<compile_context>
chip_gen: v7x
topology: tpu7x:2x2x1
jax: 0.10.0
libtpu: 0.0.40
codegen_flags: <defaults>
</compile_context>

<pallas_src>
import jax
import jax.numpy as jnp
from jax import lax
from jax.experimental import pallas as pl
from jax.experimental.pallas import tpu as pltpu

N_CLASSES = 5
L_IN = 81          # input length -> 128 * 19 = 2432 flatten features (matches fc1)
BN_EPS = 1e-5
_LANE = 128


def _cnn_kernel(xw_ref,
                w1_ref, t1_ref,
                w2a_ref, w2b_ref, t2_ref,
                w3a_ref, w3b_ref, t3_ref,
                wf1_ref, bf1_ref, wf2_ref, bf2_ref,
                out_ref):
    f32 = jnp.float32
    bf16 = jnp.bfloat16
    nl, bt = xw_ref.shape[0], xw_ref.shape[1]      # 40 pooled positions, batch tile
    n_pool2 = (nl - 2) // 2                        # 19 final pooled positions

    # ---- conv1 (k=2, 6->32) + folded BN + ReLU + maxpool(2) -----------------
    # Row r = l*bt + b.  Lanes 0:12 hold the input window of conv position 2l,
    # lanes 12:24 that of 2l+1; the block-diagonal weight emits even and odd
    # conv outputs side by side and the pool is a lane-halves max.
    xw = xw_ref[...].reshape(nl * bt, 24)
    y1 = jnp.dot(xw, w1_ref[...], preferred_element_type=f32) + t1_ref[...]
    y1 = jnp.maximum(y1, 0.0)
    p1 = jnp.maximum(y1[:, 0:32], y1[:, 32:64]).astype(bf16)    # (40*bt, 32)

    # ---- conv2 (k=2, 32->64) + BN + ReLU -------------------------------------
    # Time-major layout: "p1 at position l+1" is a whole-block aligned row slice.
    r2 = (nl - 1) * bt                                           # 39*bt valid rows
    y2 = (jnp.dot(p1[0:r2], w2a_ref[...], preferred_element_type=f32)
          + jnp.dot(p1[bt:bt + r2], w2b_ref[...], preferred_element_type=f32)
          + t2_ref[...])
    y2 = jnp.maximum(y2, 0.0).astype(bf16)                       # (39*bt, 64)

    # ---- conv3 (k=2, 64->128) + BN + ReLU ------------------------------------
    r3 = (nl - 2) * bt                                           # 38*bt valid rows
    y3 = (jnp.dot(y2[0:r3], w3a_ref[...], preferred_element_type=f32)
          + jnp.dot(y2[bt:bt + r3], w3b_ref[...], preferred_element_type=f32)
          + t3_ref[...])
    y3 = jnp.maximum(y3, 0.0)                                    # (38*bt, 128), f32

    # ---- maxpool(2) + flatten + fc1, fused -----------------------------------
    # pooled2[t] = max(y3[2t], y3[2t+1]) is a pair of aligned (bt,128) blocks;
    # fc1 = sum_t pooled2[t] @ wf1[t] with wf1 pre-permuted to PyTorch's
    # channel-major flatten order, so no 2432-lane flatten is ever built.
    acc = jnp.zeros((bt, _LANE), f32)
    for t in range(n_pool2):
        lo = y3[(2 * t) * bt:(2 * t + 1) * bt]
        hi = y3[(2 * t + 1) * bt:(2 * t + 2) * bt]
        blk = jnp.maximum(lo, hi).astype(bf16)                   # (bt, 128)
        acc = acc + jnp.dot(blk, wf1_ref[t], preferred_element_type=f32)
    h = jnp.maximum(acc + bf1_ref[...], 0.0)                     # fc1 + ReLU (Dropout = id)

    # ---- fc2 (padded to 128 output lanes) + sigmoid --------------------------
    logits = (jnp.dot(h.astype(bf16), wf2_ref[...], preferred_element_type=f32)
              + bf2_ref[...])
    out_ref[...] = jax.nn.sigmoid(logits)                        # (bt, 128)


def cnn_timeseries_forward(x_ncw, params, *, batch_tile=128):
    """x_ncw: (B, 6, 81) float32 (PyTorch NCW). Returns (B, N_Classes)."""
    B, C, L = x_ncw.shape
    assert (C, L) == (6, L_IN)
    n_cls = params['Wf2'].shape[0]
    f32, bf16 = jnp.float32, jnp.bfloat16

    # ---- static parameter preprocessing (plain JAX, outside the kernel) ------
    def bn_fold(W, b, g, be, m, v):
        # Conv1d weight (O, I, 2) -> two (I, O) taps with BN scale folded in,
        # plus the remaining per-channel shift.
        s = g / jnp.sqrt(v + BN_EPS)
        wa = (W[:, :, 0].T * s[None, :]).astype(f32)
        wb = (W[:, :, 1].T * s[None, :]).astype(f32)
        t = ((b - m) * s + be)[None, :].astype(f32)
        return wa, wb, t

    w1a, w1b, t1 = bn_fold(params['W1'], params['b1'], params['g1'],
                           params['be1'], params['m1'], params['v1'])
    w2a, w2b, t2 = bn_fold(params['W2'], params['b2'], params['g2'],
                           params['be2'], params['m2'], params['v2'])
    w3a, w3b, t3 = bn_fold(params['W3'], params['b3'], params['g3'],
                           params['be3'], params['m3'], params['v3'])

    # Block-diagonal conv1 weight: one matmul yields even & odd conv outputs.
    w1s = jnp.concatenate([w1a, w1b], axis=0)                    # (12, 32)
    zero = jnp.zeros((12, 32), f32)
    w1d = jnp.block([[w1s, zero], [zero, w1s]]).astype(bf16)     # (24, 64)
    t1d = jnp.concatenate([t1, t1], axis=1)                      # (1, 64)

    # fc1 weight permuted to (t, c, o) so sum_t pooled[t] @ wf1[t] reproduces
    # PyTorch's channel-major flatten (feature index = c*19 + t).
    wf1 = params['Wf1'].reshape(128, 128, 19).transpose(2, 1, 0).astype(bf16)  # (19,128,128)
    bf1 = params['bf1'][None, :].astype(f32)                     # (1, 128)
    # fc2 padded to 128 output lanes for lane-dense stores; wrapper slices real classes.
    wf2 = jnp.zeros((128, _LANE), f32).at[:, :n_cls].set(params['Wf2'].T).astype(bf16)
    bf2 = jnp.zeros((1, _LANE), f32).at[:, :n_cls].set(params['bf2'][None, :])

    # ---- batch tiling: >= 2 grid steps (v7x megacore), small padding ---------
    cap = max(16, (int(batch_tile) // 16) * 16)
    n_steps = max(2, -(-B // cap))
    bt = min(cap, ((-(-B // n_steps) + 15) // 16) * 16)
    b_pad = n_steps * bt

    # ---- input preprocessing: NCW -> time-major per-pooled-position windows --
    x = jnp.transpose(x_ncw, (0, 2, 1)).astype(f32)              # (B, 81, 6)
    if b_pad != B:
        x = jnp.concatenate([x, jnp.zeros((b_pad - B, L_IN, 6), f32)], axis=0)
    xa = x[:, 0:80:2, :]        # x[2l]
    xb = x[:, 1:80:2, :]        # x[2l+1]
    xc = x[:, 2:81:2, :]        # x[2l+2]
    xw = jnp.concatenate([xa, xb, xb, xc], axis=-1)              # (b_pad, 40, 24)
    xw = jnp.transpose(xw, (1, 0, 2)).astype(bf16)               # (40, b_pad, 24)

    weights = [w1d, t1d,
               w2a.astype(bf16), w2b.astype(bf16), t2,
               w3a.astype(bf16), w3b.astype(bf16), t3,
               wf1, bf1, wf2, bf2]

    def wspec(a):
        nd = a.ndim
        return pl.BlockSpec(a.shape, lambda i, _nd=nd: (0,) * _nd)

    out = pl.pallas_call(
        _cnn_kernel,
        grid=(b_pad // bt,),
        in_specs=[pl.BlockSpec((40, bt, 24), lambda i: (0, i, 0))]
                 + [wspec(a) for a in weights],
        out_specs=pl.BlockSpec((bt, _LANE), lambda i: (i, 0)),
        out_shape=jax.ShapeDtypeStruct((b_pad, _LANE), jnp.float32),
        compiler_params=pltpu.CompilerParams(
            dimension_semantics=("parallel",),
            vmem_limit_bytes=(64 if bt > 128 else 32) * 1024 * 1024,
        ),
    )(xw, *weights)
    return out[:B, :n_cls]


def init_params(key, n_classes):
    keys = iter(jax.random.split(key, 32))

    def nrm(shape, scale=1.0):
        return scale * jax.random.normal(next(keys), shape, dtype=jnp.float32)

    p = {}
    for i, (cout, cin) in enumerate([(32, 6), (64, 32), (128, 64)], start=1):
        fan_in = cin * 2
        p[f'W{i}'] = nrm((cout, cin, 2), fan_in ** -0.5)      # Conv1d weight (O, I, K)
        p[f'b{i}'] = nrm((cout,), 0.05)                       # Conv1d bias
        p[f'g{i}'] = 1.0 + nrm((cout,), 0.1)                  # BN gamma
        p[f'be{i}'] = nrm((cout,), 0.1)                       # BN beta
        p[f'm{i}'] = nrm((cout,), 0.1)                        # BN running mean
        p[f'v{i}'] = 1.0 + 0.1 * jnp.abs(nrm((cout,), 1.0))   # BN running var
    p['Wf1'] = nrm((128, 2432), 2432 ** -0.5)
    p['bf1'] = nrm((128,), 0.05)
    p['Wf2'] = nrm((n_classes, 128), 128 ** -0.5)
    p['bf2'] = nrm((n_classes,), 0.05)
    return p


def reference_forward(x, p):
    """Pure-JAX reference in PyTorch NCW conventions (eval mode), f32 precision."""
    hi = lax.Precision.HIGHEST

    def conv_bn_relu(x, W, b, g, be, m, v):
        y = lax.conv_general_dilated(
            x, W, window_strides=(1,), padding='VALID',
            dimension_numbers=('NCH', 'OIH', 'NCH'), precision=hi)
        y = y + b[None, :, None]
        y = (y - m[None, :, None]) / jnp.sqrt(v[None, :, None] + BN_EPS)
        y = y * g[None, :, None] + be[None, :, None]
        return jnp.maximum(y, 0.0)

    def maxpool2(x):
        B, C, L = x.shape
        return jnp.max(x[:, :, :(L // 2) * 2].reshape(B, C, L // 2, 2), axis=-1)

    x = conv_bn_relu(x, p['W1'], p['b1'], p['g1'], p['be1'], p['m1'], p['v1'])
    x = maxpool2(x)
    x = conv_bn_relu(x, p['W2'], p['b2'], p['g2'], p['be2'], p['m2'], p['v2'])
    x = conv_bn_relu(x, p['W3'], p['b3'], p['g3'], p['be3'], p['m3'], p['v3'])
    x = maxpool2(x)
    x = x.reshape(x.shape[0], -1)                                # (B, 2432), c-major
    x = jnp.maximum(jnp.dot(x, p['Wf1'].T, precision=hi) + p['bf1'], 0.0)
    x = jnp.dot(x, p['Wf2'].T, precision=hi) + p['bf2']
    return jax.nn.sigmoid(x)


if __name__ == "__main__":
    key = jax.random.PRNGKey(0)
    kx, kp = jax.random.split(key)
    B = 2
    x = jax.random.normal(kx, (B, 6, L_IN), dtype=jnp.float32)   # PyTorch NCW input
    params = init_params(kp, N_CLASSES)

    out = jax.block_until_ready(jax.jit(cnn_timeseries_forward)(x, params))
    ref = reference_forward(x, params)

    assert out.shape == (B, N_CLASSES), out.shape
    max_err = float(jnp.max(jnp.abs(out - ref)))
    # bf16 matmul operands with f32 accumulation vs an f32-HIGHEST reference:
    # typical max-abs error on the sigmoid outputs is ~1e-3.
    assert max_err < 1e-2, f"max abs err too large: {max_err}"
    print("KERNEL_OK")
</pallas_src>

<mosaic_0001>
module attributes {stable_mosaic.version = 11 : i64} {
  func.func @_cnn_kernel(%arg0: i32, %arg1: memref<40x16x24xbf16, #tpu.memory_space<vmem>>, %arg2: memref<24x64xbf16, #tpu.memory_space<vmem>>, %arg3: memref<1x64xf32, #tpu.memory_space<vmem>>, %arg4: memref<32x64xbf16, #tpu.memory_space<vmem>>, %arg5: memref<32x64xbf16, #tpu.memory_space<vmem>>, %arg6: memref<1x64xf32, #tpu.memory_space<vmem>>, %arg7: memref<64x128xbf16, #tpu.memory_space<vmem>>, %arg8: memref<64x128xbf16, #tpu.memory_space<vmem>>, %arg9: memref<1x128xf32, #tpu.memory_space<vmem>>, %arg10: memref<19x128x128xbf16, #tpu.memory_space<vmem>>, %arg11: memref<1x128xf32, #tpu.memory_space<vmem>>, %arg12: memref<128x128xbf16, #tpu.memory_space<vmem>>, %arg13: memref<1x128xf32, #tpu.memory_space<vmem>>, %arg14: memref<16x128xf32, #tpu.memory_space<vmem>>) attributes {dimension_semantics = [#tpu.dimension_semantics<parallel>], iteration_bounds = array<i64: 2>, scalar_prefetch = 0 : i64, scratch_operands = 0 : i64, tpu.core_type = #tpu.core_type<tc>, window_params = [{transform_indices = @transform_0, window_bounds = array<i64: 40, 16, 24>}, {pipeline_mode = #tpu.pipeline_mode<synchronous>, transform_indices = @transform_1, window_bounds = array<i64: 24, 64>}, {pipeline_mode = #tpu.pipeline_mode<synchronous>, transform_indices = @transform_2, window_bounds = array<i64: 1, 64>}, {pipeline_mode = #tpu.pipeline_mode<synchronous>, transform_indices = @transform_3, window_bounds = array<i64: 32, 64>}, {pipeline_mode = #tpu.pipeline_mode<synchronous>, transform_indices = @transform_4, window_bounds = array<i64: 32, 64>}, {pipeline_mode = #tpu.pipeline_mode<synchronous>, transform_indices = @transform_5, window_bounds = array<i64: 1, 64>}, {pipeline_mode = #tpu.pipeline_mode<synchronous>, transform_indices = @transform_6, window_bounds = array<i64: 64, 128>}, {pipeline_mode = #tpu.pipeline_mode<synchronous>, transform_indices = @transform_7, window_bounds = array<i64: 64, 128>}, {pipeline_mode = #tpu.pipeline_mode<synchronous>, transform_indices = @transform_8, window_bounds = array<i64: 1, 128>}, {pipeline_mode = #tpu.pipeline_mode<synchronous>, transform_indices = @transform_9, window_bounds = array<i64: 19, 128, 128>}, {pipeline_mode = #tpu.pipeline_mode<synchronous>, transform_indices = @transform_10, window_bounds = array<i64: 1, 128>}, {pipeline_mode = #tpu.pipeline_mode<synchronous>, transform_indices = @transform_11, window_bounds = array<i64: 128, 128>}, {pipeline_mode = #tpu.pipeline_mode<synchronous>, transform_indices = @transform_12, window_bounds = array<i64: 1, 128>}, {transform_indices = @transform_13, window_bounds = array<i64: 16, 128>}]} {
    %c0 = arith.constant 0 : index
    %c0_0 = arith.constant 0 : index
    %c0_1 = arith.constant 0 : index
    %0 = vector.load %arg1[%c0, %c0_0, %c0_1] : memref<40x16x24xbf16, #tpu.memory_space<vmem>>, vector<40x16x24xbf16>
    %1 = vector.shape_cast %0 : vector<40x16x24xbf16> to vector<640x24xbf16>
    %c0_2 = arith.constant 0 : index
    %c0_3 = arith.constant 0 : index
    %2 = vector.load %arg2[%c0_2, %c0_3] : memref<24x64xbf16, #tpu.memory_space<vmem>>, vector<24x64xbf16>
    %cst = arith.constant dense<0.000000e+00> : vector<640x64xf32>
    %3 = tpu.matmul %1, %2, %cst {dimension_numbers = #tpu.dot_dimension_numbers<[1], [0], [0], [1], [0, 0, 1, 1], [], []>} : vector<640x24xbf16>, vector<24x64xbf16>, vector<640x64xf32> -> vector<640x64xf32>
    %c0_4 = arith.constant 0 : index
    %c0_5 = arith.constant 0 : index
    %4 = vector.load %arg3[%c0_4, %c0_5] : memref<1x64xf32, #tpu.memory_space<vmem>>, vector<1x64xf32>
    %5 = vector.broadcast %4 : vector<1x64xf32> to vector<640x64xf32>
    %6 = arith.addf %3, %5 : vector<640x64xf32>
    %cst_6 = arith.constant 0.000000e+00 : f32
    %7 = vector.broadcast %cst_6 : f32 to vector<640x64xf32>
    %8 = arith.maximumf %6, %7 : vector<640x64xf32>
    %9 = vector.extract_strided_slice %8 {offsets = [0, 0], sizes = [640, 32], strides = [1, 1]} : vector<640x64xf32> to vector<640x32xf32>
    %10 = vector.extract_strided_slice %8 {offsets = [0, 32], sizes = [640, 32], strides = [1, 1]} : vector<640x64xf32> to vector<640x32xf32>
    %11 = arith.maximumf %9, %10 : vector<640x32xf32>
    %12 = arith.truncf %11 : vector<640x32xf32> to vector<640x32xbf16>
    %13 = vector.extract_strided_slice %12 {offsets = [0, 0], sizes = [624, 32], strides = [1, 1]} : vector<640x32xbf16> to vector<624x32xbf16>
    %c0_7 = arith.constant 0 : index
    %c0_8 = arith.constant 0 : index
    %14 = vector.load %arg4[%c0_7, %c0_8] : memref<32x64xbf16, #tpu.memory_space<vmem>>, vector<32x64xbf16>
    %cst_9 = arith.constant dense<0.000000e+00> : vector<624x64xf32>
    %15 = tpu.matmul %13, %14, %cst_9 {dimension_numbers = #tpu.dot_dimension_numbers<[1], [0], [0], [1], [0, 0, 1, 1], [], []>} : vector<624x32xbf16>, vector<32x64xbf16>, vector<624x64xf32> -> vector<624x64xf32>
    %16 = vector.extract_strided_slice %12 {offsets = [16, 0], sizes = [624, 32], strides = [1, 1]} : vector<640x32xbf16> to vector<624x32xbf16>
    %c0_10 = arith.constant 0 : index
    %c0_11 = arith.constant 0 : index
    %17 = vector.load %arg5[%c0_10, %c0_11] : memref<32x64xbf16, #tpu.memory_space<vmem>>, vector<32x64xbf16>
    %cst_12 = arith.constant dense<0.000000e+00> : vector<624x64xf32>
    %18 = tpu.matmul %16, %17, %cst_12 {dimension_numbers = #tpu.dot_dimension_numbers<[1], [0], [0], [1], [0, 0, 1, 1], [], []>} : vector<624x32xbf16>, vector<32x64xbf16>, vector<624x64xf32> -> vector<624x64xf32>
    %19 = arith.addf %15, %18 : vector<624x64xf32>
    %c0_13 = arith.constant 0 : index
    %c0_14 = arith.constant 0 : index
    %20 = vector.load %arg6[%c0_13, %c0_14] : memref<1x64xf32, #tpu.memory_space<vmem>>, vector<1x64xf32>
    %21 = vector.broadcast %20 : vector<1x64xf32> to vector<624x64xf32>
    %22 = arith.addf %19, %21 : vector<624x64xf32>
    %cst_15 = arith.constant 0.000000e+00 : f32
    %23 = vector.broadcast %cst_15 : f32 to vector<624x64xf32>
    %24 = arith.maximumf %22, %23 : vector<624x64xf32>
    %25 = arith.truncf %24 : vector<624x64xf32> to vector<624x64xbf16>
    %26 = vector.extract_strided_slice %25 {offsets = [0, 0], sizes = [608, 64], strides = [1, 1]} : vector<624x64xbf16> to vector<608x64xbf16>
    %c0_16 = arith.constant 0 : index
    %c0_17 = arith.constant 0 : index
    %27 = vector.load %arg7[%c0_16, %c0_17] : memref<64x128xbf16, #tpu.memory_space<vmem>>, vector<64x128xbf16>
    %cst_18 = arith.constant dense<0.000000e+00> : vector<608x128xf32>
    %28 = tpu.matmul %26, %27, %cst_18 {dimension_numbers = #tpu.dot_dimension_numbers<[1], [0], [0], [1], [0, 0, 1, 1], [], []>} : vector<608x64xbf16>, vector<64x128xbf16>, vector<608x128xf32> -> vector<608x128xf32>
    %29 = vector.extract_strided_slice %25 {offsets = [16, 0], sizes = [608, 64], strides = [1, 1]} : vector<624x64xbf16> to vector<608x64xbf16>
    %c0_19 = arith.constant 0 : index
    %c0_20 = arith.constant 0 : index
    %30 = vector.load %arg8[%c0_19, %c0_20] : memref<64x128xbf16, #tpu.memory_space<vmem>>, vector<64x128xbf16>
    %cst_21 = arith.constant dense<0.000000e+00> : vector<608x128xf32>
    %31 = tpu.matmul %29, %30, %cst_21 {dimension_numbers = #tpu.dot_dimension_numbers<[1], [0], [0], [1], [0, 0, 1, 1], [], []>} : vector<608x64xbf16>, vector<64x128xbf16>, vector<608x128xf32> -> vector<608x128xf32>
    %32 = arith.addf %28, %31 : vector<608x128xf32>
    %c0_22 = arith.constant 0 : index
    %c0_23 = arith.constant 0 : index
    %33 = vector.load %arg9[%c0_22, %c0_23] : memref<1x128xf32, #tpu.memory_space<vmem>>, vector<1x128xf32>
    %34 = vector.broadcast %33 : vector<1x128xf32> to vector<608x128xf32>
    %35 = arith.addf %32, %34 : vector<608x128xf32>
    %cst_24 = arith.constant 0.000000e+00 : f32
    %36 = vector.broadcast %cst_24 : f32 to vector<608x128xf32>
    %37 = arith.maximumf %35, %36 : vector<608x128xf32>
    %cst_25 = arith.constant 0.000000e+00 : f32
    %38 = vector.broadcast %cst_25 : f32 to vector<16x128xf32>
    %39 = vector.extract_strided_slice %37 {offsets = [0, 0], sizes = [16, 128], strides = [1, 1]} : vector<608x128xf32> to vector<16x128xf32>
    %40 = vector.extract_strided_slice %37 {offsets = [16, 0], sizes = [16, 128], strides = [1, 1]} : vector<608x128xf32> to vector<16x128xf32>
    %41 = arith.maximumf %39, %40 : vector<16x128xf32>
    %42 = arith.truncf %41 : vector<16x128xf32> to vector<16x128xbf16>
    %c0_26 = arith.constant 0 : index
    %c0_27 = arith.constant 0 : index
    %c0_28 = arith.constant 0 : index
    %43 = vector.load %arg10[%c0_26, %c0_27, %c0_28] : memref<19x128x128xbf16, #tpu.memory_space<vmem>>, vector<1x128x128xbf16>
    %44 = vector.shape_cast %43 : vector<1x128x128xbf16> to vector<128x128xbf16>
    %cst_29 = arith.constant dense<0.000000e+00> : vector<16x128xf32>
    %45 = tpu.matmul %42, %44, %cst_29 {dimension_numbers = #tpu.dot_dimension_numbers<[1], [0], [0], [1], [0, 0, 1, 1], [], []>} : vector<16x128xbf16>, vector<128x128xbf16>, vector<16x128xf32> -> vector<16x128xf32>
    %46 = arith.addf %38, %45 : vector<16x128xf32>
    %47 = vector.extract_strided_slice %37 {offsets = [32, 0], sizes = [16, 128], strides = [1, 1]} : vector<608x128xf32> to vector<16x128xf32>
    %48 = vector.extract_strided_slice %37 {offsets = [48, 0], sizes = [16, 128], strides = [1, 1]} : vector<608x128xf32> to vector<16x128xf32>
    %49 = arith.maximumf %47, %48 : vector<16x128xf32>
    %50 = arith.truncf %49 : vector<16x128xf32> to vector<16x128xbf16>
    %c1 = arith.constant 1 : index
    %c0_30 = arith.constant 0 : index
    %c0_31 = arith.constant 0 : index
    %51 = vector.load %arg10[%c1, %c0_30, %c0_31] : memref<19x128x128xbf16, #tpu.memory_space<vmem>>, vector<1x128x128xbf16>
    %52 = vector.shape_cast %51 : vector<1x128x128xbf16> to vector<128x128xbf16>
    %cst_32 = arith.constant dense<0.000000e+00> : vector<16x128xf32>
    %53 = tpu.matmul %50, %52, %cst_32 {dimension_numbers = #tpu.dot_dimension_numbers<[1], [0], [0], [1], [0, 0, 1, 1], [], []>} : vector<16x128xbf16>, vector<128x128xbf16>, vector<16x128xf32> -> vector<16x128xf32>
    %54 = arith.addf %46, %53 : vector<16x128xf32>
    %55 = vector.extract_strided_slice %37 {offsets = [64, 0], sizes = [16, 128], strides = [1, 1]} : vector<608x128xf32> to vector<16x128xf32>
    %56 = vector.extract_strided_slice %37 {offsets = [80, 0], sizes = [16, 128], strides = [1, 1]} : vector<608x128xf32> to vector<16x128xf32>
    %57 = arith.maximumf %55, %56 : vector<16x128xf32>
    %58 = arith.truncf %57 : vector<16x128xf32> to vector<16x128xbf16>
    %c2 = arith.constant 2 : index
    %c0_33 = arith.constant 0 : index
    %c0_34 = arith.constant 0 : index
    %59 = vector.load %arg10[%c2, %c0_33, %c0_34] : memref<19x128x128xbf16, #tpu.memory_space<vmem>>, vector<1x128x128xbf16>
    %60 = vector.shape_cast %59 : vector<1x128x128xbf16> to vector<128x128xbf16>
    %cst_35 = arith.constant dense<0.000000e+00> : vector<16x128xf32>
    %61 = tpu.matmul %58, %60, %cst_35 {dimension_numbers = #tpu.dot_dimension_numbers<[1], [0], [0], [1], [0, 0, 1, 1], [], []>} : vector<16x128xbf16>, vector<128x128xbf16>, vector<16x128xf32> -> vector<16x128xf32>
    %62 = arith.addf %54, %61 : vector<16x128xf32>
    %63 = vector.extract_strided_slice %37 {offsets = [96, 0], sizes = [16, 128], strides = [1, 1]} : vector<608x128xf32> to vector<16x128xf32>
    %64 = vector.extract_strided_slice %37 {offsets = [112, 0], sizes = [16, 128], strides = [1, 1]} : vector<608x128xf32> to vector<16x128xf32>
    %65 = arith.maximumf %63, %64 : vector<16x128xf32>
    %66 = arith.truncf %65 : vector<16x128xf32> to vector<16x128xbf16>
    %c3 = arith.constant 3 : index
    %c0_36 = arith.constant 0 : index
    %c0_37 = arith.constant 0 : index
    %67 = vector.load %arg10[%c3, %c0_36, %c0_37] : memref<19x128x128xbf16, #tpu.memory_space<vmem>>, vector<1x128x128xbf16>
    %68 = vector.shape_cast %67 : vector<1x128x128xbf16> to vector<128x128xbf16>
    %cst_38 = arith.constant dense<0.000000e+00> : vector<16x128xf32>
    %69 = tpu.matmul %66, %68, %cst_38 {dimension_numbers = #tpu.dot_dimension_numbers<[1], [0], [0], [1], [0, 0, 1, 1], [], []>} : vector<16x128xbf16>, vector<128x128xbf16>, vector<16x128xf32> -> vector<16x128xf32>
    %70 = arith.addf %62, %69 : vector<16x128xf32>
    %71 = vector.extract_strided_slice %37 {offsets = [128, 0], sizes = [16, 128], strides = [1, 1]} : vector<608x128xf32> to vector<16x128xf32>
    %72 = vector.extract_strided_slice %37 {offsets = [144, 0], sizes = [16, 128], strides = [1, 1]} : vector<608x128xf32> to vector<16x128xf32>
    %73 = arith.maximumf %71, %72 : vector<16x128xf32>
    %74 = arith.truncf %73 : vector<16x128xf32> to vector<16x128xbf16>
    %c4 = arith.constant 4 : index
    %c0_39 = arith.constant 0 : index
    %c0_40 = arith.constant 0 : index
    %75 = vector.load %arg10[%c4, %c0_39, %c0_40] : memref<19x128x128xbf16, #tpu.memory_space<vmem>>, vector<1x128x128xbf16>
    %76 = vector.shape_cast %75 : vector<1x128x128xbf16> to vector<128x128xbf16>
    %cst_41 = arith.constant dense<0.000000e+00> : vector<16x128xf32>
    %77 = tpu.matmul %74, %76, %cst_41 {dimension_numbers = #tpu.dot_dimension_numbers<[1], [0], [0], [1], [0, 0, 1, 1], [], []>} : vector<16x128xbf16>, vector<128x128xbf16>, vector<16x128xf32> -> vector<16x128xf32>
    %78 = arith.addf %70, %77 : vector<16x128xf32>
    %79 = vector.extract_strided_slice %37 {offsets = [160, 0], sizes = [16, 128], strides = [1, 1]} : vector<608x128xf32> to vector<16x128xf32>
    %80 = vector.extract_strided_slice %37 {offsets = [176, 0], sizes = [16, 128], strides = [1, 1]} : vector<608x128xf32> to vector<16x128xf32>
    %81 = arith.maximumf %79, %80 : vector<16x128xf32>
    %82 = arith.truncf %81 : vector<16x128xf32> to vector<16x128xbf16>
    %c5 = arith.constant 5 : index
    %c0_42 = arith.constant 0 : index
    %c0_43 = arith.constant 0 : index
    %83 = vector.load %arg10[%c5, %c0_42, %c0_43] : memref<19x128x128xbf16, #tpu.memory_space<vmem>>, vector<1x128x128xbf16>
    %84 = vector.shape_cast %83 : vector<1x128x128xbf16> to vector<128x128xbf16>
    %cst_44 = arith.constant dense<0.000000e+00> : vector<16x128xf32>
    %85 = tpu.matmul %82, %84, %cst_44 {dimension_numbers = #tpu.dot_dimension_numbers<[1], [0], [0], [1], [0, 0, 1, 1], [], []>} : vector<16x128xbf16>, vector<128x128xbf16>, vector<16x128xf32> -> vector<16x128xf32>
    %86 = arith.addf %78, %85 : vector<16x128xf32>
    %87 = vector.extract_strided_slice %37 {offsets = [192, 0], sizes = [16, 128], strides = [1, 1]} : vector<608x128xf32> to vector<16x128xf32>
    %88 = vector.extract_strided_slice %37 {offsets = [208, 0], sizes = [16, 128], strides = [1, 1]} : vector<608x128xf32> to vector<16x128xf32>
    %89 = arith.maximumf %87, %88 : vector<16x128xf32>
    %90 = arith.truncf %89 : vector<16x128xf32> to vector<16x128xbf16>
    %c6 = arith.constant 6 : index
    %c0_45 = arith.constant 0 : index
    %c0_46 = arith.constant 0 : index
    %91 = vector.load %arg10[%c6, %c0_45, %c0_46] : memref<19x128x128xbf16, #tpu.memory_space<vmem>>, vector<1x128x128xbf16>
    %92 = vector.shape_cast %91 : vector<1x128x128xbf16> to vector<128x128xbf16>
    %cst_47 = arith.constant dense<0.000000e+00> : vector<16x128xf32>
    %93 = tpu.matmul %90, %92, %cst_47 {dimension_numbers = #tpu.dot_dimension_numbers<[1], [0], [0], [1], [0, 0, 1, 1], [], []>} : vector<16x128xbf16>, vector<128x128xbf16>, vector<16x128xf32> -> vector<16x128xf32>
    %94 = arith.addf %86, %93 : vector<16x128xf32>
    %95 = vector.extract_strided_slice %37 {offsets = [224, 0], sizes = [16, 128], strides = [1, 1]} : vector<608x128xf32> to vector<16x128xf32>
    %96 = vector.extract_strided_slice %37 {offsets = [240, 0], sizes = [16, 128], strides = [1, 1]} : vector<608x128xf32> to vector<16x128xf32>
    %97 = arith.maximumf %95, %96 : vector<16x128xf32>
    %98 = arith.truncf %97 : vector<16x128xf32> to vector<16x128xbf16>
    %c7 = arith.constant 7 : index
    %c0_48 = arith.constant 0 : index
    %c0_49 = arith.constant 0 : index
    %99 = vector.load %arg10[%c7, %c0_48, %c0_49] : memref<19x128x128xbf16, #tpu.memory_space<vmem>>, vector<1x128x128xbf16>
    %100 = vector.shape_cast %99 : vector<1x128x128xbf16> to vector<128x128xbf16>
    %cst_50 = arith.constant dense<0.000000e+00> : vector<16x128xf32>
    %101 = tpu.matmul %98, %100, %cst_50 {dimension_numbers = #tpu.dot_dimension_numbers<[1], [0], [0], [1], [0, 0, 1, 1], [], []>} : vector<16x128xbf16>, vector<128x128xbf16>, vector<16x128xf32> -> vector<16x128xf32>
    %102 = arith.addf %94, %101 : vector<16x128xf32>
    %103 = vector.extract_strided_slice %37 {offsets = [256, 0], sizes = [16, 128], strides = [1, 1]} : vector<608x128xf32> to vector<16x128xf32>
    %104 = vector.extract_strided_slice %37 {offsets = [272, 0], sizes = [16, 128], strides = [1, 1]} : vector<608x128xf32> to vector<16x128xf32>
    %105 = arith.maximumf %103, %104 : vector<16x128xf32>
    %106 = arith.truncf %105 : vector<16x128xf32> to vector<16x128xbf16>
    %c8 = arith.constant 8 : index
    %c0_51 = arith.constant 0 : index
    %c0_52 = arith.constant 0 : index
    %107 = vector.load %arg10[%c8, %c0_51, %c0_52] : memref<19x128x128xbf16, #tpu.memory_space<vmem>>, vector<1x128x128xbf16>
    %108 = vector.shape_cast %107 : vector<1x128x128xbf16> to vector<128x128xbf16>
    %cst_53 = arith.constant dense<0.000000e+00> : vector<16x128xf32>
    %109 = tpu.matmul %106, %108, %cst_53 {dimension_numbers = #tpu.dot_dimension_numbers<[1], [0], [0], [1], [0, 0, 1, 1], [], []>} : vector<16x128xbf16>, vector<128x128xbf16>, vector<16x128xf32> -> vector<16x128xf32>
    %110 = arith.addf %102, %109 : vector<16x128xf32>
    %111 = vector.extract_strided_slice %37 {offsets = [288, 0], sizes = [16, 128], strides = [1, 1]} : vector<608x128xf32> to vector<16x128xf32>
    %112 = vector.extract_strided_slice %37 {offsets = [304, 0], sizes = [16, 128], strides = [1, 1]} : vector<608x128xf32> to vector<16x128xf32>
    %113 = arith.maximumf %111, %112 : vector<16x128xf32>
    %114 = arith.truncf %113 : vector<16x128xf32> to vector<16x128xbf16>
    %c9 = arith.constant 9 : index
    %c0_54 = arith.constant 0 : index
    %c0_55 = arith.constant 0 : index
    %115 = vector.load %arg10[%c9, %c0_54, %c0_55] : memref<19x128x128xbf16, #tpu.memory_space<vmem>>, vector<1x128x128xbf16>
    %116 = vector.shape_cast %115 : vector<1x128x128xbf16> to vector<128x128xbf16>
    %cst_56 = arith.constant dense<0.000000e+00> : vector<16x128xf32>
    %117 = tpu.matmul %114, %116, %cst_56 {dimension_numbers = #tpu.dot_dimension_numbers<[1], [0], [0], [1], [0, 0, 1, 1], [], []>} : vector<16x128xbf16>, vector<128x128xbf16>, vector<16x128xf32> -> vector<16x128xf32>
    %118 = arith.addf %110, %117 : vector<16x128xf32>
    %119 = vector.extract_strided_slice %37 {offsets = [320, 0], sizes = [16, 128], strides = [1, 1]} : vector<608x128xf32> to vector<16x128xf32>
    %120 = vector.extract_strided_slice %37 {offsets = [336, 0], sizes = [16, 128], strides = [1, 1]} : vector<608x128xf32> to vector<16x128xf32>
    %121 = arith.maximumf %119, %120 : vector<16x128xf32>
    %122 = arith.truncf %121 : vector<16x128xf32> to vector<16x128xbf16>
    %c10 = arith.constant 10 : index
    %c0_57 = arith.constant 0 : index
    %c0_58 = arith.constant 0 : index
    %123 = vector.load %arg10[%c10, %c0_57, %c0_58] : memref<19x128x128xbf16, #tpu.memory_space<vmem>>, vector<1x128x128xbf16>
    %124 = vector.shape_cast %123 : vector<1x128x128xbf16> to vector<128x128xbf16>
    %cst_59 = arith.constant dense<0.000000e+00> : vector<16x128xf32>
    %125 = tpu.matmul %122, %124, %cst_59 {dimension_numbers = #tpu.dot_dimension_numbers<[1], [0], [0], [1], [0, 0, 1, 1], [], []>} : vector<16x128xbf16>, vector<128x128xbf16>, vector<16x128xf32> -> vector<16x128xf32>
    %126 = arith.addf %118, %125 : vector<16x128xf32>
    %127 = vector.extract_strided_slice %37 {offsets = [352, 0], sizes = [16, 128], strides = [1, 1]} : vector<608x128xf32> to vector<16x128xf32>
    %128 = vector.extract_strided_slice %37 {offsets = [368, 0], sizes = [16, 128], strides = [1, 1]} : vector<608x128xf32> to vector<16x128xf32>
    %129 = arith.maximumf %127, %128 : vector<16x128xf32>
    %130 = arith.truncf %129 : vector<16x128xf32> to vector<16x128xbf16>
    %c11 = arith.constant 11 : index
    %c0_60 = arith.constant 0 : index
    %c0_61 = arith.constant 0 : index
    %131 = vector.load %arg10[%c11, %c0_60, %c0_61] : memref<19x128x128xbf16, #tpu.memory_space<vmem>>, vector<1x128x128xbf16>
    %132 = vector.shape_cast %131 : vector<1x128x128xbf16> to vector<128x128xbf16>
    %cst_62 = arith.constant dense<0.000000e+00> : vector<16x128xf32>
    %133 = tpu.matmul %130, %132, %cst_62 {dimension_numbers = #tpu.dot_dimension_numbers<[1], [0], [0], [1], [0, 0, 1, 1], [], []>} : vector<16x128xbf16>, vector<128x128xbf16>, vector<16x128xf32> -> vector<16x128xf32>
    %134 = arith.addf %126, %133 : vector<16x128xf32>
    %135 = vector.extract_strided_slice %37 {offsets = [384, 0], sizes = [16, 128], strides = [1, 1]} : vector<608x128xf32> to vector<16x128xf32>
    %136 = vector.extract_strided_slice %37 {offsets = [400, 0], sizes = [16, 128], strides = [1, 1]} : vector<608x128xf32> to vector<16x128xf32>
    %137 = arith.maximumf %135, %136 : vector<16x128xf32>
    %138 = arith.truncf %137 : vector<16x128xf32> to vector<16x128xbf16>
    %c12 = arith.constant 12 : index
    %c0_63 = arith.constant 0 : index
    %c0_64 = arith.constant 0 : index
    %139 = vector.load %arg10[%c12, %c0_63, %c0_64] : memref<19x128x128xbf16, #tpu.memory_space<vmem>>, vector<1x128x128xbf16>
    %140 = vector.shape_cast %139 : vector<1x128x128xbf16> to vector<128x128xbf16>
    %cst_65 = arith.constant dense<0.000000e+00> : vector<16x128xf32>
    %141 = tpu.matmul %138, %140, %cst_65 {dimension_numbers = #tpu.dot_dimension_numbers<[1], [0], [0], [1], [0, 0, 1, 1], [], []>} : vector<16x128xbf16>, vector<128x128xbf16>, vector<16x128xf32> -> vector<16x128xf32>
    %142 = arith.addf %134, %141 : vector<16x128xf32>
    %143 = vector.extract_strided_slice %37 {offsets = [416, 0], sizes = [16, 128], strides = [1, 1]} : vector<608x128xf32> to vector<16x128xf32>
    %144 = vector.extract_strided_slice %37 {offsets = [432, 0], sizes = [16, 128], strides = [1, 1]} : vector<608x128xf32> to vector<16x128xf32>
    %145 = arith.maximumf %143, %144 : vector<16x128xf32>
    %146 = arith.truncf %145 : vector<16x128xf32> to vector<16x128xbf16>
    %c13 = arith.constant 13 : index
    %c0_66 = arith.constant 0 : index
    %c0_67 = arith.constant 0 : index
    %147 = vector.load %arg10[%c13, %c0_66, %c0_67] : memref<19x128x128xbf16, #tpu.memory_space<vmem>>, vector<1x128x128xbf16>
    %148 = vector.shape_cast %147 : vector<1x128x128xbf16> to vector<128x128xbf16>
    %cst_68 = arith.constant dense<0.000000e+00> : vector<16x128xf32>
    %149 = tpu.matmul %146, %148, %cst_68 {dimension_numbers = #tpu.dot_dimension_numbers<[1], [0], [0], [1], [0, 0, 1, 1], [], []>} : vector<16x128xbf16>, vector<128x128xbf16>, vector<16x128xf32> -> vector<16x128xf32>
    %150 = arith.addf %142, %149 : vector<16x128xf32>
    %151 = vector.extract_strided_slice %37 {offsets = [448, 0], sizes = [16, 128], strides = [1, 1]} : vector<608x128xf32> to vector<16x128xf32>
    %152 = vector.extract_strided_slice %37 {offsets = [464, 0], sizes = [16, 128], strides = [1, 1]} : vector<608x128xf32> to vector<16x128xf32>
    %153 = arith.maximumf %151, %152 : vector<16x128xf32>
    %154 = arith.truncf %153 : vector<16x128xf32> to vector<16x128xbf16>
    %c14 = arith.constant 14 : index
    %c0_69 = arith.constant 0 : index
    %c0_70 = arith.constant 0 : index
    %155 = vector.load %arg10[%c14, %c0_69, %c0_70] : memref<19x128x128xbf16, #tpu.memory_space<vmem>>, vector<1x128x128xbf16>
    %156 = vector.shape_cast %155 : vector<1x128x128xbf16> to vector<128x128xbf16>
    %cst_71 = arith.constant dense<0.000000e+00> : vector<16x128xf32>
    %157 = tpu.matmul %154, %156, %cst_71 {dimension_numbers = #tpu.dot_dimension_numbers<[1], [0], [0], [1], [0, 0, 1, 1], [], []>} : vector<16x128xbf16>, vector<128x128xbf16>, vector<16x128xf32> -> vector<16x128xf32>
    %158 = arith.addf %150, %157 : vector<16x128xf32>
    %159 = vector.extract_strided_slice %37 {offsets = [480, 0], sizes = [16, 128], strides = [1, 1]} : vector<608x128xf32> to vector<16x128xf32>
    %160 = vector.extract_strided_slice %37 {offsets = [496, 0], sizes = [16, 128], strides = [1, 1]} : vector<608x128xf32> to vector<16x128xf32>
    %161 = arith.maximumf %159, %160 : vector<16x128xf32>
    %162 = arith.truncf %161 : vector<16x128xf32> to vector<16x128xbf16>
    %c15 = arith.constant 15 : index
    %c0_72 = arith.constant 0 : index
    %c0_73 = arith.constant 0 : index
    %163 = vector.load %arg10[%c15, %c0_72, %c0_73] : memref<19x128x128xbf16, #tpu.memory_space<vmem>>, vector<1x128x128xbf16>
    %164 = vector.shape_cast %163 : vector<1x128x128xbf16> to vector<128x128xbf16>
    %cst_74 = arith.constant dense<0.000000e+00> : vector<16x128xf32>
    %165 = tpu.matmul %162, %164, %cst_74 {dimension_numbers = #tpu.dot_dimension_numbers<[1], [0], [0], [1], [0, 0, 1, 1], [], []>} : vector<16x128xbf16>, vector<128x128xbf16>, vector<16x128xf32> -> vector<16x128xf32>
    %166 = arith.addf %158, %165 : vector<16x128xf32>
    %167 = vector.extract_strided_slice %37 {offsets = [512, 0], sizes = [16, 128], strides = [1, 1]} : vector<608x128xf32> to vector<16x128xf32>
    %168 = vector.extract_strided_slice %37 {offsets = [528, 0], sizes = [16, 128], strides = [1, 1]} : vector<608x128xf32> to vector<16x128xf32>
    %169 = arith.maximumf %167, %168 : vector<16x128xf32>
    %170 = arith.truncf %169 : vector<16x128xf32> to vector<16x128xbf16>
    %c16 = arith.constant 16 : index
    %c0_75 = arith.constant 0 : index
    %c0_76 = arith.constant 0 : index
    %171 = vector.load %arg10[%c16, %c0_75, %c0_76] : memref<19x128x128xbf16, #tpu.memory_space<vmem>>, vector<1x128x128xbf16>
    %172 = vector.shape_cast %171 : vector<1x128x128xbf16> to vector<128x128xbf16>
    %cst_77 = arith.constant dense<0.000000e+00> : vector<16x128xf32>
    %173 = tpu.matmul %170, %172, %cst_77 {dimension_numbers = #tpu.dot_dimension_numbers<[1], [0], [0], [1], [0, 0, 1, 1], [], []>} : vector<16x128xbf16>, vector<128x128xbf16>, vector<16x128xf32> -> vector<16x128xf32>
    %174 = arith.addf %166, %173 : vector<16x128xf32>
    %175 = vector.extract_strided_slice %37 {offsets = [544, 0], sizes = [16, 128], strides = [1, 1]} : vector<608x128xf32> to vector<16x128xf32>
    %176 = vector.extract_strided_slice %37 {offsets = [560, 0], sizes = [16, 128], strides = [1, 1]} : vector<608x128xf32> to vector<16x128xf32>
    %177 = arith.maximumf %175, %176 : vector<16x128xf32>
    %178 = arith.truncf %177 : vector<16x128xf32> to vector<16x128xbf16>
    %c17 = arith.constant 17 : index
    %c0_78 = arith.constant 0 : index
    %c0_79 = arith.constant 0 : index
    %179 = vector.load %arg10[%c17, %c0_78, %c0_79] : memref<19x128x128xbf16, #tpu.memory_space<vmem>>, vector<1x128x128xbf16>
    %180 = vector.shape_cast %179 : vector<1x128x128xbf16> to vector<128x128xbf16>
    %cst_80 = arith.constant dense<0.000000e+00> : vector<16x128xf32>
    %181 = tpu.matmul %178, %180, %cst_80 {dimension_numbers = #tpu.dot_dimension_numbers<[1], [0], [0], [1], [0, 0, 1, 1], [], []>} : vector<16x128xbf16>, vector<128x128xbf16>, vector<16x128xf32> -> vector<16x128xf32>
    %182 = arith.addf %174, %181 : vector<16x128xf32>
    %183 = vector.extract_strided_slice %37 {offsets = [576, 0], sizes = [16, 128], strides = [1, 1]} : vector<608x128xf32> to vector<16x128xf32>
    %184 = vector.extract_strided_slice %37 {offsets = [592, 0], sizes = [16, 128], strides = [1, 1]} : vector<608x128xf32> to vector<16x128xf32>
    %185 = arith.maximumf %183, %184 : vector<16x128xf32>
    %186 = arith.truncf %185 : vector<16x128xf32> to vector<16x128xbf16>
    %c18 = arith.constant 18 : index
    %c0_81 = arith.constant 0 : index
    %c0_82 = arith.constant 0 : index
    %187 = vector.load %arg10[%c18, %c0_81, %c0_82] : memref<19x128x128xbf16, #tpu.memory_space<vmem>>, vector<1x128x128xbf16>
    %188 = vector.shape_cast %187 : vector<1x128x128xbf16> to vector<128x128xbf16>
    %cst_83 = arith.constant dense<0.000000e+00> : vector<16x128xf32>
    %189 = tpu.matmul %186, %188, %cst_83 {dimension_numbers = #tpu.dot_dimension_numbers<[1], [0], [0], [1], [0, 0, 1, 1], [], []>} : vector<16x128xbf16>, vector<128x128xbf16>, vector<16x128xf32> -> vector<16x128xf32>
    %190 = arith.addf %182, %189 : vector<16x128xf32>
    %c0_84 = arith.constant 0 : index
    %c0_85 = arith.constant 0 : index
    %191 = vector.load %arg11[%c0_84, %c0_85] : memref<1x128xf32, #tpu.memory_space<vmem>>, vector<1x128xf32>
    %192 = vector.broadcast %191 : vector<1x128xf32> to vector<16x128xf32>
    %193 = arith.addf %190, %192 : vector<16x128xf32>
    %cst_86 = arith.constant 0.000000e+00 : f32
    %194 = vector.broadcast %cst_86 : f32 to vector<16x128xf32>
    %195 = arith.maximumf %193, %194 : vector<16x128xf32>
    %196 = arith.truncf %195 : vector<16x128xf32> to vector<16x128xbf16>
    %c0_87 = arith.constant 0 : index
    %c0_88 = arith.constant 0 : index
    %197 = vector.load %arg12[%c0_87, %c0_88] : memref<128x128xbf16, #tpu.memory_space<vmem>>, vector<128x128xbf16>
    %cst_89 = arith.constant dense<0.000000e+00> : vector<16x128xf32>
    %198 = tpu.matmul %196, %197, %cst_89 {dimension_numbers = #tpu.dot_dimension_numbers<[1], [0], [0], [1], [0, 0, 1, 1], [], []>} : vector<16x128xbf16>, vector<128x128xbf16>, vector<16x128xf32> -> vector<16x128xf32>
    %c0_90 = arith.constant 0 : index
    %c0_91 = arith.constant 0 : index
    %199 = vector.load %arg13[%c0_90, %c0_91] : memref<1x128xf32, #tpu.memory_space<vmem>>, vector<1x128xf32>
    %200 = vector.broadcast %199 : vector<1x128xf32> to vector<16x128xf32>
    %201 = arith.addf %198, %200 : vector<16x128xf32>
    %202 = arith.negf %201 : vector<16x128xf32>
    %203 = math.exp %202 : vector<16x128xf32>
    %cst_92 = arith.constant 1.000000e+00 : f32
    %204 = vector.broadcast %cst_92 : f32 to vector<16x128xf32>
    %205 = arith.addf %204, %203 : vector<16x128xf32>
    %206 = arith.divf %204, %205 : vector<16x128xf32>
    %c0_93 = arith.constant 0 : index
    %c0_94 = arith.constant 0 : index
    %207 = vector.load %arg14[%c0_93, %c0_94] : memref<16x128xf32, #tpu.memory_space<vmem>>, vector<16x128xf32>
    tpu.vector_store %arg14[%c0_93, %c0_94], %206 {strides = array<i32>} : memref<16x128xf32, #tpu.memory_space<vmem>>, vector<16x128xf32>,
    return
  }
  func.func @transform_0(%arg0: i32) -> (i32, i32, i32) {
    %c0_i32 = arith.constant 0 : i32
    %c0_i32_0 = arith.constant 0 : i32
    %c0_i32_1 = arith.constant 0 : i32
    return %c0_i32, %arg0, %c0_i32_0 : i32, i32, i32
  }
  func.func @transform_1(%arg0: i32) -> (i32, i32) {
    %c0_i32 = arith.constant 0 : i32
    %c0_i32_0 = arith.constant 0 : i32
    %c0_i32_1 = arith.constant 0 : i32
    return %c0_i32, %c0_i32_0 : i32, i32
  }
  func.func @transform_2(%arg0: i32) -> (i32, i32) {
    %c0_i32 = arith.constant 0 : i32
    %c0_i32_0 = arith.constant 0 : i32
    %c0_i32_1 = arith.constant 0 : i32
    return %c0_i32, %c0_i32_0 : i32, i32
  }
  func.func @transform_3(%arg0: i32) -> (i32, i32) {
    %c0_i32 = arith.constant 0 : i32
    %c0_i32_0 = arith.constant 0 : i32
    %c0_i32_1 = arith.constant 0 : i32
    return %c0_i32, %c0_i32_0 : i32, i32
  }
  func.func @transform_4(%arg0: i32) -> (i32, i32) {
    %c0_i32 = arith.constant 0 : i32
    %c0_i32_0 = arith.constant 0 : i32
    %c0_i32_1 = arith.constant 0 : i32
    return %c0_i32, %c0_i32_0 : i32, i32
  }
  func.func @transform_5(%arg0: i32) -> (i32, i32) {
    %c0_i32 = arith.constant 0 : i32
    %c0_i32_0 = arith.constant 0 : i32
    %c0_i32_1 = arith.constant 0 : i32
    return %c0_i32, %c0_i32_0 : i32, i32
  }
  func.func @transform_6(%arg0: i32) -> (i32, i32) {
    %c0_i32 = arith.constant 0 : i32
    %c0_i32_0 = arith.constant 0 : i32
    %c0_i32_1 = arith.constant 0 : i32
    return %c0_i32, %c0_i32_0 : i32, i32
  }
  func.func @transform_7(%arg0: i32) -> (i32, i32) {
    %c0_i32 = arith.constant 0 : i32
    %c0_i32_0 = arith.constant 0 : i32
    %c0_i32_1 = arith.constant 0 : i32
    return %c0_i32, %c0_i32_0 : i32, i32
  }
  func.func @transform_8(%arg0: i32) -> (i32, i32) {
    %c0_i32 = arith.constant 0 : i32
    %c0_i32_0 = arith.constant 0 : i32
    %c0_i32_1 = arith.constant 0 : i32
    return %c0_i32, %c0_i32_0 : i32, i32
  }
  func.func @transform_9(%arg0: i32) -> (i32, i32, i32) {
    %c0_i32 = arith.constant 0 : i32
    %c0_i32_0 = arith.constant 0 : i32
    %c0_i32_1 = arith.constant 0 : i32
    %c0_i32_2 = arith.constant 0 : i32
    return %c0_i32, %c0_i32_0, %c0_i32_1 : i32, i32, i32
  }
  func.func @transform_10(%arg0: i32) -> (i32, i32) {
    %c0_i32 = arith.constant 0 : i32
    %c0_i32_0 = arith.constant 0 : i32
    %c0_i32_1 = arith.constant 0 : i32
    return %c0_i32, %c0_i32_0 : i32, i32
  }
  func.func @transform_11(%arg0: i32) -> (i32, i32) {
    %c0_i32 = arith.constant 0 : i32
    %c0_i32_0 = arith.constant 0 : i32
    %c0_i32_1 = arith.constant 0 : i32
    return %c0_i32, %c0_i32_0 : i32, i32
  }
  func.func @transform_12(%arg0: i32) -> (i32, i32) {
    %c0_i32 = arith.constant 0 : i32
    %c0_i32_0 = arith.constant 0 : i32
    %c0_i32_1 = arith.constant 0 : i32
    return %c0_i32, %c0_i32_0 : i32, i32
  }
  func.func @transform_13(%arg0: i32) -> (i32, i32) {
    %c0_i32 = arith.constant 0 : i32
    %c0_i32_0 = arith.constant 0 : i32
    return %arg0, %c0_i32 : i32, i32
  }
}

</mosaic_0001>

<llo_original>
// kernel: cnn_timeseries_forward.1
$region0: #{cnn_timeseries_forward.1}
  #allocation0 [shape = 'u32[]', space=smem, size = 0x4, offset = 0x4, fixed_abs, tag = 'smem constant byte address 0x4 - core index']
  #allocation1 [shape = 'u32[144,128]{1,0:T(1,128)}', space=vmem, size = 0x12000, scoped, tag = 'internal scratch']
  %s0 = inlined_call_operand.vmem [shape: bf16[40,32,24], index: 0, kind: input, shape index: {}]
  %s1 = inlined_call_operand.vmem [shape: bf16[24,64], index: 1, kind: input, shape index: {}]
  %s2 = inlined_call_operand.vmem [shape: f32[1,64], index: 2, kind: input, shape index: {}]
  %s3 = inlined_call_operand.vmem [shape: bf16[32,64], index: 3, kind: input, shape index: {}]
  %s4 = inlined_call_operand.vmem [shape: bf16[32,64], index: 4, kind: input, shape index: {}]
  %s5 = inlined_call_operand.vmem [shape: f32[1,64], index: 5, kind: input, shape index: {}]
  %s6 = inlined_call_operand.vmem [shape: bf16[64,128], index: 6, kind: input, shape index: {}]
  %s7 = inlined_call_operand.vmem [shape: bf16[64,128], index: 7, kind: input, shape index: {}]
  %s8 = inlined_call_operand.vmem [shape: f32[1,128], index: 8, kind: input, shape index: {}]
  %s9 = inlined_call_operand.vmem [shape: bf16[19,128,128], index: 9, kind: input, shape index: {}]
  %s10 = inlined_call_operand.vmem [shape: f32[1,128], index: 10, kind: input, shape index: {}]
  %s11 = inlined_call_operand.vmem [shape: bf16[128,128], index: 11, kind: input, shape index: {}]
  %s12 = inlined_call_operand.vmem [shape: f32[1,128], index: 12, kind: input, shape index: {}]
  %s13 = inlined_call_operand.vmem [shape: f32[32,128], index: 13, kind: output, shape index: {}]
  %s14 = sld [smem:[#allocation0]]
  $region126: #{cnn_timeseries_forward.1} parent=0
    _
  %s16 = ssub.s32 1, %s14
  %s17 = scalar_select 0, %s16, %s14
  $region1: #{cnn_timeseries_forward.1} parent=0
    #allocation2 [shape = 'u8[327680]{0}', space=vmem, size = 0x50000, scoped, tag = 'input window, operand 0']
    loop: start=0, step=1, limit=4
    $region2: #{cnn_timeseries_forward.1} parent=1 // loop_pre_header
      _
    $region3: #{cnn_timeseries_forward.1} parent=1 // loop_header
      %s19 = sphi 0, %s23
      %p20 = scmp.ge.s32.totalorder %s19, 4
      %s29 = sphi 0, %s31
      %s32 = sphi 0, %s29
      %s33 = sphi 0, %s32
      %s49 = sphi 0, %s33
      %s53 = sphi 0, %s53
      %s55 = sphi 0, %s53
      %s56 = sphi 0, %s55
      %s70 = sphi 0, %s56
      %s74 = sphi 0, %s74
      %s76 = sphi 0, %s74
      %s77 = sphi 0, %s76
      %s91 = sphi 0, %s77
      %s95 = sphi 0, %s95
      %s97 = sphi 0, %s95
      %s98 = sphi 0, %s97
      %s112 = sphi 0, %s98
      %s116 = sphi 0, %s116
      %s118 = sphi 0, %s116
      %s119 = sphi 0, %s118
      %s133 = sphi 0, %s119
      %s137 = sphi 0, %s137
      %s139 = sphi 0, %s137
      %s140 = sphi 0, %s139
      %s154 = sphi 0, %s140
      %s158 = sphi 0, %s158
      %s160 = sphi 0, %s158
      %s161 = sphi 0, %s160
      %s175 = sphi 0, %s161
      %s179 = sphi 0, %s179
      %s181 = sphi 0, %s179
      %s182 = sphi 0, %s181
      %s196 = sphi 0, %s182
      %s200 = sphi 0, %s200
      %s202 = sphi 0, %s200
      %s203 = sphi 0, %s202
      %s217 = sphi 0, %s203
      %s221 = sphi 0, %s221
      %s223 = sphi 0, %s221
      %s224 = sphi 0, %s223
      %s238 = sphi 0, %s224
      %s242 = sphi 0, %s242
      %s244 = sphi 0, %s242
      %s245 = sphi 0, %s244
      %s259 = sphi 0, %s245
      %s263 = sphi 0, %s263
      %s265 = sphi 0, %s263
      %s266 = sphi 0, %s265
      %s280 = sphi 0, %s266
      %s284 = sphi 0, %s284
      %s286 = sphi 0, %s284
      %s287 = sphi 0, %s286
      %s301 = sphi 0, %s287
      %s307 = sphi 0, %s309
      %s310 = sphi 0, %s307
      %s311 = sphi 0, %s310
      %s327 = sphi 0, %s311
    $region4: #{cnn_timeseries_forward.1} parent=1 // loop_header_branch
      %22 = sbr.rel (%p20) target = $region8
    $region5: #{cnn_timeseries_forward.1} parent=1 // loop_body
      %s24 = ssub.s32 %s19, 1
      %s25 = ssub.s32 %s19, 2
      %s26 = sadd.s32 %s19, 1
      %s27 = ssub.s32 %s19, %s26
      %p28 = scmp.eq.s32.totalorder %s27, 0
      %s30 = sadd.s32 %s29, 1
      %s31 = scalar_select %p28, %s29, %s30
      %p34 = pneg %p28
      %p35 = scmp.eq.s32.totalorder %s19, 1
      %p36 = por %p34, %p35
      %p37 = scmp.ne.s32.totalorder %s29, %s32
      %p38 = scmp.eq.s32.totalorder %s19, 0
      %p39 = por %p37, %p38
      %p40 = scmp.ne.s32.totalorder %s29, %s32
      %p41 = scmp.eq.s32.totalorder %s24, 1
      %p42 = por %p40, %p41
      %p43 = scmp.ne.s32.totalorder %s32, %s33
      %p44 = scmp.eq.s32.totalorder %s24, 0
      %p45 = por %p43, %p44
      %p46 = scmp.ne.s32.totalorder %s32, %s33
      %p47 = scmp.eq.s32.totalorder %s25, 1
      %p48 = por %p46, %p47
      %p50 = scmp.ne.s32.totalorder %s33, %s49
      %p51 = scmp.eq.s32.totalorder %s25, 0
      %p52 = por %p50, %p51
      %s54 = sadd.s32 %s53, 1
      %p57 = scmp.eq.s32.totalorder %s19, 1
      %p58 = scmp.ne.s32.totalorder %s53, %s55
      %p59 = scmp.eq.s32.totalorder %s19, 0
      %p60 = por %p58, %p59
      %p61 = scmp.ne.s32.totalorder %s53, %s55
      %p62 = scmp.eq.s32.totalorder %s24, 1
      %p63 = por %p61, %p62
      %p64 = scmp.ne.s32.totalorder %s55, %s56
      %p65 = scmp.eq.s32.totalorder %s24, 0
      %p66 = por %p64, %p65
      %p67 = scmp.ne.s32.totalorder %s55, %s56
      %p68 = scmp.eq.s32.totalorder %s25, 1
      %p69 = por %p67, %p68
      %p71 = scmp.ne.s32.totalorder %s56, %s70
      %p72 = scmp.eq.s32.totalorder %s25, 0
      %p73 = por %p71, %p72
      %s75 = sadd.s32 %s74, 1
      %p78 = scmp.eq.s32.totalorder %s19, 1
      %p79 = scmp.ne.s32.totalorder %s74, %s76
      %p80 = scmp.eq.s32.totalorder %s19, 0
      %p81 = por %p79, %p80
      %p82 = scmp.ne.s32.totalorder %s74, %s76
      %p83 = scmp.eq.s32.totalorder %s24, 1
      %p84 = por %p82, %p83
      %p85 = scmp.ne.s32.totalorder %s76, %s77
      %p86 = scmp.eq.s32.totalorder %s24, 0
      %p87 = por %p85, %p86
      %p88 = scmp.ne.s32.totalorder %s76, %s77
      %p89 = scmp.eq.s32.totalorder %s25, 1
      %p90 = por %p88, %p89
      %p92 = scmp.ne.s32.totalorder %s77, %s91
      %p93 = scmp.eq.s32.totalorder %s25, 0
      %p94 = por %p92, %p93
      %s96 = sadd.s32 %s95, 1
      %p99 = scmp.eq.s32.totalorder %s19, 1
      %p100 = scmp.ne.s32.totalorder %s95, %s97
      %p101 = scmp.eq.s32.totalorder %s19, 0
      %p102 = por %p100, %p101
      %p103 = scmp.ne.s32.totalorder %s95, %s97
      %p104 = scmp.eq.s32.totalorder %s24, 1
      %p105 = por %p103, %p104
      %p106 = scmp.ne.s32.totalorder %s97, %s98
      %p107 = scmp.eq.s32.totalorder %s24, 0
      %p108 = por %p106, %p107
      %p109 = scmp.ne.s32.totalorder %s97, %s98
      %p110 = scmp.eq.s32.totalorder %s25, 1
      %p111 = por %p109, %p110
      %p113 = scmp.ne.s32.totalorder %s98, %s112
      %p114 = scmp.eq.s32.totalorder %s25, 0
      %p115 = por %p113, %p114
      %s117 = sadd.s32 %s116, 1
      %p120 = scmp.eq.s32.totalorder %s19, 1
      %p121 = scmp.ne.s32.totalorder %s116, %s118
      %p122 = scmp.eq.s32.totalorder %s19, 0
      %p123 = por %p121, %p122
      %p124 = scmp.ne.s32.totalorder %s116, %s118
      %p125 = scmp.eq.s32.totalorder %s24, 1
      %p126 = por %p124, %p125
      %p127 = scmp.ne.s32.totalorder %s118, %s119
      %p128 = scmp.eq.s32.totalorder %s24, 0
      %p129 = por %p127, %p128
      %p130 = scmp.ne.s32.totalorder %s118, %s119
      %p131 = scmp.eq.s32.totalorder %s25, 1
      %p132 = por %p130, %p131
      %p134 = scmp.ne.s32.totalorder %s119, %s133
      %p135 = scmp.eq.s32.totalorder %s25, 0
      %p136 = por %p134, %p135
      %s138 = sadd.s32 %s137, 1
      %p141 = scmp.eq.s32.totalorder %s19, 1
      %p142 = scmp.ne.s32.totalorder %s137, %s139
      %p143 = scmp.eq.s32.totalorder %s19, 0
      %p144 = por %p142, %p143
      %p145 = scmp.ne.s32.totalorder %s137, %s139
      %p146 = scmp.eq.s32.totalorder %s24, 1
      %p147 = por %p145, %p146
      %p148 = scmp.ne.s32.totalorder %s139, %s140
      %p149 = scmp.eq.s32.totalorder %s24, 0
      %p150 = por %p148, %p149
      %p151 = scmp.ne.s32.totalorder %s139, %s140
      %p152 = scmp.eq.s32.totalorder %s25, 1
      %p153 = por %p151, %p152
      %p155 = scmp.ne.s32.totalorder %s140, %s154
      %p156 = scmp.eq.s32.totalorder %s25, 0
      %p157 = por %p155, %p156
      %s159 = sadd.s32 %s158, 1
      %p162 = scmp.eq.s32.totalorder %s19, 1
      %p163 = scmp.ne.s32.totalorder %s158, %s160
      %p164 = scmp.eq.s32.totalorder %s19, 0
      %p165 = por %p163, %p164
      %p166 = scmp.ne.s32.totalorder %s158, %s160
      %p167 = scmp.eq.s32.totalorder %s24, 1
      %p168 = por %p166, %p167
      %p169 = scmp.ne.s32.totalorder %s160, %s161
      %p170 = scmp.eq.s32.totalorder %s24, 0
      %p171 = por %p169, %p170
      %p172 = scmp.ne.s32.totalorder %s160, %s161
      %p173 = scmp.eq.s32.totalorder %s25, 1
      %p174 = por %p172, %p173
      %p176 = scmp.ne.s32.totalorder %s161, %s175
      %p177 = scmp.eq.s32.totalorder %s25, 0
      %p178 = por %p176, %p177
      %s180 = sadd.s32 %s179, 1
      %p183 = scmp.eq.s32.totalorder %s19, 1
      %p184 = scmp.ne.s32.totalorder %s179, %s181
      %p185 = scmp.eq.s32.totalorder %s19, 0
      %p186 = por %p184, %p185
      %p187 = scmp.ne.s32.totalorder %s179, %s181
      %p188 = scmp.eq.s32.totalorder %s24, 1
      %p189 = por %p187, %p188
      %p190 = scmp.ne.s32.totalorder %s181, %s182
      %p191 = scmp.eq.s32.totalorder %s24, 0
      %p192 = por %p190, %p191
      %p193 = scmp.ne.s32.totalorder %s181, %s182
      %p194 = scmp.eq.s32.totalorder %s25, 1
      %p195 = por %p193, %p194
      %p197 = scmp.ne.s32.totalorder %s182, %s196
      %p198 = scmp.eq.s32.totalorder %s25, 0
      %p199 = por %p197, %p198
      %s201 = sadd.s32 %s200, 1
      %p204 = scmp.eq.s32.totalorder %s19, 1
      %p205 = scmp.ne.s32.totalorder %s200, %s202
      %p206 = scmp.eq.s32.totalorder %s19, 0
      %p207 = por %p205, %p206
      %p208 = scmp.ne.s32.totalorder %s200, %s202
      %p209 = scmp.eq.s32.totalorder %s24, 1
      %p210 = por %p208, %p209
      %p211 = scmp.ne.s32.totalorder %s202, %s203
      %p212 = scmp.eq.s32.totalorder %s24, 0
      %p213 = por %p211, %p212
      %p214 = scmp.ne.s32.totalorder %s202, %s203
      %p215 = scmp.eq.s32.totalorder %s25, 1
      %p216 = por %p214, %p215
      %p218 = scmp.ne.s32.totalorder %s203, %s217
      %p219 = scmp.eq.s32.totalorder %s25, 0
      %p220 = por %p218, %p219
      %s222 = sadd.s32 %s221, 1
      %p225 = scmp.eq.s32.totalorder %s19, 1
      %p226 = scmp.ne.s32.totalorder %s221, %s223
      %p227 = scmp.eq.s32.totalorder %s19, 0
      %p228 = por %p226, %p227
      %p229 = scmp.ne.s32.totalorder %s221, %s223
      %p230 = scmp.eq.s32.totalorder %s24, 1
      %p231 = por %p229, %p230
      %p232 = scmp.ne.s32.totalorder %s223, %s224
      %p233 = scmp.eq.s32.totalorder %s24, 0
      %p234 = por %p232, %p233
      %p235 = scmp.ne.s32.totalorder %s223, %s224
      %p236 = scmp.eq.s32.totalorder %s25, 1
      %p237 = por %p235, %p236
      %p239 = scmp.ne.s32.totalorder %s224, %s238
      %p240 = scmp.eq.s32.totalorder %s25, 0
      %p241 = por %p239, %p240
      %s243 = sadd.s32 %s242, 1
      %p246 = scmp.eq.s32.totalorder %s19, 1
      %p247 = scmp.ne.s32.totalorder %s242, %s244
      %p248 = scmp.eq.s32.totalorder %s19, 0
      %p249 = por %p247, %p248
      %p250 = scmp.ne.s32.totalorder %s242, %s244
      %p251 = scmp.eq.s32.totalorder %s24, 1
      %p252 = por %p250, %p251
      %p253 = scmp.ne.s32.totalorder %s244, %s245
      %p254 = scmp.eq.s32.totalorder %s24, 0
      %p255 = por %p253, %p254
      %p256 = scmp.ne.s32.totalorder %s244, %s245
      %p257 = scmp.eq.s32.totalorder %s25, 1
      %p258 = por %p256, %p257
      %p260 = scmp.ne.s32.totalorder %s245, %s259
      %p261 = scmp.eq.s32.totalorder %s25, 0
      %p262 = por %p260, %p261
      %s264 = sadd.s32 %s263, 1
      %p267 = scmp.eq.s32.totalorder %s19, 1
      %p268 = scmp.ne.s32.totalorder %s263, %s265
      %p269 = scmp.eq.s32.totalorder %s19, 0
      %p270 = por %p268, %p269
      %p271 = scmp.ne.s32.totalorder %s263, %s265
      %p272 = scmp.eq.s32.totalorder %s24, 1
      %p273 = por %p271, %p272
      %p274 = scmp.ne.s32.totalorder %s265, %s266
      %p275 = scmp.eq.s32.totalorder %s24, 0
      %p276 = por %p274, %p275
      %p277 = scmp.ne.s32.totalorder %s265, %s266
      %p278 = scmp.eq.s32.totalorder %s25, 1
      %p279 = por %p277, %p278
      %p281 = scmp.ne.s32.totalorder %s266, %s280
      %p282 = scmp.eq.s32.totalorder %s25, 0
      %p283 = por %p281, %p282
      %s285 = sadd.s32 %s284, 1
      %p288 = scmp.eq.s32.totalorder %s19, 1
      %p289 = scmp.ne.s32.totalorder %s284, %s286
      %p290 = scmp.eq.s32.totalorder %s19, 0
      %p291 = por %p289, %p290
      %p292 = scmp.ne.s32.totalorder %s284, %s286
      %p293 = scmp.eq.s32.totalorder %s24, 1
      %p294 = por %p292, %p293
      %p295 = scmp.ne.s32.totalorder %s286, %s287
      %p296 = scmp.eq.s32.totalorder %s24, 0
      %p297 = por %p295, %p296
      %p298 = scmp.ne.s32.totalorder %s286, %s287
      %p299 = scmp.eq.s32.totalorder %s25, 1
      %p300 = por %p298, %p299
      %p302 = scmp.ne.s32.totalorder %s287, %s301
      %p303 = scmp.eq.s32.totalorder %s25, 0
      %p304 = por %p302, %p303
      %s305 = ssub.s32 %s19, %s26
      %p306 = scmp.eq.s32.totalorder %s305, 0
      %s308 = sadd.s32 %s307, 1
      %s309 = scalar_select %p306, %s307, %s308
      %p312 = pneg %p306
      %p313 = scmp.eq.s32.totalorder %s19, 1
      %p314 = por %p312, %p313
      %p315 = scmp.ne.s32.totalorder %s307, %s310
      %p316 = scmp.eq.s32.totalorder %s19, 0
      %p317 = por %p315, %p316
      %p318 = scmp.ne.s32.totalorder %s307, %s310
      %p319 = scmp.eq.s32.totalorder %s24, 1
      %p320 = por %p318, %p319
      %p321 = scmp.ne.s32.totalorder %s310, %s311
      %p322 = scmp.eq.s32.totalorder %s24, 0
      %p323 = por %p321, %p322
      %p324 = scmp.ne.s32.totalorder %s310, %s311
      %p325 = scmp.eq.s32.totalorder %s25, 1
      %p326 = por %p324, %p325
      %p328 = scmp.ne.s32.totalorder %s311, %s327
      %p329 = scmp.eq.s32.totalorder %s25, 0
      %p330 = por %p328, %p329
      %p331 = scmp.le.s32.totalorder 1, %s19
      %p332 = scmp.lt.s32.totalorder %s19, 3
      %p333 = pnand %p331, %p332
      %p334 = pneg %p333
      // Predicated region
      $region9: #{cnn_timeseries_forward.1} parent=5 // pred_check
        _
      $region10: #{cnn_timeseries_forward.1} parent=5 // pred_check_branch
        %336 = sbr.rel (%p333) target = $region12
      $region11: #{cnn_timeseries_forward.1} parent=5 // pred_region
        %s337 = ssub.s32 %s19, 1
        // Predicated region
        $region13: #{cnn_timeseries_forward.1} parent=11 // pred_check
          %p338 = pneg %p66
        $region14: #{cnn_timeseries_forward.1} parent=11 // pred_check_branch
          %340 = sbr.rel (%p338) target = $region16
        $region15: #{cnn_timeseries_forward.1} parent=11 // pred_region
          _
        $region16: #{cnn_timeseries_forward.1} parent=11 // pred_fallthru
          _
        // Predicated region
        $region17: #{cnn_timeseries_forward.1} parent=11 // pred_check
          %p341 = pneg %p87
        $region18: #{cnn_timeseries_forward.1} parent=11 // pred_check_branch
          %343 = sbr.rel (%p341) target = $region20
        $region19: #{cnn_timeseries_forward.1} parent=11 // pred_region
          _
        $region20: #{cnn_timeseries_forward.1} parent=11 // pred_fallthru
          _
        // Predicated region
        $region21: #{cnn_timeseries_forward.1} parent=11 // pred_check
          %p344 = pneg %p108
        $region22: #{cnn_timeseries_forward.1} parent=11 // pred_check_branch
          %346 = sbr.rel (%p344) target = $region24
        $region23: #{cnn_timeseries_forward.1} parent=11 // pred_region
          _
        $region24: #{cnn_timeseries_forward.1} parent=11 // pred_fallthru
          _
        // Predicated region
        $region25: #{cnn_timeseries_forward.1} parent=11 // pred_check
          %p347 = pneg %p129
        $region26: #{cnn_timeseries_forward.1} parent=11 // pred_check_branch
          %349 = sbr.rel (%p347) target = $region28
        $region27: #{cnn_timeseries_forward.1} parent=11 // pred_region
          _
        $region28: #{cnn_timeseries_forward.1} parent=11 // pred_fallthru
          _
        // Predicated region
        $region29: #{cnn_timeseries_forward.1} parent=11 // pred_check
          %p350 = pneg %p150
        $region30: #{cnn_timeseries_forward.1} parent=11 // pred_check_branch
          %352 = sbr.rel (%p350) target = $region32
        $region31: #{cnn_timeseries_forward.1} parent=11 // pred_region
          _
        $region32: #{cnn_timeseries_forward.1} parent=11 // pred_fallthru
          _
        // Predicated region
        $region33: #{cnn_timeseries_forward.1} parent=11 // pred_check
          %p353 = pneg %p171
        $region34: #{cnn_timeseries_forward.1} parent=11 // pred_check_branch
          %355 = sbr.rel (%p353) target = $region36
        $region35: #{cnn_timeseries_forward.1} parent=11 // pred_region
          _
        $region36: #{cnn_timeseries_forward.1} parent=11 // pred_fallthru
          _
        // Predicated region
        $region37: #{cnn_timeseries_forward.1} parent=11 // pred_check
          %p356 = pneg %p192
        $region38: #{cnn_timeseries_forward.1} parent=11 // pred_check_branch
          %358 = sbr.rel (%p356) target = $region40
        $region39: #{cnn_timeseries_forward.1} parent=11 // pred_region
          _
        $region40: #{cnn_timeseries_forward.1} parent=11 // pred_fallthru
          _
        // Predicated region
        $region41: #{cnn_timeseries_forward.1} parent=11 // pred_check
          %p359 = pneg %p213
        $region42: #{cnn_timeseries_forward.1} parent=11 // pred_check_branch
          %361 = sbr.rel (%p359) target = $region44
        $region43: #{cnn_timeseries_forward.1} parent=11 // pred_region
          _
        $region44: #{cnn_timeseries_forward.1} parent=11 // pred_fallthru
          _
        // Predicated region
        $region45: #{cnn_timeseries_forward.1} parent=11 // pred_check
          %p362 = pneg %p234
        $region46: #{cnn_timeseries_forward.1} parent=11 // pred_check_branch
          %364 = sbr.rel (%p362) target = $region48
        $region47: #{cnn_timeseries_forward.1} parent=11 // pred_region
          _
        $region48: #{cnn_timeseries_forward.1} parent=11 // pred_fallthru
          _
        // Predicated region
        $region49: #{cnn_timeseries_forward.1} parent=11 // pred_check
          %p365 = pneg %p255
        $region50: #{cnn_timeseries_forward.1} parent=11 // pred_check_branch
          %367 = sbr.rel (%p365) target = $region52
        $region51: #{cnn_timeseries_forward.1} parent=11 // pred_region
          _
        $region52: #{cnn_timeseries_forward.1} parent=11 // pred_fallthru
          _
        // Predicated region
        $region53: #{cnn_timeseries_forward.1} parent=11 // pred_check
          %p368 = pneg %p276
        $region54: #{cnn_timeseries_forward.1} parent=11 // pred_check_branch
          %370 = sbr.rel (%p368) target = $region56
        $region55: #{cnn_timeseries_forward.1} parent=11 // pred_region
          _
        $region56: #{cnn_timeseries_forward.1} parent=11 // pred_fallthru
          _
        // Predicated region
        $region57: #{cnn_timeseries_forward.1} parent=11 // pred_check
          %p371 = pneg %p297
        $region58: #{cnn_timeseries_forward.1} parent=11 // pred_check_branch
          %373 = sbr.rel (%p371) target = $region60
        $region59: #{cnn_timeseries_forward.1} parent=11 // pred_region
          _
        $region60: #{cnn_timeseries_forward.1} parent=11 // pred_fallthru
          _
      $region12: #{cnn_timeseries_forward.1} parent=5 // pred_fallthru
        _
      %p374 = scmp.lt.s32.totalorder %s19, 2
      // Predicated region
      $region61: #{cnn_timeseries_forward.1} parent=5 // pred_check
        %p375 = pneg %p374
      $region62: #{cnn_timeseries_forward.1} parent=5 // pred_check_branch
        %377 = sbr.rel (%p375) target = $region64
      $region63: #{cnn_timeseries_forward.1} parent=5 // pred_region
        // Predicated region
        $region65: #{cnn_timeseries_forward.1} parent=63 // pred_check
          %p378 = pneg %p39
        $region66: #{cnn_timeseries_forward.1} parent=63 // pred_check_branch
          %380 = sbr.rel (%p378) target = $region68
        $region67: #{cnn_timeseries_forward.1} parent=63 // pred_region
          %s381 = sand.u32 %s29, 1
          %s382 = sand.u32 %s29, 1
          %s383 = smul.addr %s382, 320
          %s384 = scalar_lea.vmem [#allocation2], %s383
          %s385 = smul.u32 2, %s19
          %s386 = smul.addr %s385, 4
          %s387 = scalar_lea.vmem %s0, %s386
          // Predicated region
          $region69: #{cnn_timeseries_forward.1} parent=67 // pred_check
            _
          $region70: #{cnn_timeseries_forward.1} parent=67 // pred_check_branch
            %389 = sbr.rel (0) target = $region72
          $region71: #{cnn_timeseries_forward.1} parent=67 // pred_region
            // Predicated region
            $region73: #{cnn_timeseries_forward.1} parent=71 // pred_check
              _
            $region74: #{cnn_timeseries_forward.1} parent=71 // pred_check_branch
              %391 = sbr.rel target = $region76
            $region75: #{cnn_timeseries_forward.1} parent=71 // pred_region
              // Predicated region
              $region88: #{cnn_timeseries_forward.1} parent=75 // pred_check
                _
              $region89: #{cnn_timeseries_forward.1} parent=75 // pred_check_branch
                %564 = sbr.rel (0) target = $region91
              $region90: #{cnn_timeseries_forward.1} parent=75 // pred_region
                loop: start=0, step=1, limit=1
                $region92: #{cnn_timeseries_forward.1} parent=90 // loop_pre_header
                  _
                $region93: #{cnn_timeseries_forward.1} parent=90 // loop_header
                  %s566 = sphi 0, %s570
                  %p567 = scmp.ge.s32.totalorder %s566, 1
                  %s571 = sphi %s387, %s387
                  %s572 = sphi %s384, %s384
                $region94: #{cnn_timeseries_forward.1} parent=90 // loop_header_branch
                  %569 = sbr.rel (%p567) target = $region98
                $region95: #{cnn_timeseries_forward.1} parent=90 // loop_body
                  _
                $region96: #{cnn_timeseries_forward.1} parent=90 // loop_footer
                  %s570 = sadd.s32 1, %s566
                $region97: #{cnn_timeseries_forward.1} parent=90 // loop_footer_branch
                  %565 = sbr.rel target = $region93
                $region98: #{cnn_timeseries_forward.1} parent=90 // loop_exit
                  _
                loop: start=0, step=1, limit=1
                $region99: #{cnn_timeseries_forward.1} parent=90 // loop_pre_header
                  _
                $region100: #{cnn_timeseries_forward.1} parent=90 // loop_header
                  %s575 = sphi 0, %s579
                  %p576 = scmp.ge.s32.totalorder %s575, 1
                  %s580 = sphi %s387, %s387
                  %s581 = sphi %s384, %s384
                $region101: #{cnn_timeseries_forward.1} parent=90 // loop_header_branch
                  %578 = sbr.rel (%p576) target = $region105
                $region102: #{cnn_timeseries_forward.1} parent=90 // loop_body
                  %v582 = vld [vmem:[%s580] sm:$0xf]
                  %583 = vst [vmem:[%s581] sm:$0xf] %v582
                  %v584 = vld [vmem:[%s580 + $0x4] sm:$0xf]
                  %585 = vst [vmem:[%s581 + $0x4] sm:$0xf] %v584
                  %v586 = vld [vmem:[%s580 + $0x10] sm:$0xf]
                  %587 = vst [vmem:[%s581 + $0x8] sm:$0xf] %v586
                  %v588 = vld [vmem:[%s580 + $0x14] sm:$0xf]
                  %589 = vst [vmem:[%s581 + $0xc] sm:$0xf] %v588
                  %v590 = vld [vmem:[%s580 + $0x20] sm:$0xf]
                  %591 = vst [vmem:[%s581 + $0x10] sm:$0xf] %v590
                  %v592 = vld [vmem:[%s580 + $0x24] sm:$0xf]
                  %593 = vst [vmem:[%s581 + $0x14] sm:$0xf] %v592
                  %v594 = vld [vmem:[%s580 + $0x30] sm:$0xf]
                  %595 = vst [vmem:[%s581 + $0x18] sm:$0xf] %v594
                  %v596 = vld [vmem:[%s580 + $0x34] sm:$0xf]
                  %597 = vst [vmem:[%s581 + $0x1c] sm:$0xf] %v596
                  %v598 = vld [vmem:[%s580 + $0x40] sm:$0xf]
                  %599 = vst [vmem:[%s581 + $0x20] sm:$0xf] %v598
                  %v600 = vld [vmem:[%s580 + $0x44] sm:$0xf]
                  %601 = vst [vmem:[%s581 + $0x24] sm:$0xf] %v600
                  %v602 = vld [vmem:[%s580 + $0x50] sm:$0xf]
                  %603 = vst [vmem:[%s581 + $0x28] sm:$0xf] %v602
                  %v604 = vld [vmem:[%s580 + $0x54] sm:$0xf]
                  %605 = vst [vmem:[%s581 + $0x2c] sm:$0xf] %v604
                  %v606 = vld [vmem:[%s580 + $0x60] sm:$0xf]
                  %607 = vst [vmem:[%s581 + $0x30] sm:$0xf] %v606
                  %v608 = vld [vmem:[%s580 + $0x64] sm:$0xf]
                  %609 = vst [vmem:[%s581 + $0x34] sm:$0xf] %v608
                  %v610 = vld [vmem:[%s580 + $0x70] sm:$0xf]
                  %611 = vst [vmem:[%s581 + $0x38] sm:$0xf] %v610
                  %v612 = vld [vmem:[%s580 + $0x74] sm:$0xf]
                  %613 = vst [vmem:[%s581 + $0x3c] sm:$0xf] %v612
                  %v614 = vld [vmem:[%s580 + $0x80] sm:$0xf]
                  %615 = vst [vmem:[%s581 + $0x40] sm:$0xf] %v614
                  %v616 = vld [vmem:[%s580 + $0x84] sm:$0xf]
                  %617 = vst [vmem:[%s581 + $0x44] sm:$0xf] %v616
                  %v618 = vld [vmem:[%s580 + $0x90] sm:$0xf]
                  %619 = vst [vmem:[%s581 + $0x48] sm:$0xf] %v618
                  %v620 = vld [vmem:[%s580 + $0x94] sm:$0xf]
                  %621 = vst [vmem:[%s581 + $0x4c] sm:$0xf] %v620
                  %v622 = vld [vmem:[%s580 + $0xa0] sm:$0xf]
                  %623 = vst [vmem:[%s581 + $0x50] sm:$0xf] %v622
                  %v624 = vld [vmem:[%s580 + $0xa4] sm:$0xf]
                  %625 = vst [vmem:[%s581 + $0x54] sm:$0xf] %v624
                  %v626 = vld [vmem:[%s580 + $0xb0] sm:$0xf]
                  %627 = vst [vmem:[%s581 + $0x58] sm:$0xf] %v626
                  %v628 = vld [vmem:[%s580 + $0xb4] sm:$0xf]
                  %629 = vst [vmem:[%s581 + $0x5c] sm:$0xf] %v628
                  %v630 = vld [vmem:[%s580 + $0xc0] sm:$0xf]
                  %631 = vst [vmem:[%s581 + $0x60] sm:$0xf] %v630
                  %v632 = vld [vmem:[%s580 + $0xc4] sm:$0xf]
                  %633 = vst [vmem:[%s581 + $0x64] sm:$0xf] %v632
                  %v634 = vld [vmem:[%s580 + $0xd0] sm:$0xf]
                  %635 = vst [vmem:[%s581 + $0x68] sm:$0xf] %v634
                  %v636 = vld [vmem:[%s580 + $0xd4] sm:$0xf]
                  %637 = vst [vmem:[%s581 + $0x6c] sm:$0xf] %v636
                  %v638 = vld [vmem:[%s580 + $0xe0] sm:$0xf]
                  %639 = vst [vmem:[%s581 + $0x70] sm:$0xf] %v638
                  %v640 = vld [vmem:[%s580 + $0xe4] sm:$0xf]
                  %641 = vst [vmem:[%s581 + $0x74] sm:$0xf] %v640
                  %v642 = vld [vmem:[%s580 + $0xf0] sm:$0xf]
                  %643 = vst [vmem:[%s581 + $0x78] sm:$0xf] %v642
                  %v644 = vld [vmem:[%s580 + $0xf4] sm:$0xf]
                  %645 = vst [vmem:[%s581 + $0x7c] sm:$0xf] %v644
                  %v646 = vld [vmem:[%s580 + $0x100] sm:$0xf]
                  %647 = vst [vmem:[%s581 + $0x80] sm:$0xf] %v646
                  %v648 = vld [vmem:[%s580 + $0x104] sm:$0xf]
                  %649 = vst [vmem:[%s581 + $0x84] sm:$0xf] %v648
                  %v650 = vld [vmem:[%s580 + $0x110] sm:$0xf]
                  %651 = vst [vmem:[%s581 + $0x88] sm:$0xf] %v650
                  %v652 = vld [vmem:[%s580 + $0x114] sm:$0xf]
                  %653 = vst [vmem:[%s581 + $0x8c] sm:$0xf] %v652
                  %v654 = vld [vmem:[%s580 + $0x120] sm:$0xf]
                  %655 = vst [vmem:[%s581 + $0x90] sm:$0xf] %v654
                  %v656 = vld [vmem:[%s580 + $0x124] sm:$0xf]
                  %657 = vst [vmem:[%s581 + $0x94] sm:$0xf] %v656
                  %v658 = vld [vmem:[%s580 + $0x130] sm:$0xf]
                  %659 = vst [vmem:[%s581 + $0x98] sm:$0xf] %v658
                  %v660 = vld [vmem:[%s580 + $0x134] sm:$0xf]
                  %661 = vst [vmem:[%s581 + $0x9c] sm:$0xf] %v660
                  %v662 = vld [vmem:[%s580 + $0x140] sm:$0xf]
                  %663 = vst [vmem:[%s581 + $0xa0] sm:$0xf] %v662
                  %v664 = vld [vmem:[%s580 + $0x144] sm:$0xf]
                  %665 = vst [vmem:[%s581 + $0xa4] sm:$0xf] %v664
                  %v666 = vld [vmem:[%s580 + $0x150] sm:$0xf]
                  %667 = vst [vmem:[%s581 + $0xa8] sm:$0xf] %v666
                  %v668 = vld [vmem:[%s580 + $0x154] sm:$0xf]
                  %669 = vst [vmem:[%s581 + $0xac] sm:$0xf] %v668
                  %v670 = vld [vmem:[%s580 + $0x160] sm:$0xf]
                  %671 = vst [vmem:[%s581 + $0xb0] sm:$0xf] %v670
                  %v672 = vld [vmem:[%s580 + $0x164] sm:$0xf]
                  %673 = vst [vmem:[%s581 + $0xb4] sm:$0xf] %v672
                  %v674 = vld [vmem:[%s580 + $0x170] sm:$0xf]
                  %675 = vst [vmem:[%s581 + $0xb8] sm:$0xf] %v674
                  %v676 = vld [vmem:[%s580 + $0x174] sm:$0xf]
                  %677 = vst [vmem:[%s581 + $0xbc] sm:$0xf] %v676
                  %v678 = vld [vmem:[%s580 + $0x180] sm:$0xf]
                  %679 = vst [vmem:[%s581 + $0xc0] sm:$0xf] %v678
                  %v680 = vld [vmem:[%s580 + $0x184] sm:$0xf]
                  %681 = vst [vmem:[%s581 + $0xc4] sm:$0xf] %v680
                  %v682 = vld [vmem:[%s580 + $0x190] sm:$0xf]
                  %683 = vst [vmem:[%s581 + $0xc8] sm:$0xf] %v682
                  %v684 = vld [vmem:[%s580 + $0x194] sm:$0xf]
                  %685 = vst [vmem:[%s581 + $0xcc] sm:$0xf] %v684
                  %v686 = vld [vmem:[%s580 + $0x1a0] sm:$0xf]
                  %687 = vst [vmem:[%s581 + $0xd0] sm:$0xf] %v686
                  %v688 = vld [vmem:[%s580 + $0x1a4] sm:$0xf]
                  %689 = vst [vmem:[%s581 + $0xd4] sm:$0xf] %v688
                  %v690 = vld [vmem:[%s580 + $0x1b0] sm:$0xf]
                  %691 = vst [vmem:[%s581 + $0xd8] sm:$0xf] %v690
                  %v692 = vld [vmem:[%s580 + $0x1b4] sm:$0xf]
                  %693 = vst [vmem:[%s581 + $0xdc] sm:$0xf] %v692
                  %v694 = vld [vmem:[%s580 + $0x1c0] sm:$0xf]
                  %695 = vst [vmem:[%s581 + $0xe0] sm:$0xf] %v694
                  %v696 = vld [vmem:[%s580 + $0x1c4] sm:$0xf]
                  %697 = vst [vmem:[%s581 + $0xe4] sm:$0xf] %v696
                  %v698 = vld [vmem:[%s580 + $0x1d0] sm:$0xf]
                  %699 = vst [vmem:[%s581 + $0xe8] sm:$0xf] %v698
                  %v700 = vld [vmem:[%s580 + $0x1d4] sm:$0xf]
                  %701 = vst [vmem:[%s581 + $0xec] sm:$0xf] %v700
                  %v702 = vld [vmem:[%s580 + $0x1e0] sm:$0xf]
                  %703 = vst [vmem:[%s581 + $0xf0] sm:$0xf] %v702
                  %v704 = vld [vmem:[%s580 + $0x1e4] sm:$0xf]
                  %705 = vst [vmem:[%s581 + $0xf4] sm:$0xf] %v704
                  %v706 = vld [vmem:[%s580 + $0x1f0] sm:$0xf]
                  %707 = vst [vmem:[%s581 + $0xf8] sm:$0xf] %v706
                  %v708 = vld [vmem:[%s580 + $0x1f4] sm:$0xf]
                  %709 = vst [vmem:[%s581 + $0xfc] sm:$0xf] %v708
                  %v710 = vld [vmem:[%s580 + $0x200] sm:$0xf]
                  %711 = vst [vmem:[%s581 + $0x100] sm:$0xf] %v710
                  %v712 = vld [vmem:[%s580 + $0x204] sm:$0xf]
                  %713 = vst [vmem:[%s581 + $0x104] sm:$0xf] %v712
                  %v714 = vld [vmem:[%s580 + $0x210] sm:$0xf]
                  %715 = vst [vmem:[%s581 + $0x108] sm:$0xf] %v714
                  %v716 = vld [vmem:[%s580 + $0x214] sm:$0xf]
                  %717 = vst [vmem:[%s581 + $0x10c] sm:$0xf] %v716
                  %v718 = vld [vmem:[%s580 + $0x220] sm:$0xf]
                  %719 = vst [vmem:[%s581 + $0x110] sm:$0xf] %v718
                  %v720 = vld [vmem:[%s580 + $0x224] sm:$0xf]
                  %721 = vst [vmem:[%s581 + $0x114] sm:$0xf] %v720
                  %v722 = vld [vmem:[%s580 + $0x230] sm:$0xf]
                  %723 = vst [vmem:[%s581 + $0x118] sm:$0xf] %v722
                  %v724 = vld [vmem:[%s580 + $0x234] sm:$0xf]
                  %725 = vst [vmem:[%s581 + $0x11c] sm:$0xf] %v724
                  %v726 = vld [vmem:[%s580 + $0x240] sm:$0xf]
                  %727 = vst [vmem:[%s581 + $0x120] sm:$0xf] %v726
                  %v728 = vld [vmem:[%s580 + $0x244] sm:$0xf]
                  %729 = vst [vmem:[%s581 + $0x124] sm:$0xf] %v728
                  %v730 = vld [vmem:[%s580 + $0x250] sm:$0xf]
                  %731 = vst [vmem:[%s581 + $0x128] sm:$0xf] %v730
                  %v732 = vld [vmem:[%s580 + $0x254] sm:$0xf]
                  %733 = vst [vmem:[%s581 + $0x12c] sm:$0xf] %v732
                  %v734 = vld [vmem:[%s580 + $0x260] sm:$0xf]
                  %735 = vst [vmem:[%s581 + $0x130] sm:$0xf] %v734
                  %v736 = vld [vmem:[%s580 + $0x264] sm:$0xf]
                  %737 = vst [vmem:[%s581 + $0x134] sm:$0xf] %v736
                  %v738 = vld [vmem:[%s580 + $0x270] sm:$0xf]
                  %739 = vst [vmem:[%s581 + $0x138] sm:$0xf] %v738
                  %v740 = vld [vmem:[%s580 + $0x274] sm:$0xf]
                  %741 = vst [vmem:[%s581 + $0x13c] sm:$0xf] %v740
                $region103: #{cnn_timeseries_forward.1} parent=90 // loop_footer
                  %s579 = sadd.s32 1, %s575
                $region104: #{cnn_timeseries_forward.1} parent=90 // loop_footer_branch
                  %574 = sbr.rel target = $region100
                $region105: #{cnn_timeseries_forward.1} parent=90 // loop_exit
                  _
              $region91: #{cnn_timeseries_forward.1} parent=75 // pred_fallthru
                _
            $region76: #{cnn_timeseries_forward.1} parent=71 // pred_fallthru
              _
            // Predicated region
            $region77: #{cnn_timeseries_forward.1} parent=71 // pred_check
              _
            $region78: #{cnn_timeseries_forward.1} parent=71 // pred_check_branch
              %393 = sbr.rel (0) target = $region80
            $region79: #{cnn_timeseries_forward.1} parent=71 // pred_region
              loop: start=0, step=1, limit=1
              $region81: #{cnn_timeseries_forward.1} parent=79 // loop_pre_header
                _
              $region82: #{cnn_timeseries_forward.1} parent=79 // loop_header
                %s396 = sphi 0, %s400
                %p397 = scmp.ge.s32.totalorder %s396, 1
                %s401 = sphi %s387, %s387
                %s402 = sphi %s384, %s384
              $region83: #{cnn_timeseries_forward.1} parent=79 // loop_header_branch
                %399 = sbr.rel (%p397) target = $region87
              $region84: #{cnn_timeseries_forward.1} parent=79 // loop_body
                %v403 = vld [vmem:[%s401] sm:$0xf]
                %404 = vst [vmem:[%s402] sm:$0xf] %v403
                %v405 = vld [vmem:[%s401 + $0x4] sm:$0xf]
                %406 = vst [vmem:[%s402 + $0x4] sm:$0xf] %v405
                %v407 = vld [vmem:[%s401 + $0x10] sm:$0xf]
                %408 = vst [vmem:[%s402 + $0x8] sm:$0xf] %v407
                %v409 = vld [vmem:[%s401 + $0x14] sm:$0xf]
                %410 = vst [vmem:[%s402 + $0xc] sm:$0xf] %v409
                %v411 = vld [vmem:[%s401 + $0x20] sm:$0xf]
                %412 = vst [vmem:[%s402 + $0x10] sm:$0xf] %v411
                %v413 = vld [vmem:[%s401 + $0x24] sm:$0xf]
                %414 = vst [vmem:[%s402 + $0x14] sm:$0xf] %v413
                %v415 = vld [vmem:[%s401 + $0x30] sm:$0xf]
                %416 = vst [vmem:[%s402 + $0x18] sm:$0xf] %v415
                %v417 = vld [vmem:[%s401 + $0x34] sm:$0xf]
                %418 = vst [vmem:[%s402 + $0x1c] sm:$0xf] %v417
                %v419 = vld [vmem:[%s401 + $0x40] sm:$0xf]
                %420 = vst [vmem:[%s402 + $0x20] sm:$0xf] %v419
                %v421 = vld [vmem:[%s401 + $0x44] sm:$0xf]
                %422 = vst [vmem:[%s402 + $0x24] sm:$0xf] %v421
                %v423 = vld [vmem:[%s401 + $0x50] sm:$0xf]
                %424 = vst [vmem:[%s402 + $0x28] sm:$0xf] %v423
                %v425 = vld [vmem:[%s401 + $0x54] sm:$0xf]
                %426 = vst [vmem:[%s402 + $0x2c] sm:$0xf] %v425
                %v427 = vld [vmem:[%s401 + $0x60] sm:$0xf]
                %428 = vst [vmem:[%s402 + $0x30] sm:$0xf] %v427
                %v429 = vld [vmem:[%s401 + $0x64] sm:$0xf]
                %430 = vst [vmem:[%s402 + $0x34] sm:$0xf] %v429
                %v431 = vld [vmem:[%s401 + $0x70] sm:$0xf]
                %432 = vst [vmem:[%s402 + $0x38] sm:$0xf] %v431
                %v433 = vld [vmem:[%s401 + $0x74] sm:$0xf]
                %434 = vst [vmem:[%s402 + $0x3c] sm:$0xf] %v433
                %v435 = vld [vmem:[%s401 + $0x80] sm:$0xf]
                %436 = vst [vmem:[%s402 + $0x40] sm:$0xf] %v435
                %v437 = vld [vmem:[%s401 + $0x84] sm:$0xf]
                %438 = vst [vmem:[%s402 + $0x44] sm:$0xf] %v437
                %v439 = vld [vmem:[%s401 + $0x90] sm:$0xf]
                %440 = vst [vmem:[%s402 + $0x48] sm:$0xf] %v439
                %v441 = vld [vmem:[%s401 + $0x94] sm:$0xf]
                %442 = vst [vmem:[%s402 + $0x4c] sm:$0xf] %v441
                %v443 = vld [vmem:[%s401 + $0xa0] sm:$0xf]
                %444 = vst [vmem:[%s402 + $0x50] sm:$0xf] %v443
                %v445 = vld [vmem:[%s401 + $0xa4] sm:$0xf]
                %446 = vst [vmem:[%s402 + $0x54] sm:$0xf] %v445
                %v447 = vld [vmem:[%s401 + $0xb0] sm:$0xf]
                %448 = vst [vmem:[%s402 + $0x58] sm:$0xf] %v447
                %v449 = vld [vmem:[%s401 + $0xb4] sm:$0xf]
                %450 = vst [vmem:[%s402 + $0x5c] sm:$0xf] %v449
                %v451 = vld [vmem:[%s401 + $0xc0] sm:$0xf]
                %452 = vst [vmem:[%s402 + $0x60] sm:$0xf] %v451
                %v453 = vld [vmem:[%s401 + $0xc4] sm:$0xf]
                %454 = vst [vmem:[%s402 + $0x64] sm:$0xf] %v453
                %v455 = vld [vmem:[%s401 + $0xd0] sm:$0xf]
                %456 = vst [vmem:[%s402 + $0x68] sm:$0xf] %v455
                %v457 = vld [vmem:[%s401 + $0xd4] sm:$0xf]
                %458 = vst [vmem:[%s402 + $0x6c] sm:$0xf] %v457
                %v459 = vld [vmem:[%s401 + $0xe0] sm:$0xf]
                %460 = vst [vmem:[%s402 + $0x70] sm:$0xf] %v459
                %v461 = vld [vmem:[%s401 + $0xe4] sm:$0xf]
                %462 = vst [vmem:[%s402 + $0x74] sm:$0xf] %v461
                %v463 = vld [vmem:[%s401 + $0xf0] sm:$0xf]
                %464 = vst [vmem:[%s402 + $0x78] sm:$0xf] %v463
                %v465 = vld [vmem:[%s401 + $0xf4] sm:$0xf]
                %466 = vst [vmem:[%s402 + $0x7c] sm:$0xf] %v465
                %v467 = vld [vmem:[%s401 + $0x100] sm:$0xf]
                %468 = vst [vmem:[%s402 + $0x80] sm:$0xf] %v467
                %v469 = vld [vmem:[%s401 + $0x104] sm:$0xf]
                %470 = vst [vmem:[%s402 + $0x84] sm:$0xf] %v469
                %v471 = vld [vmem:[%s401 + $0x110] sm:$0xf]
                %472 = vst [vmem:[%s402 + $0x88] sm:$0xf] %v471
                %v473 = vld [vmem:[%s401 + $0x114] sm:$0xf]
                %474 = vst [vmem:[%s402 + $0x8c] sm:$0xf] %v473
                %v475 = vld [vmem:[%s401 + $0x120] sm:$0xf]
                %476 = vst [vmem:[%s402 + $0x90] sm:$0xf] %v475
                %v477 = vld [vmem:[%s401 + $0x124] sm:$0xf]
                %478 = vst [vmem:[%s402 + $0x94] sm:$0xf] %v477
                %v479 = vld [vmem:[%s401 + $0x130] sm:$0xf]
                %480 = vst [vmem:[%s402 + $0x98] sm:$0xf] %v479
                %v481 = vld [vmem:[%s401 + $0x134] sm:$0xf]
                %482 = vst [vmem:[%s402 + $0x9c] sm:$0xf] %v481
                %v483 = vld [vmem:[%s401 + $0x140] sm:$0xf]
                %484 = vst [vmem:[%s402 + $0xa0] sm:$0xf] %v483
                %v485 = vld [vmem:[%s401 + $0x144] sm:$0xf]
                %486 = vst [vmem:[%s402 + $0xa4] sm:$0xf] %v485
                %v487 = vld [vmem:[%s401 + $0x150] sm:$0xf]
                %488 = vst [vmem:[%s402 + $0xa8] sm:$0xf] %v487
                %v489 = vld [vmem:[%s401 + $0x154] sm:$0xf]
                %490 = vst [vmem:[%s402 + $0xac] sm:$0xf] %v489
                %v491 = vld [vmem:[%s401 + $0x160] sm:$0xf]
                %492 = vst [vmem:[%s402 + $0xb0] sm:$0xf] %v491
                %v493 = vld [vmem:[%s401 + $0x164] sm:$0xf]
                %494 = vst [vmem:[%s402 + $0xb4] sm:$0xf] %v493
                %v495 = vld [vmem:[%s401 + $0x170] sm:$0xf]
                %496 = vst [vmem:[%s402 + $0xb8] sm:$0xf] %v495
                %v497 = vld [vmem:[%s401 + $0x174] sm:$0xf]
                %498 = vst [vmem:[%s402 + $0xbc] sm:$0xf] %v497
                %v499 = vld [vmem:[%s401 + $0x180] sm:$0xf]
                %500 = vst [vmem:[%s402 + $0xc0] sm:$0xf] %v499
                %v501 = vld [vmem:[%s401 + $0x184] sm:$0xf]
                %502 = vst [vmem:[%s402 + $0xc4] sm:$0xf] %v501
                %v503 = vld [vmem:[%s401 + $0x190] sm:$0xf]
                %504 = vst [vmem:[%s402 + $0xc8] sm:$0xf] %v503
                %v505 = vld [vmem:[%s401 + $0x194] sm:$0xf]
                %506 = vst [vmem:[%s402 + $0xcc] sm:$0xf] %v505
                %v507 = vld [vmem:[%s401 + $0x1a0] sm:$0xf]
                %508 = vst [vmem:[%s402 + $0xd0] sm:$0xf] %v507
                %v509 = vld [vmem:[%s401 + $0x1a4] sm:$0xf]
                %510 = vst [vmem:[%s402 + $0xd4] sm:$0xf] %v509
                %v511 = vld [vmem:[%s401 + $0x1b0] sm:$0xf]
                %512 = vst [vmem:[%s402 + $0xd8] sm:$0xf] %v511
                %v513 = vld [vmem:[%s401 + $0x1b4] sm:$0xf]
                %514 = vst [vmem:[%s402 + $0xdc] sm:$0xf] %v513
                %v515 = vld [vmem:[%s401 + $0x1c0] sm:$0xf]
                %516 = vst [vmem:[%s402 + $0xe0] sm:$0xf] %v515
                %v517 = vld [vmem:[%s401 + $0x1c4] sm:$0xf]
                %518 = vst [vmem:[%s402 + $0xe4] sm:$0xf] %v517
                %v519 = vld [vmem:[%s401 + $0x1d0] sm:$0xf]
                %520 = vst [vmem:[%s402 + $0xe8] sm:$0xf] %v519
                %v521 = vld [vmem:[%s401 + $0x1d4] sm:$0xf]
                %522 = vst [vmem:[%s402 + $0xec] sm:$0xf] %v521
                %v523 = vld [vmem:[%s401 + $0x1e0] sm:$0xf]
                %524 = vst [vmem:[%s402 + $0xf0] sm:$0xf] %v523
                %v525 = vld [vmem:[%s401 + $0x1e4] sm:$0xf]
                %526 = vst [vmem:[%s402 + $0xf4] sm:$0xf] %v525
                %v527 = vld [vmem:[%s401 + $0x1f0] sm:$0xf]
                %528 = vst [vmem:[%s402 + $0xf8] sm:$0xf] %v527
                %v529 = vld [vmem:[%s401 + $0x1f4] sm:$0xf]
                %530 = vst [vmem:[%s402 + $0xfc] sm:$0xf] %v529
                %v531 = vld [vmem:[%s401 + $0x200] sm:$0xf]
                %532 = vst [vmem:[%s402 + $0x100] sm:$0xf] %v531
                %v533 = vld [vmem:[%s401 + $0x204] sm:$0xf]
                %534 = vst [vmem:[%s402 + $0x104] sm:$0xf] %v533
                %v535 = vld [vmem:[%s401 + $0x210] sm:$0xf]
                %536 = vst [vmem:[%s402 + $0x108] sm:$0xf] %v535
                %v537 = vld [vmem:[%s401 + $0x214] sm:$0xf]
                %538 = vst [vmem:[%s402 + $0x10c] sm:$0xf] %v537
                %v539 = vld [vmem:[%s401 + $0x220] sm:$0xf]
                %540 = vst [vmem:[%s402 + $0x110] sm:$0xf] %v539
                %v541 = vld [vmem:[%s401 + $0x224] sm:$0xf]
                %542 = vst [vmem:[%s402 + $0x114] sm:$0xf] %v541
                %v543 = vld [vmem:[%s401 + $0x230] sm:$0xf]
                %544 = vst [vmem:[%s402 + $0x118] sm:$0xf] %v543
                %v545 = vld [vmem:[%s401 + $0x234] sm:$0xf]
                %546 = vst [vmem:[%s402 + $0x11c] sm:$0xf] %v545
                %v547 = vld [vmem:[%s401 + $0x240] sm:$0xf]
                %548 = vst [vmem:[%s402 + $0x120] sm:$0xf] %v547
                %v549 = vld [vmem:[%s401 + $0x244] sm:$0xf]
                %550 = vst [vmem:[%s402 + $0x124] sm:$0xf] %v549
                %v551 = vld [vmem:[%s401 + $0x250] sm:$0xf]
                %552 = vst [vmem:[%s402 + $0x128] sm:$0xf] %v551
                %v553 = vld [vmem:[%s401 + $0x254] sm:$0xf]
                %554 = vst [vmem:[%s402 + $0x12c] sm:$0xf] %v553
                %v555 = vld [vmem:[%s401 + $0x260] sm:$0xf]
                %556 = vst [vmem:[%s402 + $0x130] sm:$0xf] %v555
                %v557 = vld [vmem:[%s401 + $0x264] sm:$0xf]
                %558 = vst [vmem:[%s402 + $0x134] sm:$0xf] %v557
                %v559 = vld [vmem:[%s401 + $0x270] sm:$0xf]
                %560 = vst [vmem:[%s402 + $0x138] sm:$0xf] %v559
                %v561 = vld [vmem:[%s401 + $0x274] sm:$0xf]
                %562 = vst [vmem:[%s402 + $0x13c] sm:$0xf] %v561
              $region85: #{cnn_timeseries_forward.1} parent=79 // loop_footer
                %s400 = sadd.s32 1, %s396
              $region86: #{cnn_timeseries_forward.1} parent=79 // loop_footer_branch
                %395 = sbr.rel target = $region82
              $region87: #{cnn_timeseries_forward.1} parent=79 // loop_exit
                _
            $region80: #{cnn_timeseries_forward.1} parent=71 // pred_fallthru
              _
          $region72: #{cnn_timeseries_forward.1} parent=67 // pred_fallthru
            _
          %742 = vnop
        $region68: #{cnn_timeseries_forward.1} parent=63 // pred_fallthru
          _
      $region64: #{cnn_timeseries_forward.1} parent=5 // pred_fallthru
        _
      %p743 = scmp.le.s32.totalorder 1, %s19
      %p744 = scmp.lt.s32.totalorder %s19, 3
      %p745 = pnand %p743, %p744
      %p746 = pneg %p745
      // Predicated region
      $region106: #{cnn_timeseries_forward.1} parent=5 // pred_check
        _
      $region107: #{cnn_timeseries_forward.1} parent=5 // pred_check_branch
        %748 = sbr.rel (%p745) target = $region109
      $region108: #{cnn_timeseries_forward.1} parent=5 // pred_region
        %s749 = ssub.s32 %s19, 1
        %s750 = sand.u32 %s32, 1
        %s751 = sand.u32 %s32, 1
        %s752 = smul.addr %s751, 320
        %s753 = scalar_lea.vmem [#allocation2], %s752
        // Predicated region
        $region110: #{cnn_timeseries_forward.1} parent=108 // pred_check
          %p754 = pneg %p45
        $region111: #{cnn_timeseries_forward.1} parent=108 // pred_check_branch
          %756 = sbr.rel (%p754) target = $region113
        $region112: #{cnn_timeseries_forward.1} parent=108 // pred_region
          _
        $region113: #{cnn_timeseries_forward.1} parent=108 // pred_fallthru
          _
        %s757 = sand.u32 %s32, 1
        %s758 = sand.u32 %s32, 1
        %s759 = smul.addr %s758, 320
        %s760 = scalar_lea.vmem [#allocation2], %s759
        %p761 = pneg %p45
        %p762 = pneg %p42
        %p763 = pneg %p66
        %p764 = pneg %p63
        %p765 = pneg %p87
        %p766 = pneg %p84
        %p767 = pneg %p108
        %p768 = pneg %p105
        %p769 = pneg %p129
        %p770 = pneg %p126
        %p771 = pneg %p150
        %p772 = pneg %p147
        %p773 = pneg %p171
        %p774 = pneg %p168
        %p775 = pneg %p192
        %p776 = pneg %p189
        %p777 = pneg %p213
        %p778 = pneg %p210
        %p779 = pneg %p234
        %p780 = pneg %p231
        %p781 = pneg %p255
        %p782 = pneg %p252
        %p783 = pneg %p276
        %p784 = pneg %p273
        %p785 = pneg %p297
        %p786 = pneg %p294
        %p787 = pneg %p323
        %p788 = pneg %p320
        %s789 = smul.u32 2, %s24
        %p790 = scmp.lt.s32.totalorder %s789, 3
        %s791 = scalar_select %p790, %s789, 3
        %s792 = smul.addr %s791, 8
        %s793 = scalar_lea.vmem %s13, %s792
        %s794 = smul.u32 2, %s24
        %s795 = smul.u32 2, %s24
        %p796 = scmp.lt.s32.totalorder %s795, 3
        %s797 = scalar_select %p796, %s795, 3
        %s798 = smul.addr %s797, 8
        %s799 = scalar_lea.vmem %s13, %s798
        %s800 = smul.u32 2, %s24
        %v802 = vld [vmem:[%s753] sm:$0xf]
        %v803 = vld [vmem:[%s753 + $0x4] sm:$0xf]
        %v804 = vld [vmem:[%s753 + $0x8] sm:$0xf]
        %v805 = vld [vmem:[%s753 + $0xc] sm:$0xf]
        %v806 = vld [vmem:[%s753 + $0x10] sm:$0xf]
        %v807 = vld [vmem:[%s753 + $0x14] sm:$0xf]
        %v808 = vld [vmem:[%s753 + $0x18] sm:$0xf]
        %v809 = vld [vmem:[%s753 + $0x1c] sm:$0xf]
        %v810 = vld [vmem:[%s753 + $0x20] sm:$0xf]
        %v811 = vld [vmem:[%s753 + $0x24] sm:$0xf]
        %v812 = vld [vmem:[%s753 + $0x28] sm:$0xf]
        %v813 = vld [vmem:[%s753 + $0x2c] sm:$0xf]
        %v814 = vld [vmem:[%s753 + $0x30] sm:$0xf]
        %v815 = vld [vmem:[%s753 + $0x34] sm:$0xf]
        %v816 = vld [vmem:[%s753 + $0x38] sm:$0xf]
        %v817 = vld [vmem:[%s753 + $0x3c] sm:$0xf]
        %v818 = vld [vmem:[%s753 + $0x40] sm:$0xf]
        %v819 = vld [vmem:[%s753 + $0x44] sm:$0xf]
        %v820 = vld [vmem:[%s753 + $0x48] sm:$0xf]
        %v821 = vld [vmem:[%s753 + $0x4c] sm:$0xf]
        %v822 = vld [vmem:[%s753 + $0x50] sm:$0xf]
        %v823 = vld [vmem:[%s753 + $0x54] sm:$0xf]
        %v824 = vld [vmem:[%s753 + $0x58] sm:$0xf]
        %v825 = vld [vmem:[%s753 + $0x5c] sm:$0xf]
        %v826 = vld [vmem:[%s753 + $0x60] sm:$0xf]
        %v827 = vld [vmem:[%s753 + $0x64] sm:$0xf]
        %v828 = vld [vmem:[%s753 + $0x68] sm:$0xf]
        %v829 = vld [vmem:[%s753 + $0x6c] sm:$0xf]
        %v830 = vld [vmem:[%s753 + $0x70] sm:$0xf]
        %v831 = vld [vmem:[%s753 + $0x74] sm:$0xf]
        %v832 = vld [vmem:[%s753 + $0x78] sm:$0xf]
        %v833 = vld [vmem:[%s753 + $0x7c] sm:$0xf]
        %v834 = vld [vmem:[%s753 + $0x80] sm:$0xf]
        %v835 = vld [vmem:[%s753 + $0x84] sm:$0xf]
        %v836 = vld [vmem:[%s753 + $0x88] sm:$0xf]
        %v837 = vld [vmem:[%s753 + $0x8c] sm:$0xf]
        %v838 = vld [vmem:[%s753 + $0x90] sm:$0xf]
        %v839 = vld [vmem:[%s753 + $0x94] sm:$0xf]
        %v840 = vld [vmem:[%s753 + $0x98] sm:$0xf]
        %v841 = vld [vmem:[%s753 + $0x9c] sm:$0xf]
        %v842 = vld [vmem:[%s753 + $0xa0] sm:$0xf]
        %v843 = vld [vmem:[%s753 + $0xa4] sm:$0xf]
        %v844 = vld [vmem:[%s753 + $0xa8] sm:$0xf]
        %v845 = vld [vmem:[%s753 + $0xac] sm:$0xf]
        %v846 = vld [vmem:[%s753 + $0xb0] sm:$0xf]
        %v847 = vld [vmem:[%s753 + $0xb4] sm:$0xf]
        %v848 = vld [vmem:[%s753 + $0xb8] sm:$0xf]
        %v849 = vld [vmem:[%s753 + $0xbc] sm:$0xf]
        %v850 = vld [vmem:[%s753 + $0xc0] sm:$0xf]
        %v851 = vld [vmem:[%s753 + $0xc4] sm:$0xf]
        %v852 = vld [vmem:[%s753 + $0xc8] sm:$0xf]
        %v853 = vld [vmem:[%s753 + $0xcc] sm:$0xf]
        %v854 = vld [vmem:[%s753 + $0xd0] sm:$0xf]
        %v855 = vld [vmem:[%s753 + $0xd4] sm:$0xf]
        %v856 = vld [vmem:[%s753 + $0xd8] sm:$0xf]
        %v857 = vld [vmem:[%s753 + $0xdc] sm:$0xf]
        %v858 = vld [vmem:[%s753 + $0xe0] sm:$0xf]
        %v859 = vld [vmem:[%s753 + $0xe4] sm:$0xf]
        %v860 = vld [vmem:[%s753 + $0xe8] sm:$0xf]
        %v861 = vld [vmem:[%s753 + $0xec] sm:$0xf]
        %v862 = vld [vmem:[%s753 + $0xf0] sm:$0xf]
        %v863 = vld [vmem:[%s753 + $0xf4] sm:$0xf]
        %v864 = vld [vmem:[%s753 + $0xf8] sm:$0xf]
        %v865 = vld [vmem:[%s753 + $0xfc] sm:$0xf]
        %v866 = vld [vmem:[%s753 + $0x100] sm:$0xf]
        %v867 = vld [vmem:[%s753 + $0x104] sm:$0xf]
        %v868 = vld [vmem:[%s753 + $0x108] sm:$0xf]
        %v869 = vld [vmem:[%s753 + $0x10c] sm:$0xf]
        %v870 = vld [vmem:[%s753 + $0x110] sm:$0xf]
        %v871 = vld [vmem:[%s753 + $0x114] sm:$0xf]
        %v872 = vld [vmem:[%s753 + $0x118] sm:$0xf]
        %v873 = vld [vmem:[%s753 + $0x11c] sm:$0xf]
        %v874 = vld [vmem:[%s753 + $0x120] sm:$0xf]
        %v875 = vld [vmem:[%s753 + $0x124] sm:$0xf]
        %v876 = vld [vmem:[%s753 + $0x128] sm:$0xf]
        %v877 = vld [vmem:[%s753 + $0x12c] sm:$0xf]
        %v878 = vld [vmem:[%s753 + $0x130] sm:$0xf]
        %v879 = vld [vmem:[%s753 + $0x134] sm:$0xf]
        %v880 = vld [vmem:[%s753 + $0x138] sm:$0xf]
        %v881 = vld [vmem:[%s753 + $0x13c] sm:$0xf]
        %v882 = vld [vmem:[%s1] sm:$0xf]
        %v883 = vld [vmem:[%s1 + $0x4] sm:$0xf]
        %v884 = vld [vmem:[%s1 + $0x8] sm:$0xf]
        %v885 = vld [vmem:[%s2] sm:$0x1]
        %v887 = vlaneseq
        %v888 = vshrl.u32 %v887, 7
        %v889 = vsub.s32 0, %v888
        %v890 = vrot.slane %v885, %v889
        %v972 = vunpack.c.l.b16 %v802
        %v973 = vunpack.c.l.b16 %v803
        %v974 = vunpack.c.l.b16 %v804
        %v975 = vunpack.c.l.b16 %v805
        %v976 = vunpack.c.l.b16 %v806
        %v977 = vunpack.c.l.b16 %v807
        %v978 = vunpack.c.l.b16 %v808
        %v979 = vunpack.c.l.b16 %v809
        %v980 = vunpack.c.l.b16 %v810
        %v981 = vunpack.c.l.b16 %v811
        %v982 = vunpack.c.l.b16 %v812
        %v983 = vunpack.c.l.b16 %v813
        %v984 = vunpack.c.l.b16 %v814
        %v985 = vunpack.c.l.b16 %v815
        %v986 = vunpack.c.l.b16 %v816
        %v987 = vunpack.c.l.b16 %v817
        %v988 = vunpack.c.l.b16 %v818
        %v989 = vunpack.c.l.b16 %v819
        %v990 = vunpack.c.l.b16 %v820
        %v991 = vunpack.c.l.b16 %v821
        %v992 = vunpack.c.l.b16 %v822
        %v993 = vunpack.c.l.b16 %v823
        %v994 = vunpack.c.l.b16 %v824
        %v995 = vunpack.c.l.b16 %v825
        %v996 = vunpack.c.l.b16 %v826
        %v997 = vunpack.c.l.b16 %v827
        %v998 = vunpack.c.l.b16 %v828
        %v999 = vunpack.c.l.b16 %v829
        %v1000 = vunpack.c.l.b16 %v830
        %v1001 = vunpack.c.l.b16 %v831
        %v1002 = vunpack.c.l.b16 %v832
        %v1003 = vunpack.c.l.b16 %v833
        %v1004 = vunpack.c.l.b16 %v834
        %v1005 = vunpack.c.l.b16 %v835
        %v1006 = vunpack.c.l.b16 %v836
        %v1007 = vunpack.c.l.b16 %v837
        %v1008 = vunpack.c.l.b16 %v838
        %v1009 = vunpack.c.l.b16 %v839
        %v1010 = vunpack.c.l.b16 %v840
        %v1011 = vunpack.c.l.b16 %v841
        %v1012 = vunpack.c.l.b16 %v842
        %v1013 = vunpack.c.l.b16 %v843
        %v1014 = vunpack.c.l.b16 %v844
        %v1015 = vunpack.c.l.b16 %v845
        %v1016 = vunpack.c.l.b16 %v846
        %v1017 = vunpack.c.l.b16 %v847
        %v1018 = vunpack.c.l.b16 %v848
        %v1019 = vunpack.c.l.b16 %v849
        %v1020 = vunpack.c.l.b16 %v850
        %v1021 = vunpack.c.l.b16 %v851
        %v1022 = vunpack.c.l.b16 %v852
        %v1023 = vunpack.c.l.b16 %v853
        %v1024 = vunpack.c.l.b16 %v854
        %v1025 = vunpack.c.l.b16 %v855
        %v1026 = vunpack.c.l.b16 %v856
        %v1027 = vunpack.c.l.b16 %v857
        %v1028 = vunpack.c.l.b16 %v858
        %v1029 = vunpack.c.l.b16 %v859
        %v1030 = vunpack.c.l.b16 %v860
        %v1031 = vunpack.c.l.b16 %v861
        %v1032 = vunpack.c.l.b16 %v862
        %v1033 = vunpack.c.l.b16 %v863
        %v1034 = vunpack.c.l.b16 %v864
        %v1035 = vunpack.c.l.b16 %v865
        %v1036 = vunpack.c.l.b16 %v866
        %v1037 = vunpack.c.l.b16 %v867
        %v1038 = vunpack.c.l.b16 %v868
        %v1039 = vunpack.c.l.b16 %v869
        %v1040 = vunpack.c.l.b16 %v870
        %v1041 = vunpack.c.l.b16 %v871
        %v1042 = vunpack.c.l.b16 %v872
        %v1043 = vunpack.c.l.b16 %v873
        %v1044 = vunpack.c.l.b16 %v874
        %v1045 = vunpack.c.l.b16 %v875
        %v1046 = vunpack.c.l.b16 %v876
        %v1047 = vunpack.c.l.b16 %v877
        %v1048 = vunpack.c.l.b16 %v878
        %v1049 = vunpack.c.l.b16 %v879
        %v1050 = vunpack.c.l.b16 %v880
        %v1051 = vunpack.c.l.b16 %v881
        %v1052 = vpack.c.b16 %v973, %v972
        %v1053 = vpack.c.b16 %v975, %v974
        %v1054 = vpack.c.b16 %v977, %v976
        %v1055 = vpack.c.b16 %v979, %v978
        %v1056 = vpack.c.b16 %v981, %v980
        %v1057 = vpack.c.b16 %v983, %v982
        %v1058 = vpack.c.b16 %v985, %v984
        %v1059 = vpack.c.b16 %v987, %v986
        %v1060 = vpack.c.b16 %v989, %v988
        %v1061 = vpack.c.b16 %v991, %v990
        %v1062 = vpack.c.b16 %v993, %v992
        %v1063 = vpack.c.b16 %v995, %v994
        %v1064 = vpack.c.b16 %v997, %v996
        %v1065 = vpack.c.b16 %v999, %v998
        %v1066 = vpack.c.b16 %v1001, %v1000
        %v1067 = vpack.c.b16 %v1003, %v1002
        %v1068 = vpack.c.b16 %v1005, %v1004
        %v1069 = vpack.c.b16 %v1007, %v1006
        %v1070 = vpack.c.b16 %v1009, %v1008
        %v1071 = vpack.c.b16 %v1011, %v1010
        %v1072 = vpack.c.b16 %v1013, %v1012
        %v1073 = vpack.c.b16 %v1015, %v1014
        %v1074 = vpack.c.b16 %v1017, %v1016
        %v1075 = vpack.c.b16 %v1019, %v1018
        %v1076 = vpack.c.b16 %v1021, %v1020
        %v1077 = vpack.c.b16 %v1023, %v1022
        %v1078 = vpack.c.b16 %v1025, %v1024
        %v1079 = vpack.c.b16 %v1027, %v1026
        %v1080 = vpack.c.b16 %v1029, %v1028
        %v1081 = vpack.c.b16 %v1031, %v1030
        %v1082 = vpack.c.b16 %v1033, %v1032
        %v1083 = vpack.c.b16 %v1035, %v1034
        %v1084 = vpack.c.b16 %v1037, %v1036
        %v1085 = vpack.c.b16 %v1039, %v1038
        %v1086 = vpack.c.b16 %v1041, %v1040
        %v1087 = vpack.c.b16 %v1043, %v1042
        %v1088 = vpack.c.b16 %v1045, %v1044
        %v1089 = vpack.c.b16 %v1047, %v1046
        %v1090 = vpack.c.b16 %v1049, %v1048
        %v1091 = vpack.c.b16 %v1051, %v1050
        %v1095 = vunpack.c.l.b16 %v882
        %v1096 = vunpack.c.l.b16 %v883
        %v1097 = vunpack.c.l.b16 %v884
        %v1098 = vpack.c.b16 %v1096, %v1095
        %v1099 = vpack.c.b16 %v1097, %v1097
        %vm1101 = vcmask 195584
        %v1103 = vsel %vm1101, %v1052, 0
        %v1106 = vsel %vm1101, %v1053, 0
        %v1109 = vsel %vm1101, %v1054, 0
        %v1112 = vsel %vm1101, %v1055, 0
        %v1115 = vsel %vm1101, %v1056, 0
        %v1118 = vsel %vm1101, %v1057, 0
        %v1121 = vsel %vm1101, %v1058, 0
        %v1124 = vsel %vm1101, %v1059, 0
        %v1127 = vsel %vm1101, %v1060, 0
        %v1130 = vsel %vm1101, %v1061, 0
        %v1133 = vsel %vm1101, %v1062, 0
        %v1136 = vsel %vm1101, %v1063, 0
        %v1139 = vsel %vm1101, %v1064, 0
        %v1142 = vsel %vm1101, %v1065, 0
        %v1145 = vsel %vm1101, %v1066, 0
        %v1148 = vsel %vm1101, %v1067, 0
        %v1151 = vsel %vm1101, %v1068, 0
        %v1154 = vsel %vm1101, %v1069, 0
        %v1157 = vsel %vm1101, %v1070, 0
        %v1160 = vsel %vm1101, %v1071, 0
        %v1163 = vsel %vm1101, %v1072, 0
        %v1166 = vsel %vm1101, %v1073, 0
        %v1169 = vsel %vm1101, %v1074, 0
        %v1172 = vsel %vm1101, %v1075, 0
        %v1175 = vsel %vm1101, %v1076, 0
        %v1178 = vsel %vm1101, %v1077, 0
        %v1181 = vsel %vm1101, %v1078, 0
        %v1184 = vsel %vm1101, %v1079, 0
        %v1187 = vsel %vm1101, %v1080, 0
        %v1190 = vsel %vm1101, %v1081, 0
        %v1193 = vsel %vm1101, %v1082, 0
        %v1196 = vsel %vm1101, %v1083, 0
        %v1199 = vsel %vm1101, %v1084, 0
        %v1202 = vsel %vm1101, %v1085, 0
        %v1205 = vsel %vm1101, %v1086, 0
        %v1208 = vsel %vm1101, %v1087, 0
        %v1211 = vsel %vm1101, %v1088, 0
        %v1214 = vsel %vm1101, %v1089, 0
        %v1217 = vsel %vm1101, %v1090, 0
        %v1220 = vsel %vm1101, %v1091, 0
        %vm1222 = vcmask 1043456
        %v1224 = vsel %vm1222, %v1099, 0
        %1226 = vmatprep.subr.bf16.mxu0 0
        %1227 = vmatpush1.bf16.msra.mxu0 %v1098
        %1228 = vmatprep.subr.bf16.mxu0 0
        %1229 = vmatpush1.bf16.msra.mxu0 %v1224
        %1230 = vmatprep.subr.bf16.mxu0 0
        %1231 = vmatpush1.bf16.msra.mxu0 0
        %1232 = vmatprep.subr.bf16.mxu0 0
        %1233 = vmatpush1.bf16.msra.mxu0 0
        %1234 = vmatprep.subr.bf16.mxu0 0
        %1235 = vmatpush1.bf16.msra.mxu0 0
        %1236 = vmatprep.subr.bf16.mxu0 0
        %1237 = vmatpush1.bf16.msra.mxu0 0
        %1238 = vmatprep.subr.bf16.mxu0 0
        %1239 = vmatpush1.bf16.msra.mxu0 0
        %1240 = vmatprep.subr.bf16.mxu0 0
        %1241 = vmatpush1.bf16.msra.mxu0 0
        %1242 = vmatprep.subr.bf16.mxu0 0
        %1243 = vmatpush1.bf16.msra.mxu0 0
        %1244 = vmatprep.subr.bf16.mxu0 0
        %1245 = vmatpush1.bf16.msra.mxu0 0
        %1246 = vmatprep.subr.bf16.mxu0 0
        %1247 = vmatpush1.bf16.msra.mxu0 0
        %1248 = vmatprep.subr.bf16.mxu0 0
        %1249 = vmatpush1.bf16.msra.mxu0 0
        %1250 = vmatprep.subr.bf16.mxu0 0
        %1251 = vmatpush1.bf16.msra.mxu0 0
        %1252 = vmatprep.subr.bf16.mxu0 0
        %1253 = vmatpush1.bf16.msra.mxu0 0
        %1254 = vmatprep.subr.bf16.mxu0 0
        %1255 = vmatpush1.bf16.msra.mxu0 0
        %1256 = vmatprep.subr.bf16.mxu0 0
        %1257 = vmatpush1.bf16.msra.mxu0 0
        %1258 = vmatprep.mubr.bf16.mxu0 0
        %1259 = vmatmul.mubr.bf16.gmra.mrb[0].mxu0 %v1103
        %v1260 = vpop.f32.mrb[0].mxu0
        %v1261 = vadd.f32 %v890, %v1260
        %v1262 = vpop.f32.mrb[0].mxu0
        %v1263 = vpop.f32.mrb[0].mxu0
        %v1264 = vadd.f32 %v890, %v1263
        %v1265 = vpop.f32.mrb[0].mxu0
        %1266 = vmatprep.mubr.bf16.mxu0 0
        %1267 = vmatmul.mubr.bf16.gmra.mrb[0].mxu0 %v1106
        %v1268 = vpop.f32.mrb[0].mxu0
        %v1269 = vadd.f32 %v890, %v1268
        %v1270 = vpop.f32.mrb[0].mxu0
        %v1271 = vpop.f32.mrb[0].mxu0
        %v1272 = vadd.f32 %v890, %v1271
        %v1273 = vpop.f32.mrb[0].mxu0
        %1274 = vmatprep.mubr.bf16.mxu0 0
        %1275 = vmatmul.mubr.bf16.gmra.mrb[0].mxu0 %v1109
        %v1276 = vpop.f32.mrb[0].mxu0
        %v1277 = vadd.f32 %v890, %v1276
        %v1278 = vpop.f32.mrb[0].mxu0
        %v1279 = vpop.f32.mrb[0].mxu0
        %v1280 = vadd.f32 %v890, %v1279
        %v1281 = vpop.f32.mrb[0].mxu0
        %1282 = vmatprep.mubr.bf16.mxu0 0
        %1283 = vmatmul.mubr.bf16.gmra.mrb[0].mxu0 %v1112
        %v1284 = vpop.f32.mrb[0].mxu0
        %v1285 = vadd.f32 %v890, %v1284
        %v1286 = vpop.f32.mrb[0].mxu0
        %v1287 = vpop.f32.mrb[0].mxu0
        %v1288 = vadd.f32 %v890, %v1287
        %v1289 = vpop.f32.mrb[0].mxu0
        %1290 = vmatprep.mubr.bf16.mxu0 0
        %1291 = vmatmul.mubr.bf16.gmra.mrb[0].mxu0 %v1115
        %v1292 = vpop.f32.mrb[0].mxu0
        %v1293 = vadd.f32 %v890, %v1292
        %v1294 = vpop.f32.mrb[0].mxu0
        %v1295 = vpop.f32.mrb[0].mxu0
        %v1296 = vadd.f32 %v890, %v1295
        %v1297 = vpop.f32.mrb[0].mxu0
        %1298 = vmatprep.mubr.bf16.mxu0 0
        %1299 = vmatmul.mubr.bf16.gmra.mrb[0].mxu0 %v1118
        %v1300 = vpop.f32.mrb[0].mxu0
        %v1301 = vadd.f32 %v890, %v1300
        %v1302 = vpop.f32.mrb[0].mxu0
        %v1303 = vpop.f32.mrb[0].mxu0
        %v1304 = vadd.f32 %v890, %v1303
        %v1305 = vpop.f32.mrb[0].mxu0
        %1306 = vmatprep.mubr.bf16.mxu0 0
        %1307 = vmatmul.mubr.bf16.gmra.mrb[0].mxu0 %v1121
        %v1308 = vpop.f32.mrb[0].mxu0
        %v1309 = vadd.f32 %v890, %v1308
        %v1310 = vpop.f32.mrb[0].mxu0
        %v1311 = vpop.f32.mrb[0].mxu0
        %v1312 = vadd.f32 %v890, %v1311
        %v1313 = vpop.f32.mrb[0].mxu0
        %1314 = vmatprep.mubr.bf16.mxu0 0
        %1315 = vmatmul.mubr.bf16.gmra.mrb[0].mxu0 %v1124
        %v1316 = vpop.f32.mrb[0].mxu0
        %v1317 = vadd.f32 %v890, %v1316
        %v1318 = vpop.f32.mrb[0].mxu0
        %v1319 = vpop.f32.mrb[0].mxu0
        %v1320 = vadd.f32 %v890, %v1319
        %v1321 = vpop.f32.mrb[0].mxu0
        %1322 = vmatprep.mubr.bf16.mxu0 0
        %1323 = vmatmul.mubr.bf16.gmra.mrb[0].mxu0 %v1127
        %v1324 = vpop.f32.mrb[0].mxu0
        %v1325 = vadd.f32 %v890, %v1324
        %v1326 = vpop.f32.mrb[0].mxu0
        %v1327 = vpop.f32.mrb[0].mxu0
        %v1328 = vadd.f32 %v890, %v1327
        %v1329 = vpop.f32.mrb[0].mxu0
        %1330 = vmatprep.mubr.bf16.mxu0 0
        %1331 = vmatmul.mubr.bf16.gmra.mrb[0].mxu0 %v1130
        %v1332 = vpop.f32.mrb[0].mxu0
        %v1333 = vadd.f32 %v890, %v1332
        %v1334 = vpop.f32.mrb[0].mxu0
        %v1335 = vpop.f32.mrb[0].mxu0
        %v1336 = vadd.f32 %v890, %v1335
        %v1337 = vpop.f32.mrb[0].mxu0
        %1338 = vmatprep.mubr.bf16.mxu0 0
        %1339 = vmatmul.mubr.bf16.gmra.mrb[0].mxu0 %v1133
        %v1340 = vpop.f32.mrb[0].mxu0
        %v1341 = vadd.f32 %v890, %v1340
        %v1342 = vpop.f32.mrb[0].mxu0
        %v1343 = vpop.f32.mrb[0].mxu0
        %v1344 = vadd.f32 %v890, %v1343
        %v1345 = vpop.f32.mrb[0].mxu0
        %1346 = vmatprep.mubr.bf16.mxu0 0
        %1347 = vmatmul.mubr.bf16.gmra.mrb[0].mxu0 %v1136
        %v1348 = vpop.f32.mrb[0].mxu0
        %v1349 = vadd.f32 %v890, %v1348
        %v1350 = vpop.f32.mrb[0].mxu0
        %v1351 = vpop.f32.mrb[0].mxu0
        %v1352 = vadd.f32 %v890, %v1351
        %v1353 = vpop.f32.mrb[0].mxu0
        %1354 = vmatprep.mubr.bf16.mxu0 0
        %1355 = vmatmul.mubr.bf16.gmra.mrb[0].mxu0 %v1139
        %v1356 = vpop.f32.mrb[0].mxu0
        %v1357 = vadd.f32 %v890, %v1356
        %v1358 = vpop.f32.mrb[0].mxu0
        %v1359 = vpop.f32.mrb[0].mxu0
        %v1360 = vadd.f32 %v890, %v1359
        %v1361 = vpop.f32.mrb[0].mxu0
        %1362 = vmatprep.mubr.bf16.mxu0 0
        %1363 = vmatmul.mubr.bf16.gmra.mrb[0].mxu0 %v1142
        %v1364 = vpop.f32.mrb[0].mxu0
        %v1365 = vadd.f32 %v890, %v1364
        %v1366 = vpop.f32.mrb[0].mxu0
        %v1367 = vpop.f32.mrb[0].mxu0
        %v1368 = vadd.f32 %v890, %v1367
        %v1369 = vpop.f32.mrb[0].mxu0
        %1370 = vmatprep.mubr.bf16.mxu0 0
        %1371 = vmatmul.mubr.bf16.gmra.mrb[0].mxu0 %v1145
        %v1372 = vpop.f32.mrb[0].mxu0
        %v1373 = vadd.f32 %v890, %v1372
        %v1374 = vpop.f32.mrb[0].mxu0
        %v1375 = vpop.f32.mrb[0].mxu0
        %v1376 = vadd.f32 %v890, %v1375
        %v1377 = vpop.f32.mrb[0].mxu0
        %1378 = vmatprep.mubr.bf16.mxu0 0
        %1379 = vmatmul.mubr.bf16.gmra.mrb[0].mxu0 %v1148
        %v1380 = vpop.f32.mrb[0].mxu0
        %v1381 = vadd.f32 %v890, %v1380
        %v1382 = vpop.f32.mrb[0].mxu0
        %v1383 = vpop.f32.mrb[0].mxu0
        %v1384 = vadd.f32 %v890, %v1383
        %v1385 = vpop.f32.mrb[0].mxu0
        %1386 = vmatprep.mubr.bf16.mxu0 0
        %1387 = vmatmul.mubr.bf16.gmra.mrb[0].mxu0 %v1151
        %v1388 = vpop.f32.mrb[0].mxu0
        %v1389 = vadd.f32 %v890, %v1388
        %v1390 = vpop.f32.mrb[0].mxu0
        %v1391 = vpop.f32.mrb[0].mxu0
        %v1392 = vadd.f32 %v890, %v1391
        %v1393 = vpop.f32.mrb[0].mxu0
        %1394 = vmatprep.mubr.bf16.mxu0 0
        %1395 = vmatmul.mubr.bf16.gmra.mrb[0].mxu0 %v1154
        %v1396 = vpop.f32.mrb[0].mxu0
        %v1397 = vadd.f32 %v890, %v1396
        %v1398 = vpop.f32.mrb[0].mxu0
        %v1399 = vpop.f32.mrb[0].mxu0
        %v1400 = vadd.f32 %v890, %v1399
        %v1401 = vpop.f32.mrb[0].mxu0
        %1402 = vmatprep.mubr.bf16.mxu0 0
        %1403 = vmatmul.mubr.bf16.gmra.mrb[0].mxu0 %v1157
        %v1404 = vpop.f32.mrb[0].mxu0
        %v1405 = vadd.f32 %v890, %v1404
        %v1406 = vpop.f32.mrb[0].mxu0
        %v1407 = vpop.f32.mrb[0].mxu0
        %v1408 = vadd.f32 %v890, %v1407
        %v1409 = vpop.f32.mrb[0].mxu0
        %1410 = vmatprep.mubr.bf16.mxu0 0
        %1411 = vmatmul.mubr.bf16.gmra.mrb[0].mxu0 %v1160
        %v1412 = vpop.f32.mrb[0].mxu0
        %v1413 = vadd.f32 %v890, %v1412
        %v1414 = vpop.f32.mrb[0].mxu0
        %v1415 = vpop.f32.mrb[0].mxu0
        %v1416 = vadd.f32 %v890, %v1415
        %v1417 = vpop.f32.mrb[0].mxu0
        %1418 = vmatprep.mubr.bf16.mxu0 0
        %1419 = vmatmul.mubr.bf16.gmra.mrb[0].mxu0 %v1163
        %v1420 = vpop.f32.mrb[0].mxu0
        %v1421 = vadd.f32 %v890, %v1420
        %v1422 = vpop.f32.mrb[0].mxu0
        %v1423 = vpop.f32.mrb[0].mxu0
        %v1424 = vadd.f32 %v890, %v1423
        %v1425 = vpop.f32.mrb[0].mxu0
        %1426 = vmatprep.mubr.bf16.mxu0 0
        %1427 = vmatmul.mubr.bf16.gmra.mrb[0].mxu0 %v1166
        %v1428 = vpop.f32.mrb[0].mxu0
        %v1429 = vadd.f32 %v890, %v1428
        %v1430 = vpop.f32.mrb[0].mxu0
        %v1431 = vpop.f32.mrb[0].mxu0
        %v1432 = vadd.f32 %v890, %v1431
        %v1433 = vpop.f32.mrb[0].mxu0
        %1434 = vmatprep.mubr.bf16.mxu0 0
        %1435 = vmatmul.mubr.bf16.gmra.mrb[0].mxu0 %v1169
        %v1436 = vpop.f32.mrb[0].mxu0
        %v1437 = vadd.f32 %v890, %v1436
        %v1438 = vpop.f32.mrb[0].mxu0
        %v1439 = vpop.f32.mrb[0].mxu0
        %v1440 = vadd.f32 %v890, %v1439
        %v1441 = vpop.f32.mrb[0].mxu0
        %1442 = vmatprep.mubr.bf16.mxu0 0
        %1443 = vmatmul.mubr.bf16.gmra.mrb[0].mxu0 %v1172
        %v1444 = vpop.f32.mrb[0].mxu0
        %v1445 = vadd.f32 %v890, %v1444
        %v1446 = vpop.f32.mrb[0].mxu0
        %v1447 = vpop.f32.mrb[0].mxu0
        %v1448 = vadd.f32 %v890, %v1447
        %v1449 = vpop.f32.mrb[0].mxu0
        %1450 = vmatprep.mubr.bf16.mxu0 0
        %1451 = vmatmul.mubr.bf16.gmra.mrb[0].mxu0 %v1175
        %v1452 = vpop.f32.mrb[0].mxu0
        %v1453 = vadd.f32 %v890, %v1452
        %v1454 = vpop.f32.mrb[0].mxu0
        %v1455 = vpop.f32.mrb[0].mxu0
        %v1456 = vadd.f32 %v890, %v1455
        %v1457 = vpop.f32.mrb[0].mxu0
        %1458 = vmatprep.mubr.bf16.mxu0 0
        %1459 = vmatmul.mubr.bf16.gmra.mrb[0].mxu0 %v1178
        %v1460 = vpop.f32.mrb[0].mxu0
        %v1461 = vadd.f32 %v890, %v1460
        %v1462 = vpop.f32.mrb[0].mxu0
        %v1463 = vpop.f32.mrb[0].mxu0
        %v1464 = vadd.f32 %v890, %v1463
        %v1465 = vpop.f32.mrb[0].mxu0
        %1466 = vmatprep.mubr.bf16.mxu0 0
        %1467 = vmatmul.mubr.bf16.gmra.mrb[0].mxu0 %v1181
        %v1468 = vpop.f32.mrb[0].mxu0
        %v1469 = vadd.f32 %v890, %v1468
        %v1470 = vpop.f32.mrb[0].mxu0
        %v1471 = vpop.f32.mrb[0].mxu0
        %v1472 = vadd.f32 %v890, %v1471
        %v1473 = vpop.f32.mrb[0].mxu0
        %1474 = vmatprep.mubr.bf16.mxu0 0
        %1475 = vmatmul.mubr.bf16.gmra.mrb[0].mxu0 %v1184
        %v1476 = vpop.f32.mrb[0].mxu0
        %v1477 = vadd.f32 %v890, %v1476
        %v1478 = vpop.f32.mrb[0].mxu0
        %v1479 = vpop.f32.mrb[0].mxu0
        %v1480 = vadd.f32 %v890, %v1479
        %v1481 = vpop.f32.mrb[0].mxu0
        %1482 = vmatprep.mubr.bf16.mxu0 0
        %1483 = vmatmul.mubr.bf16.gmra.mrb[0].mxu0 %v1187
        %v1484 = vpop.f32.mrb[0].mxu0
        %v1485 = vadd.f32 %v890, %v1484
        %v1486 = vpop.f32.mrb[0].mxu0
        %v1487 = vpop.f32.mrb[0].mxu0
        %v1488 = vadd.f32 %v890, %v1487
        %v1489 = vpop.f32.mrb[0].mxu0
        %1490 = vmatprep.mubr.bf16.mxu0 0
        %1491 = vmatmul.mubr.bf16.gmra.mrb[0].mxu0 %v1190
        %v1492 = vpop.f32.mrb[0].mxu0
        %v1493 = vadd.f32 %v890, %v1492
        %v1494 = vpop.f32.mrb[0].mxu0
        %v1495 = vpop.f32.mrb[0].mxu0
        %v1496 = vadd.f32 %v890, %v1495
        %v1497 = vpop.f32.mrb[0].mxu0
        %1498 = vmatprep.mubr.bf16.mxu0 0
        %1499 = vmatmul.mubr.bf16.gmra.mrb[0].mxu0 %v1193
        %v1500 = vpop.f32.mrb[0].mxu0
        %v1501 = vadd.f32 %v890, %v1500
        %v1502 = vpop.f32.mrb[0].mxu0
        %v1503 = vpop.f32.mrb[0].mxu0
        %v1504 = vadd.f32 %v890, %v1503
        %v1505 = vpop.f32.mrb[0].mxu0
        %1506 = vmatprep.mubr.bf16.mxu0 0
        %1507 = vmatmul.mubr.bf16.gmra.mrb[0].mxu0 %v1196
        %v1508 = vpop.f32.mrb[0].mxu0
        %v1509 = vadd.f32 %v890, %v1508
        %v1510 = vpop.f32.mrb[0].mxu0
        %v1511 = vpop.f32.mrb[0].mxu0
        %v1512 = vadd.f32 %v890, %v1511
        %v1513 = vpop.f32.mrb[0].mxu0
        %1514 = vmatprep.mubr.bf16.mxu0 0
        %1515 = vmatmul.mubr.bf16.gmra.mrb[0].mxu0 %v1199
        %v1516 = vpop.f32.mrb[0].mxu0
        %v1517 = vadd.f32 %v890, %v1516
        %v1518 = vpop.f32.mrb[0].mxu0
        %v1519 = vpop.f32.mrb[0].mxu0
        %v1520 = vadd.f32 %v890, %v1519
        %v1521 = vpop.f32.mrb[0].mxu0
        %1522 = vmatprep.mubr.bf16.mxu0 0
        %1523 = vmatmul.mubr.bf16.gmra.mrb[0].mxu0 %v1202
        %v1524 = vpop.f32.mrb[0].mxu0
        %v1525 = vadd.f32 %v890, %v1524
        %v1526 = vpop.f32.mrb[0].mxu0
        %v1527 = vpop.f32.mrb[0].mxu0
        %v1528 = vadd.f32 %v890, %v1527
        %v1529 = vpop.f32.mrb[0].mxu0
        %1530 = vmatprep.mubr.bf16.mxu0 0
        %1531 = vmatmul.mubr.bf16.gmra.mrb[0].mxu0 %v1205
        %v1532 = vpop.f32.mrb[0].mxu0
        %v1533 = vadd.f32 %v890, %v1532
        %v1534 = vpop.f32.mrb[0].mxu0
        %v1535 = vpop.f32.mrb[0].mxu0
        %v1536 = vadd.f32 %v890, %v1535
        %v1537 = vpop.f32.mrb[0].mxu0
        %1538 = vmatprep.mubr.bf16.mxu0 0
        %1539 = vmatmul.mubr.bf16.gmra.mrb[0].mxu0 %v1208
        %v1540 = vpop.f32.mrb[0].mxu0
        %v1541 = vadd.f32 %v890, %v1540
        %v1542 = vpop.f32.mrb[0].mxu0
        %v1543 = vpop.f32.mrb[0].mxu0
        %v1544 = vadd.f32 %v890, %v1543
        %v1545 = vpop.f32.mrb[0].mxu0
        %1546 = vmatprep.mubr.bf16.mxu0 0
        %1547 = vmatmul.mubr.bf16.gmra.mrb[0].mxu0 %v1211
        %v1548 = vpop.f32.mrb[0].mxu0
        %v1549 = vadd.f32 %v890, %v1548
        %v1550 = vpop.f32.mrb[0].mxu0
        %v1551 = vpop.f32.mrb[0].mxu0
        %v1552 = vadd.f32 %v890, %v1551
        %v1553 = vpop.f32.mrb[0].mxu0
        %1554 = vmatprep.mubr.bf16.mxu0 0
        %1555 = vmatmul.mubr.bf16.gmra.mrb[0].mxu0 %v1214
        %v1556 = vpop.f32.mrb[0].mxu0
        %v1557 = vadd.f32 %v890, %v1556
        %v1558 = vpop.f32.mrb[0].mxu0
        %v1559 = vpop.f32.mrb[0].mxu0
        %v1560 = vadd.f32 %v890, %v1559
        %v1561 = vpop.f32.mrb[0].mxu0
        %1562 = vmatprep.mubr.bf16.mxu0 0
        %1563 = vmatmul.mubr.bf16.gmra.mrb[0].mxu0 %v1217
        %v1564 = vpop.f32.mrb[0].mxu0
        %v1565 = vadd.f32 %v890, %v1564
        %v1566 = vpop.f32.mrb[0].mxu0
        %v1567 = vpop.f32.mrb[0].mxu0
        %v1568 = vadd.f32 %v890, %v1567
        %v1569 = vpop.f32.mrb[0].mxu0
        %1570 = vmatprep.mubr.bf16.mxu0 0
        %1571 = vmatmul.mubr.bf16.gmra.mrb[0].mxu0 %v1220
        %v1572 = vpop.f32.mrb[0].mxu0
        %v1573 = vadd.f32 %v890, %v1572
        %v1574 = vpop.f32.mrb[0].mxu0
        %v1575 = vpop.f32.mrb[0].mxu0
        %v1576 = vadd.f32 %v890, %v1575
        %v1577 = vpop.f32.mrb[0].mxu0
        %1578 = vdwg.mxu0
        %v1579 = vmax.f32 %v1261, 0.0
        %v1580 = vmax.f32 %v1264, 0.0
        %v1581 = vmax.f32 %v1269, 0.0
        %v1582 = vmax.f32 %v1272, 0.0
        %v1583 = vmax.f32 %v1277, 0.0
        %v1584 = vmax.f32 %v1280, 0.0
        %v1585 = vmax.f32 %v1285, 0.0
        %v1586 = vmax.f32 %v1288, 0.0
        %v1587 = vmax.f32 %v1293, 0.0
        %v1588 = vmax.f32 %v1296, 0.0
        %v1589 = vmax.f32 %v1301, 0.0
        %v1590 = vmax.f32 %v1304, 0.0
        %v1591 = vmax.f32 %v1309, 0.0
        %v1592 = vmax.f32 %v1312, 0.0
        %v1593 = vmax.f32 %v1317, 0.0
        %v1594 = vmax.f32 %v1320, 0.0
        %v1595 = vmax.f32 %v1325, 0.0
        %v1596 = vmax.f32 %v1328, 0.0
        %v1597 = vmax.f32 %v1333, 0.0
        %v1598 = vmax.f32 %v1336, 0.0
        %v1599 = vmax.f32 %v1341, 0.0
        %v1600 = vmax.f32 %v1344, 0.0
        %v1601 = vmax.f32 %v1349, 0.0
        %v1602 = vmax.f32 %v1352, 0.0
        %v1603 = vmax.f32 %v1357, 0.0
        %v1604 = vmax.f32 %v1360, 0.0
        %v1605 = vmax.f32 %v1365, 0.0
        %v1606 = vmax.f32 %v1368, 0.0
        %v1607 = vmax.f32 %v1373, 0.0
        %v1608 = vmax.f32 %v1376, 0.0
        %v1609 = vmax.f32 %v1381, 0.0
        %v1610 = vmax.f32 %v1384, 0.0
        %v1611 = vmax.f32 %v1389, 0.0
        %v1612 = vmax.f32 %v1392, 0.0
        %v1613 = vmax.f32 %v1397, 0.0
        %v1614 = vmax.f32 %v1400, 0.0
        %v1615 = vmax.f32 %v1405, 0.0
        %v1616 = vmax.f32 %v1408, 0.0
        %v1617 = vmax.f32 %v1413, 0.0
        %v1618 = vmax.f32 %v1416, 0.0
        %v1619 = vmax.f32 %v1421, 0.0
        %v1620 = vmax.f32 %v1424, 0.0
        %v1621 = vmax.f32 %v1429, 0.0
        %v1622 = vmax.f32 %v1432, 0.0
        %v1623 = vmax.f32 %v1437, 0.0
        %v1624 = vmax.f32 %v1440, 0.0
        %v1625 = vmax.f32 %v1445, 0.0
        %v1626 = vmax.f32 %v1448, 0.0
        %v1627 = vmax.f32 %v1453, 0.0
        %v1628 = vmax.f32 %v1456, 0.0
        %v1629 = vmax.f32 %v1461, 0.0
        %v1630 = vmax.f32 %v1464, 0.0
        %v1631 = vmax.f32 %v1469, 0.0
        %v1632 = vmax.f32 %v1472, 0.0
        %v1633 = vmax.f32 %v1477, 0.0
        %v1634 = vmax.f32 %v1480, 0.0
        %v1635 = vmax.f32 %v1485, 0.0
        %v1636 = vmax.f32 %v1488, 0.0
        %v1637 = vmax.f32 %v1493, 0.0
        %v1638 = vmax.f32 %v1496, 0.0
        %v1639 = vmax.f32 %v1501, 0.0
        %v1640 = vmax.f32 %v1504, 0.0
        %v1641 = vmax.f32 %v1509, 0.0
        %v1642 = vmax.f32 %v1512, 0.0
        %v1643 = vmax.f32 %v1517, 0.0
        %v1644 = vmax.f32 %v1520, 0.0
        %v1645 = vmax.f32 %v1525, 0.0
        %v1646 = vmax.f32 %v1528, 0.0
        %v1647 = vmax.f32 %v1533, 0.0
        %v1648 = vmax.f32 %v1536, 0.0
        %v1649 = vmax.f32 %v1541, 0.0
        %v1650 = vmax.f32 %v1544, 0.0
        %v1651 = vmax.f32 %v1549, 0.0
        %v1652 = vmax.f32 %v1552, 0.0
        %v1653 = vmax.f32 %v1557, 0.0
        %v1654 = vmax.f32 %v1560, 0.0
        %v1655 = vmax.f32 %v1565, 0.0
        %v1656 = vmax.f32 %v1568, 0.0
        %v1657 = vmax.f32 %v1573, 0.0
        %v1658 = vmax.f32 %v1576, 0.0
        %1739 = vrot.lane.b32.xlu0 %v1579, 96
        %v1740 = vpop.permute.xlu0 %1739
        %1741 = vrot.lane.b32.xlu0 %v1580, 96
        %v1742 = vpop.permute.xlu0 %1741
        %1743 = vrot.lane.b32.xlu0 %v1581, 96
        %v1744 = vpop.permute.xlu0 %1743
        %1745 = vrot.lane.b32.xlu0 %v1582, 96
        %v1746 = vpop.permute.xlu0 %1745
        %1747 = vrot.lane.b32.xlu0 %v1583, 96
        %v1748 = vpop.permute.xlu0 %1747
        %1749 = vrot.lane.b32.xlu0 %v1584, 96
        %v1750 = vpop.permute.xlu0 %1749
        %1751 = vrot.lane.b32.xlu0 %v1585, 96
        %v1752 = vpop.permute.xlu0 %1751
        %1753 = vrot.lane.b32.xlu0 %v1586, 96
        %v1754 = vpop.permute.xlu0 %1753
        %1755 = vrot.lane.b32.xlu0 %v1587, 96
        %v1756 = vpop.permute.xlu0 %1755
        %1757 = vrot.lane.b32.xlu0 %v1588, 96
        %v1758 = vpop.permute.xlu0 %1757
        %1759 = vrot.lane.b32.xlu0 %v1589, 96
        %v1760 = vpop.permute.xlu0 %1759
        %1761 = vrot.lane.b32.xlu0 %v1590, 96
        %v1762 = vpop.permute.xlu0 %1761
        %1763 = vrot.lane.b32.xlu0 %v1591, 96
        %v1764 = vpop.permute.xlu0 %1763
        %1765 = vrot.lane.b32.xlu0 %v1592, 96
        %v1766 = vpop.permute.xlu0 %1765
        %1767 = vrot.lane.b32.xlu0 %v1593, 96
        %v1768 = vpop.permute.xlu0 %1767
        %1769 = vrot.lane.b32.xlu0 %v1594, 96
        %v1770 = vpop.permute.xlu0 %1769
        %1771 = vrot.lane.b32.xlu0 %v1595, 96
        %v1772 = vpop.permute.xlu0 %1771
        %1773 = vrot.lane.b32.xlu0 %v1596, 96
        %v1774 = vpop.permute.xlu0 %1773
        %1775 = vrot.lane.b32.xlu0 %v1597, 96
        %v1776 = vpop.permute.xlu0 %1775
        %1777 = vrot.lane.b32.xlu0 %v1598, 96
        %v1778 = vpop.permute.xlu0 %1777
        %1779 = vrot.lane.b32.xlu0 %v1599, 96
        %v1780 = vpop.permute.xlu0 %1779
        %1781 = vrot.lane.b32.xlu0 %v1600, 96
        %v1782 = vpop.permute.xlu0 %1781
        %1783 = vrot.lane.b32.xlu0 %v1601, 96
        %v1784 = vpop.permute.xlu0 %1783
        %1785 = vrot.lane.b32.xlu0 %v1602, 96
        %v1786 = vpop.permute.xlu0 %1785
        %1787 = vrot.lane.b32.xlu0 %v1603, 96
        %v1788 = vpop.permute.xlu0 %1787
        %1789 = vrot.lane.b32.xlu0 %v1604, 96
        %v1790 = vpop.permute.xlu0 %1789
        %1791 = vrot.lane.b32.xlu0 %v1605, 96
        %v1792 = vpop.permute.xlu0 %1791
        %1793 = vrot.lane.b32.xlu0 %v1606, 96
        %v1794 = vpop.permute.xlu0 %1793
        %1795 = vrot.lane.b32.xlu0 %v1607, 96
        %v1796 = vpop.permute.xlu0 %1795
        %1797 = vrot.lane.b32.xlu0 %v1608, 96
        %v1798 = vpop.permute.xlu0 %1797
        %1799 = vrot.lane.b32.xlu0 %v1609, 96
        %v1800 = vpop.permute.xlu0 %1799
        %1801 = vrot.lane.b32.xlu0 %v1610, 96
        %v1802 = vpop.permute.xlu0 %1801
        %1803 = vrot.lane.b32.xlu0 %v1611, 96
        %v1804 = vpop.permute.xlu0 %1803
        %1805 = vrot.lane.b32.xlu0 %v1612, 96
        %v1806 = vpop.permute.xlu0 %1805
        %1807 = vrot.lane.b32.xlu0 %v1613, 96
        %v1808 = vpop.permute.xlu0 %1807
        %1809 = vrot.lane.b32.xlu0 %v1614, 96
        %v1810 = vpop.permute.xlu0 %1809
        %1811 = vrot.lane.b32.xlu0 %v1615, 96
        %v1812 = vpop.permute.xlu0 %1811
        %1813 = vrot.lane.b32.xlu0 %v1616, 96
        %v1814 = vpop.permute.xlu0 %1813
        %1815 = vrot.lane.b32.xlu0 %v1617, 96
        %v1816 = vpop.permute.xlu0 %1815
        %1817 = vrot.lane.b32.xlu0 %v1618, 96
        %v1818 = vpop.permute.xlu0 %1817
        %1819 = vrot.lane.b32.xlu0 %v1619, 96
        %v1820 = vpop.permute.xlu0 %1819
        %1821 = vrot.lane.b32.xlu0 %v1620, 96
        %v1822 = vpop.permute.xlu0 %1821
        %1823 = vrot.lane.b32.xlu0 %v1621, 96
        %v1824 = vpop.permute.xlu0 %1823
        %1825 = vrot.lane.b32.xlu0 %v1622, 96
        %v1826 = vpop.permute.xlu0 %1825
        %1827 = vrot.lane.b32.xlu0 %v1623, 96
        %v1828 = vpop.permute.xlu0 %1827
        %1829 = vrot.lane.b32.xlu0 %v1624, 96
        %v1830 = vpop.permute.xlu0 %1829
        %1831 = vrot.lane.b32.xlu0 %v1625, 96
        %v1832 = vpop.permute.xlu0 %1831
        %1833 = vrot.lane.b32.xlu0 %v1626, 96
        %v1834 = vpop.permute.xlu0 %1833
        %1835 = vrot.lane.b32.xlu0 %v1627, 96
        %v1836 = vpop.permute.xlu0 %1835
        %1837 = vrot.lane.b32.xlu0 %v1628, 96
        %v1838 = vpop.permute.xlu0 %1837
        %1839 = vrot.lane.b32.xlu0 %v1629, 96
        %v1840 = vpop.permute.xlu0 %1839
        %1841 = vrot.lane.b32.xlu0 %v1630, 96
        %v1842 = vpop.permute.xlu0 %1841
        %1843 = vrot.lane.b32.xlu0 %v1631, 96
        %v1844 = vpop.permute.xlu0 %1843
        %1845 = vrot.lane.b32.xlu0 %v1632, 96
        %v1846 = vpop.permute.xlu0 %1845
        %1847 = vrot.lane.b32.xlu0 %v1633, 96
        %v1848 = vpop.permute.xlu0 %1847
        %1849 = vrot.lane.b32.xlu0 %v1634, 96
        %v1850 = vpop.permute.xlu0 %1849
        %1851 = vrot.lane.b32.xlu0 %v1635, 96
        %v1852 = vpop.permute.xlu0 %1851
        %1853 = vrot.lane.b32.xlu0 %v1636, 96
        %v1854 = vpop.permute.xlu0 %1853
        %1855 = vrot.lane.b32.xlu0 %v1637, 96
        %v1856 = vpop.permute.xlu0 %1855
        %1857 = vrot.lane.b32.xlu0 %v1638, 96
        %v1858 = vpop.permute.xlu0 %1857
        %1859 = vrot.lane.b32.xlu0 %v1639, 96
        %v1860 = vpop.permute.xlu0 %1859
        %1861 = vrot.lane.b32.xlu0 %v1640, 96
        %v1862 = vpop.permute.xlu0 %1861
        %1863 = vrot.lane.b32.xlu0 %v1641, 96
        %v1864 = vpop.permute.xlu0 %1863
        %1865 = vrot.lane.b32.xlu0 %v1642, 96
        %v1866 = vpop.permute.xlu0 %1865
        %1867 = vrot.lane.b32.xlu0 %v1643, 96
        %v1868 = vpop.permute.xlu0 %1867
        %1869 = vrot.lane.b32.xlu0 %v1644, 96
        %v1870 = vpop.permute.xlu0 %1869
        %1871 = vrot.lane.b32.xlu0 %v1645, 96
        %v1872 = vpop.permute.xlu0 %1871
        %1873 = vrot.lane.b32.xlu0 %v1646, 96
        %v1874 = vpop.permute.xlu0 %1873
        %1875 = vrot.lane.b32.xlu0 %v1647, 96
        %v1876 = vpop.permute.xlu0 %1875
        %1877 = vrot.lane.b32.xlu0 %v1648, 96
        %v1878 = vpop.permute.xlu0 %1877
        %1879 = vrot.lane.b32.xlu0 %v1649, 96
        %v1880 = vpop.permute.xlu0 %1879
        %1881 = vrot.lane.b32.xlu0 %v1650, 96
        %v1882 = vpop.permute.xlu0 %1881
        %1883 = vrot.lane.b32.xlu0 %v1651, 96
        %v1884 = vpop.permute.xlu0 %1883
        %1885 = vrot.lane.b32.xlu0 %v1652, 96
        %v1886 = vpop.permute.xlu0 %1885
        %1887 = vrot.lane.b32.xlu0 %v1653, 96
        %v1888 = vpop.permute.xlu0 %1887
        %1889 = vrot.lane.b32.xlu0 %v1654, 96
        %v1890 = vpop.permute.xlu0 %1889
        %1891 = vrot.lane.b32.xlu0 %v1655, 96
        %v1892 = vpop.permute.xlu0 %1891
        %1893 = vrot.lane.b32.xlu0 %v1656, 96
        %v1894 = vpop.permute.xlu0 %1893
        %1895 = vrot.lane.b32.xlu0 %v1657, 96
        %v1896 = vpop.permute.xlu0 %1895
        %1897 = vrot.lane.b32.xlu0 %v1658, 96
        %v1898 = vpop.permute.xlu0 %1897
        %v1979 = vmax.f32 %v1579, %v1740
        %v1980 = vmax.f32 %v1580, %v1742
        %v1981 = vmax.f32 %v1581, %v1744
        %v1982 = vmax.f32 %v1582, %v1746
        %v1983 = vmax.f32 %v1583, %v1748
        %v1984 = vmax.f32 %v1584, %v1750
        %v1985 = vmax.f32 %v1585, %v1752
        %v1986 = vmax.f32 %v1586, %v1754
        %v1987 = vmax.f32 %v1587, %v1756
        %v1988 = vmax.f32 %v1588, %v1758
        %v1989 = vmax.f32 %v1589, %v1760
        %v1990 = vmax.f32 %v1590, %v1762
        %v1991 = vmax.f32 %v1591, %v1764
        %v1992 = vmax.f32 %v1592, %v1766
        %v1993 = vmax.f32 %v1593, %v1768
        %v1994 = vmax.f32 %v1594, %v1770
        %v1995 = vmax.f32 %v1595, %v1772
        %v1996 = vmax.f32 %v1596, %v1774
        %v1997 = vmax.f32 %v1597, %v1776
        %v1998 = vmax.f32 %v1598, %v1778
        %v1999 = vmax.f32 %v1599, %v1780
        %v2000 = vmax.f32 %v1600, %v1782
        %v2001 = vmax.f32 %v1601, %v1784
        %v2002 = vmax.f32 %v1602, %v1786
        %v2003 = vmax.f32 %v1603, %v1788
        %v2004 = vmax.f32 %v1604, %v1790
        %v2005 = vmax.f32 %v1605, %v1792
        %v2006 = vmax.f32 %v1606, %v1794
        %v2007 = vmax.f32 %v1607, %v1796
        %v2008 = vmax.f32 %v1608, %v1798
        %v2009 = vmax.f32 %v1609, %v1800
        %v2010 = vmax.f32 %v1610, %v1802
        %v2011 = vmax.f32 %v1611, %v1804
        %v2012 = vmax.f32 %v1612, %v1806
        %v2013 = vmax.f32 %v1613, %v1808
        %v2014 = vmax.f32 %v1614, %v1810
        %v2015 = vmax.f32 %v1615, %v1812
        %v2016 = vmax.f32 %v1616, %v1814
        %v2017 = vmax.f32 %v1617, %v1816
        %v2018 = vmax.f32 %v1618, %v1818
        %v2019 = vmax.f32 %v1619, %v1820
        %v2020 = vmax.f32 %v1620, %v1822
        %v2021 = vmax.f32 %v1621, %v1824
        %v2022 = vmax.f32 %v1622, %v1826
        %v2023 = vmax.f32 %v1623, %v1828
        %v2024 = vmax.f32 %v1624, %v1830
        %v2025 = vmax.f32 %v1625, %v1832
        %v2026 = vmax.f32 %v1626, %v1834
        %v2027 = vmax.f32 %v1627, %v1836
        %v2028 = vmax.f32 %v1628, %v1838
        %v2029 = vmax.f32 %v1629, %v1840
        %v2030 = vmax.f32 %v1630, %v1842
        %v2031 = vmax.f32 %v1631, %v1844
        %v2032 = vmax.f32 %v1632, %v1846
        %v2033 = vmax.f32 %v1633, %v1848
        %v2034 = vmax.f32 %v1634, %v1850
        %v2035 = vmax.f32 %v1635, %v1852
        %v2036 = vmax.f32 %v1636, %v1854
        %v2037 = vmax.f32 %v1637, %v1856
        %v2038 = vmax.f32 %v1638, %v1858
        %v2039 = vmax.f32 %v1639, %v1860
        %v2040 = vmax.f32 %v1640, %v1862
        %v2041 = vmax.f32 %v1641, %v1864
        %v2042 = vmax.f32 %v1642, %v1866
        %v2043 = vmax.f32 %v1643, %v1868
        %v2044 = vmax.f32 %v1644, %v1870
        %v2045 = vmax.f32 %v1645, %v1872
        %v2046 = vmax.f32 %v1646, %v1874
        %v2047 = vmax.f32 %v1647, %v1876
        %v2048 = vmax.f32 %v1648, %v1878
        %v2049 = vmax.f32 %v1649, %v1880
        %v2050 = vmax.f32 %v1650, %v1882
        %v2051 = vmax.f32 %v1651, %v1884
        %v2052 = vmax.f32 %v1652, %v1886
        %v2053 = vmax.f32 %v1653, %v1888
        %v2054 = vmax.f32 %v1654, %v1890
        %v2055 = vmax.f32 %v1655, %v1892
        %v2056 = vmax.f32 %v1656, %v1894
        %v2057 = vmax.f32 %v1657, %v1896
        %v2058 = vmax.f32 %v1658, %v1898
        %v2059 = vpack.c.bf16 %v1980, %v1979
        %v2060 = vpack.c.bf16 %v1982, %v1981
        %v2061 = vpack.c.bf16 %v1984, %v1983
        %v2062 = vpack.c.bf16 %v1986, %v1985
        %v2063 = vpack.c.bf16 %v1988, %v1987
        %v2064 = vpack.c.bf16 %v1990, %v1989
        %v2065 = vpack.c.bf16 %v1992, %v1991
        %v2066 = vpack.c.bf16 %v1994, %v1993
        %v2067 = vpack.c.bf16 %v1996, %v1995
        %v2068 = vpack.c.bf16 %v1998, %v1997
        %v2069 = vpack.c.bf16 %v2000, %v1999
        %v2070 = vpack.c.bf16 %v2002, %v2001
        %v2071 = vpack.c.bf16 %v2004, %v2003
        %v2072 = vpack.c.bf16 %v2006, %v2005
        %v2073 = vpack.c.bf16 %v2008, %v2007
        %v2074 = vpack.c.bf16 %v2010, %v2009
        %v2075 = vpack.c.bf16 %v2012, %v2011
        %v2076 = vpack.c.bf16 %v2014, %v2013
        %v2077 = vpack.c.bf16 %v2016, %v2015
        %v2078 = vpack.c.bf16 %v2018, %v2017
        %v2079 = vpack.c.bf16 %v2020, %v2019
        %v2080 = vpack.c.bf16 %v2022, %v2021
        %v2081 = vpack.c.bf16 %v2024, %v2023
        %v2082 = vpack.c.bf16 %v2026, %v2025
        %v2083 = vpack.c.bf16 %v2028, %v2027
        %v2084 = vpack.c.bf16 %v2030, %v2029
        %v2085 = vpack.c.bf16 %v2032, %v2031
        %v2086 = vpack.c.bf16 %v2034, %v2033
        %v2087 = vpack.c.bf16 %v2036, %v2035
        %v2088 = vpack.c.bf16 %v2038, %v2037
        %v2089 = vpack.c.bf16 %v2040, %v2039
        %v2090 = vpack.c.bf16 %v2042, %v2041
        %v2091 = vpack.c.bf16 %v2044, %v2043
        %v2092 = vpack.c.bf16 %v2046, %v2045
        %v2093 = vpack.c.bf16 %v2048, %v2047
        %v2094 = vpack.c.bf16 %v2050, %v2049
        %v2095 = vpack.c.bf16 %v2052, %v2051
        %v2096 = vpack.c.bf16 %v2054, %v2053
        %v2097 = vpack.c.bf16 %v2056, %v2055
        %v2098 = vpack.c.bf16 %v2058, %v2057
        %v2099 = vld [vmem:[%s3] sm:$0xf]
        %v2100 = vld [vmem:[%s3 + $0x4] sm:$0xf]
        %v2101 = vld [vmem:[%s3 + $0x8] sm:$0xf]
        %v2102 = vld [vmem:[%s3 + $0xc] sm:$0xf]
        %v2103 = vld [vmem:[%s4] sm:$0xf]
        %v2104 = vld [vmem:[%s4 + $0x4] sm:$0xf]
        %v2105 = vld [vmem:[%s4 + $0x8] sm:$0xf]
        %v2106 = vld [vmem:[%s4 + $0xc] sm:$0xf]
        %v2111 = vunpack.c.l.b16 %v2103
        %v2112 = vunpack.c.l.b16 %v2104
        %v2113 = vunpack.c.l.b16 %v2105
        %v2114 = vunpack.c.l.b16 %v2106
        %v2115 = vpack.c.b16 %v2112, %v2111
        %v2116 = vpack.c.b16 %v2114, %v2113
        %vm2119 = vcmask 261120
        %v2121 = vsel %vm2119, %v2060, 0
        %v2124 = vsel %vm2119, %v2061, 0
        %v2127 = vsel %vm2119, %v2062, 0
        %v2130 = vsel %vm2119, %v2063, 0
        %v2133 = vsel %vm2119, %v2064, 0
        %v2136 = vsel %vm2119, %v2065, 0
        %v2139 = vsel %vm2119, %v2066, 0
        %v2142 = vsel %vm2119, %v2067, 0
        %v2145 = vsel %vm2119, %v2068, 0
        %v2148 = vsel %vm2119, %v2069, 0
        %v2151 = vsel %vm2119, %v2070, 0
        %v2154 = vsel %vm2119, %v2071, 0
        %v2157 = vsel %vm2119, %v2072, 0
        %v2160 = vsel %vm2119, %v2073, 0
        %v2163 = vsel %vm2119, %v2074, 0
        %v2166 = vsel %vm2119, %v2075, 0
        %v2169 = vsel %vm2119, %v2076, 0
        %v2172 = vsel %vm2119, %v2077, 0
        %v2175 = vsel %vm2119, %v2078, 0
        %v2178 = vsel %vm2119, %v2079, 0
        %v2181 = vsel %vm2119, %v2080, 0
        %v2184 = vsel %vm2119, %v2081, 0
        %v2187 = vsel %vm2119, %v2082, 0
        %v2190 = vsel %vm2119, %v2083, 0
        %v2193 = vsel %vm2119, %v2084, 0
        %v2196 = vsel %vm2119, %v2085, 0
        %v2199 = vsel %vm2119, %v2086, 0
        %v2202 = vsel %vm2119, %v2087, 0
        %v2205 = vsel %vm2119, %v2088, 0
        %v2208 = vsel %vm2119, %v2089, 0
        %v2211 = vsel %vm2119, %v2090, 0
        %v2214 = vsel %vm2119, %v2091, 0
        %v2217 = vsel %vm2119, %v2092, 0
        %v2220 = vsel %vm2119, %v2093, 0
        %v2223 = vsel %vm2119, %v2094, 0
        %v2226 = vsel %vm2119, %v2095, 0
        %v2229 = vsel %vm2119, %v2096, 0
        %v2232 = vsel %vm2119, %v2097, 0
        %v2235 = vsel %vm2119, %v2098, 0
        %2237 = vmatprep.subr.bf16.mxu0 0
        %2238 = vmatpush1.bf16.msra.mxu0 %v2115
        %2239 = vmatprep.subr.bf16.mxu0 0
        %2240 = vmatpush1.bf16.msra.mxu0 %v2116
        %2241 = vmatprep.subr.bf16.mxu0 0
        %2242 = vmatpush1.bf16.msra.mxu0 0
        %2243 = vmatprep.subr.bf16.mxu0 0
        %2244 = vmatpush1.bf16.msra.mxu0 0
        %2245 = vmatprep.subr.bf16.mxu0 0
        %2246 = vmatpush1.bf16.msra.mxu0 0
        %2247 = vmatprep.subr.bf16.mxu0 0
        %2248 = vmatpush1.bf16.msra.mxu0 0
        %2249 = vmatprep.subr.bf16.mxu0 0
        %2250 = vmatpush1.bf16.msra.mxu0 0
        %2251 = vmatprep.subr.bf16.mxu0 0
        %2252 = vmatpush1.bf16.msra.mxu0 0
        %2253 = vmatprep.subr.bf16.mxu0 0
        %2254 = vmatpush1.bf16.msra.mxu0 0
        %2255 = vmatprep.subr.bf16.mxu0 0
        %2256 = vmatpush1.bf16.msra.mxu0 0
        %2257 = vmatprep.subr.bf16.mxu0 0
        %2258 = vmatpush1.bf16.msra.mxu0 0
        %2259 = vmatprep.subr.bf16.mxu0 0
        %2260 = vmatpush1.bf16.msra.mxu0 0
        %2261 = vmatprep.subr.bf16.mxu0 0
        %2262 = vmatpush1.bf16.msra.mxu0 0
        %2263 = vmatprep.subr.bf16.mxu0 0
        %2264 = vmatpush1.bf16.msra.mxu0 0
        %2265 = vmatprep.subr.bf16.mxu0 0
        %2266 = vmatpush1.bf16.msra.mxu0 0
        %2267 = vmatprep.subr.bf16.mxu0 0
        %2268 = vmatpush1.bf16.msra.mxu0 0
        %2269 = vmatprep.mubr.bf16.mxu0 0
        %2270 = vmatmul.mubr.bf16.gmra.mrb[0].mxu0 %v2121
        %v2271 = vpop.f32.mrb[0].mxu0
        %v2272 = vadd.f32 0.0, %v2271
        %v2273 = vpop.f32.mrb[0].mxu0
        %v2274 = vpop.f32.mrb[0].mxu0
        %v2275 = vadd.f32 0.0, %v2274
        %v2276 = vpop.f32.mrb[0].mxu0
        %2277 = vmatprep.mubr.bf16.mxu0 0
        %2278 = vmatmul.mubr.bf16.gmra.mrb[0].mxu0 %v2124
        %v2279 = vpop.f32.mrb[0].mxu0
        %v2280 = vadd.f32 0.0, %v2279
        %v2281 = vpop.f32.mrb[0].mxu0
        %v2282 = vpop.f32.mrb[0].mxu0
        %v2283 = vadd.f32 0.0, %v2282
        %v2284 = vpop.f32.mrb[0].mxu0
        %2285 = vmatprep.mubr.bf16.mxu0 0
        %2286 = vmatmul.mubr.bf16.gmra.mrb[0].mxu0 %v2127
        %v2287 = vpop.f32.mrb[0].mxu0
        %v2288 = vadd.f32 0.0, %v2287
        %v2289 = vpop.f32.mrb[0].mxu0
        %v2290 = vpop.f32.mrb[0].mxu0
        %v2291 = vadd.f32 0.0, %v2290
        %v2292 = vpop.f32.mrb[0].mxu0
        %2293 = vmatprep.mubr.bf16.mxu0 0
        %2294 = vmatmul.mubr.bf16.gmra.mrb[0].mxu0 %v2130
        %v2295 = vpop.f32.mrb[0].mxu0
        %v2296 = vadd.f32 0.0, %v2295
        %v2297 = vpop.f32.mrb[0].mxu0
        %v2298 = vpop.f32.mrb[0].mxu0
        %v2299 = vadd.f32 0.0, %v2298
        %v2300 = vpop.f32.mrb[0].mxu0
        %2301 = vmatprep.mubr.bf16.mxu0 0
        %2302 = vmatmul.mubr.bf16.gmra.mrb[0].mxu0 %v2133
        %v2303 = vpop.f32.mrb[0].mxu0
        %v2304 = vadd.f32 0.0, %v2303
        %v2305 = vpop.f32.mrb[0].mxu0
        %v2306 = vpop.f32.mrb[0].mxu0
        %v2307 = vadd.f32 0.0, %v2306
        %v2308 = vpop.f32.mrb[0].mxu0
        %2309 = vmatprep.mubr.bf16.mxu0 0
        %2310 = vmatmul.mubr.bf16.gmra.mrb[0].mxu0 %v2136
        %v2311 = vpop.f32.mrb[0].mxu0
        %v2312 = vadd.f32 0.0, %v2311
        %v2313 = vpop.f32.mrb[0].mxu0
        %v2314 = vpop.f32.mrb[0].mxu0
        %v2315 = vadd.f32 0.0, %v2314
        %v2316 = vpop.f32.mrb[0].mxu0
        %2317 = vmatprep.mubr.bf16.mxu0 0
        %2318 = vmatmul.mubr.bf16.gmra.mrb[0].mxu0 %v2139
        %v2319 = vpop.f32.mrb[0].mxu0
        %v2320 = vadd.f32 0.0, %v2319
        %v2321 = vpop.f32.mrb[0].mxu0
        %v2322 = vpop.f32.mrb[0].mxu0
        %v2323 = vadd.f32 0.0, %v2322
        %v2324 = vpop.f32.mrb[0].mxu0
        %2325 = vmatprep.mubr.bf16.mxu0 0
        %2326 = vmatmul.mubr.bf16.gmra.mrb[0].mxu0 %v2142
        %v2327 = vpop.f32.mrb[0].mxu0
        %v2328 = vadd.f32 0.0, %v2327
        %v2329 = vpop.f32.mrb[0].mxu0
        %v2330 = vpop.f32.mrb[0].mxu0
        %v2331 = vadd.f32 0.0, %v2330
        %v2332 = vpop.f32.mrb[0].mxu0
        %2333 = vmatprep.mubr.bf16.mxu0 0
        %2334 = vmatmul.mubr.bf16.gmra.mrb[0].mxu0 %v2145
        %v2335 = vpop.f32.mrb[0].mxu0
        %v2336 = vadd.f32 0.0, %v2335
        %v2337 = vpop.f32.mrb[0].mxu0
        %v2338 = vpop.f32.mrb[0].mxu0
        %v2339 = vadd.f32 0.0, %v2338
        %v2340 = vpop.f32.mrb[0].mxu0
        %2341 = vmatprep.mubr.bf16.mxu0 0
        %2342 = vmatmul.mubr.bf16.gmra.mrb[0].mxu0 %v2148
        %v2343 = vpop.f32.mrb[0].mxu0
        %v2344 = vadd.f32 0.0, %v2343
        %v2345 = vpop.f32.mrb[0].mxu0
        %v2346 = vpop.f32.mrb[0].mxu0
        %v2347 = vadd.f32 0.0, %v2346
        %v2348 = vpop.f32.mrb[0].mxu0
        %2349 = vmatprep.mubr.bf16.mxu0 0
        %2350 = vmatmul.mubr.bf16.gmra.mrb[0].mxu0 %v2151
        %v2351 = vpop.f32.mrb[0].mxu0
        %v2352 = vadd.f32 0.0, %v2351
        %v2353 = vpop.f32.mrb[0].mxu0
        %v2354 = vpop.f32.mrb[0].mxu0
        %v2355 = vadd.f32 0.0, %v2354
        %v2356 = vpop.f32.mrb[0].mxu0
        %2357 = vmatprep.mubr.bf16.mxu0 0
        %2358 = vmatmul.mubr.bf16.gmra.mrb[0].mxu0 %v2154
        %v2359 = vpop.f32.mrb[0].mxu0
        %v2360 = vadd.f32 0.0, %v2359
        %v2361 = vpop.f32.mrb[0].mxu0
        %v2362 = vpop.f32.mrb[0].mxu0
        %v2363 = vadd.f32 0.0, %v2362
        %v2364 = vpop.f32.mrb[0].mxu0
        %2365 = vmatprep.mubr.bf16.mxu0 0
        %2366 = vmatmul.mubr.bf16.gmra.mrb[0].mxu0 %v2157
        %v2367 = vpop.f32.mrb[0].mxu0
        %v2368 = vadd.f32 0.0, %v2367
        %v2369 = vpop.f32.mrb[0].mxu0
        %v2370 = vpop.f32.mrb[0].mxu0
        %v2371 = vadd.f32 0.0, %v2370
        %v2372 = vpop.f32.mrb[0].mxu0
        %2373 = vmatprep.mubr.bf16.mxu0 0
        %2374 = vmatmul.mubr.bf16.gmra.mrb[0].mxu0 %v2160
        %v2375 = vpop.f32.mrb[0].mxu0
        %v2376 = vadd.f32 0.0, %v2375
        %v2377 = vpop.f32.mrb[0].mxu0
        %v2378 = vpop.f32.mrb[0].mxu0
        %v2379 = vadd.f32 0.0, %v2378
        %v2380 = vpop.f32.mrb[0].mxu0
        %2381 = vmatprep.mubr.bf16.mxu0 0
        %2382 = vmatmul.mubr.bf16.gmra.mrb[0].mxu0 %v2163
        %v2383 = vpop.f32.mrb[0].mxu0
        %v2384 = vadd.f32 0.0, %v2383
        %v2385 = vpop.f32.mrb[0].mxu0
        %v2386 = vpop.f32.mrb[0].mxu0
        %v2387 = vadd.f32 0.0, %v2386
        %v2388 = vpop.f32.mrb[0].mxu0
        %2389 = vmatprep.mubr.bf16.mxu0 0
        %2390 = vmatmul.mubr.bf16.gmra.mrb[0].mxu0 %v2166
        %v2391 = vpop.f32.mrb[0].mxu0
        %v2392 = vadd.f32 0.0, %v2391
        %v2393 = vpop.f32.mrb[0].mxu0
        %v2394 = vpop.f32.mrb[0].mxu0
        %v2395 = vadd.f32 0.0, %v2394
        %v2396 = vpop.f32.mrb[0].mxu0
        %2397 = vmatprep.mubr.bf16.mxu0 0
        %2398 = vmatmul.mubr.bf16.gmra.mrb[0].mxu0 %v2169
        %v2399 = vpop.f32.mrb[0].mxu0
        %v2400 = vadd.f32 0.0, %v2399
        %v2401 = vpop.f32.mrb[0].mxu0
        %v2402 = vpop.f32.mrb[0].mxu0
        %v2403 = vadd.f32 0.0, %v2402
        %v2404 = vpop.f32.mrb[0].mxu0
        %2405 = vmatprep.mubr.bf16.mxu0 0
        %2406 = vmatmul.mubr.bf16.gmra.mrb[0].mxu0 %v2172
        %v2407 = vpop.f32.mrb[0].mxu0
        %v2408 = vadd.f32 0.0, %v2407
        %v2409 = vpop.f32.mrb[0].mxu0
        %v2410 = vpop.f32.mrb[0].mxu0
        %v2411 = vadd.f32 0.0, %v2410
        %v2412 = vpop.f32.mrb[0].mxu0
        %2413 = vmatprep.mubr.bf16.mxu0 0
        %2414 = vmatmul.mubr.bf16.gmra.mrb[0].mxu0 %v2175
        %v2415 = vpop.f32.mrb[0].mxu0
        %v2416 = vadd.f32 0.0, %v2415
        %v2417 = vpop.f32.mrb[0].mxu0
        %v2418 = vpop.f32.mrb[0].mxu0
        %v2419 = vadd.f32 0.0, %v2418
        %v2420 = vpop.f32.mrb[0].mxu0
        %2421 = vmatprep.mubr.bf16.mxu0 0
        %2422 = vmatmul.mubr.bf16.gmra.mrb[0].mxu0 %v2178
        %v2423 = vpop.f32.mrb[0].mxu0
        %v2424 = vadd.f32 0.0, %v2423
        %v2425 = vpop.f32.mrb[0].mxu0
        %v2426 = vpop.f32.mrb[0].mxu0
        %v2427 = vadd.f32 0.0, %v2426
        %v2428 = vpop.f32.mrb[0].mxu0
        %2429 = vmatprep.mubr.bf16.mxu0 0
        %2430 = vmatmul.mubr.bf16.gmra.mrb[0].mxu0 %v2181
        %v2431 = vpop.f32.mrb[0].mxu0
        %v2432 = vadd.f32 0.0, %v2431
        %v2433 = vpop.f32.mrb[0].mxu0
        %v2434 = vpop.f32.mrb[0].mxu0
        %v2435 = vadd.f32 0.0, %v2434
        %v2436 = vpop.f32.mrb[0].mxu0
        %2437 = vmatprep.mubr.bf16.mxu0 0
        %2438 = vmatmul.mubr.bf16.gmra.mrb[0].mxu0 %v2184
        %v2439 = vpop.f32.mrb[0].mxu0
        %v2440 = vadd.f32 0.0, %v2439
        %v2441 = vpop.f32.mrb[0].mxu0
        %v2442 = vpop.f32.mrb[0].mxu0
        %v2443 = vadd.f32 0.0, %v2442
        %v2444 = vpop.f32.mrb[0].mxu0
        %2445 = vmatprep.mubr.bf16.mxu0 0
        %2446 = vmatmul.mubr.bf16.gmra.mrb[0].mxu0 %v2187
        %v2447 = vpop.f32.mrb[0].mxu0
        %v2448 = vadd.f32 0.0, %v2447
        %v2449 = vpop.f32.mrb[0].mxu0
        %v2450 = vpop.f32.mrb[0].mxu0
        %v2451 = vadd.f32 0.0, %v2450
        %v2452 = vpop.f32.mrb[0].mxu0
        %2453 = vmatprep.mubr.bf16.mxu0 0
        %2454 = vmatmul.mubr.bf16.gmra.mrb[0].mxu0 %v2190
        %v2455 = vpop.f32.mrb[0].mxu0
        %v2456 = vadd.f32 0.0, %v2455
        %v2457 = vpop.f32.mrb[0].mxu0
        %v2458 = vpop.f32.mrb[0].mxu0
        %v2459 = vadd.f32 0.0, %v2458
        %v2460 = vpop.f32.mrb[0].mxu0
        %2461 = vmatprep.mubr.bf16.mxu0 0
        %2462 = vmatmul.mubr.bf16.gmra.mrb[0].mxu0 %v2193
        %v2463 = vpop.f32.mrb[0].mxu0
        %v2464 = vadd.f32 0.0, %v2463
        %v2465 = vpop.f32.mrb[0].mxu0
        %v2466 = vpop.f32.mrb[0].mxu0
        %v2467 = vadd.f32 0.0, %v2466
        %v2468 = vpop.f32.mrb[0].mxu0
        %2469 = vmatprep.mubr.bf16.mxu0 0
        %2470 = vmatmul.mubr.bf16.gmra.mrb[0].mxu0 %v2196
        %v2471 = vpop.f32.mrb[0].mxu0
        %v2472 = vadd.f32 0.0, %v2471
        %v2473 = vpop.f32.mrb[0].mxu0
        %v2474 = vpop.f32.mrb[0].mxu0
        %v2475 = vadd.f32 0.0, %v2474
        %v2476 = vpop.f32.mrb[0].mxu0
        %2477 = vmatprep.mubr.bf16.mxu0 0
        %2478 = vmatmul.mubr.bf16.gmra.mrb[0].mxu0 %v2199
        %v2479 = vpop.f32.mrb[0].mxu0
        %v2480 = vadd.f32 0.0, %v2479
        %v2481 = vpop.f32.mrb[0].mxu0
        %v2482 = vpop.f32.mrb[0].mxu0
        %v2483 = vadd.f32 0.0, %v2482
        %v2484 = vpop.f32.mrb[0].mxu0
        %2485 = vmatprep.mubr.bf16.mxu0 0
        %2486 = vmatmul.mubr.bf16.gmra.mrb[0].mxu0 %v2202
        %v2487 = vpop.f32.mrb[0].mxu0
        %v2488 = vadd.f32 0.0, %v2487
        %v2489 = vpop.f32.mrb[0].mxu0
        %v2490 = vpop.f32.mrb[0].mxu0
        %v2491 = vadd.f32 0.0, %v2490
        %v2492 = vpop.f32.mrb[0].mxu0
        %2493 = vmatprep.mubr.bf16.mxu0 0
        %2494 = vmatmul.mubr.bf16.gmra.mrb[0].mxu0 %v2205
        %v2495 = vpop.f32.mrb[0].mxu0
        %v2496 = vadd.f32 0.0, %v2495
        %v2497 = vpop.f32.mrb[0].mxu0
        %v2498 = vpop.f32.mrb[0].mxu0
        %v2499 = vadd.f32 0.0, %v2498
        %v2500 = vpop.f32.mrb[0].mxu0
        %2501 = vmatprep.mubr.bf16.mxu0 0
        %2502 = vmatmul.mubr.bf16.gmra.mrb[0].mxu0 %v2208
        %v2503 = vpop.f32.mrb[0].mxu0
        %v2504 = vadd.f32 0.0, %v2503
        %v2505 = vpop.f32.mrb[0].mxu0
        %v2506 = vpop.f32.mrb[0].mxu0
        %v2507 = vadd.f32 0.0, %v2506
        %v2508 = vpop.f32.mrb[0].mxu0
        %2509 = vmatprep.mubr.bf16.mxu0 0
        %2510 = vmatmul.mubr.bf16.gmra.mrb[0].mxu0 %v2211
        %v2511 = vpop.f32.mrb[0].mxu0
        %v2512 = vadd.f32 0.0, %v2511
        %v2513 = vpop.f32.mrb[0].mxu0
        %v2514 = vpop.f32.mrb[0].mxu0
        %v2515 = vadd.f32 0.0, %v2514
        %v2516 = vpop.f32.mrb[0].mxu0
        %2517 = vmatprep.mubr.bf16.mxu0 0
        %2518 = vmatmul.mubr.bf16.gmra.mrb[0].mxu0 %v2214
        %v2519 = vpop.f32.mrb[0].mxu0
        %v2520 = vadd.f32 0.0, %v2519
        %v2521 = vpop.f32.mrb[0].mxu0
        %v2522 = vpop.f32.mrb[0].mxu0
        %v2523 = vadd.f32 0.0, %v2522
        %v2524 = vpop.f32.mrb[0].mxu0
        %2525 = vmatprep.mubr.bf16.mxu0 0
        %2526 = vmatmul.mubr.bf16.gmra.mrb[0].mxu0 %v2217
        %v2527 = vpop.f32.mrb[0].mxu0
        %v2528 = vadd.f32 0.0, %v2527
        %v2529 = vpop.f32.mrb[0].mxu0
        %v2530 = vpop.f32.mrb[0].mxu0
        %v2531 = vadd.f32 0.0, %v2530
        %v2532 = vpop.f32.mrb[0].mxu0
        %2533 = vmatprep.mubr.bf16.mxu0 0
        %2534 = vmatmul.mubr.bf16.gmra.mrb[0].mxu0 %v2220
        %v2535 = vpop.f32.mrb[0].mxu0
        %v2536 = vadd.f32 0.0, %v2535
        %v2537 = vpop.f32.mrb[0].mxu0
        %v2538 = vpop.f32.mrb[0].mxu0
        %v2539 = vadd.f32 0.0, %v2538
        %v2540 = vpop.f32.mrb[0].mxu0
        %2541 = vmatprep.mubr.bf16.mxu0 0
        %2542 = vmatmul.mubr.bf16.gmra.mrb[0].mxu0 %v2223
        %v2543 = vpop.f32.mrb[0].mxu0
        %v2544 = vadd.f32 0.0, %v2543
        %v2545 = vpop.f32.mrb[0].mxu0
        %v2546 = vpop.f32.mrb[0].mxu0
        %v2547 = vadd.f32 0.0, %v2546
        %v2548 = vpop.f32.mrb[0].mxu0
        %2549 = vmatprep.mubr.bf16.mxu0 0
        %2550 = vmatmul.mubr.bf16.gmra.mrb[0].mxu0 %v2226
        %v2551 = vpop.f32.mrb[0].mxu0
        %v2552 = vadd.f32 0.0, %v2551
        %v2553 = vpop.f32.mrb[0].mxu0
        %v2554 = vpop.f32.mrb[0].mxu0
        %v2555 = vadd.f32 0.0, %v2554
        %v2556 = vpop.f32.mrb[0].mxu0
        %2557 = vmatprep.mubr.bf16.mxu0 0
        %2558 = vmatmul.mubr.bf16.gmra.mrb[0].mxu0 %v2229
        %v2559 = vpop.f32.mrb[0].mxu0
        %v2560 = vadd.f32 0.0, %v2559
        %v2561 = vpop.f32.mrb[0].mxu0
        %v2562 = vpop.f32.mrb[0].mxu0
        %v2563 = vadd.f32 0.0, %v2562
        %v2564 = vpop.f32.mrb[0].mxu0
        %2565 = vmatprep.mubr.bf16.mxu0 0
        %2566 = vmatmul.mubr.bf16.gmra.mrb[0].mxu0 %v2232
        %v2567 = vpop.f32.mrb[0].mxu0
        %v2568 = vadd.f32 0.0, %v2567
        %v2569 = vpop.f32.mrb[0].mxu0
        %v2570 = vpop.f32.mrb[0].mxu0
        %v2571 = vadd.f32 0.0, %v2570
        %v2572 = vpop.f32.mrb[0].mxu0
        %2573 = vmatprep.mubr.bf16.mxu0 0
        %2574 = vmatmul.mubr.bf16.gmra.mrb[0].mxu0 %v2235
        %v2575 = vpop.f32.mrb[0].mxu0
        %v2576 = vadd.f32 0.0, %v2575
        %v2577 = vpop.f32.mrb[0].mxu0
        %v2578 = vpop.f32.mrb[0].mxu0
        %v2579 = vadd.f32 0.0, %v2578
        %v2580 = vpop.f32.mrb[0].mxu0
        %2581 = vdwg.mxu0
        %v2586 = vunpack.c.l.b16 %v2099
        %v2587 = vunpack.c.l.b16 %v2100
        %v2588 = vunpack.c.l.b16 %v2101
        %v2589 = vunpack.c.l.b16 %v2102
        %v2590 = vpack.c.b16 %v2587, %v2586
        %v2591 = vpack.c.b16 %v2589, %v2588
        %v2595 = vsel %vm2119, %v2059, 0
        %2597 = vmatprep.subr.bf16.mxu0 0
        %2598 = vmatpush1.bf16.msra.mxu0 %v2590
        %2599 = vmatprep.subr.bf16.mxu0 0
        %2600 = vmatpush1.bf16.msra.mxu0 %v2591
        %2601 = vmatprep.subr.bf16.mxu0 0
        %2602 = vmatpush1.bf16.msra.mxu0 0
        %2603 = vmatprep.subr.bf16.mxu0 0
        %2604 = vmatpush1.bf16.msra.mxu0 0
        %2605 = vmatprep.subr.bf16.mxu0 0
        %2606 = vmatpush1.bf16.msra.mxu0 0
        %2607 = vmatprep.subr.bf16.mxu0 0
        %2608 = vmatpush1.bf16.msra.mxu0 0
        %2609 = vmatprep.subr.bf16.mxu0 0
        %2610 = vmatpush1.bf16.msra.mxu0 0
        %2611 = vmatprep.subr.bf16.mxu0 0
        %2612 = vmatpush1.bf16.msra.mxu0 0
        %2613 = vmatprep.subr.bf16.mxu0 0
        %2614 = vmatpush1.bf16.msra.mxu0 0
        %2615 = vmatprep.subr.bf16.mxu0 0
        %2616 = vmatpush1.bf16.msra.mxu0 0
        %2617 = vmatprep.subr.bf16.mxu0 0
        %2618 = vmatpush1.bf16.msra.mxu0 0
        %2619 = vmatprep.subr.bf16.mxu0 0
        %2620 = vmatpush1.bf16.msra.mxu0 0
        %2621 = vmatprep.subr.bf16.mxu0 0
        %2622 = vmatpush1.bf16.msra.mxu0 0
        %2623 = vmatprep.subr.bf16.mxu0 0
        %2624 = vmatpush1.bf16.msra.mxu0 0
        %2625 = vmatprep.subr.bf16.mxu0 0
        %2626 = vmatpush1.bf16.msra.mxu0 0
        %2627 = vmatprep.subr.bf16.mxu0 0
        %2628 = vmatpush1.bf16.msra.mxu0 0
        %2629 = vmatprep.mubr.bf16.mxu0 0
        %2630 = vmatmul.mubr.bf16.gmra.mrb[0].mxu0 %v2595
        %v2631 = vpop.f32.mrb[0].mxu0
        %v2632 = vadd.f32 %v2272, %v2631
        %v2633 = vpop.f32.mrb[0].mxu0
        %v2634 = vpop.f32.mrb[0].mxu0
        %v2635 = vadd.f32 %v2275, %v2634
        %v2636 = vpop.f32.mrb[0].mxu0
        %2637 = vmatprep.mubr.bf16.mxu0 0
        %2638 = vmatmul.mubr.bf16.gmra.mrb[0].mxu0 %v2121
        %v2639 = vpop.f32.mrb[0].mxu0
        %v2640 = vadd.f32 %v2280, %v2639
        %v2641 = vpop.f32.mrb[0].mxu0
        %v2642 = vpop.f32.mrb[0].mxu0
        %v2643 = vadd.f32 %v2283, %v2642
        %v2644 = vpop.f32.mrb[0].mxu0
        %2645 = vmatprep.mubr.bf16.mxu0 0
        %2646 = vmatmul.mubr.bf16.gmra.mrb[0].mxu0 %v2124
        %v2647 = vpop.f32.mrb[0].mxu0
        %v2648 = vadd.f32 %v2288, %v2647
        %v2649 = vpop.f32.mrb[0].mxu0
        %v2650 = vpop.f32.mrb[0].mxu0
        %v2651 = vadd.f32 %v2291, %v2650
        %v2652 = vpop.f32.mrb[0].mxu0
        %2653 = vmatprep.mubr.bf16.mxu0 0
        %2654 = vmatmul.mubr.bf16.gmra.mrb[0].mxu0 %v2127
        %v2655 = vpop.f32.mrb[0].mxu0
        %v2656 = vadd.f32 %v2296, %v2655
        %v2657 = vpop.f32.mrb[0].mxu0
        %v2658 = vpop.f32.mrb[0].mxu0
        %v2659 = vadd.f32 %v2299, %v2658
        %v2660 = vpop.f32.mrb[0].mxu0
        %2661 = vmatprep.mubr.bf16.mxu0 0
        %2662 = vmatmul.mubr.bf16.gmra.mrb[0].mxu0 %v2130
        %v2663 = vpop.f32.mrb[0].mxu0
        %v2664 = vadd.f32 %v2304, %v2663
        %v2665 = vpop.f32.mrb[0].mxu0
        %v2666 = vpop.f32.mrb[0].mxu0
        %v2667 = vadd.f32 %v2307, %v2666
        %v2668 = vpop.f32.mrb[0].mxu0
        %2669 = vmatprep.mubr.bf16.mxu0 0
        %2670 = vmatmul.mubr.bf16.gmra.mrb[0].mxu0 %v2133
        %v2671 = vpop.f32.mrb[0].mxu0
        %v2672 = vadd.f32 %v2312, %v2671
        %v2673 = vpop.f32.mrb[0].mxu0
        %v2674 = vpop.f32.mrb[0].mxu0
        %v2675 = vadd.f32 %v2315, %v2674
        %v2676 = vpop.f32.mrb[0].mxu0
        %2677 = vmatprep.mubr.bf16.mxu0 0
        %2678 = vmatmul.mubr.bf16.gmra.mrb[0].mxu0 %v2136
        %v2679 = vpop.f32.mrb[0].mxu0
        %v2680 = vadd.f32 %v2320, %v2679
        %v2681 = vpop.f32.mrb[0].mxu0
        %v2682 = vpop.f32.mrb[0].mxu0
        %v2683 = vadd.f32 %v2323, %v2682
        %v2684 = vpop.f32.mrb[0].mxu0
        %2685 = vmatprep.mubr.bf16.mxu0 0
        %2686 = vmatmul.mubr.bf16.gmra.mrb[0].mxu0 %v2139
        %v2687 = vpop.f32.mrb[0].mxu0
        %v2688 = vadd.f32 %v2328, %v2687
        %v2689 = vpop.f32.mrb[0].mxu0
        %v2690 = vpop.f32.mrb[0].mxu0
        %v2691 = vadd.f32 %v2331, %v2690
        %v2692 = vpop.f32.mrb[0].mxu0
        %2693 = vmatprep.mubr.bf16.mxu0 0
        %2694 = vmatmul.mubr.bf16.gmra.mrb[0].mxu0 %v2142
        %v2695 = vpop.f32.mrb[0].mxu0
        %v2696 = vadd.f32 %v2336, %v2695
        %v2697 = vpop.f32.mrb[0].mxu0
        %v2698 = vpop.f32.mrb[0].mxu0
        %v2699 = vadd.f32 %v2339, %v2698
        %v2700 = vpop.f32.mrb[0].mxu0
        %2701 = vmatprep.mubr.bf16.mxu0 0
        %2702 = vmatmul.mubr.bf16.gmra.mrb[0].mxu0 %v2145
        %v2703 = vpop.f32.mrb[0].mxu0
        %v2704 = vadd.f32 %v2344, %v2703
        %v2705 = vpop.f32.mrb[0].mxu0
        %v2706 = vpop.f32.mrb[0].mxu0
        %v2707 = vadd.f32 %v2347, %v2706
        %v2708 = vpop.f32.mrb[0].mxu0
        %2709 = vmatprep.mubr.bf16.mxu0 0
        %2710 = vmatmul.mubr.bf16.gmra.mrb[0].mxu0 %v2148
        %v2711 = vpop.f32.mrb[0].mxu0
        %v2712 = vadd.f32 %v2352, %v2711
        %v2713 = vpop.f32.mrb[0].mxu0
        %v2714 = vpop.f32.mrb[0].mxu0
        %v2715 = vadd.f32 %v2355, %v2714
        %v2716 = vpop.f32.mrb[0].mxu0
        %2717 = vmatprep.mubr.bf16.mxu0 0
        %2718 = vmatmul.mubr.bf16.gmra.mrb[0].mxu0 %v2151
        %v2719 = vpop.f32.mrb[0].mxu0
        %v2720 = vadd.f32 %v2360, %v2719
        %v2721 = vpop.f32.mrb[0].mxu0
        %v2722 = vpop.f32.mrb[0].mxu0
        %v2723 = vadd.f32 %v2363, %v2722
        %v2724 = vpop.f32.mrb[0].mxu0
        %2725 = vmatprep.mubr.bf16.mxu0 0
        %2726 = vmatmul.mubr.bf16.gmra.mrb[0].mxu0 %v2154
        %v2727 = vpop.f32.mrb[0].mxu0
        %v2728 = vadd.f32 %v2368, %v2727
        %v2729 = vpop.f32.mrb[0].mxu0
        %v2730 = vpop.f32.mrb[0].mxu0
        %v2731 = vadd.f32 %v2371, %v2730
        %v2732 = vpop.f32.mrb[0].mxu0
        %2733 = vmatprep.mubr.bf16.mxu0 0
        %2734 = vmatmul.mubr.bf16.gmra.mrb[0].mxu0 %v2157
        %v2735 = vpop.f32.mrb[0].mxu0
        %v2736 = vadd.f32 %v2376, %v2735
        %v2737 = vpop.f32.mrb[0].mxu0
        %v2738 = vpop.f32.mrb[0].mxu0
        %v2739 = vadd.f32 %v2379, %v2738
        %v2740 = vpop.f32.mrb[0].mxu0
        %2741 = vmatprep.mubr.bf16.mxu0 0
        %2742 = vmatmul.mubr.bf16.gmra.mrb[0].mxu0 %v2160
        %v2743 = vpop.f32.mrb[0].mxu0
        %v2744 = vadd.f32 %v2384, %v2743
        %v2745 = vpop.f32.mrb[0].mxu0
        %v2746 = vpop.f32.mrb[0].mxu0
        %v2747 = vadd.f32 %v2387, %v2746
        %v2748 = vpop.f32.mrb[0].mxu0
        %2749 = vmatprep.mubr.bf16.mxu0 0
        %2750 = vmatmul.mubr.bf16.gmra.mrb[0].mxu0 %v2163
        %v2751 = vpop.f32.mrb[0].mxu0
        %v2752 = vadd.f32 %v2392, %v2751
        %v2753 = vpop.f32.mrb[0].mxu0
        %v2754 = vpop.f32.mrb[0].mxu0
        %v2755 = vadd.f32 %v2395, %v2754
        %v2756 = vpop.f32.mrb[0].mxu0
        %2757 = vmatprep.mubr.bf16.mxu0 0
        %2758 = vmatmul.mubr.bf16.gmra.mrb[0].mxu0 %v2166
        %v2759 = vpop.f32.mrb[0].mxu0
        %v2760 = vadd.f32 %v2400, %v2759
        %v2761 = vpop.f32.mrb[0].mxu0
        %v2762 = vpop.f32.mrb[0].mxu0
        %v2763 = vadd.f32 %v2403, %v2762
        %v2764 = vpop.f32.mrb[0].mxu0
        %2765 = vmatprep.mubr.bf16.mxu0 0
        %2766 = vmatmul.mubr.bf16.gmra.mrb[0].mxu0 %v2169
        %v2767 = vpop.f32.mrb[0].mxu0
        %v2768 = vadd.f32 %v2408, %v2767
        %v2769 = vpop.f32.mrb[0].mxu0
        %v2770 = vpop.f32.mrb[0].mxu0
        %v2771 = vadd.f32 %v2411, %v2770
        %v2772 = vpop.f32.mrb[0].mxu0
        %2773 = vmatprep.mubr.bf16.mxu0 0
        %2774 = vmatmul.mubr.bf16.gmra.mrb[0].mxu0 %v2172
        %v2775 = vpop.f32.mrb[0].mxu0
        %v2776 = vadd.f32 %v2416, %v2775
        %v2777 = vpop.f32.mrb[0].mxu0
        %v2778 = vpop.f32.mrb[0].mxu0
        %v2779 = vadd.f32 %v2419, %v2778
        %v2780 = vpop.f32.mrb[0].mxu0
        %2781 = vmatprep.mubr.bf16.mxu0 0
        %2782 = vmatmul.mubr.bf16.gmra.mrb[0].mxu0 %v2175
        %v2783 = vpop.f32.mrb[0].mxu0
        %v2784 = vadd.f32 %v2424, %v2783
        %v2785 = vpop.f32.mrb[0].mxu0
        %v2786 = vpop.f32.mrb[0].mxu0
        %v2787 = vadd.f32 %v2427, %v2786
        %v2788 = vpop.f32.mrb[0].mxu0
        %2789 = vmatprep.mubr.bf16.mxu0 0
        %2790 = vmatmul.mubr.bf16.gmra.mrb[0].mxu0 %v2178
        %v2791 = vpop.f32.mrb[0].mxu0
        %v2792 = vadd.f32 %v2432, %v2791
        %v2793 = vpop.f32.mrb[0].mxu0
        %v2794 = vpop.f32.mrb[0].mxu0
        %v2795 = vadd.f32 %v2435, %v2794
        %v2796 = vpop.f32.mrb[0].mxu0
        %2797 = vmatprep.mubr.bf16.mxu0 0
        %2798 = vmatmul.mubr.bf16.gmra.mrb[0].mxu0 %v2181
        %v2799 = vpop.f32.mrb[0].mxu0
        %v2800 = vadd.f32 %v2440, %v2799
        %v2801 = vpop.f32.mrb[0].mxu0
        %v2802 = vpop.f32.mrb[0].mxu0
        %v2803 = vadd.f32 %v2443, %v2802
        %v2804 = vpop.f32.mrb[0].mxu0
        %2805 = vmatprep.mubr.bf16.mxu0 0
        %2806 = vmatmul.mubr.bf16.gmra.mrb[0].mxu0 %v2184
        %v2807 = vpop.f32.mrb[0].mxu0
        %v2808 = vadd.f32 %v2448, %v2807
        %v2809 = vpop.f32.mrb[0].mxu0
        %v2810 = vpop.f32.mrb[0].mxu0
        %v2811 = vadd.f32 %v2451, %v2810
        %v2812 = vpop.f32.mrb[0].mxu0
        %2813 = vmatprep.mubr.bf16.mxu0 0
        %2814 = vmatmul.mubr.bf16.gmra.mrb[0].mxu0 %v2187
        %v2815 = vpop.f32.mrb[0].mxu0
        %v2816 = vadd.f32 %v2456, %v2815
        %v2817 = vpop.f32.mrb[0].mxu0
        %v2818 = vpop.f32.mrb[0].mxu0
        %v2819 = vadd.f32 %v2459, %v2818
        %v2820 = vpop.f32.mrb[0].mxu0
        %2821 = vmatprep.mubr.bf16.mxu0 0
        %2822 = vmatmul.mubr.bf16.gmra.mrb[0].mxu0 %v2190
        %v2823 = vpop.f32.mrb[0].mxu0
        %v2824 = vadd.f32 %v2464, %v2823
        %v2825 = vpop.f32.mrb[0].mxu0
        %v2826 = vpop.f32.mrb[0].mxu0
        %v2827 = vadd.f32 %v2467, %v2826
        %v2828 = vpop.f32.mrb[0].mxu0
        %2829 = vmatprep.mubr.bf16.mxu0 0
        %2830 = vmatmul.mubr.bf16.gmra.mrb[0].mxu0 %v2193
        %v2831 = vpop.f32.mrb[0].mxu0
        %v2832 = vadd.f32 %v2472, %v2831
        %v2833 = vpop.f32.mrb[0].mxu0
        %v2834 = vpop.f32.mrb[0].mxu0
        %v2835 = vadd.f32 %v2475, %v2834
        %v2836 = vpop.f32.mrb[0].mxu0
        %2837 = vmatprep.mubr.bf16.mxu0 0
        %2838 = vmatmul.mubr.bf16.gmra.mrb[0].mxu0 %v2196
        %v2839 = vpop.f32.mrb[0].mxu0
        %v2840 = vadd.f32 %v2480, %v2839
        %v2841 = vpop.f32.mrb[0].mxu0
        %v2842 = vpop.f32.mrb[0].mxu0
        %v2843 = vadd.f32 %v2483, %v2842
        %v2844 = vpop.f32.mrb[0].mxu0
        %2845 = vmatprep.mubr.bf16.mxu0 0
        %2846 = vmatmul.mubr.bf16.gmra.mrb[0].mxu0 %v2199
        %v2847 = vpop.f32.mrb[0].mxu0
        %v2848 = vadd.f32 %v2488, %v2847
        %v2849 = vpop.f32.mrb[0].mxu0
        %v2850 = vpop.f32.mrb[0].mxu0
        %v2851 = vadd.f32 %v2491, %v2850
        %v2852 = vpop.f32.mrb[0].mxu0
        %2853 = vmatprep.mubr.bf16.mxu0 0
        %2854 = vmatmul.mubr.bf16.gmra.mrb[0].mxu0 %v2202
        %v2855 = vpop.f32.mrb[0].mxu0
        %v2856 = vadd.f32 %v2496, %v2855
        %v2857 = vpop.f32.mrb[0].mxu0
        %v2858 = vpop.f32.mrb[0].mxu0
        %v2859 = vadd.f32 %v2499, %v2858
        %v2860 = vpop.f32.mrb[0].mxu0
        %2861 = vmatprep.mubr.bf16.mxu0 0
        %2862 = vmatmul.mubr.bf16.gmra.mrb[0].mxu0 %v2205
        %v2863 = vpop.f32.mrb[0].mxu0
        %v2864 = vadd.f32 %v2504, %v2863
        %v2865 = vpop.f32.mrb[0].mxu0
        %v2866 = vpop.f32.mrb[0].mxu0
        %v2867 = vadd.f32 %v2507, %v2866
        %v2868 = vpop.f32.mrb[0].mxu0
        %2869 = vmatprep.mubr.bf16.mxu0 0
        %2870 = vmatmul.mubr.bf16.gmra.mrb[0].mxu0 %v2208
        %v2871 = vpop.f32.mrb[0].mxu0
        %v2872 = vadd.f32 %v2512, %v2871
        %v2873 = vpop.f32.mrb[0].mxu0
        %v2874 = vpop.f32.mrb[0].mxu0
        %v2875 = vadd.f32 %v2515, %v2874
        %v2876 = vpop.f32.mrb[0].mxu0
        %2877 = vmatprep.mubr.bf16.mxu0 0
        %2878 = vmatmul.mubr.bf16.gmra.mrb[0].mxu0 %v2211
        %v2879 = vpop.f32.mrb[0].mxu0
        %v2880 = vadd.f32 %v2520, %v2879
        %v2881 = vpop.f32.mrb[0].mxu0
        %v2882 = vpop.f32.mrb[0].mxu0
        %v2883 = vadd.f32 %v2523, %v2882
        %v2884 = vpop.f32.mrb[0].mxu0
        %2885 = vmatprep.mubr.bf16.mxu0 0
        %2886 = vmatmul.mubr.bf16.gmra.mrb[0].mxu0 %v2214
        %v2887 = vpop.f32.mrb[0].mxu0
        %v2888 = vadd.f32 %v2528, %v2887
        %v2889 = vpop.f32.mrb[0].mxu0
        %v2890 = vpop.f32.mrb[0].mxu0
        %v2891 = vadd.f32 %v2531, %v2890
        %v2892 = vpop.f32.mrb[0].mxu0
        %2893 = vmatprep.mubr.bf16.mxu0 0
        %2894 = vmatmul.mubr.bf16.gmra.mrb[0].mxu0 %v2217
        %v2895 = vpop.f32.mrb[0].mxu0
        %v2896 = vadd.f32 %v2536, %v2895
        %v2897 = vpop.f32.mrb[0].mxu0
        %v2898 = vpop.f32.mrb[0].mxu0
        %v2899 = vadd.f32 %v2539, %v2898
        %v2900 = vpop.f32.mrb[0].mxu0
        %2901 = vmatprep.mubr.bf16.mxu0 0
        %2902 = vmatmul.mubr.bf16.gmra.mrb[0].mxu0 %v2220
        %v2903 = vpop.f32.mrb[0].mxu0
        %v2904 = vadd.f32 %v2544, %v2903
        %v2905 = vpop.f32.mrb[0].mxu0
        %v2906 = vpop.f32.mrb[0].mxu0
        %v2907 = vadd.f32 %v2547, %v2906
        %v2908 = vpop.f32.mrb[0].mxu0
        %2909 = vmatprep.mubr.bf16.mxu0 0
        %2910 = vmatmul.mubr.bf16.gmra.mrb[0].mxu0 %v2223
        %v2911 = vpop.f32.mrb[0].mxu0
        %v2912 = vadd.f32 %v2552, %v2911
        %v2913 = vpop.f32.mrb[0].mxu0
        %v2914 = vpop.f32.mrb[0].mxu0
        %v2915 = vadd.f32 %v2555, %v2914
        %v2916 = vpop.f32.mrb[0].mxu0
        %2917 = vmatprep.mubr.bf16.mxu0 0
        %2918 = vmatmul.mubr.bf16.gmra.mrb[0].mxu0 %v2226
        %v2919 = vpop.f32.mrb[0].mxu0
        %v2920 = vadd.f32 %v2560, %v2919
        %v2921 = vpop.f32.mrb[0].mxu0
        %v2922 = vpop.f32.mrb[0].mxu0
        %v2923 = vadd.f32 %v2563, %v2922
        %v2924 = vpop.f32.mrb[0].mxu0
        %2925 = vmatprep.mubr.bf16.mxu0 0
        %2926 = vmatmul.mubr.bf16.gmra.mrb[0].mxu0 %v2229
        %v2927 = vpop.f32.mrb[0].mxu0
        %v2928 = vadd.f32 %v2568, %v2927
        %v2929 = vpop.f32.mrb[0].mxu0
        %v2930 = vpop.f32.mrb[0].mxu0
        %v2931 = vadd.f32 %v2571, %v2930
        %v2932 = vpop.f32.mrb[0].mxu0
        %2933 = vmatprep.mubr.bf16.mxu0 0
        %2934 = vmatmul.mubr.bf16.gmra.mrb[0].mxu0 %v2232
        %v2935 = vpop.f32.mrb[0].mxu0
        %v2936 = vadd.f32 %v2576, %v2935
        %v2937 = vpop.f32.mrb[0].mxu0
        %v2938 = vpop.f32.mrb[0].mxu0
        %v2939 = vadd.f32 %v2579, %v2938
        %v2940 = vpop.f32.mrb[0].mxu0
        %2941 = vdwg.mxu0
        %v2942 = vld [vmem:[%s5] sm:$0x1]
        %v2944 = vlaneseq
        %v2945 = vshrl.u32 %v2944, 7
        %v2946 = vsub.s32 0, %v2945
        %v2947 = vrot.slane %v2942, %v2946
        %v2949 = vadd.f32 %v2632, %v2947
        %v2950 = vadd.f32 %v2635, %v2947
        %v2951 = vadd.f32 %v2640, %v2947
        %v2952 = vadd.f32 %v2643, %v2947
        %v2953 = vadd.f32 %v2648, %v2947
        %v2954 = vadd.f32 %v2651, %v2947
        %v2955 = vadd.f32 %v2656, %v2947
        %v2956 = vadd.f32 %v2659, %v2947
        %v2957 = vadd.f32 %v2664, %v2947
        %v2958 = vadd.f32 %v2667, %v2947
        %v2959 = vadd.f32 %v2672, %v2947
        %v2960 = vadd.f32 %v2675, %v2947
        %v2961 = vadd.f32 %v2680, %v2947
        %v2962 = vadd.f32 %v2683, %v2947
        %v2963 = vadd.f32 %v2688, %v2947
        %v2964 = vadd.f32 %v2691, %v2947
        %v2965 = vadd.f32 %v2696, %v2947
        %v2966 = vadd.f32 %v2699, %v2947
        %v2967 = vadd.f32 %v2704, %v2947
        %v2968 = vadd.f32 %v2707, %v2947
        %v2969 = vadd.f32 %v2712, %v2947
        %v2970 = vadd.f32 %v2715, %v2947
        %v2971 = vadd.f32 %v2720, %v2947
        %v2972 = vadd.f32 %v2723, %v2947
        %v2973 = vadd.f32 %v2728, %v2947
        %v2974 = vadd.f32 %v2731, %v2947
        %v2975 = vadd.f32 %v2736, %v2947
        %v2976 = vadd.f32 %v2739, %v2947
        %v2977 = vadd.f32 %v2744, %v2947
        %v2978 = vadd.f32 %v2747, %v2947
        %v2979 = vadd.f32 %v2752, %v2947
        %v2980 = vadd.f32 %v2755, %v2947
        %v2981 = vadd.f32 %v2760, %v2947
        %v2982 = vadd.f32 %v2763, %v2947
        %v2983 = vadd.f32 %v2768, %v2947
        %v2984 = vadd.f32 %v2771, %v2947
        %v2985 = vadd.f32 %v2776, %v2947
        %v2986 = vadd.f32 %v2779, %v2947
        %v2987 = vadd.f32 %v2784, %v2947
        %v2988 = vadd.f32 %v2787, %v2947
        %v2989 = vadd.f32 %v2792, %v2947
        %v2990 = vadd.f32 %v2795, %v2947
        %v2991 = vadd.f32 %v2800, %v2947
        %v2992 = vadd.f32 %v2803, %v2947
        %v2993 = vadd.f32 %v2808, %v2947
        %v2994 = vadd.f32 %v2811, %v2947
        %v2995 = vadd.f32 %v2816, %v2947
        %v2996 = vadd.f32 %v2819, %v2947
        %v2997 = vadd.f32 %v2824, %v2947
        %v2998 = vadd.f32 %v2827, %v2947
        %v2999 = vadd.f32 %v2832, %v2947
        %v3000 = vadd.f32 %v2835, %v2947
        %v3001 = vadd.f32 %v2840, %v2947
        %v3002 = vadd.f32 %v2843, %v2947
        %v3003 = vadd.f32 %v2848, %v2947
        %v3004 = vadd.f32 %v2851, %v2947
        %v3005 = vadd.f32 %v2856, %v2947
        %v3006 = vadd.f32 %v2859, %v2947
        %v3007 = vadd.f32 %v2864, %v2947
        %v3008 = vadd.f32 %v2867, %v2947
        %v3009 = vadd.f32 %v2872, %v2947
        %v3010 = vadd.f32 %v2875, %v2947
        %v3011 = vadd.f32 %v2880, %v2947
        %v3012 = vadd.f32 %v2883, %v2947
        %v3013 = vadd.f32 %v2888, %v2947
        %v3014 = vadd.f32 %v2891, %v2947
        %v3015 = vadd.f32 %v2896, %v2947
        %v3016 = vadd.f32 %v2899, %v2947
        %v3017 = vadd.f32 %v2904, %v2947
        %v3018 = vadd.f32 %v2907, %v2947
        %v3019 = vadd.f32 %v2912, %v2947
        %v3020 = vadd.f32 %v2915, %v2947
        %v3021 = vadd.f32 %v2920, %v2947
        %v3022 = vadd.f32 %v2923, %v2947
        %v3023 = vadd.f32 %v2928, %v2947
        %v3024 = vadd.f32 %v2931, %v2947
        %v3025 = vadd.f32 %v2936, %v2947
        %v3026 = vadd.f32 %v2939, %v2947
        %v3027 = vmax.f32 %v2949, 0.0
        %v3028 = vmax.f32 %v2950, 0.0
        %v3029 = vmax.f32 %v2951, 0.0
        %v3030 = vmax.f32 %v2952, 0.0
        %v3031 = vmax.f32 %v2953, 0.0
        %v3032 = vmax.f32 %v2954, 0.0
        %v3033 = vmax.f32 %v2955, 0.0
        %v3034 = vmax.f32 %v2956, 0.0
        %v3035 = vmax.f32 %v2957, 0.0
        %v3036 = vmax.f32 %v2958, 0.0
        %v3037 = vmax.f32 %v2959, 0.0
        %v3038 = vmax.f32 %v2960, 0.0
        %v3039 = vmax.f32 %v2961, 0.0
        %v3040 = vmax.f32 %v2962, 0.0
        %v3041 = vmax.f32 %v2963, 0.0
        %v3042 = vmax.f32 %v2964, 0.0
        %v3043 = vmax.f32 %v2965, 0.0
        %v3044 = vmax.f32 %v2966, 0.0
        %v3045 = vmax.f32 %v2967, 0.0
        %v3046 = vmax.f32 %v2968, 0.0
        %v3047 = vmax.f32 %v2969, 0.0
        %v3048 = vmax.f32 %v2970, 0.0
        %v3049 = vmax.f32 %v2971, 0.0
        %v3050 = vmax.f32 %v2972, 0.0
        %v3051 = vmax.f32 %v2973, 0.0
        %v3052 = vmax.f32 %v2974, 0.0
        %v3053 = vmax.f32 %v2975, 0.0
        %v3054 = vmax.f32 %v2976, 0.0
        %v3055 = vmax.f32 %v2977, 0.0
        %v3056 = vmax.f32 %v2978, 0.0
        %v3057 = vmax.f32 %v2979, 0.0
        %v3058 = vmax.f32 %v2980, 0.0
        %v3059 = vmax.f32 %v2981, 0.0
        %v3060 = vmax.f32 %v2982, 0.0
        %v3061 = vmax.f32 %v2983, 0.0
        %v3062 = vmax.f32 %v2984, 0.0
        %v3063 = vmax.f32 %v2985, 0.0
        %v3064 = vmax.f32 %v2986, 0.0
        %v3065 = vmax.f32 %v2987, 0.0
        %v3066 = vmax.f32 %v2988, 0.0
        %v3067 = vmax.f32 %v2989, 0.0
        %v3068 = vmax.f32 %v2990, 0.0
        %v3069 = vmax.f32 %v2991, 0.0
        %v3070 = vmax.f32 %v2992, 0.0
        %v3071 = vmax.f32 %v2993, 0.0
        %v3072 = vmax.f32 %v2994, 0.0
        %v3073 = vmax.f32 %v2995, 0.0
        %v3074 = vmax.f32 %v2996, 0.0
        %v3075 = vmax.f32 %v2997, 0.0
        %v3076 = vmax.f32 %v2998, 0.0
        %v3077 = vmax.f32 %v2999, 0.0
        %v3078 = vmax.f32 %v3000, 0.0
        %v3079 = vmax.f32 %v3001, 0.0
        %v3080 = vmax.f32 %v3002, 0.0
        %v3081 = vmax.f32 %v3003, 0.0
        %v3082 = vmax.f32 %v3004, 0.0
        %v3083 = vmax.f32 %v3005, 0.0
        %v3084 = vmax.f32 %v3006, 0.0
        %v3085 = vmax.f32 %v3007, 0.0
        %v3086 = vmax.f32 %v3008, 0.0
        %v3087 = vmax.f32 %v3009, 0.0
        %v3088 = vmax.f32 %v3010, 0.0
        %v3089 = vmax.f32 %v3011, 0.0
        %v3090 = vmax.f32 %v3012, 0.0
        %v3091 = vmax.f32 %v3013, 0.0
        %v3092 = vmax.f32 %v3014, 0.0
        %v3093 = vmax.f32 %v3015, 0.0
        %v3094 = vmax.f32 %v3016, 0.0
        %v3095 = vmax.f32 %v3017, 0.0
        %v3096 = vmax.f32 %v3018, 0.0
        %v3097 = vmax.f32 %v3019, 0.0
        %v3098 = vmax.f32 %v3020, 0.0
        %v3099 = vmax.f32 %v3021, 0.0
        %v3100 = vmax.f32 %v3022, 0.0
        %v3101 = vmax.f32 %v3023, 0.0
        %v3102 = vmax.f32 %v3024, 0.0
        %v3103 = vmax.f32 %v3025, 0.0
        %v3104 = vmax.f32 %v3026, 0.0
        %v3105 = vpack.c.bf16 %v3028, %v3027
        %v3106 = vpack.c.bf16 %v3030, %v3029
        %v3107 = vpack.c.bf16 %v3032, %v3031
        %v3108 = vpack.c.bf16 %v3034, %v3033
        %v3109 = vpack.c.bf16 %v3036, %v3035
        %v3110 = vpack.c.bf16 %v3038, %v3037
        %v3111 = vpack.c.bf16 %v3040, %v3039
        %v3112 = vpack.c.bf16 %v3042, %v3041
        %v3113 = vpack.c.bf16 %v3044, %v3043
        %v3114 = vpack.c.bf16 %v3046, %v3045
        %v3115 = vpack.c.bf16 %v3048, %v3047
        %v3116 = vpack.c.bf16 %v3050, %v3049
        %v3117 = vpack.c.bf16 %v3052, %v3051
        %v3118 = vpack.c.bf16 %v3054, %v3053
        %v3119 = vpack.c.bf16 %v3056, %v3055
        %v3120 = vpack.c.bf16 %v3058, %v3057
        %v3121 = vpack.c.bf16 %v3060, %v3059
        %v3122 = vpack.c.bf16 %v3062, %v3061
        %v3123 = vpack.c.bf16 %v3064, %v3063
        %v3124 = vpack.c.bf16 %v3066, %v3065
        %v3125 = vpack.c.bf16 %v3068, %v3067
        %v3126 = vpack.c.bf16 %v3070, %v3069
        %v3127 = vpack.c.bf16 %v3072, %v3071
        %v3128 = vpack.c.bf16 %v3074, %v3073
        %v3129 = vpack.c.bf16 %v3076, %v3075
        %v3130 = vpack.c.bf16 %v3078, %v3077
        %v3131 = vpack.c.bf16 %v3080, %v3079
        %v3132 = vpack.c.bf16 %v3082, %v3081
        %v3133 = vpack.c.bf16 %v3084, %v3083
        %v3134 = vpack.c.bf16 %v3086, %v3085
        %v3135 = vpack.c.bf16 %v3088, %v3087
        %v3136 = vpack.c.bf16 %v3090, %v3089
        %v3137 = vpack.c.bf16 %v3092, %v3091
        %v3138 = vpack.c.bf16 %v3094, %v3093
        %v3139 = vpack.c.bf16 %v3096, %v3095
        %v3140 = vpack.c.bf16 %v3098, %v3097
        %v3141 = vpack.c.bf16 %v3100, %v3099
        %v3142 = vpack.c.bf16 %v3102, %v3101
        %v3143 = vpack.c.bf16 %v3104, %v3103
        %v3144 = vld [vmem:[%s6] sm:$0xf]
        %v3145 = vld [vmem:[%s6 + $0x4] sm:$0xf]
        %v3146 = vld [vmem:[%s6 + $0x8] sm:$0xf]
        %v3147 = vld [vmem:[%s6 + $0xc] sm:$0xf]
        %v3148 = vld [vmem:[%s6 + $0x10] sm:$0xf]
        %v3149 = vld [vmem:[%s6 + $0x14] sm:$0xf]
        %v3150 = vld [vmem:[%s6 + $0x18] sm:$0xf]
        %v3151 = vld [vmem:[%s6 + $0x1c] sm:$0xf]
        %v3152 = vld [vmem:[%s7] sm:$0xf]
        %v3153 = vld [vmem:[%s7 + $0x4] sm:$0xf]
        %v3154 = vld [vmem:[%s7 + $0x8] sm:$0xf]
        %v3155 = vld [vmem:[%s7 + $0xc] sm:$0xf]
        %v3156 = vld [vmem:[%s7 + $0x10] sm:$0xf]
        %v3157 = vld [vmem:[%s7 + $0x14] sm:$0xf]
        %v3158 = vld [vmem:[%s7 + $0x18] sm:$0xf]
        %v3159 = vld [vmem:[%s7 + $0x1c] sm:$0xf]
        %v3168 = vunpack.c.l.b16 %v3152
        %v3169 = vunpack.c.l.b16 %v3153
        %v3170 = vunpack.c.l.b16 %v3154
        %v3171 = vunpack.c.l.b16 %v3155
        %v3172 = vunpack.c.l.b16 %v3156
        %v3173 = vunpack.c.l.b16 %v3157
        %v3174 = vunpack.c.l.b16 %v3158
        %v3175 = vunpack.c.l.b16 %v3159
        %v3176 = vpack.c.b16 %v3169, %v3168
        %v3177 = vpack.c.b16 %v3171, %v3170
        %v3178 = vpack.c.b16 %v3173, %v3172
        %v3179 = vpack.c.b16 %v3175, %v3174
        %vm3184 = vcmask 523264
        %v3186 = vsel %vm3184, %v3106, 0
        %v3189 = vsel %vm3184, %v3107, 0
        %v3192 = vsel %vm3184, %v3108, 0
        %v3195 = vsel %vm3184, %v3109, 0
        %v3198 = vsel %vm3184, %v3110, 0
        %v3201 = vsel %vm3184, %v3111, 0
        %v3204 = vsel %vm3184, %v3112, 0
        %v3207 = vsel %vm3184, %v3113, 0
        %v3210 = vsel %vm3184, %v3114, 0
        %v3213 = vsel %vm3184, %v3115, 0
        %v3216 = vsel %vm3184, %v3116, 0
        %v3219 = vsel %vm3184, %v3117, 0
        %v3222 = vsel %vm3184, %v3118, 0
        %v3225 = vsel %vm3184, %v3119, 0
        %v3228 = vsel %vm3184, %v3120, 0
        %v3231 = vsel %vm3184, %v3121, 0
        %v3234 = vsel %vm3184, %v3122, 0
        %v3237 = vsel %vm3184, %v3123, 0
        %v3240 = vsel %vm3184, %v3124, 0
        %v3243 = vsel %vm3184, %v3125, 0
        %v3246 = vsel %vm3184, %v3126, 0
        %v3249 = vsel %vm3184, %v3127, 0
        %v3252 = vsel %vm3184, %v3128, 0
        %v3255 = vsel %vm3184, %v3129, 0
        %v3258 = vsel %vm3184, %v3130, 0
        %v3261 = vsel %vm3184, %v3131, 0
        %v3264 = vsel %vm3184, %v3132, 0
        %v3267 = vsel %vm3184, %v3133, 0
        %v3270 = vsel %vm3184, %v3134, 0
        %v3273 = vsel %vm3184, %v3135, 0
        %v3276 = vsel %vm3184, %v3136, 0
        %v3279 = vsel %vm3184, %v3137, 0
        %v3282 = vsel %vm3184, %v3138, 0
        %v3285 = vsel %vm3184, %v3139, 0
        %v3288 = vsel %vm3184, %v3140, 0
        %v3291 = vsel %vm3184, %v3141, 0
        %v3294 = vsel %vm3184, %v3142, 0
        %v3297 = vsel %vm3184, %v3143, 0
        %3299 = vmatprep.subr.bf16.mxu0 0
        %3300 = vmatpush1.bf16.msra.mxu0 %v3176
        %3301 = vmatprep.subr.bf16.mxu0 0
        %3302 = vmatpush1.bf16.msra.mxu0 %v3177
        %3303 = vmatprep.subr.bf16.mxu0 0
        %3304 = vmatpush1.bf16.msra.mxu0 %v3178
        %3305 = vmatprep.subr.bf16.mxu0 0
        %3306 = vmatpush1.bf16.msra.mxu0 %v3179
        %3307 = vmatprep.subr.bf16.mxu0 0
        %3308 = vmatpush1.bf16.msra.mxu0 0
        %3309 = vmatprep.subr.bf16.mxu0 0
        %3310 = vmatpush1.bf16.msra.mxu0 0
        %3311 = vmatprep.subr.bf16.mxu0 0
        %3312 = vmatpush1.bf16.msra.mxu0 0
        %3313 = vmatprep.subr.bf16.mxu0 0
        %3314 = vmatpush1.bf16.msra.mxu0 0
        %3315 = vmatprep.subr.bf16.mxu0 0
        %3316 = vmatpush1.bf16.msra.mxu0 0
        %3317 = vmatprep.subr.bf16.mxu0 0
        %3318 = vmatpush1.bf16.msra.mxu0 0
        %3319 = vmatprep.subr.bf16.mxu0 0
        %3320 = vmatpush1.bf16.msra.mxu0 0
        %3321 = vmatprep.subr.bf16.mxu0 0
        %3322 = vmatpush1.bf16.msra.mxu0 0
        %3323 = vmatprep.subr.bf16.mxu0 0
        %3324 = vmatpush1.bf16.msra.mxu0 0
        %3325 = vmatprep.subr.bf16.mxu0 0
        %3326 = vmatpush1.bf16.msra.mxu0 0
        %3327 = vmatprep.subr.bf16.mxu0 0
        %3328 = vmatpush1.bf16.msra.mxu0 0
        %3329 = vmatprep.subr.bf16.mxu0 0
        %3330 = vmatpush1.bf16.msra.mxu0 0
        %3331 = vmatprep.mubr.bf16.mxu0 0
        %3332 = vmatmul.mubr.bf16.gmra.mrb[0].mxu0 %v3186
        %v3333 = vpop.f32.mrb[0].mxu0
        %v3334 = vadd.f32 0.0, %v3333
        %v3335 = vpop.f32.mrb[0].mxu0
        %v3336 = vpop.f32.mrb[0].mxu0
        %v3337 = vadd.f32 0.0, %v3336
        %v3338 = vpop.f32.mrb[0].mxu0
        %3339 = vmatprep.mubr.bf16.mxu0 0
        %3340 = vmatmul.mubr.bf16.gmra.mrb[0].mxu0 %v3189
        %v3341 = vpop.f32.mrb[0].mxu0
        %v3342 = vadd.f32 0.0, %v3341
        %v3343 = vpop.f32.mrb[0].mxu0
        %v3344 = vpop.f32.mrb[0].mxu0
        %v3345 = vadd.f32 0.0, %v3344
        %v3346 = vpop.f32.mrb[0].mxu0
        %3347 = vmatprep.mubr.bf16.mxu0 0
        %3348 = vmatmul.mubr.bf16.gmra.mrb[0].mxu0 %v3192
        %v3349 = vpop.f32.mrb[0].mxu0
        %v3350 = vadd.f32 0.0, %v3349
        %v3351 = vpop.f32.mrb[0].mxu0
        %v3352 = vpop.f32.mrb[0].mxu0
        %v3353 = vadd.f32 0.0, %v3352
        %v3354 = vpop.f32.mrb[0].mxu0
        %3355 = vmatprep.mubr.bf16.mxu0 0
        %3356 = vmatmul.mubr.bf16.gmra.mrb[0].mxu0 %v3195
        %v3357 = vpop.f32.mrb[0].mxu0
        %v3358 = vadd.f32 0.0, %v3357
        %v3359 = vpop.f32.mrb[0].mxu0
        %v3360 = vpop.f32.mrb[0].mxu0
        %v3361 = vadd.f32 0.0, %v3360
        %v3362 = vpop.f32.mrb[0].mxu0
        %3363 = vmatprep.mubr.bf16.mxu0 0
        %3364 = vmatmul.mubr.bf16.gmra.mrb[0].mxu0 %v3198
        %v3365 = vpop.f32.mrb[0].mxu0
        %v3366 = vadd.f32 0.0, %v3365
        %v3367 = vpop.f32.mrb[0].mxu0
        %v3368 = vpop.f32.mrb[0].mxu0
        %v3369 = vadd.f32 0.0, %v3368
        %v3370 = vpop.f32.mrb[0].mxu0
        %3371 = vmatprep.mubr.bf16.mxu0 0
        %3372 = vmatmul.mubr.bf16.gmra.mrb[0].mxu0 %v3201
        %v3373 = vpop.f32.mrb[0].mxu0
        %v3374 = vadd.f32 0.0, %v3373
        %v3375 = vpop.f32.mrb[0].mxu0
        %v3376 = vpop.f32.mrb[0].mxu0
        %v3377 = vadd.f32 0.0, %v3376
        %v3378 = vpop.f32.mrb[0].mxu0
        %3379 = vmatprep.mubr.bf16.mxu0 0
        %3380 = vmatmul.mubr.bf16.gmra.mrb[0].mxu0 %v3204
        %v3381 = vpop.f32.mrb[0].mxu0
        %v3382 = vadd.f32 0.0, %v3381
        %v3383 = vpop.f32.mrb[0].mxu0
        %v3384 = vpop.f32.mrb[0].mxu0
        %v3385 = vadd.f32 0.0, %v3384
        %v3386 = vpop.f32.mrb[0].mxu0
        %3387 = vmatprep.mubr.bf16.mxu0 0
        %3388 = vmatmul.mubr.bf16.gmra.mrb[0].mxu0 %v3207
        %v3389 = vpop.f32.mrb[0].mxu0
        %v3390 = vadd.f32 0.0, %v3389
        %v3391 = vpop.f32.mrb[0].mxu0
        %v3392 = vpop.f32.mrb[0].mxu0
        %v3393 = vadd.f32 0.0, %v3392
        %v3394 = vpop.f32.mrb[0].mxu0
        %3395 = vmatprep.mubr.bf16.mxu0 0
        %3396 = vmatmul.mubr.bf16.gmra.mrb[0].mxu0 %v3210
        %v3397 = vpop.f32.mrb[0].mxu0
        %v3398 = vadd.f32 0.0, %v3397
        %v3399 = vpop.f32.mrb[0].mxu0
        %v3400 = vpop.f32.mrb[0].mxu0
        %v3401 = vadd.f32 0.0, %v3400
        %v3402 = vpop.f32.mrb[0].mxu0
        %3403 = vmatprep.mubr.bf16.mxu0 0
        %3404 = vmatmul.mubr.bf16.gmra.mrb[0].mxu0 %v3213
        %v3405 = vpop.f32.mrb[0].mxu0
        %v3406 = vadd.f32 0.0, %v3405
        %v3407 = vpop.f32.mrb[0].mxu0
        %v3408 = vpop.f32.mrb[0].mxu0
        %v3409 = vadd.f32 0.0, %v3408
        %v3410 = vpop.f32.mrb[0].mxu0
        %3411 = vmatprep.mubr.bf16.mxu0 0
        %3412 = vmatmul.mubr.bf16.gmra.mrb[0].mxu0 %v3216
        %v3413 = vpop.f32.mrb[0].mxu0
        %v3414 = vadd.f32 0.0, %v3413
        %v3415 = vpop.f32.mrb[0].mxu0
        %v3416 = vpop.f32.mrb[0].mxu0
        %v3417 = vadd.f32 0.0, %v3416
        %v3418 = vpop.f32.mrb[0].mxu0
        %3419 = vmatprep.mubr.bf16.mxu0 0
        %3420 = vmatmul.mubr.bf16.gmra.mrb[0].mxu0 %v3219
        %v3421 = vpop.f32.mrb[0].mxu0
        %v3422 = vadd.f32 0.0, %v3421
        %v3423 = vpop.f32.mrb[0].mxu0
        %v3424 = vpop.f32.mrb[0].mxu0
        %v3425 = vadd.f32 0.0, %v3424
        %v3426 = vpop.f32.mrb[0].mxu0
        %3427 = vmatprep.mubr.bf16.mxu0 0
        %3428 = vmatmul.mubr.bf16.gmra.mrb[0].mxu0 %v3222
        %v3429 = vpop.f32.mrb[0].mxu0
        %v3430 = vadd.f32 0.0, %v3429
        %v3431 = vpop.f32.mrb[0].mxu0
        %v3432 = vpop.f32.mrb[0].mxu0
        %v3433 = vadd.f32 0.0, %v3432
        %v3434 = vpop.f32.mrb[0].mxu0
        %3435 = vmatprep.mubr.bf16.mxu0 0
        %3436 = vmatmul.mubr.bf16.gmra.mrb[0].mxu0 %v3225
        %v3437 = vpop.f32.mrb[0].mxu0
        %v3438 = vadd.f32 0.0, %v3437
        %v3439 = vpop.f32.mrb[0].mxu0
        %v3440 = vpop.f32.mrb[0].mxu0
        %v3441 = vadd.f32 0.0, %v3440
        %v3442 = vpop.f32.mrb[0].mxu0
        %3443 = vmatprep.mubr.bf16.mxu0 0
        %3444 = vmatmul.mubr.bf16.gmra.mrb[0].mxu0 %v3228
        %v3445 = vpop.f32.mrb[0].mxu0
        %v3446 = vadd.f32 0.0, %v3445
        %v3447 = vpop.f32.mrb[0].mxu0
        %v3448 = vpop.f32.mrb[0].mxu0
        %v3449 = vadd.f32 0.0, %v3448
        %v3450 = vpop.f32.mrb[0].mxu0
        %3451 = vmatprep.mubr.bf16.mxu0 0
        %3452 = vmatmul.mubr.bf16.gmra.mrb[0].mxu0 %v3231
        %v3453 = vpop.f32.mrb[0].mxu0
        %v3454 = vadd.f32 0.0, %v3453
        %v3455 = vpop.f32.mrb[0].mxu0
        %v3456 = vpop.f32.mrb[0].mxu0
        %v3457 = vadd.f32 0.0, %v3456
        %v3458 = vpop.f32.mrb[0].mxu0
        %3459 = vmatprep.mubr.bf16.mxu0 0
        %3460 = vmatmul.mubr.bf16.gmra.mrb[0].mxu0 %v3234
        %v3461 = vpop.f32.mrb[0].mxu0
        %v3462 = vadd.f32 0.0, %v3461
        %v3463 = vpop.f32.mrb[0].mxu0
        %v3464 = vpop.f32.mrb[0].mxu0
        %v3465 = vadd.f32 0.0, %v3464
        %v3466 = vpop.f32.mrb[0].mxu0
        %3467 = vmatprep.mubr.bf16.mxu0 0
        %3468 = vmatmul.mubr.bf16.gmra.mrb[0].mxu0 %v3237
        %v3469 = vpop.f32.mrb[0].mxu0
        %v3470 = vadd.f32 0.0, %v3469
        %v3471 = vpop.f32.mrb[0].mxu0
        %v3472 = vpop.f32.mrb[0].mxu0
        %v3473 = vadd.f32 0.0, %v3472
        %v3474 = vpop.f32.mrb[0].mxu0
        %3475 = vmatprep.mubr.bf16.mxu0 0
        %3476 = vmatmul.mubr.bf16.gmra.mrb[0].mxu0 %v3240
        %v3477 = vpop.f32.mrb[0].mxu0
        %v3478 = vadd.f32 0.0, %v3477
        %v3479 = vpop.f32.mrb[0].mxu0
        %v3480 = vpop.f32.mrb[0].mxu0
        %v3481 = vadd.f32 0.0, %v3480
        %v3482 = vpop.f32.mrb[0].mxu0
        %3483 = vmatprep.mubr.bf16.mxu0 0
        %3484 = vmatmul.mubr.bf16.gmra.mrb[0].mxu0 %v3243
        %v3485 = vpop.f32.mrb[0].mxu0
        %v3486 = vadd.f32 0.0, %v3485
        %v3487 = vpop.f32.mrb[0].mxu0
        %v3488 = vpop.f32.mrb[0].mxu0
        %v3489 = vadd.f32 0.0, %v3488
        %v3490 = vpop.f32.mrb[0].mxu0
        %3491 = vmatprep.mubr.bf16.mxu0 0
        %3492 = vmatmul.mubr.bf16.gmra.mrb[0].mxu0 %v3246
        %v3493 = vpop.f32.mrb[0].mxu0
        %v3494 = vadd.f32 0.0, %v3493
        %v3495 = vpop.f32.mrb[0].mxu0
        %v3496 = vpop.f32.mrb[0].mxu0
        %v3497 = vadd.f32 0.0, %v3496
        %v3498 = vpop.f32.mrb[0].mxu0
        %3499 = vmatprep.mubr.bf16.mxu0 0
        %3500 = vmatmul.mubr.bf16.gmra.mrb[0].mxu0 %v3249
        %v3501 = vpop.f32.mrb[0].mxu0
        %v3502 = vadd.f32 0.0, %v3501
        %v3503 = vpop.f32.mrb[0].mxu0
        %v3504 = vpop.f32.mrb[0].mxu0
        %v3505 = vadd.f32 0.0, %v3504
        %v3506 = vpop.f32.mrb[0].mxu0
        %3507 = vmatprep.mubr.bf16.mxu0 0
        %3508 = vmatmul.mubr.bf16.gmra.mrb[0].mxu0 %v3252
        %v3509 = vpop.f32.mrb[0].mxu0
        %v3510 = vadd.f32 0.0, %v3509
        %v3511 = vpop.f32.mrb[0].mxu0
        %v3512 = vpop.f32.mrb[0].mxu0
        %v3513 = vadd.f32 0.0, %v3512
        %v3514 = vpop.f32.mrb[0].mxu0
        %3515 = vmatprep.mubr.bf16.mxu0 0
        %3516 = vmatmul.mubr.bf16.gmra.mrb[0].mxu0 %v3255
        %v3517 = vpop.f32.mrb[0].mxu0
        %v3518 = vadd.f32 0.0, %v3517
        %v3519 = vpop.f32.mrb[0].mxu0
        %v3520 = vpop.f32.mrb[0].mxu0
        %v3521 = vadd.f32 0.0, %v3520
        %v3522 = vpop.f32.mrb[0].mxu0
        %3523 = vmatprep.mubr.bf16.mxu0 0
        %3524 = vmatmul.mubr.bf16.gmra.mrb[0].mxu0 %v3258
        %v3525 = vpop.f32.mrb[0].mxu0
        %v3526 = vadd.f32 0.0, %v3525
        %v3527 = vpop.f32.mrb[0].mxu0
        %v3528 = vpop.f32.mrb[0].mxu0
        %v3529 = vadd.f32 0.0, %v3528
        %v3530 = vpop.f32.mrb[0].mxu0
        %3531 = vmatprep.mubr.bf16.mxu0 0
        %3532 = vmatmul.mubr.bf16.gmra.mrb[0].mxu0 %v3261
        %v3533 = vpop.f32.mrb[0].mxu0
        %v3534 = vadd.f32 0.0, %v3533
        %v3535 = vpop.f32.mrb[0].mxu0
        %v3536 = vpop.f32.mrb[0].mxu0
        %v3537 = vadd.f32 0.0, %v3536
        %v3538 = vpop.f32.mrb[0].mxu0
        %3539 = vmatprep.mubr.bf16.mxu0 0
        %3540 = vmatmul.mubr.bf16.gmra.mrb[0].mxu0 %v3264
        %v3541 = vpop.f32.mrb[0].mxu0
        %v3542 = vadd.f32 0.0, %v3541
        %v3543 = vpop.f32.mrb[0].mxu0
        %v3544 = vpop.f32.mrb[0].mxu0
        %v3545 = vadd.f32 0.0, %v3544
        %v3546 = vpop.f32.mrb[0].mxu0
        %3547 = vmatprep.mubr.bf16.mxu0 0
        %3548 = vmatmul.mubr.bf16.gmra.mrb[0].mxu0 %v3267
        %v3549 = vpop.f32.mrb[0].mxu0
        %v3550 = vadd.f32 0.0, %v3549
        %v3551 = vpop.f32.mrb[0].mxu0
        %v3552 = vpop.f32.mrb[0].mxu0
        %v3553 = vadd.f32 0.0, %v3552
        %v3554 = vpop.f32.mrb[0].mxu0
        %3555 = vmatprep.mubr.bf16.mxu0 0
        %3556 = vmatmul.mubr.bf16.gmra.mrb[0].mxu0 %v3270
        %v3557 = vpop.f32.mrb[0].mxu0
        %v3558 = vadd.f32 0.0, %v3557
        %v3559 = vpop.f32.mrb[0].mxu0
        %v3560 = vpop.f32.mrb[0].mxu0
        %v3561 = vadd.f32 0.0, %v3560
        %v3562 = vpop.f32.mrb[0].mxu0
        %3563 = vmatprep.mubr.bf16.mxu0 0
        %3564 = vmatmul.mubr.bf16.gmra.mrb[0].mxu0 %v3273
        %v3565 = vpop.f32.mrb[0].mxu0
        %v3566 = vadd.f32 0.0, %v3565
        %v3567 = vpop.f32.mrb[0].mxu0
        %v3568 = vpop.f32.mrb[0].mxu0
        %v3569 = vadd.f32 0.0, %v3568
        %v3570 = vpop.f32.mrb[0].mxu0
        %3571 = vmatprep.mubr.bf16.mxu0 0
        %3572 = vmatmul.mubr.bf16.gmra.mrb[0].mxu0 %v3276
        %v3573 = vpop.f32.mrb[0].mxu0
        %v3574 = vadd.f32 0.0, %v3573
        %v3575 = vpop.f32.mrb[0].mxu0
        %v3576 = vpop.f32.mrb[0].mxu0
        %v3577 = vadd.f32 0.0, %v3576
        %v3578 = vpop.f32.mrb[0].mxu0
        %3579 = vmatprep.mubr.bf16.mxu0 0
        %3580 = vmatmul.mubr.bf16.gmra.mrb[0].mxu0 %v3279
        %v3581 = vpop.f32.mrb[0].mxu0
        %v3582 = vadd.f32 0.0, %v3581
        %v3583 = vpop.f32.mrb[0].mxu0
        %v3584 = vpop.f32.mrb[0].mxu0
        %v3585 = vadd.f32 0.0, %v3584
        %v3586 = vpop.f32.mrb[0].mxu0
        %3587 = vmatprep.mubr.bf16.mxu0 0
        %3588 = vmatmul.mubr.bf16.gmra.mrb[0].mxu0 %v3282
        %v3589 = vpop.f32.mrb[0].mxu0
        %v3590 = vadd.f32 0.0, %v3589
        %v3591 = vpop.f32.mrb[0].mxu0
        %v3592 = vpop.f32.mrb[0].mxu0
        %v3593 = vadd.f32 0.0, %v3592
        %v3594 = vpop.f32.mrb[0].mxu0
        %3595 = vmatprep.mubr.bf16.mxu0 0
        %3596 = vmatmul.mubr.bf16.gmra.mrb[0].mxu0 %v3285
        %v3597 = vpop.f32.mrb[0].mxu0
        %v3598 = vadd.f32 0.0, %v3597
        %v3599 = vpop.f32.mrb[0].mxu0
        %v3600 = vpop.f32.mrb[0].mxu0
        %v3601 = vadd.f32 0.0, %v3600
        %v3602 = vpop.f32.mrb[0].mxu0
        %3603 = vmatprep.mubr.bf16.mxu0 0
        %3604 = vmatmul.mubr.bf16.gmra.mrb[0].mxu0 %v3288
        %v3605 = vpop.f32.mrb[0].mxu0
        %v3606 = vadd.f32 0.0, %v3605
        %v3607 = vpop.f32.mrb[0].mxu0
        %v3608 = vpop.f32.mrb[0].mxu0
        %v3609 = vadd.f32 0.0, %v3608
        %v3610 = vpop.f32.mrb[0].mxu0
        %3611 = vmatprep.mubr.bf16.mxu0 0
        %3612 = vmatmul.mubr.bf16.gmra.mrb[0].mxu0 %v3291
        %v3613 = vpop.f32.mrb[0].mxu0
        %v3614 = vadd.f32 0.0, %v3613
        %v3615 = vpop.f32.mrb[0].mxu0
        %v3616 = vpop.f32.mrb[0].mxu0
        %v3617 = vadd.f32 0.0, %v3616
        %v3618 = vpop.f32.mrb[0].mxu0
        %3619 = vmatprep.mubr.bf16.mxu0 0
        %3620 = vmatmul.mubr.bf16.gmra.mrb[0].mxu0 %v3294
        %v3621 = vpop.f32.mrb[0].mxu0
        %v3622 = vadd.f32 0.0, %v3621
        %v3623 = vpop.f32.mrb[0].mxu0
        %v3624 = vpop.f32.mrb[0].mxu0
        %v3625 = vadd.f32 0.0, %v3624
        %v3626 = vpop.f32.mrb[0].mxu0
        %3627 = vmatprep.mubr.bf16.mxu0 0
        %3628 = vmatmul.mubr.bf16.gmra.mrb[0].mxu0 %v3297
        %v3629 = vpop.f32.mrb[0].mxu0
        %v3630 = vadd.f32 0.0, %v3629
        %v3631 = vpop.f32.mrb[0].mxu0
        %v3632 = vpop.f32.mrb[0].mxu0
        %v3633 = vadd.f32 0.0, %v3632
        %v3634 = vpop.f32.mrb[0].mxu0
        %3635 = vdwg.mxu0
        %v3644 = vunpack.c.l.b16 %v3144
        %v3645 = vunpack.c.l.b16 %v3145
        %v3646 = vunpack.c.l.b16 %v3146
        %v3647 = vunpack.c.l.b16 %v3147
        %v3648 = vunpack.c.l.b16 %v3148
        %v3649 = vunpack.c.l.b16 %v3149
        %v3650 = vunpack.c.l.b16 %v3150
        %v3651 = vunpack.c.l.b16 %v3151
        %v3652 = vpack.c.b16 %v3645, %v3644
        %v3653 = vpack.c.b16 %v3647, %v3646
        %v3654 = vpack.c.b16 %v3649, %v3648
        %v3655 = vpack.c.b16 %v3651, %v3650
        %v3661 = vsel %vm3184, %v3105, 0
        %3663 = vmatprep.subr.bf16.mxu0 0
        %3664 = vmatpush1.bf16.msra.mxu0 %v3652
        %3665 = vmatprep.subr.bf16.mxu0 0
        %3666 = vmatpush1.bf16.msra.mxu0 %v3653
        %3667 = vmatprep.subr.bf16.mxu0 0
        %3668 = vmatpush1.bf16.msra.mxu0 %v3654
        %3669 = vmatprep.subr.bf16.mxu0 0
        %3670 = vmatpush1.bf16.msra.mxu0 %v3655
        %3671 = vmatprep.subr.bf16.mxu0 0
        %3672 = vmatpush1.bf16.msra.mxu0 0
        %3673 = vmatprep.subr.bf16.mxu0 0
        %3674 = vmatpush1.bf16.msra.mxu0 0
        %3675 = vmatprep.subr.bf16.mxu0 0
        %3676 = vmatpush1.bf16.msra.mxu0 0
        %3677 = vmatprep.subr.bf16.mxu0 0
        %3678 = vmatpush1.bf16.msra.mxu0 0
        %3679 = vmatprep.subr.bf16.mxu0 0
        %3680 = vmatpush1.bf16.msra.mxu0 0
        %3681 = vmatprep.subr.bf16.mxu0 0
        %3682 = vmatpush1.bf16.msra.mxu0 0
        %3683 = vmatprep.subr.bf16.mxu0 0
        %3684 = vmatpush1.bf16.msra.mxu0 0
        %3685 = vmatprep.subr.bf16.mxu0 0
        %3686 = vmatpush1.bf16.msra.mxu0 0
        %3687 = vmatprep.subr.bf16.mxu0 0
        %3688 = vmatpush1.bf16.msra.mxu0 0
        %3689 = vmatprep.subr.bf16.mxu0 0
        %3690 = vmatpush1.bf16.msra.mxu0 0
        %3691 = vmatprep.subr.bf16.mxu0 0
        %3692 = vmatpush1.bf16.msra.mxu0 0
        %3693 = vmatprep.subr.bf16.mxu0 0
        %3694 = vmatpush1.bf16.msra.mxu0 0
        %3695 = vmatprep.mubr.bf16.mxu0 0
        %3696 = vmatmul.mubr.bf16.gmra.mrb[0].mxu0 %v3661
        %v3697 = vpop.f32.mrb[0].mxu0
        %v3698 = vadd.f32 %v3334, %v3697
        %v3699 = vpop.f32.mrb[0].mxu0
        %v3700 = vpop.f32.mrb[0].mxu0
        %v3701 = vadd.f32 %v3337, %v3700
        %v3702 = vpop.f32.mrb[0].mxu0
        %3703 = vmatprep.mubr.bf16.mxu0 0
        %3704 = vmatmul.mubr.bf16.gmra.mrb[0].mxu0 %v3186
        %v3705 = vpop.f32.mrb[0].mxu0
        %v3706 = vadd.f32 %v3342, %v3705
        %v3707 = vpop.f32.mrb[0].mxu0
        %v3708 = vpop.f32.mrb[0].mxu0
        %v3709 = vadd.f32 %v3345, %v3708
        %v3710 = vpop.f32.mrb[0].mxu0
        %3711 = vmatprep.mubr.bf16.mxu0 0
        %3712 = vmatmul.mubr.bf16.gmra.mrb[0].mxu0 %v3189
        %v3713 = vpop.f32.mrb[0].mxu0
        %v3714 = vadd.f32 %v3350, %v3713
        %v3715 = vpop.f32.mrb[0].mxu0
        %v3716 = vpop.f32.mrb[0].mxu0
        %v3717 = vadd.f32 %v3353, %v3716
        %v3718 = vpop.f32.mrb[0].mxu0
        %3719 = vmatprep.mubr.bf16.mxu0 0
        %3720 = vmatmul.mubr.bf16.gmra.mrb[0].mxu0 %v3192
        %v3721 = vpop.f32.mrb[0].mxu0
        %v3722 = vadd.f32 %v3358, %v3721
        %v3723 = vpop.f32.mrb[0].mxu0
        %v3724 = vpop.f32.mrb[0].mxu0
        %v3725 = vadd.f32 %v3361, %v3724
        %v3726 = vpop.f32.mrb[0].mxu0
        %3727 = vmatprep.mubr.bf16.mxu0 0
        %3728 = vmatmul.mubr.bf16.gmra.mrb[0].mxu0 %v3195
        %v3729 = vpop.f32.mrb[0].mxu0
        %v3730 = vadd.f32 %v3366, %v3729
        %v3731 = vpop.f32.mrb[0].mxu0
        %v3732 = vpop.f32.mrb[0].mxu0
        %v3733 = vadd.f32 %v3369, %v3732
        %v3734 = vpop.f32.mrb[0].mxu0
        %3735 = vmatprep.mubr.bf16.mxu0 0
        %3736 = vmatmul.mubr.bf16.gmra.mrb[0].mxu0 %v3198
        %v3737 = vpop.f32.mrb[0].mxu0
        %v3738 = vadd.f32 %v3374, %v3737
        %v3739 = vpop.f32.mrb[0].mxu0
        %v3740 = vpop.f32.mrb[0].mxu0
        %v3741 = vadd.f32 %v3377, %v3740
        %v3742 = vpop.f32.mrb[0].mxu0
        %3743 = vmatprep.mubr.bf16.mxu0 0
        %3744 = vmatmul.mubr.bf16.gmra.mrb[0].mxu0 %v3201
        %v3745 = vpop.f32.mrb[0].mxu0
        %v3746 = vadd.f32 %v3382, %v3745
        %v3747 = vpop.f32.mrb[0].mxu0
        %v3748 = vpop.f32.mrb[0].mxu0
        %v3749 = vadd.f32 %v3385, %v3748
        %v3750 = vpop.f32.mrb[0].mxu0
        %3751 = vmatprep.mubr.bf16.mxu0 0
        %3752 = vmatmul.mubr.bf16.gmra.mrb[0].mxu0 %v3204
        %v3753 = vpop.f32.mrb[0].mxu0
        %v3754 = vadd.f32 %v3390, %v3753
        %v3755 = vpop.f32.mrb[0].mxu0
        %v3756 = vpop.f32.mrb[0].mxu0
        %v3757 = vadd.f32 %v3393, %v3756
        %v3758 = vpop.f32.mrb[0].mxu0
        %3759 = vmatprep.mubr.bf16.mxu0 0
        %3760 = vmatmul.mubr.bf16.gmra.mrb[0].mxu0 %v3207
        %v3761 = vpop.f32.mrb[0].mxu0
        %v3762 = vadd.f32 %v3398, %v3761
        %v3763 = vpop.f32.mrb[0].mxu0
        %v3764 = vpop.f32.mrb[0].mxu0
        %v3765 = vadd.f32 %v3401, %v3764
        %v3766 = vpop.f32.mrb[0].mxu0
        %3767 = vmatprep.mubr.bf16.mxu0 0
        %3768 = vmatmul.mubr.bf16.gmra.mrb[0].mxu0 %v3210
        %v3769 = vpop.f32.mrb[0].mxu0
        %v3770 = vadd.f32 %v3406, %v3769
        %v3771 = vpop.f32.mrb[0].mxu0
        %v3772 = vpop.f32.mrb[0].mxu0
        %v3773 = vadd.f32 %v3409, %v3772
        %v3774 = vpop.f32.mrb[0].mxu0
        %3775 = vmatprep.mubr.bf16.mxu0 0
        %3776 = vmatmul.mubr.bf16.gmra.mrb[0].mxu0 %v3213
        %v3777 = vpop.f32.mrb[0].mxu0
        %v3778 = vadd.f32 %v3414, %v3777
        %v3779 = vpop.f32.mrb[0].mxu0
        %v3780 = vpop.f32.mrb[0].mxu0
        %v3781 = vadd.f32 %v3417, %v3780
        %v3782 = vpop.f32.mrb[0].mxu0
        %3783 = vmatprep.mubr.bf16.mxu0 0
        %3784 = vmatmul.mubr.bf16.gmra.mrb[0].mxu0 %v3216
        %v3785 = vpop.f32.mrb[0].mxu0
        %v3786 = vadd.f32 %v3422, %v3785
        %v3787 = vpop.f32.mrb[0].mxu0
        %v3788 = vpop.f32.mrb[0].mxu0
        %v3789 = vadd.f32 %v3425, %v3788
        %v3790 = vpop.f32.mrb[0].mxu0
        %3791 = vmatprep.mubr.bf16.mxu0 0
        %3792 = vmatmul.mubr.bf16.gmra.mrb[0].mxu0 %v3219
        %v3793 = vpop.f32.mrb[0].mxu0
        %v3794 = vadd.f32 %v3430, %v3793
        %v3795 = vpop.f32.mrb[0].mxu0
        %v3796 = vpop.f32.mrb[0].mxu0
        %v3797 = vadd.f32 %v3433, %v3796
        %v3798 = vpop.f32.mrb[0].mxu0
        %3799 = vmatprep.mubr.bf16.mxu0 0
        %3800 = vmatmul.mubr.bf16.gmra.mrb[0].mxu0 %v3222
        %v3801 = vpop.f32.mrb[0].mxu0
        %v3802 = vadd.f32 %v3438, %v3801
        %v3803 = vpop.f32.mrb[0].mxu0
        %v3804 = vpop.f32.mrb[0].mxu0
        %v3805 = vadd.f32 %v3441, %v3804
        %v3806 = vpop.f32.mrb[0].mxu0
        %3807 = vmatprep.mubr.bf16.mxu0 0
        %3808 = vmatmul.mubr.bf16.gmra.mrb[0].mxu0 %v3225
        %v3809 = vpop.f32.mrb[0].mxu0
        %v3810 = vadd.f32 %v3446, %v3809
        %v3811 = vpop.f32.mrb[0].mxu0
        %v3812 = vpop.f32.mrb[0].mxu0
        %v3813 = vadd.f32 %v3449, %v3812
        %v3814 = vpop.f32.mrb[0].mxu0
        %3815 = vmatprep.mubr.bf16.mxu0 0
        %3816 = vmatmul.mubr.bf16.gmra.mrb[0].mxu0 %v3228
        %v3817 = vpop.f32.mrb[0].mxu0
        %v3818 = vadd.f32 %v3454, %v3817
        %v3819 = vpop.f32.mrb[0].mxu0
        %v3820 = vpop.f32.mrb[0].mxu0
        %v3821 = vadd.f32 %v3457, %v3820
        %v3822 = vpop.f32.mrb[0].mxu0
        %3823 = vmatprep.mubr.bf16.mxu0 0
        %3824 = vmatmul.mubr.bf16.gmra.mrb[0].mxu0 %v3231
        %v3825 = vpop.f32.mrb[0].mxu0
        %v3826 = vadd.f32 %v3462, %v3825
        %v3827 = vpop.f32.mrb[0].mxu0
        %v3828 = vpop.f32.mrb[0].mxu0
        %v3829 = vadd.f32 %v3465, %v3828
        %v3830 = vpop.f32.mrb[0].mxu0
        %3831 = vmatprep.mubr.bf16.mxu0 0
        %3832 = vmatmul.mubr.bf16.gmra.mrb[0].mxu0 %v3234
        %v3833 = vpop.f32.mrb[0].mxu0
        %v3834 = vadd.f32 %v3470, %v3833
        %v3835 = vpop.f32.mrb[0].mxu0
        %v3836 = vpop.f32.mrb[0].mxu0
        %v3837 = vadd.f32 %v3473, %v3836
        %v3838 = vpop.f32.mrb[0].mxu0
        %3839 = vmatprep.mubr.bf16.mxu0 0
        %3840 = vmatmul.mubr.bf16.gmra.mrb[0].mxu0 %v3237
        %v3841 = vpop.f32.mrb[0].mxu0
        %v3842 = vadd.f32 %v3478, %v3841
        %v3843 = vpop.f32.mrb[0].mxu0
        %v3844 = vpop.f32.mrb[0].mxu0
        %v3845 = vadd.f32 %v3481, %v3844
        %v3846 = vpop.f32.mrb[0].mxu0
        %3847 = vmatprep.mubr.bf16.mxu0 0
        %3848 = vmatmul.mubr.bf16.gmra.mrb[0].mxu0 %v3240
        %v3849 = vpop.f32.mrb[0].mxu0
        %v3850 = vadd.f32 %v3486, %v3849
        %v3851 = vpop.f32.mrb[0].mxu0
        %v3852 = vpop.f32.mrb[0].mxu0
        %v3853 = vadd.f32 %v3489, %v3852
        %v3854 = vpop.f32.mrb[0].mxu0
        %3855 = vmatprep.mubr.bf16.mxu0 0
        %3856 = vmatmul.mubr.bf16.gmra.mrb[0].mxu0 %v3243
        %v3857 = vpop.f32.mrb[0].mxu0
        %v3858 = vadd.f32 %v3494, %v3857
        %v3859 = vpop.f32.mrb[0].mxu0
        %v3860 = vpop.f32.mrb[0].mxu0
        %v3861 = vadd.f32 %v3497, %v3860
        %v3862 = vpop.f32.mrb[0].mxu0
        %3863 = vmatprep.mubr.bf16.mxu0 0
        %3864 = vmatmul.mubr.bf16.gmra.mrb[0].mxu0 %v3246
        %v3865 = vpop.f32.mrb[0].mxu0
        %v3866 = vadd.f32 %v3502, %v3865
        %v3867 = vpop.f32.mrb[0].mxu0
        %v3868 = vpop.f32.mrb[0].mxu0
        %v3869 = vadd.f32 %v3505, %v3868
        %v3870 = vpop.f32.mrb[0].mxu0
        %3871 = vmatprep.mubr.bf16.mxu0 0
        %3872 = vmatmul.mubr.bf16.gmra.mrb[0].mxu0 %v3249
        %v3873 = vpop.f32.mrb[0].mxu0
        %v3874 = vadd.f32 %v3510, %v3873
        %v3875 = vpop.f32.mrb[0].mxu0
        %v3876 = vpop.f32.mrb[0].mxu0
        %v3877 = vadd.f32 %v3513, %v3876
        %v3878 = vpop.f32.mrb[0].mxu0
        %3879 = vmatprep.mubr.bf16.mxu0 0
        %3880 = vmatmul.mubr.bf16.gmra.mrb[0].mxu0 %v3252
        %v3881 = vpop.f32.mrb[0].mxu0
        %v3882 = vadd.f32 %v3518, %v3881
        %v3883 = vpop.f32.mrb[0].mxu0
        %v3884 = vpop.f32.mrb[0].mxu0
        %v3885 = vadd.f32 %v3521, %v3884
        %v3886 = vpop.f32.mrb[0].mxu0
        %3887 = vmatprep.mubr.bf16.mxu0 0
        %3888 = vmatmul.mubr.bf16.gmra.mrb[0].mxu0 %v3255
        %v3889 = vpop.f32.mrb[0].mxu0
        %v3890 = vadd.f32 %v3526, %v3889
        %v3891 = vpop.f32.mrb[0].mxu0
        %v3892 = vpop.f32.mrb[0].mxu0
        %v3893 = vadd.f32 %v3529, %v3892
        %v3894 = vpop.f32.mrb[0].mxu0
        %3895 = vmatprep.mubr.bf16.mxu0 0
        %3896 = vmatmul.mubr.bf16.gmra.mrb[0].mxu0 %v3258
        %v3897 = vpop.f32.mrb[0].mxu0
        %v3898 = vadd.f32 %v3534, %v3897
        %v3899 = vpop.f32.mrb[0].mxu0
        %v3900 = vpop.f32.mrb[0].mxu0
        %v3901 = vadd.f32 %v3537, %v3900
        %v3902 = vpop.f32.mrb[0].mxu0
        %3903 = vmatprep.mubr.bf16.mxu0 0
        %3904 = vmatmul.mubr.bf16.gmra.mrb[0].mxu0 %v3261
        %v3905 = vpop.f32.mrb[0].mxu0
        %v3906 = vadd.f32 %v3542, %v3905
        %v3907 = vpop.f32.mrb[0].mxu0
        %v3908 = vpop.f32.mrb[0].mxu0
        %v3909 = vadd.f32 %v3545, %v3908
        %v3910 = vpop.f32.mrb[0].mxu0
        %3911 = vmatprep.mubr.bf16.mxu0 0
        %3912 = vmatmul.mubr.bf16.gmra.mrb[0].mxu0 %v3264
        %v3913 = vpop.f32.mrb[0].mxu0
        %v3914 = vadd.f32 %v3550, %v3913
        %v3915 = vpop.f32.mrb[0].mxu0
        %v3916 = vpop.f32.mrb[0].mxu0
        %v3917 = vadd.f32 %v3553, %v3916
        %v3918 = vpop.f32.mrb[0].mxu0
        %3919 = vmatprep.mubr.bf16.mxu0 0
        %3920 = vmatmul.mubr.bf16.gmra.mrb[0].mxu0 %v3267
        %v3921 = vpop.f32.mrb[0].mxu0
        %v3922 = vadd.f32 %v3558, %v3921
        %v3923 = vpop.f32.mrb[0].mxu0
        %v3924 = vpop.f32.mrb[0].mxu0
        %v3925 = vadd.f32 %v3561, %v3924
        %v3926 = vpop.f32.mrb[0].mxu0
        %3927 = vmatprep.mubr.bf16.mxu0 0
        %3928 = vmatmul.mubr.bf16.gmra.mrb[0].mxu0 %v3270
        %v3929 = vpop.f32.mrb[0].mxu0
        %v3930 = vadd.f32 %v3566, %v3929
        %v3931 = vpop.f32.mrb[0].mxu0
        %v3932 = vpop.f32.mrb[0].mxu0
        %v3933 = vadd.f32 %v3569, %v3932
        %v3934 = vpop.f32.mrb[0].mxu0
        %3935 = vmatprep.mubr.bf16.mxu0 0
        %3936 = vmatmul.mubr.bf16.gmra.mrb[0].mxu0 %v3273
        %v3937 = vpop.f32.mrb[0].mxu0
        %v3938 = vadd.f32 %v3574, %v3937
        %v3939 = vpop.f32.mrb[0].mxu0
        %v3940 = vpop.f32.mrb[0].mxu0
        %v3941 = vadd.f32 %v3577, %v3940
        %v3942 = vpop.f32.mrb[0].mxu0
        %3943 = vmatprep.mubr.bf16.mxu0 0
        %3944 = vmatmul.mubr.bf16.gmra.mrb[0].mxu0 %v3276
        %v3945 = vpop.f32.mrb[0].mxu0
        %v3946 = vadd.f32 %v3582, %v3945
        %v3947 = vpop.f32.mrb[0].mxu0
        %v3948 = vpop.f32.mrb[0].mxu0
        %v3949 = vadd.f32 %v3585, %v3948
        %v3950 = vpop.f32.mrb[0].mxu0
        %3951 = vmatprep.mubr.bf16.mxu0 0
        %3952 = vmatmul.mubr.bf16.gmra.mrb[0].mxu0 %v3279
        %v3953 = vpop.f32.mrb[0].mxu0
        %v3954 = vadd.f32 %v3590, %v3953
        %v3955 = vpop.f32.mrb[0].mxu0
        %v3956 = vpop.f32.mrb[0].mxu0
        %v3957 = vadd.f32 %v3593, %v3956
        %v3958 = vpop.f32.mrb[0].mxu0
        %3959 = vmatprep.mubr.bf16.mxu0 0
        %3960 = vmatmul.mubr.bf16.gmra.mrb[0].mxu0 %v3282
        %v3961 = vpop.f32.mrb[0].mxu0
        %v3962 = vadd.f32 %v3598, %v3961
        %v3963 = vpop.f32.mrb[0].mxu0
        %v3964 = vpop.f32.mrb[0].mxu0
        %v3965 = vadd.f32 %v3601, %v3964
        %v3966 = vpop.f32.mrb[0].mxu0
        %3967 = vmatprep.mubr.bf16.mxu0 0
        %3968 = vmatmul.mubr.bf16.gmra.mrb[0].mxu0 %v3285
        %v3969 = vpop.f32.mrb[0].mxu0
        %v3970 = vadd.f32 %v3606, %v3969
        %v3971 = vpop.f32.mrb[0].mxu0
        %v3972 = vpop.f32.mrb[0].mxu0
        %v3973 = vadd.f32 %v3609, %v3972
        %v3974 = vpop.f32.mrb[0].mxu0
        %3975 = vmatprep.mubr.bf16.mxu0 0
        %3976 = vmatmul.mubr.bf16.gmra.mrb[0].mxu0 %v3288
        %v3977 = vpop.f32.mrb[0].mxu0
        %v3978 = vadd.f32 %v3614, %v3977
        %v3979 = vpop.f32.mrb[0].mxu0
        %v3980 = vpop.f32.mrb[0].mxu0
        %v3981 = vadd.f32 %v3617, %v3980
        %v3982 = vpop.f32.mrb[0].mxu0
        %3983 = vmatprep.mubr.bf16.mxu0 0
        %3984 = vmatmul.mubr.bf16.gmra.mrb[0].mxu0 %v3291
        %v3985 = vpop.f32.mrb[0].mxu0
        %v3986 = vadd.f32 %v3622, %v3985
        %v3987 = vpop.f32.mrb[0].mxu0
        %v3988 = vpop.f32.mrb[0].mxu0
        %v3989 = vadd.f32 %v3625, %v3988
        %v3990 = vpop.f32.mrb[0].mxu0
        %3991 = vmatprep.mubr.bf16.mxu0 0
        %3992 = vmatmul.mubr.bf16.gmra.mrb[0].mxu0 %v3294
        %v3993 = vpop.f32.mrb[0].mxu0
        %v3994 = vadd.f32 %v3630, %v3993
        %v3995 = vpop.f32.mrb[0].mxu0
        %v3996 = vpop.f32.mrb[0].mxu0
        %v3997 = vadd.f32 %v3633, %v3996
        %v3998 = vpop.f32.mrb[0].mxu0
        %3999 = vdwg.mxu0
        %v4000 = vld [vmem:[%s8] sm:$0x1]
        %v4002 = vlaneseq
        %v4003 = vshrl.u32 %v4002, 7
        %v4004 = vsub.s32 0, %v4003
        %v4005 = vrot.slane %v4000, %v4004
        %v4007 = vadd.f32 %v3698, %v4005
        %v4008 = vadd.f32 %v3701, %v4005
        %v4009 = vadd.f32 %v3706, %v4005
        %v4010 = vadd.f32 %v3709, %v4005
        %v4011 = vadd.f32 %v3714, %v4005
        %v4012 = vadd.f32 %v3717, %v4005
        %v4013 = vadd.f32 %v3722, %v4005
        %v4014 = vadd.f32 %v3725, %v4005
        %v4015 = vadd.f32 %v3730, %v4005
        %v4016 = vadd.f32 %v3733, %v4005
        %v4017 = vadd.f32 %v3738, %v4005
        %v4018 = vadd.f32 %v3741, %v4005
        %v4019 = vadd.f32 %v3746, %v4005
        %v4020 = vadd.f32 %v3749, %v4005
        %v4021 = vadd.f32 %v3754, %v4005
        %v4022 = vadd.f32 %v3757, %v4005
        %v4023 = vadd.f32 %v3762, %v4005
        %v4024 = vadd.f32 %v3765, %v4005
        %v4025 = vadd.f32 %v3770, %v4005
        %v4026 = vadd.f32 %v3773, %v4005
        %v4027 = vadd.f32 %v3778, %v4005
        %v4028 = vadd.f32 %v3781, %v4005
        %v4029 = vadd.f32 %v3786, %v4005
        %v4030 = vadd.f32 %v3789, %v4005
        %v4031 = vadd.f32 %v3794, %v4005
        %v4032 = vadd.f32 %v3797, %v4005
        %v4033 = vadd.f32 %v3802, %v4005
        %v4034 = vadd.f32 %v3805, %v4005
        %v4035 = vadd.f32 %v3810, %v4005
        %v4036 = vadd.f32 %v3813, %v4005
        %v4037 = vadd.f32 %v3818, %v4005
        %v4038 = vadd.f32 %v3821, %v4005
        %v4039 = vadd.f32 %v3826, %v4005
        %v4040 = vadd.f32 %v3829, %v4005
        %v4041 = vadd.f32 %v3834, %v4005
        %v4042 = vadd.f32 %v3837, %v4005
        %v4043 = vadd.f32 %v3842, %v4005
        %v4044 = vadd.f32 %v3845, %v4005
        %v4045 = vadd.f32 %v3850, %v4005
        %v4046 = vadd.f32 %v3853, %v4005
        %v4047 = vadd.f32 %v3858, %v4005
        %v4048 = vadd.f32 %v3861, %v4005
        %v4049 = vadd.f32 %v3866, %v4005
        %v4050 = vadd.f32 %v3869, %v4005
        %v4051 = vadd.f32 %v3874, %v4005
        %v4052 = vadd.f32 %v3877, %v4005
        %v4053 = vadd.f32 %v3882, %v4005
        %v4054 = vadd.f32 %v3885, %v4005
        %v4055 = vadd.f32 %v3890, %v4005
        %v4056 = vadd.f32 %v3893, %v4005
        %v4057 = vadd.f32 %v3898, %v4005
        %v4058 = vadd.f32 %v3901, %v4005
        %v4059 = vadd.f32 %v3906, %v4005
        %v4060 = vadd.f32 %v3909, %v4005
        %v4061 = vadd.f32 %v3914, %v4005
        %v4062 = vadd.f32 %v3917, %v4005
        %v4063 = vadd.f32 %v3922, %v4005
        %v4064 = vadd.f32 %v3925, %v4005
        %v4065 = vadd.f32 %v3930, %v4005
        %v4066 = vadd.f32 %v3933, %v4005
        %v4067 = vadd.f32 %v3938, %v4005
        %v4068 = vadd.f32 %v3941, %v4005
        %v4069 = vadd.f32 %v3946, %v4005
        %v4070 = vadd.f32 %v3949, %v4005
        %v4071 = vadd.f32 %v3954, %v4005
        %v4072 = vadd.f32 %v3957, %v4005
        %v4073 = vadd.f32 %v3962, %v4005
        %v4074 = vadd.f32 %v3965, %v4005
        %v4075 = vadd.f32 %v3970, %v4005
        %v4076 = vadd.f32 %v3973, %v4005
        %v4077 = vadd.f32 %v3978, %v4005
        %v4078 = vadd.f32 %v3981, %v4005
        %v4079 = vadd.f32 %v3986, %v4005
        %v4080 = vadd.f32 %v3989, %v4005
        %v4081 = vadd.f32 %v3994, %v4005
        %v4082 = vadd.f32 %v3997, %v4005
        %v4083 = vmax.f32 %v4007, 0.0
        %v4084 = vmax.f32 %v4008, 0.0
        %v4085 = vmax.f32 %v4009, 0.0
        %v4086 = vmax.f32 %v4010, 0.0
        %v4087 = vmax.f32 %v4011, 0.0
        %v4088 = vmax.f32 %v4012, 0.0
        %v4089 = vmax.f32 %v4013, 0.0
        %v4090 = vmax.f32 %v4014, 0.0
        %v4091 = vmax.f32 %v4015, 0.0
        %v4092 = vmax.f32 %v4016, 0.0
        %v4093 = vmax.f32 %v4017, 0.0
        %v4094 = vmax.f32 %v4018, 0.0
        %v4095 = vmax.f32 %v4019, 0.0
        %v4096 = vmax.f32 %v4020, 0.0
        %v4097 = vmax.f32 %v4021, 0.0
        %v4098 = vmax.f32 %v4022, 0.0
        %v4099 = vmax.f32 %v4023, 0.0
        %v4100 = vmax.f32 %v4024, 0.0
        %v4101 = vmax.f32 %v4025, 0.0
        %v4102 = vmax.f32 %v4026, 0.0
        %v4103 = vmax.f32 %v4027, 0.0
        %v4104 = vmax.f32 %v4028, 0.0
        %v4105 = vmax.f32 %v4029, 0.0
        %v4106 = vmax.f32 %v4030, 0.0
        %v4107 = vmax.f32 %v4031, 0.0
        %v4108 = vmax.f32 %v4032, 0.0
        %v4109 = vmax.f32 %v4033, 0.0
        %v4110 = vmax.f32 %v4034, 0.0
        %v4111 = vmax.f32 %v4035, 0.0
        %v4112 = vmax.f32 %v4036, 0.0
        %v4113 = vmax.f32 %v4037, 0.0
        %v4114 = vmax.f32 %v4038, 0.0
        %v4115 = vmax.f32 %v4039, 0.0
        %v4116 = vmax.f32 %v4040, 0.0
        %v4117 = vmax.f32 %v4041, 0.0
        %v4118 = vmax.f32 %v4042, 0.0
        %v4119 = vmax.f32 %v4043, 0.0
        %v4120 = vmax.f32 %v4044, 0.0
        %v4121 = vmax.f32 %v4045, 0.0
        %v4122 = vmax.f32 %v4046, 0.0
        %v4123 = vmax.f32 %v4047, 0.0
        %v4124 = vmax.f32 %v4048, 0.0
        %v4125 = vmax.f32 %v4049, 0.0
        %v4126 = vmax.f32 %v4050, 0.0
        %v4127 = vmax.f32 %v4051, 0.0
        %v4128 = vmax.f32 %v4052, 0.0
        %v4129 = vmax.f32 %v4053, 0.0
        %v4130 = vmax.f32 %v4054, 0.0
        %v4131 = vmax.f32 %v4055, 0.0
        %v4132 = vmax.f32 %v4056, 0.0
        %v4133 = vmax.f32 %v4057, 0.0
        %v4134 = vmax.f32 %v4058, 0.0
        %v4135 = vmax.f32 %v4059, 0.0
        %v4136 = vmax.f32 %v4060, 0.0
        %v4137 = vmax.f32 %v4061, 0.0
        %v4138 = vmax.f32 %v4062, 0.0
        %v4139 = vmax.f32 %v4063, 0.0
        %v4140 = vmax.f32 %v4064, 0.0
        %v4141 = vmax.f32 %v4065, 0.0
        %v4142 = vmax.f32 %v4066, 0.0
        %v4143 = vmax.f32 %v4067, 0.0
        %v4144 = vmax.f32 %v4068, 0.0
        %v4145 = vmax.f32 %v4069, 0.0
        %v4146 = vmax.f32 %v4070, 0.0
        %v4147 = vmax.f32 %v4071, 0.0
        %v4148 = vmax.f32 %v4072, 0.0
        %v4149 = vmax.f32 %v4073, 0.0
        %v4150 = vmax.f32 %v4074, 0.0
        %v4151 = vmax.f32 %v4075, 0.0
        %v4152 = vmax.f32 %v4076, 0.0
        %v4153 = vmax.f32 %v4077, 0.0
        %v4154 = vmax.f32 %v4078, 0.0
        %v4155 = vmax.f32 %v4079, 0.0
        %v4156 = vmax.f32 %v4080, 0.0
        %v4157 = vmax.f32 %v4081, 0.0
        %v4158 = vmax.f32 %v4082, 0.0
        %v4159 = vmax.f32 %v4083, %v4085
        %v4160 = vmax.f32 %v4084, %v4086
        %v4161 = vpack.c.bf16 %v4160, %v4159
        %v4162 = vld [vmem:[%s9] sm:$0xf]
        %v4163 = vld [vmem:[%s9 + $0x4] sm:$0xf]
        %v4164 = vld [vmem:[%s9 + $0x8] sm:$0xf]
        %v4165 = vld [vmem:[%s9 + $0xc] sm:$0xf]
        %v4166 = vld [vmem:[%s9 + $0x10] sm:$0xf]
        %v4167 = vld [vmem:[%s9 + $0x14] sm:$0xf]
        %v4168 = vld [vmem:[%s9 + $0x18] sm:$0xf]
        %v4169 = vld [vmem:[%s9 + $0x1c] sm:$0xf]
        %v4170 = vld [vmem:[%s9 + $0x20] sm:$0xf]
        %v4171 = vld [vmem:[%s9 + $0x24] sm:$0xf]
        %v4172 = vld [vmem:[%s9 + $0x28] sm:$0xf]
        %v4173 = vld [vmem:[%s9 + $0x2c] sm:$0xf]
        %v4174 = vld [vmem:[%s9 + $0x30] sm:$0xf]
        %v4175 = vld [vmem:[%s9 + $0x34] sm:$0xf]
        %v4176 = vld [vmem:[%s9 + $0x38] sm:$0xf]
        %v4177 = vld [vmem:[%s9 + $0x3c] sm:$0xf]
        %v4178 = vmax.f32 %v4087, %v4089
        %v4179 = vmax.f32 %v4088, %v4090
        %v4180 = vpack.c.bf16 %v4179, %v4178
        %s4181 = scalar_lea.vmem %s9, 64
        %v4182 = vld [vmem:[%s4181] sm:$0xf]
        %v4183 = vld [vmem:[%s4181 + $0x4] sm:$0xf]
        %v4184 = vld [vmem:[%s4181 + $0x8] sm:$0xf]
        %v4185 = vld [vmem:[%s4181 + $0xc] sm:$0xf]
        %v4186 = vld [vmem:[%s4181 + $0x10] sm:$0xf]
        %v4187 = vld [vmem:[%s4181 + $0x14] sm:$0xf]
        %v4188 = vld [vmem:[%s4181 + $0x18] sm:$0xf]
        %v4189 = vld [vmem:[%s4181 + $0x1c] sm:$0xf]
        %v4190 = vld [vmem:[%s4181 + $0x20] sm:$0xf]
        %v4191 = vld [vmem:[%s4181 + $0x24] sm:$0xf]
        %v4192 = vld [vmem:[%s4181 + $0x28] sm:$0xf]
        %v4193 = vld [vmem:[%s4181 + $0x2c] sm:$0xf]
        %v4194 = vld [vmem:[%s4181 + $0x30] sm:$0xf]
        %v4195 = vld [vmem:[%s4181 + $0x34] sm:$0xf]
        %v4196 = vld [vmem:[%s4181 + $0x38] sm:$0xf]
        %v4197 = vld [vmem:[%s4181 + $0x3c] sm:$0xf]
        %v4214 = vunpack.c.l.b16 %v4182
        %v4215 = vunpack.c.l.b16 %v4183
        %v4216 = vunpack.c.l.b16 %v4184
        %v4217 = vunpack.c.l.b16 %v4185
        %v4218 = vunpack.c.l.b16 %v4186
        %v4219 = vunpack.c.l.b16 %v4187
        %v4220 = vunpack.c.l.b16 %v4188
        %v4221 = vunpack.c.l.b16 %v4189
        %v4222 = vunpack.c.l.b16 %v4190
        %v4223 = vunpack.c.l.b16 %v4191
        %v4224 = vunpack.c.l.b16 %v4192
        %v4225 = vunpack.c.l.b16 %v4193
        %v4226 = vunpack.c.l.b16 %v4194
        %v4227 = vunpack.c.l.b16 %v4195
        %v4228 = vunpack.c.l.b16 %v4196
        %v4229 = vunpack.c.l.b16 %v4197
        %v4230 = vpack.c.b16 %v4215, %v4214
        %v4231 = vpack.c.b16 %v4217, %v4216
        %v4232 = vpack.c.b16 %v4219, %v4218
        %v4233 = vpack.c.b16 %v4221, %v4220
        %v4234 = vpack.c.b16 %v4223, %v4222
        %v4235 = vpack.c.b16 %v4225, %v4224
        %v4236 = vpack.c.b16 %v4227, %v4226
        %v4237 = vpack.c.b16 %v4229, %v4228
        %4246 = vmatprep.subr.bf16.mxu0 0
        %4247 = vmatpush1.bf16.msra.mxu0 %v4230
        %4248 = vmatprep.subr.bf16.mxu0 0
        %4249 = vmatpush1.bf16.msra.mxu0 %v4231
        %4250 = vmatprep.subr.bf16.mxu0 0
        %4251 = vmatpush1.bf16.msra.mxu0 %v4232
        %4252 = vmatprep.subr.bf16.mxu0 0
        %4253 = vmatpush1.bf16.msra.mxu0 %v4233
        %4254 = vmatprep.subr.bf16.mxu0 0
        %4255 = vmatpush1.bf16.msra.mxu0 %v4234
        %4256 = vmatprep.subr.bf16.mxu0 0
        %4257 = vmatpush1.bf16.msra.mxu0 %v4235
        %4258 = vmatprep.subr.bf16.mxu0 0
        %4259 = vmatpush1.bf16.msra.mxu0 %v4236
        %4260 = vmatprep.subr.bf16.mxu0 0
        %4261 = vmatpush1.bf16.msra.mxu0 %v4237
        %4262 = vmatprep.subr.bf16.mxu0 0
        %4263 = vmatpush1.bf16.msra.mxu0 0
        %4264 = vmatprep.subr.bf16.mxu0 0
        %4265 = vmatpush1.bf16.msra.mxu0 0
        %4266 = vmatprep.subr.bf16.mxu0 0
        %4267 = vmatpush1.bf16.msra.mxu0 0
        %4268 = vmatprep.subr.bf16.mxu0 0
        %4269 = vmatpush1.bf16.msra.mxu0 0
        %4270 = vmatprep.subr.bf16.mxu0 0
        %4271 = vmatpush1.bf16.msra.mxu0 0
        %4272 = vmatprep.subr.bf16.mxu0 0
        %4273 = vmatpush1.bf16.msra.mxu0 0
        %4274 = vmatprep.subr.bf16.mxu0 0
        %4275 = vmatpush1.bf16.msra.mxu0 0
        %4276 = vmatprep.subr.bf16.mxu0 0
        %4277 = vmatpush1.bf16.msra.mxu0 0
        %4278 = vmatprep.mubr.bf16.mxu0 0
        %4279 = vmatmul.mubr.bf16.gmra.mrb[0].mxu0 %v4180
        %v4280 = vpop.f32.mrb[0].mxu0
        %v4281 = vadd.f32 0.0, %v4280
        %v4282 = vpop.f32.mrb[0].mxu0
        %v4283 = vpop.f32.mrb[0].mxu0
        %v4284 = vadd.f32 0.0, %v4283
        %v4285 = vpop.f32.mrb[0].mxu0
        %4286 = vdwg.mxu0
        %v4303 = vunpack.c.l.b16 %v4162
        %v4304 = vunpack.c.l.b16 %v4163
        %v4305 = vunpack.c.l.b16 %v4164
        %v4306 = vunpack.c.l.b16 %v4165
        %v4307 = vunpack.c.l.b16 %v4166
        %v4308 = vunpack.c.l.b16 %v4167
        %v4309 = vunpack.c.l.b16 %v4168
        %v4310 = vunpack.c.l.b16 %v4169
        %v4311 = vunpack.c.l.b16 %v4170
        %v4312 = vunpack.c.l.b16 %v4171
        %v4313 = vunpack.c.l.b16 %v4172
        %v4314 = vunpack.c.l.b16 %v4173
        %v4315 = vunpack.c.l.b16 %v4174
        %v4316 = vunpack.c.l.b16 %v4175
        %v4317 = vunpack.c.l.b16 %v4176
        %v4318 = vunpack.c.l.b16 %v4177
        %v4319 = vpack.c.b16 %v4304, %v4303
        %v4320 = vpack.c.b16 %v4306, %v4305
        %v4321 = vpack.c.b16 %v4308, %v4307
        %v4322 = vpack.c.b16 %v4310, %v4309
        %v4323 = vpack.c.b16 %v4312, %v4311
        %v4324 = vpack.c.b16 %v4314, %v4313
        %v4325 = vpack.c.b16 %v4316, %v4315
        %v4326 = vpack.c.b16 %v4318, %v4317
        %4335 = vmatprep.subr.bf16.mxu0 0
        %4336 = vmatpush1.bf16.msra.mxu0 %v4319
        %4337 = vmatprep.subr.bf16.mxu0 0
        %4338 = vmatpush1.bf16.msra.mxu0 %v4320
        %4339 = vmatprep.subr.bf16.mxu0 0
        %4340 = vmatpush1.bf16.msra.mxu0 %v4321
        %4341 = vmatprep.subr.bf16.mxu0 0
        %4342 = vmatpush1.bf16.msra.mxu0 %v4322
        %4343 = vmatprep.subr.bf16.mxu0 0
        %4344 = vmatpush1.bf16.msra.mxu0 %v4323
        %4345 = vmatprep.subr.bf16.mxu0 0
        %4346 = vmatpush1.bf16.msra.mxu0 %v4324
        %4347 = vmatprep.subr.bf16.mxu0 0
        %4348 = vmatpush1.bf16.msra.mxu0 %v4325
        %4349 = vmatprep.subr.bf16.mxu0 0
        %4350 = vmatpush1.bf16.msra.mxu0 %v4326
        %4351 = vmatprep.subr.bf16.mxu0 0
        %4352 = vmatpush1.bf16.msra.mxu0 0
        %4353 = vmatprep.subr.bf16.mxu0 0
        %4354 = vmatpush1.bf16.msra.mxu0 0
        %4355 = vmatprep.subr.bf16.mxu0 0
        %4356 = vmatpush1.bf16.msra.mxu0 0
        %4357 = vmatprep.subr.bf16.mxu0 0
        %4358 = vmatpush1.bf16.msra.mxu0 0
        %4359 = vmatprep.subr.bf16.mxu0 0
        %4360 = vmatpush1.bf16.msra.mxu0 0
        %4361 = vmatprep.subr.bf16.mxu0 0
        %4362 = vmatpush1.bf16.msra.mxu0 0
        %4363 = vmatprep.subr.bf16.mxu0 0
        %4364 = vmatpush1.bf16.msra.mxu0 0
        %4365 = vmatprep.subr.bf16.mxu0 0
        %4366 = vmatpush1.bf16.msra.mxu0 0
        %4367 = vmatprep.mubr.bf16.mxu0 0
        %4368 = vmatmul.mubr.bf16.gmra.mrb[0].mxu0 %v4161
        %v4369 = vpop.f32.mrb[0].mxu0
        %v4370 = vadd.f32 %v4281, %v4369
        %v4371 = vpop.f32.mrb[0].mxu0
        %v4372 = vpop.f32.mrb[0].mxu0
        %v4373 = vadd.f32 %v4284, %v4372
        %v4374 = vpop.f32.mrb[0].mxu0
        %4375 = vdwg.mxu0
        %v4376 = vmax.f32 %v4091, %v4093
        %v4377 = vmax.f32 %v4092, %v4094
        %v4378 = vpack.c.bf16 %v4377, %v4376
        %s4379 = scalar_lea.vmem %s9, 128
        %v4380 = vld [vmem:[%s4379] sm:$0xf]
        %v4381 = vld [vmem:[%s4379 + $0x4] sm:$0xf]
        %v4382 = vld [vmem:[%s4379 + $0x8] sm:$0xf]
        %v4383 = vld [vmem:[%s4379 + $0xc] sm:$0xf]
        %v4384 = vld [vmem:[%s4379 + $0x10] sm:$0xf]
        %v4385 = vld [vmem:[%s4379 + $0x14] sm:$0xf]
        %v4386 = vld [vmem:[%s4379 + $0x18] sm:$0xf]
        %v4387 = vld [vmem:[%s4379 + $0x1c] sm:$0xf]
        %v4388 = vld [vmem:[%s4379 + $0x20] sm:$0xf]
        %v4389 = vld [vmem:[%s4379 + $0x24] sm:$0xf]
        %v4390 = vld [vmem:[%s4379 + $0x28] sm:$0xf]
        %v4391 = vld [vmem:[%s4379 + $0x2c] sm:$0xf]
        %v4392 = vld [vmem:[%s4379 + $0x30] sm:$0xf]
        %v4393 = vld [vmem:[%s4379 + $0x34] sm:$0xf]
        %v4394 = vld [vmem:[%s4379 + $0x38] sm:$0xf]
        %v4395 = vld [vmem:[%s4379 + $0x3c] sm:$0xf]
        %v4412 = vunpack.c.l.b16 %v4380
        %v4413 = vunpack.c.l.b16 %v4381
        %v4414 = vunpack.c.l.b16 %v4382
        %v4415 = vunpack.c.l.b16 %v4383
        %v4416 = vunpack.c.l.b16 %v4384
        %v4417 = vunpack.c.l.b16 %v4385
        %v4418 = vunpack.c.l.b16 %v4386
        %v4419 = vunpack.c.l.b16 %v4387
        %v4420 = vunpack.c.l.b16 %v4388
        %v4421 = vunpack.c.l.b16 %v4389
        %v4422 = vunpack.c.l.b16 %v4390
        %v4423 = vunpack.c.l.b16 %v4391
        %v4424 = vunpack.c.l.b16 %v4392
        %v4425 = vunpack.c.l.b16 %v4393
        %v4426 = vunpack.c.l.b16 %v4394
        %v4427 = vunpack.c.l.b16 %v4395
        %v4428 = vpack.c.b16 %v4413, %v4412
        %v4429 = vpack.c.b16 %v4415, %v4414
        %v4430 = vpack.c.b16 %v4417, %v4416
        %v4431 = vpack.c.b16 %v4419, %v4418
        %v4432 = vpack.c.b16 %v4421, %v4420
        %v4433 = vpack.c.b16 %v4423, %v4422
        %v4434 = vpack.c.b16 %v4425, %v4424
        %v4435 = vpack.c.b16 %v4427, %v4426
        %4444 = vmatprep.subr.bf16.mxu0 0
        %4445 = vmatpush1.bf16.msra.mxu0 %v4428
        %4446 = vmatprep.subr.bf16.mxu0 0
        %4447 = vmatpush1.bf16.msra.mxu0 %v4429
        %4448 = vmatprep.subr.bf16.mxu0 0
        %4449 = vmatpush1.bf16.msra.mxu0 %v4430
        %4450 = vmatprep.subr.bf16.mxu0 0
        %4451 = vmatpush1.bf16.msra.mxu0 %v4431
        %4452 = vmatprep.subr.bf16.mxu0 0
        %4453 = vmatpush1.bf16.msra.mxu0 %v4432
        %4454 = vmatprep.subr.bf16.mxu0 0
        %4455 = vmatpush1.bf16.msra.mxu0 %v4433
        %4456 = vmatprep.subr.bf16.mxu0 0
        %4457 = vmatpush1.bf16.msra.mxu0 %v4434
        %4458 = vmatprep.subr.bf16.mxu0 0
        %4459 = vmatpush1.bf16.msra.mxu0 %v4435
        %4460 = vmatprep.subr.bf16.mxu0 0
        %4461 = vmatpush1.bf16.msra.mxu0 0
        %4462 = vmatprep.subr.bf16.mxu0 0
        %4463 = vmatpush1.bf16.msra.mxu0 0
        %4464 = vmatprep.subr.bf16.mxu0 0
        %4465 = vmatpush1.bf16.msra.mxu0 0
        %4466 = vmatprep.subr.bf16.mxu0 0
        %4467 = vmatpush1.bf16.msra.mxu0 0
        %4468 = vmatprep.subr.bf16.mxu0 0
        %4469 = vmatpush1.bf16.msra.mxu0 0
        %4470 = vmatprep.subr.bf16.mxu0 0
        %4471 = vmatpush1.bf16.msra.mxu0 0
        %4472 = vmatprep.subr.bf16.mxu0 0
        %4473 = vmatpush1.bf16.msra.mxu0 0
        %4474 = vmatprep.subr.bf16.mxu0 0
        %4475 = vmatpush1.bf16.msra.mxu0 0
        %4476 = vmatprep.mubr.bf16.mxu0 0
        %4477 = vmatmul.mubr.bf16.gmra.mrb[0].mxu0 %v4378
        %v4478 = vpop.f32.mrb[0].mxu0
        %v4479 = vadd.f32 0.0, %v4478
        %v4480 = vpop.f32.mrb[0].mxu0
        %v4481 = vpop.f32.mrb[0].mxu0
        %v4482 = vadd.f32 0.0, %v4481
        %v4483 = vpop.f32.mrb[0].mxu0
        %4484 = vdwg.mxu0
        %v4485 = vadd.f32 %v4370, %v4479
        %v4486 = vadd.f32 %v4373, %v4482
        %v4487 = vmax.f32 %v4095, %v4097
        %v4488 = vmax.f32 %v4096, %v4098
        %v4489 = vpack.c.bf16 %v4488, %v4487
        %s4490 = scalar_lea.vmem %s9, 192
        %v4491 = vld [vmem:[%s4490] sm:$0xf]
        %v4492 = vld [vmem:[%s4490 + $0x4] sm:$0xf]
        %v4493 = vld [vmem:[%s4490 + $0x8] sm:$0xf]
        %v4494 = vld [vmem:[%s4490 + $0xc] sm:$0xf]
        %v4495 = vld [vmem:[%s4490 + $0x10] sm:$0xf]
        %v4496 = vld [vmem:[%s4490 + $0x14] sm:$0xf]
        %v4497 = vld [vmem:[%s4490 + $0x18] sm:$0xf]
        %v4498 = vld [vmem:[%s4490 + $0x1c] sm:$0xf]
        %v4499 = vld [vmem:[%s4490 + $0x20] sm:$0xf]
        %v4500 = vld [vmem:[%s4490 + $0x24] sm:$0xf]
        %v4501 = vld [vmem:[%s4490 + $0x28] sm:$0xf]
        %v4502 = vld [vmem:[%s4490 + $0x2c] sm:$0xf]
        %v4503 = vld [vmem:[%s4490 + $0x30] sm:$0xf]
        %v4504 = vld [vmem:[%s4490 + $0x34] sm:$0xf]
        %v4505 = vld [vmem:[%s4490 + $0x38] sm:$0xf]
        %v4506 = vld [vmem:[%s4490 + $0x3c] sm:$0xf]
        %v4523 = vunpack.c.l.b16 %v4491
        %v4524 = vunpack.c.l.b16 %v4492
        %v4525 = vunpack.c.l.b16 %v4493
        %v4526 = vunpack.c.l.b16 %v4494
        %v4527 = vunpack.c.l.b16 %v4495
        %v4528 = vunpack.c.l.b16 %v4496
        %v4529 = vunpack.c.l.b16 %v4497
        %v4530 = vunpack.c.l.b16 %v4498
        %v4531 = vunpack.c.l.b16 %v4499
        %v4532 = vunpack.c.l.b16 %v4500
        %v4533 = vunpack.c.l.b16 %v4501
        %v4534 = vunpack.c.l.b16 %v4502
        %v4535 = vunpack.c.l.b16 %v4503
        %v4536 = vunpack.c.l.b16 %v4504
        %v4537 = vunpack.c.l.b16 %v4505
        %v4538 = vunpack.c.l.b16 %v4506
        %v4539 = vpack.c.b16 %v4524, %v4523
        %v4540 = vpack.c.b16 %v4526, %v4525
        %v4541 = vpack.c.b16 %v4528, %v4527
        %v4542 = vpack.c.b16 %v4530, %v4529
        %v4543 = vpack.c.b16 %v4532, %v4531
        %v4544 = vpack.c.b16 %v4534, %v4533
        %v4545 = vpack.c.b16 %v4536, %v4535
        %v4546 = vpack.c.b16 %v4538, %v4537
        %4555 = vmatprep.subr.bf16.mxu0 0
        %4556 = vmatpush1.bf16.msra.mxu0 %v4539
        %4557 = vmatprep.subr.bf16.mxu0 0
        %4558 = vmatpush1.bf16.msra.mxu0 %v4540
        %4559 = vmatprep.subr.bf16.mxu0 0
        %4560 = vmatpush1.bf16.msra.mxu0 %v4541
        %4561 = vmatprep.subr.bf16.mxu0 0
        %4562 = vmatpush1.bf16.msra.mxu0 %v4542
        %4563 = vmatprep.subr.bf16.mxu0 0
        %4564 = vmatpush1.bf16.msra.mxu0 %v4543
        %4565 = vmatprep.subr.bf16.mxu0 0
        %4566 = vmatpush1.bf16.msra.mxu0 %v4544
        %4567 = vmatprep.subr.bf16.mxu0 0
        %4568 = vmatpush1.bf16.msra.mxu0 %v4545
        %4569 = vmatprep.subr.bf16.mxu0 0
        %4570 = vmatpush1.bf16.msra.mxu0 %v4546
        %4571 = vmatprep.subr.bf16.mxu0 0
        %4572 = vmatpush1.bf16.msra.mxu0 0
        %4573 = vmatprep.subr.bf16.mxu0 0
        %4574 = vmatpush1.bf16.msra.mxu0 0
        %4575 = vmatprep.subr.bf16.mxu0 0
        %4576 = vmatpush1.bf16.msra.mxu0 0
        %4577 = vmatprep.subr.bf16.mxu0 0
        %4578 = vmatpush1.bf16.msra.mxu0 0
        %4579 = vmatprep.subr.bf16.mxu0 0
        %4580 = vmatpush1.bf16.msra.mxu0 0
        %4581 = vmatprep.subr.bf16.mxu0 0
        %4582 = vmatpush1.bf16.msra.mxu0 0
        %4583 = vmatprep.subr.bf16.mxu0 0
        %4584 = vmatpush1.bf16.msra.mxu0 0
        %4585 = vmatprep.subr.bf16.mxu0 0
        %4586 = vmatpush1.bf16.msra.mxu0 0
        %4587 = vmatprep.mubr.bf16.mxu0 0
        %4588 = vmatmul.mubr.bf16.gmra.mrb[0].mxu0 %v4489
        %v4589 = vpop.f32.mrb[0].mxu0
        %v4590 = vadd.f32 0.0, %v4589
        %v4591 = vpop.f32.mrb[0].mxu0
        %v4592 = vpop.f32.mrb[0].mxu0
        %v4593 = vadd.f32 0.0, %v4592
        %v4594 = vpop.f32.mrb[0].mxu0
        %4595 = vdwg.mxu0
        %v4596 = vadd.f32 %v4485, %v4590
        %v4597 = vadd.f32 %v4486, %v4593
        %v4598 = vmax.f32 %v4099, %v4101
        %v4599 = vmax.f32 %v4100, %v4102
        %v4600 = vpack.c.bf16 %v4599, %v4598
        %s4601 = scalar_lea.vmem %s9, 256
        %v4602 = vld [vmem:[%s4601] sm:$0xf]
        %v4603 = vld [vmem:[%s4601 + $0x4] sm:$0xf]
        %v4604 = vld [vmem:[%s4601 + $0x8] sm:$0xf]
        %v4605 = vld [vmem:[%s4601 + $0xc] sm:$0xf]
        %v4606 = vld [vmem:[%s4601 + $0x10] sm:$0xf]
        %v4607 = vld [vmem:[%s4601 + $0x14] sm:$0xf]
        %v4608 = vld [vmem:[%s4601 + $0x18] sm:$0xf]
        %v4609 = vld [vmem:[%s4601 + $0x1c] sm:$0xf]
        %v4610 = vld [vmem:[%s4601 + $0x20] sm:$0xf]
        %v4611 = vld [vmem:[%s4601 + $0x24] sm:$0xf]
        %v4612 = vld [vmem:[%s4601 + $0x28] sm:$0xf]
        %v4613 = vld [vmem:[%s4601 + $0x2c] sm:$0xf]
        %v4614 = vld [vmem:[%s4601 + $0x30] sm:$0xf]
        %v4615 = vld [vmem:[%s4601 + $0x34] sm:$0xf]
        %v4616 = vld [vmem:[%s4601 + $0x38] sm:$0xf]
        %v4617 = vld [vmem:[%s4601 + $0x3c] sm:$0xf]
        %v4634 = vunpack.c.l.b16 %v4602
        %v4635 = vunpack.c.l.b16 %v4603
        %v4636 = vunpack.c.l.b16 %v4604
        %v4637 = vunpack.c.l.b16 %v4605
        %v4638 = vunpack.c.l.b16 %v4606
        %v4639 = vunpack.c.l.b16 %v4607
        %v4640 = vunpack.c.l.b16 %v4608
        %v4641 = vunpack.c.l.b16 %v4609
        %v4642 = vunpack.c.l.b16 %v4610
        %v4643 = vunpack.c.l.b16 %v4611
        %v4644 = vunpack.c.l.b16 %v4612
        %v4645 = vunpack.c.l.b16 %v4613
        %v4646 = vunpack.c.l.b16 %v4614
        %v4647 = vunpack.c.l.b16 %v4615
        %v4648 = vunpack.c.l.b16 %v4616
        %v4649 = vunpack.c.l.b16 %v4617
        %v4650 = vpack.c.b16 %v4635, %v4634
        %v4651 = vpack.c.b16 %v4637, %v4636
        %v4652 = vpack.c.b16 %v4639, %v4638
        %v4653 = vpack.c.b16 %v4641, %v4640
        %v4654 = vpack.c.b16 %v4643, %v4642
        %v4655 = vpack.c.b16 %v4645, %v4644
        %v4656 = vpack.c.b16 %v4647, %v4646
        %v4657 = vpack.c.b16 %v4649, %v4648
        %4666 = vmatprep.subr.bf16.mxu0 0
        %4667 = vmatpush1.bf16.msra.mxu0 %v4650
        %4668 = vmatprep.subr.bf16.mxu0 0
        %4669 = vmatpush1.bf16.msra.mxu0 %v4651
        %4670 = vmatprep.subr.bf16.mxu0 0
        %4671 = vmatpush1.bf16.msra.mxu0 %v4652
        %4672 = vmatprep.subr.bf16.mxu0 0
        %4673 = vmatpush1.bf16.msra.mxu0 %v4653
        %4674 = vmatprep.subr.bf16.mxu0 0
        %4675 = vmatpush1.bf16.msra.mxu0 %v4654
        %4676 = vmatprep.subr.bf16.mxu0 0
        %4677 = vmatpush1.bf16.msra.mxu0 %v4655
        %4678 = vmatprep.subr.bf16.mxu0 0
        %4679 = vmatpush1.bf16.msra.mxu0 %v4656
        %4680 = vmatprep.subr.bf16.mxu0 0
        %4681 = vmatpush1.bf16.msra.mxu0 %v4657
        %4682 = vmatprep.subr.bf16.mxu0 0
        %4683 = vmatpush1.bf16.msra.mxu0 0
        %4684 = vmatprep.subr.bf16.mxu0 0
        %4685 = vmatpush1.bf16.msra.mxu0 0
        %4686 = vmatprep.subr.bf16.mxu0 0
        %4687 = vmatpush1.bf16.msra.mxu0 0
        %4688 = vmatprep.subr.bf16.mxu0 0
        %4689 = vmatpush1.bf16.msra.mxu0 0
        %4690 = vmatprep.subr.bf16.mxu0 0
        %4691 = vmatpush1.bf16.msra.mxu0 0
        %4692 = vmatprep.subr.bf16.mxu0 0
        %4693 = vmatpush1.bf16.msra.mxu0 0
        %4694 = vmatprep.subr.bf16.mxu0 0
        %4695 = vmatpush1.bf16.msra.mxu0 0
        %4696 = vmatprep.subr.bf16.mxu0 0
        %4697 = vmatpush1.bf16.msra.mxu0 0
        %4698 = vmatprep.mubr.bf16.mxu0 0
        %4699 = vmatmul.mubr.bf16.gmra.mrb[0].mxu0 %v4600
        %v4700 = vpop.f32.mrb[0].mxu0
        %v4701 = vadd.f32 0.0, %v4700
        %v4702 = vpop.f32.mrb[0].mxu0
        %v4703 = vpop.f32.mrb[0].mxu0
        %v4704 = vadd.f32 0.0, %v4703
        %v4705 = vpop.f32.mrb[0].mxu0
        %4706 = vdwg.mxu0
        %v4707 = vadd.f32 %v4596, %v4701
        %v4708 = vadd.f32 %v4597, %v4704
        %v4709 = vmax.f32 %v4103, %v4105
        %v4710 = vmax.f32 %v4104, %v4106
        %v4711 = vpack.c.bf16 %v4710, %v4709
        %s4712 = scalar_lea.vmem %s9, 320
        %v4713 = vld [vmem:[%s4712] sm:$0xf]
        %v4714 = vld [vmem:[%s4712 + $0x4] sm:$0xf]
        %v4715 = vld [vmem:[%s4712 + $0x8] sm:$0xf]
        %v4716 = vld [vmem:[%s4712 + $0xc] sm:$0xf]
        %v4717 = vld [vmem:[%s4712 + $0x10] sm:$0xf]
        %v4718 = vld [vmem:[%s4712 + $0x14] sm:$0xf]
        %v4719 = vld [vmem:[%s4712 + $0x18] sm:$0xf]
        %v4720 = vld [vmem:[%s4712 + $0x1c] sm:$0xf]
        %v4721 = vld [vmem:[%s4712 + $0x20] sm:$0xf]
        %v4722 = vld [vmem:[%s4712 + $0x24] sm:$0xf]
        %v4723 = vld [vmem:[%s4712 + $0x28] sm:$0xf]
        %v4724 = vld [vmem:[%s4712 + $0x2c] sm:$0xf]
        %v4725 = vld [vmem:[%s4712 + $0x30] sm:$0xf]
        %v4726 = vld [vmem:[%s4712 + $0x34] sm:$0xf]
        %v4727 = vld [vmem:[%s4712 + $0x38] sm:$0xf]
        %v4728 = vld [vmem:[%s4712 + $0x3c] sm:$0xf]
        %v4745 = vunpack.c.l.b16 %v4713
        %v4746 = vunpack.c.l.b16 %v4714
        %v4747 = vunpack.c.l.b16 %v4715
        %v4748 = vunpack.c.l.b16 %v4716
        %v4749 = vunpack.c.l.b16 %v4717
        %v4750 = vunpack.c.l.b16 %v4718
        %v4751 = vunpack.c.l.b16 %v4719
        %v4752 = vunpack.c.l.b16 %v4720
        %v4753 = vunpack.c.l.b16 %v4721
        %v4754 = vunpack.c.l.b16 %v4722
        %v4755 = vunpack.c.l.b16 %v4723
        %v4756 = vunpack.c.l.b16 %v4724
        %v4757 = vunpack.c.l.b16 %v4725
        %v4758 = vunpack.c.l.b16 %v4726
        %v4759 = vunpack.c.l.b16 %v4727
        %v4760 = vunpack.c.l.b16 %v4728
        %v4761 = vpack.c.b16 %v4746, %v4745
        %v4762 = vpack.c.b16 %v4748, %v4747
        %v4763 = vpack.c.b16 %v4750, %v4749
        %v4764 = vpack.c.b16 %v4752, %v4751
        %v4765 = vpack.c.b16 %v4754, %v4753
        %v4766 = vpack.c.b16 %v4756, %v4755
        %v4767 = vpack.c.b16 %v4758, %v4757
        %v4768 = vpack.c.b16 %v4760, %v4759
        %4777 = vmatprep.subr.bf16.mxu0 0
        %4778 = vmatpush1.bf16.msra.mxu0 %v4761
        %4779 = vmatprep.subr.bf16.mxu0 0
        %4780 = vmatpush1.bf16.msra.mxu0 %v4762
        %4781 = vmatprep.subr.bf16.mxu0 0
        %4782 = vmatpush1.bf16.msra.mxu0 %v4763
        %4783 = vmatprep.subr.bf16.mxu0 0
        %4784 = vmatpush1.bf16.msra.mxu0 %v4764
        %4785 = vmatprep.subr.bf16.mxu0 0
        %4786 = vmatpush1.bf16.msra.mxu0 %v4765
        %4787 = vmatprep.subr.bf16.mxu0 0
        %4788 = vmatpush1.bf16.msra.mxu0 %v4766
        %4789 = vmatprep.subr.bf16.mxu0 0
        %4790 = vmatpush1.bf16.msra.mxu0 %v4767
        %4791 = vmatprep.subr.bf16.mxu0 0
        %4792 = vmatpush1.bf16.msra.mxu0 %v4768
        %4793 = vmatprep.subr.bf16.mxu0 0
        %4794 = vmatpush1.bf16.msra.mxu0 0
        %4795 = vmatprep.subr.bf16.mxu0 0
        %4796 = vmatpush1.bf16.msra.mxu0 0
        %4797 = vmatprep.subr.bf16.mxu0 0
        %4798 = vmatpush1.bf16.msra.mxu0 0
        %4799 = vmatprep.subr.bf16.mxu0 0
        %4800 = vmatpush1.bf16.msra.mxu0 0
        %4801 = vmatprep.subr.bf16.mxu0 0
        %4802 = vmatpush1.bf16.msra.mxu0 0
        %4803 = vmatprep.subr.bf16.mxu0 0
        %4804 = vmatpush1.bf16.msra.mxu0 0
        %4805 = vmatprep.subr.bf16.mxu0 0
        %4806 = vmatpush1.bf16.msra.mxu0 0
        %4807 = vmatprep.subr.bf16.mxu0 0
        %4808 = vmatpush1.bf16.msra.mxu0 0
        %4809 = vmatprep.mubr.bf16.mxu0 0
        %4810 = vmatmul.mubr.bf16.gmra.mrb[0].mxu0 %v4711
        %v4811 = vpop.f32.mrb[0].mxu0
        %v4812 = vadd.f32 0.0, %v4811
        %v4813 = vpop.f32.mrb[0].mxu0
        %v4814 = vpop.f32.mrb[0].mxu0
        %v4815 = vadd.f32 0.0, %v4814
        %v4816 = vpop.f32.mrb[0].mxu0
        %4817 = vdwg.mxu0
        %v4818 = vadd.f32 %v4707, %v4812
        %v4819 = vadd.f32 %v4708, %v4815
        %v4820 = vmax.f32 %v4107, %v4109
        %v4821 = vmax.f32 %v4108, %v4110
        %v4822 = vpack.c.bf16 %v4821, %v4820
        %s4823 = scalar_lea.vmem %s9, 384
        %v4824 = vld [vmem:[%s4823] sm:$0xf]
        %v4825 = vld [vmem:[%s4823 + $0x4] sm:$0xf]
        %v4826 = vld [vmem:[%s4823 + $0x8] sm:$0xf]
        %v4827 = vld [vmem:[%s4823 + $0xc] sm:$0xf]
        %v4828 = vld [vmem:[%s4823 + $0x10] sm:$0xf]
        %v4829 = vld [vmem:[%s4823 + $0x14] sm:$0xf]
        %v4830 = vld [vmem:[%s4823 + $0x18] sm:$0xf]
        %v4831 = vld [vmem:[%s4823 + $0x1c] sm:$0xf]
        %v4832 = vld [vmem:[%s4823 + $0x20] sm:$0xf]
        %v4833 = vld [vmem:[%s4823 + $0x24] sm:$0xf]
        %v4834 = vld [vmem:[%s4823 + $0x28] sm:$0xf]
        %v4835 = vld [vmem:[%s4823 + $0x2c] sm:$0xf]
        %v4836 = vld [vmem:[%s4823 + $0x30] sm:$0xf]
        %v4837 = vld [vmem:[%s4823 + $0x34] sm:$0xf]
        %v4838 = vld [vmem:[%s4823 + $0x38] sm:$0xf]
        %v4839 = vld [vmem:[%s4823 + $0x3c] sm:$0xf]
        %v4856 = vunpack.c.l.b16 %v4824
        %v4857 = vunpack.c.l.b16 %v4825
        %v4858 = vunpack.c.l.b16 %v4826
        %v4859 = vunpack.c.l.b16 %v4827
        %v4860 = vunpack.c.l.b16 %v4828
        %v4861 = vunpack.c.l.b16 %v4829
        %v4862 = vunpack.c.l.b16 %v4830
        %v4863 = vunpack.c.l.b16 %v4831
        %v4864 = vunpack.c.l.b16 %v4832
        %v4865 = vunpack.c.l.b16 %v4833
        %v4866 = vunpack.c.l.b16 %v4834
        %v4867 = vunpack.c.l.b16 %v4835
        %v4868 = vunpack.c.l.b16 %v4836
        %v4869 = vunpack.c.l.b16 %v4837
        %v4870 = vunpack.c.l.b16 %v4838
        %v4871 = vunpack.c.l.b16 %v4839
        %v4872 = vpack.c.b16 %v4857, %v4856
        %v4873 = vpack.c.b16 %v4859, %v4858
        %v4874 = vpack.c.b16 %v4861, %v4860
        %v4875 = vpack.c.b16 %v4863, %v4862
        %v4876 = vpack.c.b16 %v4865, %v4864
        %v4877 = vpack.c.b16 %v4867, %v4866
        %v4878 = vpack.c.b16 %v4869, %v4868
        %v4879 = vpack.c.b16 %v4871, %v4870
        %4888 = vmatprep.subr.bf16.mxu0 0
        %4889 = vmatpush1.bf16.msra.mxu0 %v4872
        %4890 = vmatprep.subr.bf16.mxu0 0
        %4891 = vmatpush1.bf16.msra.mxu0 %v4873
        %4892 = vmatprep.subr.bf16.mxu0 0
        %4893 = vmatpush1.bf16.msra.mxu0 %v4874
        %4894 = vmatprep.subr.bf16.mxu0 0
        %4895 = vmatpush1.bf16.msra.mxu0 %v4875
        %4896 = vmatprep.subr.bf16.mxu0 0
        %4897 = vmatpush1.bf16.msra.mxu0 %v4876
        %4898 = vmatprep.subr.bf16.mxu0 0
        %4899 = vmatpush1.bf16.msra.mxu0 %v4877
        %4900 = vmatprep.subr.bf16.mxu0 0
        %4901 = vmatpush1.bf16.msra.mxu0 %v4878
        %4902 = vmatprep.subr.bf16.mxu0 0
        %4903 = vmatpush1.bf16.msra.mxu0 %v4879
        %4904 = vmatprep.subr.bf16.mxu0 0
        %4905 = vmatpush1.bf16.msra.mxu0 0
        %4906 = vmatprep.subr.bf16.mxu0 0
        %4907 = vmatpush1.bf16.msra.mxu0 0
        %4908 = vmatprep.subr.bf16.mxu0 0
        %4909 = vmatpush1.bf16.msra.mxu0 0
        %4910 = vmatprep.subr.bf16.mxu0 0
        %4911 = vmatpush1.bf16.msra.mxu0 0
        %4912 = vmatprep.subr.bf16.mxu0 0
        %4913 = vmatpush1.bf16.msra.mxu0 0
        %4914 = vmatprep.subr.bf16.mxu0 0
        %4915 = vmatpush1.bf16.msra.mxu0 0
        %4916 = vmatprep.subr.bf16.mxu0 0
        %4917 = vmatpush1.bf16.msra.mxu0 0
        %4918 = vmatprep.subr.bf16.mxu0 0
        %4919 = vmatpush1.bf16.msra.mxu0 0
        %4920 = vmatprep.mubr.bf16.mxu0 0
        %4921 = vmatmul.mubr.bf16.gmra.mrb[0].mxu0 %v4822
        %v4922 = vpop.f32.mrb[0].mxu0
        %v4923 = vadd.f32 0.0, %v4922
        %v4924 = vpop.f32.mrb[0].mxu0
        %v4925 = vpop.f32.mrb[0].mxu0
        %v4926 = vadd.f32 0.0, %v4925
        %v4927 = vpop.f32.mrb[0].mxu0
        %4928 = vdwg.mxu0
        %v4929 = vadd.f32 %v4818, %v4923
        %v4930 = vadd.f32 %v4819, %v4926
        %v4931 = vmax.f32 %v4111, %v4113
        %v4932 = vmax.f32 %v4112, %v4114
        %v4933 = vpack.c.bf16 %v4932, %v4931
        %s4934 = scalar_lea.vmem %s9, 448
        %v4935 = vld [vmem:[%s4934] sm:$0xf]
        %v4936 = vld [vmem:[%s4934 + $0x4] sm:$0xf]
        %v4937 = vld [vmem:[%s4934 + $0x8] sm:$0xf]
        %v4938 = vld [vmem:[%s4934 + $0xc] sm:$0xf]
        %v4939 = vld [vmem:[%s4934 + $0x10] sm:$0xf]
        %v4940 = vld [vmem:[%s4934 + $0x14] sm:$0xf]
        %v4941 = vld [vmem:[%s4934 + $0x18] sm:$0xf]
        %v4942 = vld [vmem:[%s4934 + $0x1c] sm:$0xf]
        %v4943 = vld [vmem:[%s4934 + $0x20] sm:$0xf]
        %v4944 = vld [vmem:[%s4934 + $0x24] sm:$0xf]
        %v4945 = vld [vmem:[%s4934 + $0x28] sm:$0xf]
        %v4946 = vld [vmem:[%s4934 + $0x2c] sm:$0xf]
        %v4947 = vld [vmem:[%s4934 + $0x30] sm:$0xf]
        %v4948 = vld [vmem:[%s4934 + $0x34] sm:$0xf]
        %v4949 = vld [vmem:[%s4934 + $0x38] sm:$0xf]
        %v4950 = vld [vmem:[%s4934 + $0x3c] sm:$0xf]
        %v4967 = vunpack.c.l.b16 %v4935
        %v4968 = vunpack.c.l.b16 %v4936
        %v4969 = vunpack.c.l.b16 %v4937
        %v4970 = vunpack.c.l.b16 %v4938
        %v4971 = vunpack.c.l.b16 %v4939
        %v4972 = vunpack.c.l.b16 %v4940
        %v4973 = vunpack.c.l.b16 %v4941
        %v4974 = vunpack.c.l.b16 %v4942
        %v4975 = vunpack.c.l.b16 %v4943
        %v4976 = vunpack.c.l.b16 %v4944
        %v4977 = vunpack.c.l.b16 %v4945
        %v4978 = vunpack.c.l.b16 %v4946
        %v4979 = vunpack.c.l.b16 %v4947
        %v4980 = vunpack.c.l.b16 %v4948
        %v4981 = vunpack.c.l.b16 %v4949
        %v4982 = vunpack.c.l.b16 %v4950
        %v4983 = vpack.c.b16 %v4968, %v4967
        %v4984 = vpack.c.b16 %v4970, %v4969
        %v4985 = vpack.c.b16 %v4972, %v4971
        %v4986 = vpack.c.b16 %v4974, %v4973
        %v4987 = vpack.c.b16 %v4976, %v4975
        %v4988 = vpack.c.b16 %v4978, %v4977
        %v4989 = vpack.c.b16 %v4980, %v4979
        %v4990 = vpack.c.b16 %v4982, %v4981
        %4999 = vmatprep.subr.bf16.mxu0 0
        %5000 = vmatpush1.bf16.msra.mxu0 %v4983
        %5001 = vmatprep.subr.bf16.mxu0 0
        %5002 = vmatpush1.bf16.msra.mxu0 %v4984
        %5003 = vmatprep.subr.bf16.mxu0 0
        %5004 = vmatpush1.bf16.msra.mxu0 %v4985
        %5005 = vmatprep.subr.bf16.mxu0 0
        %5006 = vmatpush1.bf16.msra.mxu0 %v4986
        %5007 = vmatprep.subr.bf16.mxu0 0
        %5008 = vmatpush1.bf16.msra.mxu0 %v4987
        %5009 = vmatprep.subr.bf16.mxu0 0
        %5010 = vmatpush1.bf16.msra.mxu0 %v4988
        %5011 = vmatprep.subr.bf16.mxu0 0
        %5012 = vmatpush1.bf16.msra.mxu0 %v4989
        %5013 = vmatprep.subr.bf16.mxu0 0
        %5014 = vmatpush1.bf16.msra.mxu0 %v4990
        %5015 = vmatprep.subr.bf16.mxu0 0
        %5016 = vmatpush1.bf16.msra.mxu0 0
        %5017 = vmatprep.subr.bf16.mxu0 0
        %5018 = vmatpush1.bf16.msra.mxu0 0
        %5019 = vmatprep.subr.bf16.mxu0 0
        %5020 = vmatpush1.bf16.msra.mxu0 0
        %5021 = vmatprep.subr.bf16.mxu0 0
        %5022 = vmatpush1.bf16.msra.mxu0 0
        %5023 = vmatprep.subr.bf16.mxu0 0
        %5024 = vmatpush1.bf16.msra.mxu0 0
        %5025 = vmatprep.subr.bf16.mxu0 0
        %5026 = vmatpush1.bf16.msra.mxu0 0
        %5027 = vmatprep.subr.bf16.mxu0 0
        %5028 = vmatpush1.bf16.msra.mxu0 0
        %5029 = vmatprep.subr.bf16.mxu0 0
        %5030 = vmatpush1.bf16.msra.mxu0 0
        %5031 = vmatprep.mubr.bf16.mxu0 0
        %5032 = vmatmul.mubr.bf16.gmra.mrb[0].mxu0 %v4933
        %v5033 = vpop.f32.mrb[0].mxu0
        %v5034 = vadd.f32 0.0, %v5033
        %v5035 = vpop.f32.mrb[0].mxu0
        %v5036 = vpop.f32.mrb[0].mxu0
        %v5037 = vadd.f32 0.0, %v5036
        %v5038 = vpop.f32.mrb[0].mxu0
        %5039 = vdwg.mxu0
        %v5040 = vadd.f32 %v4929, %v5034
        %v5041 = vadd.f32 %v4930, %v5037
        %v5042 = vmax.f32 %v4115, %v4117
        %v5043 = vmax.f32 %v4116, %v4118
        %v5044 = vpack.c.bf16 %v5043, %v5042
        %s5045 = scalar_lea.vmem %s9, 512
        %v5046 = vld [vmem:[%s5045] sm:$0xf]
        %v5047 = vld [vmem:[%s5045 + $0x4] sm:$0xf]
        %v5048 = vld [vmem:[%s5045 + $0x8] sm:$0xf]
        %v5049 = vld [vmem:[%s5045 + $0xc] sm:$0xf]
        %v5050 = vld [vmem:[%s5045 + $0x10] sm:$0xf]
        %v5051 = vld [vmem:[%s5045 + $0x14] sm:$0xf]
        %v5052 = vld [vmem:[%s5045 + $0x18] sm:$0xf]
        %v5053 = vld [vmem:[%s5045 + $0x1c] sm:$0xf]
        %v5054 = vld [vmem:[%s5045 + $0x20] sm:$0xf]
        %v5055 = vld [vmem:[%s5045 + $0x24] sm:$0xf]
        %v5056 = vld [vmem:[%s5045 + $0x28] sm:$0xf]
        %v5057 = vld [vmem:[%s5045 + $0x2c] sm:$0xf]
        %v5058 = vld [vmem:[%s5045 + $0x30] sm:$0xf]
        %v5059 = vld [vmem:[%s5045 + $0x34] sm:$0xf]
        %v5060 = vld [vmem:[%s5045 + $0x38] sm:$0xf]
        %v5061 = vld [vmem:[%s5045 + $0x3c] sm:$0xf]
        %v5078 = vunpack.c.l.b16 %v5046
        %v5079 = vunpack.c.l.b16 %v5047
        %v5080 = vunpack.c.l.b16 %v5048
        %v5081 = vunpack.c.l.b16 %v5049
        %v5082 = vunpack.c.l.b16 %v5050
        %v5083 = vunpack.c.l.b16 %v5051
        %v5084 = vunpack.c.l.b16 %v5052
        %v5085 = vunpack.c.l.b16 %v5053
        %v5086 = vunpack.c.l.b16 %v5054
        %v5087 = vunpack.c.l.b16 %v5055
        %v5088 = vunpack.c.l.b16 %v5056
        %v5089 = vunpack.c.l.b16 %v5057
        %v5090 = vunpack.c.l.b16 %v5058
        %v5091 = vunpack.c.l.b16 %v5059
        %v5092 = vunpack.c.l.b16 %v5060
        %v5093 = vunpack.c.l.b16 %v5061
        %v5094 = vpack.c.b16 %v5079, %v5078
        %v5095 = vpack.c.b16 %v5081, %v5080
        %v5096 = vpack.c.b16 %v5083, %v5082
        %v5097 = vpack.c.b16 %v5085, %v5084
        %v5098 = vpack.c.b16 %v5087, %v5086
        %v5099 = vpack.c.b16 %v5089, %v5088
        %v5100 = vpack.c.b16 %v5091, %v5090
        %v5101 = vpack.c.b16 %v5093, %v5092
        %5110 = vmatprep.subr.bf16.mxu0 0
        %5111 = vmatpush1.bf16.msra.mxu0 %v5094
        %5112 = vmatprep.subr.bf16.mxu0 0
        %5113 = vmatpush1.bf16.msra.mxu0 %v5095
        %5114 = vmatprep.subr.bf16.mxu0 0
        %5115 = vmatpush1.bf16.msra.mxu0 %v5096
        %5116 = vmatprep.subr.bf16.mxu0 0
        %5117 = vmatpush1.bf16.msra.mxu0 %v5097
        %5118 = vmatprep.subr.bf16.mxu0 0
        %5119 = vmatpush1.bf16.msra.mxu0 %v5098
        %5120 = vmatprep.subr.bf16.mxu0 0
        %5121 = vmatpush1.bf16.msra.mxu0 %v5099
        %5122 = vmatprep.subr.bf16.mxu0 0
        %5123 = vmatpush1.bf16.msra.mxu0 %v5100
        %5124 = vmatprep.subr.bf16.mxu0 0
        %5125 = vmatpush1.bf16.msra.mxu0 %v5101
        %5126 = vmatprep.subr.bf16.mxu0 0
        %5127 = vmatpush1.bf16.msra.mxu0 0
        %5128 = vmatprep.subr.bf16.mxu0 0
        %5129 = vmatpush1.bf16.msra.mxu0 0
        %5130 = vmatprep.subr.bf16.mxu0 0
        %5131 = vmatpush1.bf16.msra.mxu0 0
        %5132 = vmatprep.subr.bf16.mxu0 0
        %5133 = vmatpush1.bf16.msra.mxu0 0
        %5134 = vmatprep.subr.bf16.mxu0 0
        %5135 = vmatpush1.bf16.msra.mxu0 0
        %5136 = vmatprep.subr.bf16.mxu0 0
        %5137 = vmatpush1.bf16.msra.mxu0 0
        %5138 = vmatprep.subr.bf16.mxu0 0
        %5139 = vmatpush1.bf16.msra.mxu0 0
        %5140 = vmatprep.subr.bf16.mxu0 0
        %5141 = vmatpush1.bf16.msra.mxu0 0
        %5142 = vmatprep.mubr.bf16.mxu0 0
        %5143 = vmatmul.mubr.bf16.gmra.mrb[0].mxu0 %v5044
        %v5144 = vpop.f32.mrb[0].mxu0
        %v5145 = vadd.f32 0.0, %v5144
        %v5146 = vpop.f32.mrb[0].mxu0
        %v5147 = vpop.f32.mrb[0].mxu0
        %v5148 = vadd.f32 0.0, %v5147
        %v5149 = vpop.f32.mrb[0].mxu0
        %5150 = vdwg.mxu0
        %v5151 = vadd.f32 %v5040, %v5145
        %v5152 = vadd.f32 %v5041, %v5148
        %v5153 = vmax.f32 %v4119, %v4121
        %v5154 = vmax.f32 %v4120, %v4122
        %v5155 = vpack.c.bf16 %v5154, %v5153
        %s5156 = scalar_lea.vmem %s9, 576
        %v5157 = vld [vmem:[%s5156] sm:$0xf]
        %v5158 = vld [vmem:[%s5156 + $0x4] sm:$0xf]
        %v5159 = vld [vmem:[%s5156 + $0x8] sm:$0xf]
        %v5160 = vld [vmem:[%s5156 + $0xc] sm:$0xf]
        %v5161 = vld [vmem:[%s5156 + $0x10] sm:$0xf]
        %v5162 = vld [vmem:[%s5156 + $0x14] sm:$0xf]
        %v5163 = vld [vmem:[%s5156 + $0x18] sm:$0xf]
        %v5164 = vld [vmem:[%s5156 + $0x1c] sm:$0xf]
        %v5165 = vld [vmem:[%s5156 + $0x20] sm:$0xf]
        %v5166 = vld [vmem:[%s5156 + $0x24] sm:$0xf]
        %v5167 = vld [vmem:[%s5156 + $0x28] sm:$0xf]
        %v5168 = vld [vmem:[%s5156 + $0x2c] sm:$0xf]
        %v5169 = vld [vmem:[%s5156 + $0x30] sm:$0xf]
        %v5170 = vld [vmem:[%s5156 + $0x34] sm:$0xf]
        %v5171 = vld [vmem:[%s5156 + $0x38] sm:$0xf]
        %v5172 = vld [vmem:[%s5156 + $0x3c] sm:$0xf]
        %v5189 = vunpack.c.l.b16 %v5157
        %v5190 = vunpack.c.l.b16 %v5158
        %v5191 = vunpack.c.l.b16 %v5159
        %v5192 = vunpack.c.l.b16 %v5160
        %v5193 = vunpack.c.l.b16 %v5161
        %v5194 = vunpack.c.l.b16 %v5162
        %v5195 = vunpack.c.l.b16 %v5163
        %v5196 = vunpack.c.l.b16 %v5164
        %v5197 = vunpack.c.l.b16 %v5165
        %v5198 = vunpack.c.l.b16 %v5166
        %v5199 = vunpack.c.l.b16 %v5167
        %v5200 = vunpack.c.l.b16 %v5168
        %v5201 = vunpack.c.l.b16 %v5169
        %v5202 = vunpack.c.l.b16 %v5170
        %v5203 = vunpack.c.l.b16 %v5171
        %v5204 = vunpack.c.l.b16 %v5172
        %v5205 = vpack.c.b16 %v5190, %v5189
        %v5206 = vpack.c.b16 %v5192, %v5191
        %v5207 = vpack.c.b16 %v5194, %v5193
        %v5208 = vpack.c.b16 %v5196, %v5195
        %v5209 = vpack.c.b16 %v5198, %v5197
        %v5210 = vpack.c.b16 %v5200, %v5199
        %v5211 = vpack.c.b16 %v5202, %v5201
        %v5212 = vpack.c.b16 %v5204, %v5203
        %5221 = vmatprep.subr.bf16.mxu0 0
        %5222 = vmatpush1.bf16.msra.mxu0 %v5205
        %5223 = vmatprep.subr.bf16.mxu0 0
        %5224 = vmatpush1.bf16.msra.mxu0 %v5206
        %5225 = vmatprep.subr.bf16.mxu0 0
        %5226 = vmatpush1.bf16.msra.mxu0 %v5207
        %5227 = vmatprep.subr.bf16.mxu0 0
        %5228 = vmatpush1.bf16.msra.mxu0 %v5208
        %5229 = vmatprep.subr.bf16.mxu0 0
        %5230 = vmatpush1.bf16.msra.mxu0 %v5209
        %5231 = vmatprep.subr.bf16.mxu0 0
        %5232 = vmatpush1.bf16.msra.mxu0 %v5210
        %5233 = vmatprep.subr.bf16.mxu0 0
        %5234 = vmatpush1.bf16.msra.mxu0 %v5211
        %5235 = vmatprep.subr.bf16.mxu0 0
        %5236 = vmatpush1.bf16.msra.mxu0 %v5212
        %5237 = vmatprep.subr.bf16.mxu0 0
        %5238 = vmatpush1.bf16.msra.mxu0 0
        %5239 = vmatprep.subr.bf16.mxu0 0
        %5240 = vmatpush1.bf16.msra.mxu0 0
        %5241 = vmatprep.subr.bf16.mxu0 0
        %5242 = vmatpush1.bf16.msra.mxu0 0
        %5243 = vmatprep.subr.bf16.mxu0 0
        %5244 = vmatpush1.bf16.msra.mxu0 0
        %5245 = vmatprep.subr.bf16.mxu0 0
        %5246 = vmatpush1.bf16.msra.mxu0 0
        %5247 = vmatprep.subr.bf16.mxu0 0
        %5248 = vmatpush1.bf16.msra.mxu0 0
        %5249 = vmatprep.subr.bf16.mxu0 0
        %5250 = vmatpush1.bf16.msra.mxu0 0
        %5251 = vmatprep.subr.bf16.mxu0 0
        %5252 = vmatpush1.bf16.msra.mxu0 0
        %5253 = vmatprep.mubr.bf16.mxu0 0
        %5254 = vmatmul.mubr.bf16.gmra.mrb[0].mxu0 %v5155
        %v5255 = vpop.f32.mrb[0].mxu0
        %v5256 = vadd.f32 0.0, %v5255
        %v5257 = vpop.f32.mrb[0].mxu0
        %v5258 = vpop.f32.mrb[0].mxu0
        %v5259 = vadd.f32 0.0, %v5258
        %v5260 = vpop.f32.mrb[0].mxu0
        %5261 = vdwg.mxu0
        %v5262 = vadd.f32 %v5151, %v5256
        %v5263 = vadd.f32 %v5152, %v5259
        %v5264 = vmax.f32 %v4123, %v4125
        %v5265 = vmax.f32 %v4124, %v4126
        %v5266 = vpack.c.bf16 %v5265, %v5264
        %s5267 = scalar_lea.vmem %s9, 640
        %v5268 = vld [vmem:[%s5267] sm:$0xf]
        %v5269 = vld [vmem:[%s5267 + $0x4] sm:$0xf]
        %v5270 = vld [vmem:[%s5267 + $0x8] sm:$0xf]
        %v5271 = vld [vmem:[%s5267 + $0xc] sm:$0xf]
        %v5272 = vld [vmem:[%s5267 + $0x10] sm:$0xf]
        %v5273 = vld [vmem:[%s5267 + $0x14] sm:$0xf]
        %v5274 = vld [vmem:[%s5267 + $0x18] sm:$0xf]
        %v5275 = vld [vmem:[%s5267 + $0x1c] sm:$0xf]
        %v5276 = vld [vmem:[%s5267 + $0x20] sm:$0xf]
        %v5277 = vld [vmem:[%s5267 + $0x24] sm:$0xf]
        %v5278 = vld [vmem:[%s5267 + $0x28] sm:$0xf]
        %v5279 = vld [vmem:[%s5267 + $0x2c] sm:$0xf]
        %v5280 = vld [vmem:[%s5267 + $0x30] sm:$0xf]
        %v5281 = vld [vmem:[%s5267 + $0x34] sm:$0xf]
        %v5282 = vld [vmem:[%s5267 + $0x38] sm:$0xf]
        %v5283 = vld [vmem:[%s5267 + $0x3c] sm:$0xf]
        %v5300 = vunpack.c.l.b16 %v5268
        %v5301 = vunpack.c.l.b16 %v5269
        %v5302 = vunpack.c.l.b16 %v5270
        %v5303 = vunpack.c.l.b16 %v5271
        %v5304 = vunpack.c.l.b16 %v5272
        %v5305 = vunpack.c.l.b16 %v5273
        %v5306 = vunpack.c.l.b16 %v5274
        %v5307 = vunpack.c.l.b16 %v5275
        %v5308 = vunpack.c.l.b16 %v5276
        %v5309 = vunpack.c.l.b16 %v5277
        %v5310 = vunpack.c.l.b16 %v5278
        %v5311 = vunpack.c.l.b16 %v5279
        %v5312 = vunpack.c.l.b16 %v5280
        %v5313 = vunpack.c.l.b16 %v5281
        %v5314 = vunpack.c.l.b16 %v5282
        %v5315 = vunpack.c.l.b16 %v5283
        %v5316 = vpack.c.b16 %v5301, %v5300
        %v5317 = vpack.c.b16 %v5303, %v5302
        %v5318 = vpack.c.b16 %v5305, %v5304
        %v5319 = vpack.c.b16 %v5307, %v5306
        %v5320 = vpack.c.b16 %v5309, %v5308
        %v5321 = vpack.c.b16 %v5311, %v5310
        %v5322 = vpack.c.b16 %v5313, %v5312
        %v5323 = vpack.c.b16 %v5315, %v5314
        %5332 = vmatprep.subr.bf16.mxu0 0
        %5333 = vmatpush1.bf16.msra.mxu0 %v5316
        %5334 = vmatprep.subr.bf16.mxu0 0
        %5335 = vmatpush1.bf16.msra.mxu0 %v5317
        %5336 = vmatprep.subr.bf16.mxu0 0
        %5337 = vmatpush1.bf16.msra.mxu0 %v5318
        %5338 = vmatprep.subr.bf16.mxu0 0
        %5339 = vmatpush1.bf16.msra.mxu0 %v5319
        %5340 = vmatprep.subr.bf16.mxu0 0
        %5341 = vmatpush1.bf16.msra.mxu0 %v5320
        %5342 = vmatprep.subr.bf16.mxu0 0
        %5343 = vmatpush1.bf16.msra.mxu0 %v5321
        %5344 = vmatprep.subr.bf16.mxu0 0
        %5345 = vmatpush1.bf16.msra.mxu0 %v5322
        %5346 = vmatprep.subr.bf16.mxu0 0
        %5347 = vmatpush1.bf16.msra.mxu0 %v5323
        %5348 = vmatprep.subr.bf16.mxu0 0
        %5349 = vmatpush1.bf16.msra.mxu0 0
        %5350 = vmatprep.subr.bf16.mxu0 0
        %5351 = vmatpush1.bf16.msra.mxu0 0
        %5352 = vmatprep.subr.bf16.mxu0 0
        %5353 = vmatpush1.bf16.msra.mxu0 0
        %5354 = vmatprep.subr.bf16.mxu0 0
        %5355 = vmatpush1.bf16.msra.mxu0 0
        %5356 = vmatprep.subr.bf16.mxu0 0
        %5357 = vmatpush1.bf16.msra.mxu0 0
        %5358 = vmatprep.subr.bf16.mxu0 0
        %5359 = vmatpush1.bf16.msra.mxu0 0
        %5360 = vmatprep.subr.bf16.mxu0 0
        %5361 = vmatpush1.bf16.msra.mxu0 0
        %5362 = vmatprep.subr.bf16.mxu0 0
        %5363 = vmatpush1.bf16.msra.mxu0 0
        %5364 = vmatprep.mubr.bf16.mxu0 0
        %5365 = vmatmul.mubr.bf16.gmra.mrb[0].mxu0 %v5266
        %v5366 = vpop.f32.mrb[0].mxu0
        %v5367 = vadd.f32 0.0, %v5366
        %v5368 = vpop.f32.mrb[0].mxu0
        %v5369 = vpop.f32.mrb[0].mxu0
        %v5370 = vadd.f32 0.0, %v5369
        %v5371 = vpop.f32.mrb[0].mxu0
        %5372 = vdwg.mxu0
        %v5373 = vadd.f32 %v5262, %v5367
        %v5374 = vadd.f32 %v5263, %v5370
        %v5375 = vmax.f32 %v4127, %v4129
        %v5376 = vmax.f32 %v4128, %v4130
        %v5377 = vpack.c.bf16 %v5376, %v5375
        %s5378 = scalar_lea.vmem %s9, 704
        %v5379 = vld [vmem:[%s5378] sm:$0xf]
        %v5380 = vld [vmem:[%s5378 + $0x4] sm:$0xf]
        %v5381 = vld [vmem:[%s5378 + $0x8] sm:$0xf]
        %v5382 = vld [vmem:[%s5378 + $0xc] sm:$0xf]
        %v5383 = vld [vmem:[%s5378 + $0x10] sm:$0xf]
        %v5384 = vld [vmem:[%s5378 + $0x14] sm:$0xf]
        %v5385 = vld [vmem:[%s5378 + $0x18] sm:$0xf]
        %v5386 = vld [vmem:[%s5378 + $0x1c] sm:$0xf]
        %v5387 = vld [vmem:[%s5378 + $0x20] sm:$0xf]
        %v5388 = vld [vmem:[%s5378 + $0x24] sm:$0xf]
        %v5389 = vld [vmem:[%s5378 + $0x28] sm:$0xf]
        %v5390 = vld [vmem:[%s5378 + $0x2c] sm:$0xf]
        %v5391 = vld [vmem:[%s5378 + $0x30] sm:$0xf]
        %v5392 = vld [vmem:[%s5378 + $0x34] sm:$0xf]
        %v5393 = vld [vmem:[%s5378 + $0x38] sm:$0xf]
        %v5394 = vld [vmem:[%s5378 + $0x3c] sm:$0xf]
        %v5411 = vunpack.c.l.b16 %v5379
        %v5412 = vunpack.c.l.b16 %v5380
        %v5413 = vunpack.c.l.b16 %v5381
        %v5414 = vunpack.c.l.b16 %v5382
        %v5415 = vunpack.c.l.b16 %v5383
        %v5416 = vunpack.c.l.b16 %v5384
        %v5417 = vunpack.c.l.b16 %v5385
        %v5418 = vunpack.c.l.b16 %v5386
        %v5419 = vunpack.c.l.b16 %v5387
        %v5420 = vunpack.c.l.b16 %v5388
        %v5421 = vunpack.c.l.b16 %v5389
        %v5422 = vunpack.c.l.b16 %v5390
        %v5423 = vunpack.c.l.b16 %v5391
        %v5424 = vunpack.c.l.b16 %v5392
        %v5425 = vunpack.c.l.b16 %v5393
        %v5426 = vunpack.c.l.b16 %v5394
        %v5427 = vpack.c.b16 %v5412, %v5411
        %v5428 = vpack.c.b16 %v5414, %v5413
        %v5429 = vpack.c.b16 %v5416, %v5415
        %v5430 = vpack.c.b16 %v5418, %v5417
        %v5431 = vpack.c.b16 %v5420, %v5419
        %v5432 = vpack.c.b16 %v5422, %v5421
        %v5433 = vpack.c.b16 %v5424, %v5423
        %v5434 = vpack.c.b16 %v5426, %v5425
        %5443 = vmatprep.subr.bf16.mxu0 0
        %5444 = vmatpush1.bf16.msra.mxu0 %v5427
        %5445 = vmatprep.subr.bf16.mxu0 0
        %5446 = vmatpush1.bf16.msra.mxu0 %v5428
        %5447 = vmatprep.subr.bf16.mxu0 0
        %5448 = vmatpush1.bf16.msra.mxu0 %v5429
        %5449 = vmatprep.subr.bf16.mxu0 0
        %5450 = vmatpush1.bf16.msra.mxu0 %v5430
        %5451 = vmatprep.subr.bf16.mxu0 0
        %5452 = vmatpush1.bf16.msra.mxu0 %v5431
        %5453 = vmatprep.subr.bf16.mxu0 0
        %5454 = vmatpush1.bf16.msra.mxu0 %v5432
        %5455 = vmatprep.subr.bf16.mxu0 0
        %5456 = vmatpush1.bf16.msra.mxu0 %v5433
        %5457 = vmatprep.subr.bf16.mxu0 0
        %5458 = vmatpush1.bf16.msra.mxu0 %v5434
        %5459 = vmatprep.subr.bf16.mxu0 0
        %5460 = vmatpush1.bf16.msra.mxu0 0
        %5461 = vmatprep.subr.bf16.mxu0 0
        %5462 = vmatpush1.bf16.msra.mxu0 0
        %5463 = vmatprep.subr.bf16.mxu0 0
        %5464 = vmatpush1.bf16.msra.mxu0 0
        %5465 = vmatprep.subr.bf16.mxu0 0
        %5466 = vmatpush1.bf16.msra.mxu0 0
        %5467 = vmatprep.subr.bf16.mxu0 0
        %5468 = vmatpush1.bf16.msra.mxu0 0
        %5469 = vmatprep.subr.bf16.mxu0 0
        %5470 = vmatpush1.bf16.msra.mxu0 0
        %5471 = vmatprep.subr.bf16.mxu0 0
        %5472 = vmatpush1.bf16.msra.mxu0 0
        %5473 = vmatprep.subr.bf16.mxu0 0
        %5474 = vmatpush1.bf16.msra.mxu0 0
        %5475 = vmatprep.mubr.bf16.mxu0 0
        %5476 = vmatmul.mubr.bf16.gmra.mrb[0].mxu0 %v5377
        %v5477 = vpop.f32.mrb[0].mxu0
        %v5478 = vadd.f32 0.0, %v5477
        %v5479 = vpop.f32.mrb[0].mxu0
        %v5480 = vpop.f32.mrb[0].mxu0
        %v5481 = vadd.f32 0.0, %v5480
        %v5482 = vpop.f32.mrb[0].mxu0
        %5483 = vdwg.mxu0
        %v5484 = vadd.f32 %v5373, %v5478
        %v5485 = vadd.f32 %v5374, %v5481
        %v5486 = vmax.f32 %v4131, %v4133
        %v5487 = vmax.f32 %v4132, %v4134
        %v5488 = vpack.c.bf16 %v5487, %v5486
        %s5489 = scalar_lea.vmem %s9, 768
        %v5490 = vld [vmem:[%s5489] sm:$0xf]
        %v5491 = vld [vmem:[%s5489 + $0x4] sm:$0xf]
        %v5492 = vld [vmem:[%s5489 + $0x8] sm:$0xf]
        %v5493 = vld [vmem:[%s5489 + $0xc] sm:$0xf]
        %v5494 = vld [vmem:[%s5489 + $0x10] sm:$0xf]
        %v5495 = vld [vmem:[%s5489 + $0x14] sm:$0xf]
        %v5496 = vld [vmem:[%s5489 + $0x18] sm:$0xf]
        %v5497 = vld [vmem:[%s5489 + $0x1c] sm:$0xf]
        %v5498 = vld [vmem:[%s5489 + $0x20] sm:$0xf]
        %v5499 = vld [vmem:[%s5489 + $0x24] sm:$0xf]
        %v5500 = vld [vmem:[%s5489 + $0x28] sm:$0xf]
        %v5501 = vld [vmem:[%s5489 + $0x2c] sm:$0xf]
        %v5502 = vld [vmem:[%s5489 + $0x30] sm:$0xf]
        %v5503 = vld [vmem:[%s5489 + $0x34] sm:$0xf]
        %v5504 = vld [vmem:[%s5489 + $0x38] sm:$0xf]
        %v5505 = vld [vmem:[%s5489 + $0x3c] sm:$0xf]
        %v5522 = vunpack.c.l.b16 %v5490
        %v5523 = vunpack.c.l.b16 %v5491
        %v5524 = vunpack.c.l.b16 %v5492
        %v5525 = vunpack.c.l.b16 %v5493
        %v5526 = vunpack.c.l.b16 %v5494
        %v5527 = vunpack.c.l.b16 %v5495
        %v5528 = vunpack.c.l.b16 %v5496
        %v5529 = vunpack.c.l.b16 %v5497
        %v5530 = vunpack.c.l.b16 %v5498
        %v5531 = vunpack.c.l.b16 %v5499
        %v5532 = vunpack.c.l.b16 %v5500
        %v5533 = vunpack.c.l.b16 %v5501
        %v5534 = vunpack.c.l.b16 %v5502
        %v5535 = vunpack.c.l.b16 %v5503
        %v5536 = vunpack.c.l.b16 %v5504
        %v5537 = vunpack.c.l.b16 %v5505
        %v5538 = vpack.c.b16 %v5523, %v5522
        %v5539 = vpack.c.b16 %v5525, %v5524
        %v5540 = vpack.c.b16 %v5527, %v5526
        %v5541 = vpack.c.b16 %v5529, %v5528
        %v5542 = vpack.c.b16 %v5531, %v5530
        %v5543 = vpack.c.b16 %v5533, %v5532
        %v5544 = vpack.c.b16 %v5535, %v5534
        %v5545 = vpack.c.b16 %v5537, %v5536
        %5554 = vmatprep.subr.bf16.mxu0 0
        %5555 = vmatpush1.bf16.msra.mxu0 %v5538
        %5556 = vmatprep.subr.bf16.mxu0 0
        %5557 = vmatpush1.bf16.msra.mxu0 %v5539
        %5558 = vmatprep.subr.bf16.mxu0 0
        %5559 = vmatpush1.bf16.msra.mxu0 %v5540
        %5560 = vmatprep.subr.bf16.mxu0 0
        %5561 = vmatpush1.bf16.msra.mxu0 %v5541
        %5562 = vmatprep.subr.bf16.mxu0 0
        %5563 = vmatpush1.bf16.msra.mxu0 %v5542
        %5564 = vmatprep.subr.bf16.mxu0 0
        %5565 = vmatpush1.bf16.msra.mxu0 %v5543
        %5566 = vmatprep.subr.bf16.mxu0 0
        %5567 = vmatpush1.bf16.msra.mxu0 %v5544
        %5568 = vmatprep.subr.bf16.mxu0 0
        %5569 = vmatpush1.bf16.msra.mxu0 %v5545
        %5570 = vmatprep.subr.bf16.mxu0 0
        %5571 = vmatpush1.bf16.msra.mxu0 0
        %5572 = vmatprep.subr.bf16.mxu0 0
        %5573 = vmatpush1.bf16.msra.mxu0 0
        %5574 = vmatprep.subr.bf16.mxu0 0
        %5575 = vmatpush1.bf16.msra.mxu0 0
        %5576 = vmatprep.subr.bf16.mxu0 0
        %5577 = vmatpush1.bf16.msra.mxu0 0
        %5578 = vmatprep.subr.bf16.mxu0 0
        %5579 = vmatpush1.bf16.msra.mxu0 0
        %5580 = vmatprep.subr.bf16.mxu0 0
        %5581 = vmatpush1.bf16.msra.mxu0 0
        %5582 = vmatprep.subr.bf16.mxu0 0
        %5583 = vmatpush1.bf16.msra.mxu0 0
        %5584 = vmatprep.subr.bf16.mxu0 0
        %5585 = vmatpush1.bf16.msra.mxu0 0
        %5586 = vmatprep.mubr.bf16.mxu0 0
        %5587 = vmatmul.mubr.bf16.gmra.mrb[0].mxu0 %v5488
        %v5588 = vpop.f32.mrb[0].mxu0
        %v5589 = vadd.f32 0.0, %v5588
        %v5590 = vpop.f32.mrb[0].mxu0
        %v5591 = vpop.f32.mrb[0].mxu0
        %v5592 = vadd.f32 0.0, %v5591
        %v5593 = vpop.f32.mrb[0].mxu0
        %5594 = vdwg.mxu0
        %v5595 = vadd.f32 %v5484, %v5589
        %v5596 = vadd.f32 %v5485, %v5592
        %v5597 = vmax.f32 %v4135, %v4137
        %v5598 = vmax.f32 %v4136, %v4138
        %v5599 = vpack.c.bf16 %v5598, %v5597
        %s5600 = scalar_lea.vmem %s9, 832
        %v5601 = vld [vmem:[%s5600] sm:$0xf]
        %v5602 = vld [vmem:[%s5600 + $0x4] sm:$0xf]
        %v5603 = vld [vmem:[%s5600 + $0x8] sm:$0xf]
        %v5604 = vld [vmem:[%s5600 + $0xc] sm:$0xf]
        %v5605 = vld [vmem:[%s5600 + $0x10] sm:$0xf]
        %v5606 = vld [vmem:[%s5600 + $0x14] sm:$0xf]
        %v5607 = vld [vmem:[%s5600 + $0x18] sm:$0xf]
        %v5608 = vld [vmem:[%s5600 + $0x1c] sm:$0xf]
        %v5609 = vld [vmem:[%s5600 + $0x20] sm:$0xf]
        %v5610 = vld [vmem:[%s5600 + $0x24] sm:$0xf]
        %v5611 = vld [vmem:[%s5600 + $0x28] sm:$0xf]
        %v5612 = vld [vmem:[%s5600 + $0x2c] sm:$0xf]
        %v5613 = vld [vmem:[%s5600 + $0x30] sm:$0xf]
        %v5614 = vld [vmem:[%s5600 + $0x34] sm:$0xf]
        %v5615 = vld [vmem:[%s5600 + $0x38] sm:$0xf]
        %v5616 = vld [vmem:[%s5600 + $0x3c] sm:$0xf]
        %v5633 = vunpack.c.l.b16 %v5601
        %v5634 = vunpack.c.l.b16 %v5602
        %v5635 = vunpack.c.l.b16 %v5603
        %v5636 = vunpack.c.l.b16 %v5604
        %v5637 = vunpack.c.l.b16 %v5605
        %v5638 = vunpack.c.l.b16 %v5606
        %v5639 = vunpack.c.l.b16 %v5607
        %v5640 = vunpack.c.l.b16 %v5608
        %v5641 = vunpack.c.l.b16 %v5609
        %v5642 = vunpack.c.l.b16 %v5610
        %v5643 = vunpack.c.l.b16 %v5611
        %v5644 = vunpack.c.l.b16 %v5612
        %v5645 = vunpack.c.l.b16 %v5613
        %v5646 = vunpack.c.l.b16 %v5614
        %v5647 = vunpack.c.l.b16 %v5615
        %v5648 = vunpack.c.l.b16 %v5616
        %v5649 = vpack.c.b16 %v5634, %v5633
        %v5650 = vpack.c.b16 %v5636, %v5635
        %v5651 = vpack.c.b16 %v5638, %v5637
        %v5652 = vpack.c.b16 %v5640, %v5639
        %v5653 = vpack.c.b16 %v5642, %v5641
        %v5654 = vpack.c.b16 %v5644, %v5643
        %v5655 = vpack.c.b16 %v5646, %v5645
        %v5656 = vpack.c.b16 %v5648, %v5647
        %5665 = vmatprep.subr.bf16.mxu0 0
        %5666 = vmatpush1.bf16.msra.mxu0 %v5649
        %5667 = vmatprep.subr.bf16.mxu0 0
        %5668 = vmatpush1.bf16.msra.mxu0 %v5650
        %5669 = vmatprep.subr.bf16.mxu0 0
        %5670 = vmatpush1.bf16.msra.mxu0 %v5651
        %5671 = vmatprep.subr.bf16.mxu0 0
        %5672 = vmatpush1.bf16.msra.mxu0 %v5652
        %5673 = vmatprep.subr.bf16.mxu0 0
        %5674 = vmatpush1.bf16.msra.mxu0 %v5653
        %5675 = vmatprep.subr.bf16.mxu0 0
        %5676 = vmatpush1.bf16.msra.mxu0 %v5654
        %5677 = vmatprep.subr.bf16.mxu0 0
        %5678 = vmatpush1.bf16.msra.mxu0 %v5655
        %5679 = vmatprep.subr.bf16.mxu0 0
        %5680 = vmatpush1.bf16.msra.mxu0 %v5656
        %5681 = vmatprep.subr.bf16.mxu0 0
        %5682 = vmatpush1.bf16.msra.mxu0 0
        %5683 = vmatprep.subr.bf16.mxu0 0
        %5684 = vmatpush1.bf16.msra.mxu0 0
        %5685 = vmatprep.subr.bf16.mxu0 0
        %5686 = vmatpush1.bf16.msra.mxu0 0
        %5687 = vmatprep.subr.bf16.mxu0 0
        %5688 = vmatpush1.bf16.msra.mxu0 0
        %5689 = vmatprep.subr.bf16.mxu0 0
        %5690 = vmatpush1.bf16.msra.mxu0 0
        %5691 = vmatprep.subr.bf16.mxu0 0
        %5692 = vmatpush1.bf16.msra.mxu0 0
        %5693 = vmatprep.subr.bf16.mxu0 0
        %5694 = vmatpush1.bf16.msra.mxu0 0
        %5695 = vmatprep.subr.bf16.mxu0 0
        %5696 = vmatpush1.bf16.msra.mxu0 0
        %5697 = vmatprep.mubr.bf16.mxu0 0
        %5698 = vmatmul.mubr.bf16.gmra.mrb[0].mxu0 %v5599
        %v5699 = vpop.f32.mrb[0].mxu0
        %v5700 = vadd.f32 0.0, %v5699
        %v5701 = vpop.f32.mrb[0].mxu0
        %v5702 = vpop.f32.mrb[0].mxu0
        %v5703 = vadd.f32 0.0, %v5702
        %v5704 = vpop.f32.mrb[0].mxu0
        %5705 = vdwg.mxu0
        %v5706 = vadd.f32 %v5595, %v5700
        %v5707 = vadd.f32 %v5596, %v5703
        %v5708 = vmax.f32 %v4139, %v4141
        %v5709 = vmax.f32 %v4140, %v4142
        %v5710 = vpack.c.bf16 %v5709, %v5708
        %s5711 = scalar_lea.vmem %s9, 896
        %v5712 = vld [vmem:[%s5711] sm:$0xf]
        %v5713 = vld [vmem:[%s5711 + $0x4] sm:$0xf]
        %v5714 = vld [vmem:[%s5711 + $0x8] sm:$0xf]
        %v5715 = vld [vmem:[%s5711 + $0xc] sm:$0xf]
        %v5716 = vld [vmem:[%s5711 + $0x10] sm:$0xf]
        %v5717 = vld [vmem:[%s5711 + $0x14] sm:$0xf]
        %v5718 = vld [vmem:[%s5711 + $0x18] sm:$0xf]
        %v5719 = vld [vmem:[%s5711 + $0x1c] sm:$0xf]
        %v5720 = vld [vmem:[%s5711 + $0x20] sm:$0xf]
        %v5721 = vld [vmem:[%s5711 + $0x24] sm:$0xf]
        %v5722 = vld [vmem:[%s5711 + $0x28] sm:$0xf]
        %v5723 = vld [vmem:[%s5711 + $0x2c] sm:$0xf]
        %v5724 = vld [vmem:[%s5711 + $0x30] sm:$0xf]
        %v5725 = vld [vmem:[%s5711 + $0x34] sm:$0xf]
        %v5726 = vld [vmem:[%s5711 + $0x38] sm:$0xf]
        %v5727 = vld [vmem:[%s5711 + $0x3c] sm:$0xf]
        %v5744 = vunpack.c.l.b16 %v5712
        %v5745 = vunpack.c.l.b16 %v5713
        %v5746 = vunpack.c.l.b16 %v5714
        %v5747 = vunpack.c.l.b16 %v5715
        %v5748 = vunpack.c.l.b16 %v5716
        %v5749 = vunpack.c.l.b16 %v5717
        %v5750 = vunpack.c.l.b16 %v5718
        %v5751 = vunpack.c.l.b16 %v5719
        %v5752 = vunpack.c.l.b16 %v5720
        %v5753 = vunpack.c.l.b16 %v5721
        %v5754 = vunpack.c.l.b16 %v5722
        %v5755 = vunpack.c.l.b16 %v5723
        %v5756 = vunpack.c.l.b16 %v5724
        %v5757 = vunpack.c.l.b16 %v5725
        %v5758 = vunpack.c.l.b16 %v5726
        %v5759 = vunpack.c.l.b16 %v5727
        %v5760 = vpack.c.b16 %v5745, %v5744
        %v5761 = vpack.c.b16 %v5747, %v5746
        %v5762 = vpack.c.b16 %v5749, %v5748
        %v5763 = vpack.c.b16 %v5751, %v5750
        %v5764 = vpack.c.b16 %v5753, %v5752
        %v5765 = vpack.c.b16 %v5755, %v5754
        %v5766 = vpack.c.b16 %v5757, %v5756
        %v5767 = vpack.c.b16 %v5759, %v5758
        %5776 = vmatprep.subr.bf16.mxu0 0
        %5777 = vmatpush1.bf16.msra.mxu0 %v5760
        %5778 = vmatprep.subr.bf16.mxu0 0
        %5779 = vmatpush1.bf16.msra.mxu0 %v5761
        %5780 = vmatprep.subr.bf16.mxu0 0
        %5781 = vmatpush1.bf16.msra.mxu0 %v5762
        %5782 = vmatprep.subr.bf16.mxu0 0
        %5783 = vmatpush1.bf16.msra.mxu0 %v5763
        %5784 = vmatprep.subr.bf16.mxu0 0
        %5785 = vmatpush1.bf16.msra.mxu0 %v5764
        %5786 = vmatprep.subr.bf16.mxu0 0
        %5787 = vmatpush1.bf16.msra.mxu0 %v5765
        %5788 = vmatprep.subr.bf16.mxu0 0
        %5789 = vmatpush1.bf16.msra.mxu0 %v5766
        %5790 = vmatprep.subr.bf16.mxu0 0
        %5791 = vmatpush1.bf16.msra.mxu0 %v5767
        %5792 = vmatprep.subr.bf16.mxu0 0
        %5793 = vmatpush1.bf16.msra.mxu0 0
        %5794 = vmatprep.subr.bf16.mxu0 0
        %5795 = vmatpush1.bf16.msra.mxu0 0
        %5796 = vmatprep.subr.bf16.mxu0 0
        %5797 = vmatpush1.bf16.msra.mxu0 0
        %5798 = vmatprep.subr.bf16.mxu0 0
        %5799 = vmatpush1.bf16.msra.mxu0 0
        %5800 = vmatprep.subr.bf16.mxu0 0
        %5801 = vmatpush1.bf16.msra.mxu0 0
        %5802 = vmatprep.subr.bf16.mxu0 0
        %5803 = vmatpush1.bf16.msra.mxu0 0
        %5804 = vmatprep.subr.bf16.mxu0 0
        %5805 = vmatpush1.bf16.msra.mxu0 0
        %5806 = vmatprep.subr.bf16.mxu0 0
        %5807 = vmatpush1.bf16.msra.mxu0 0
        %5808 = vmatprep.mubr.bf16.mxu0 0
        %5809 = vmatmul.mubr.bf16.gmra.mrb[0].mxu0 %v5710
        %v5810 = vpop.f32.mrb[0].mxu0
        %v5811 = vadd.f32 0.0, %v5810
        %v5812 = vpop.f32.mrb[0].mxu0
        %v5813 = vpop.f32.mrb[0].mxu0
        %v5814 = vadd.f32 0.0, %v5813
        %v5815 = vpop.f32.mrb[0].mxu0
        %5816 = vdwg.mxu0
        %v5817 = vadd.f32 %v5706, %v5811
        %v5818 = vadd.f32 %v5707, %v5814
        %v5819 = vmax.f32 %v4143, %v4145
        %v5820 = vmax.f32 %v4144, %v4146
        %v5821 = vpack.c.bf16 %v5820, %v5819
        %s5822 = scalar_lea.vmem %s9, 960
        %v5823 = vld [vmem:[%s5822] sm:$0xf]
        %v5824 = vld [vmem:[%s5822 + $0x4] sm:$0xf]
        %v5825 = vld [vmem:[%s5822 + $0x8] sm:$0xf]
        %v5826 = vld [vmem:[%s5822 + $0xc] sm:$0xf]
        %v5827 = vld [vmem:[%s5822 + $0x10] sm:$0xf]
        %v5828 = vld [vmem:[%s5822 + $0x14] sm:$0xf]
        %v5829 = vld [vmem:[%s5822 + $0x18] sm:$0xf]
        %v5830 = vld [vmem:[%s5822 + $0x1c] sm:$0xf]
        %v5831 = vld [vmem:[%s5822 + $0x20] sm:$0xf]
        %v5832 = vld [vmem:[%s5822 + $0x24] sm:$0xf]
        %v5833 = vld [vmem:[%s5822 + $0x28] sm:$0xf]
        %v5834 = vld [vmem:[%s5822 + $0x2c] sm:$0xf]
        %v5835 = vld [vmem:[%s5822 + $0x30] sm:$0xf]
        %v5836 = vld [vmem:[%s5822 + $0x34] sm:$0xf]
        %v5837 = vld [vmem:[%s5822 + $0x38] sm:$0xf]
        %v5838 = vld [vmem:[%s5822 + $0x3c] sm:$0xf]
        %v5855 = vunpack.c.l.b16 %v5823
        %v5856 = vunpack.c.l.b16 %v5824
        %v5857 = vunpack.c.l.b16 %v5825
        %v5858 = vunpack.c.l.b16 %v5826
        %v5859 = vunpack.c.l.b16 %v5827
        %v5860 = vunpack.c.l.b16 %v5828
        %v5861 = vunpack.c.l.b16 %v5829
        %v5862 = vunpack.c.l.b16 %v5830
        %v5863 = vunpack.c.l.b16 %v5831
        %v5864 = vunpack.c.l.b16 %v5832
        %v5865 = vunpack.c.l.b16 %v5833
        %v5866 = vunpack.c.l.b16 %v5834
        %v5867 = vunpack.c.l.b16 %v5835
        %v5868 = vunpack.c.l.b16 %v5836
        %v5869 = vunpack.c.l.b16 %v5837
        %v5870 = vunpack.c.l.b16 %v5838
        %v5871 = vpack.c.b16 %v5856, %v5855
        %v5872 = vpack.c.b16 %v5858, %v5857
        %v5873 = vpack.c.b16 %v5860, %v5859
        %v5874 = vpack.c.b16 %v5862, %v5861
        %v5875 = vpack.c.b16 %v5864, %v5863
        %v5876 = vpack.c.b16 %v5866, %v5865
        %v5877 = vpack.c.b16 %v5868, %v5867
        %v5878 = vpack.c.b16 %v5870, %v5869
        %5887 = vmatprep.subr.bf16.mxu0 0
        %5888 = vmatpush1.bf16.msra.mxu0 %v5871
        %5889 = vmatprep.subr.bf16.mxu0 0
        %5890 = vmatpush1.bf16.msra.mxu0 %v5872
        %5891 = vmatprep.subr.bf16.mxu0 0
        %5892 = vmatpush1.bf16.msra.mxu0 %v5873
        %5893 = vmatprep.subr.bf16.mxu0 0
        %5894 = vmatpush1.bf16.msra.mxu0 %v5874
        %5895 = vmatprep.subr.bf16.mxu0 0
        %5896 = vmatpush1.bf16.msra.mxu0 %v5875
        %5897 = vmatprep.subr.bf16.mxu0 0
        %5898 = vmatpush1.bf16.msra.mxu0 %v5876
        %5899 = vmatprep.subr.bf16.mxu0 0
        %5900 = vmatpush1.bf16.msra.mxu0 %v5877
        %5901 = vmatprep.subr.bf16.mxu0 0
        %5902 = vmatpush1.bf16.msra.mxu0 %v5878
        %5903 = vmatprep.subr.bf16.mxu0 0
        %5904 = vmatpush1.bf16.msra.mxu0 0
        %5905 = vmatprep.subr.bf16.mxu0 0
        %5906 = vmatpush1.bf16.msra.mxu0 0
        %5907 = vmatprep.subr.bf16.mxu0 0
        %5908 = vmatpush1.bf16.msra.mxu0 0
        %5909 = vmatprep.subr.bf16.mxu0 0
        %5910 = vmatpush1.bf16.msra.mxu0 0
        %5911 = vmatprep.subr.bf16.mxu0 0
        %5912 = vmatpush1.bf16.msra.mxu0 0
        %5913 = vmatprep.subr.bf16.mxu0 0
        %5914 = vmatpush1.bf16.msra.mxu0 0
        %5915 = vmatprep.subr.bf16.mxu0 0
        %5916 = vmatpush1.bf16.msra.mxu0 0
        %5917 = vmatprep.subr.bf16.mxu0 0
        %5918 = vmatpush1.bf16.msra.mxu0 0
        %5919 = vmatprep.mubr.bf16.mxu0 0
        %5920 = vmatmul.mubr.bf16.gmra.mrb[0].mxu0 %v5821
        %v5921 = vpop.f32.mrb[0].mxu0
        %v5922 = vadd.f32 0.0, %v5921
        %v5923 = vpop.f32.mrb[0].mxu0
        %v5924 = vpop.f32.mrb[0].mxu0
        %v5925 = vadd.f32 0.0, %v5924
        %v5926 = vpop.f32.mrb[0].mxu0
        %5927 = vdwg.mxu0
        %v5928 = vadd.f32 %v5817, %v5922
        %v5929 = vadd.f32 %v5818, %v5925
        %v5930 = vmax.f32 %v4147, %v4149
        %v5931 = vmax.f32 %v4148, %v4150
        %v5932 = vpack.c.bf16 %v5931, %v5930
        %s5933 = scalar_lea.vmem %s9, 1024
        %v5934 = vld [vmem:[%s5933] sm:$0xf]
        %v5935 = vld [vmem:[%s5933 + $0x4] sm:$0xf]
        %v5936 = vld [vmem:[%s5933 + $0x8] sm:$0xf]
        %v5937 = vld [vmem:[%s5933 + $0xc] sm:$0xf]
        %v5938 = vld [vmem:[%s5933 + $0x10] sm:$0xf]
        %v5939 = vld [vmem:[%s5933 + $0x14] sm:$0xf]
        %v5940 = vld [vmem:[%s5933 + $0x18] sm:$0xf]
        %v5941 = vld [vmem:[%s5933 + $0x1c] sm:$0xf]
        %v5942 = vld [vmem:[%s5933 + $0x20] sm:$0xf]
        %v5943 = vld [vmem:[%s5933 + $0x24] sm:$0xf]
        %v5944 = vld [vmem:[%s5933 + $0x28] sm:$0xf]
        %v5945 = vld [vmem:[%s5933 + $0x2c] sm:$0xf]
        %v5946 = vld [vmem:[%s5933 + $0x30] sm:$0xf]
        %v5947 = vld [vmem:[%s5933 + $0x34] sm:$0xf]
        %v5948 = vld [vmem:[%s5933 + $0x38] sm:$0xf]
        %v5949 = vld [vmem:[%s5933 + $0x3c] sm:$0xf]
        %v5966 = vunpack.c.l.b16 %v5934
        %v5967 = vunpack.c.l.b16 %v5935
        %v5968 = vunpack.c.l.b16 %v5936
        %v5969 = vunpack.c.l.b16 %v5937
        %v5970 = vunpack.c.l.b16 %v5938
        %v5971 = vunpack.c.l.b16 %v5939
        %v5972 = vunpack.c.l.b16 %v5940
        %v5973 = vunpack.c.l.b16 %v5941
        %v5974 = vunpack.c.l.b16 %v5942
        %v5975 = vunpack.c.l.b16 %v5943
        %v5976 = vunpack.c.l.b16 %v5944
        %v5977 = vunpack.c.l.b16 %v5945
        %v5978 = vunpack.c.l.b16 %v5946
        %v5979 = vunpack.c.l.b16 %v5947
        %v5980 = vunpack.c.l.b16 %v5948
        %v5981 = vunpack.c.l.b16 %v5949
        %v5982 = vpack.c.b16 %v5967, %v5966
        %v5983 = vpack.c.b16 %v5969, %v5968
        %v5984 = vpack.c.b16 %v5971, %v5970
        %v5985 = vpack.c.b16 %v5973, %v5972
        %v5986 = vpack.c.b16 %v5975, %v5974
        %v5987 = vpack.c.b16 %v5977, %v5976
        %v5988 = vpack.c.b16 %v5979, %v5978
        %v5989 = vpack.c.b16 %v5981, %v5980
        %5998 = vmatprep.subr.bf16.mxu0 0
        %5999 = vmatpush1.bf16.msra.mxu0 %v5982
        %6000 = vmatprep.subr.bf16.mxu0 0
        %6001 = vmatpush1.bf16.msra.mxu0 %v5983
        %6002 = vmatprep.subr.bf16.mxu0 0
        %6003 = vmatpush1.bf16.msra.mxu0 %v5984
        %6004 = vmatprep.subr.bf16.mxu0 0
        %6005 = vmatpush1.bf16.msra.mxu0 %v5985
        %6006 = vmatprep.subr.bf16.mxu0 0
        %6007 = vmatpush1.bf16.msra.mxu0 %v5986
        %6008 = vmatprep.subr.bf16.mxu0 0
        %6009 = vmatpush1.bf16.msra.mxu0 %v5987
        %6010 = vmatprep.subr.bf16.mxu0 0
        %6011 = vmatpush1.bf16.msra.mxu0 %v5988
        %6012 = vmatprep.subr.bf16.mxu0 0
        %6013 = vmatpush1.bf16.msra.mxu0 %v5989
        %6014 = vmatprep.subr.bf16.mxu0 0
        %6015 = vmatpush1.bf16.msra.mxu0 0
        %6016 = vmatprep.subr.bf16.mxu0 0
        %6017 = vmatpush1.bf16.msra.mxu0 0
        %6018 = vmatprep.subr.bf16.mxu0 0
        %6019 = vmatpush1.bf16.msra.mxu0 0
        %6020 = vmatprep.subr.bf16.mxu0 0
        %6021 = vmatpush1.bf16.msra.mxu0 0
        %6022 = vmatprep.subr.bf16.mxu0 0
        %6023 = vmatpush1.bf16.msra.mxu0 0
        %6024 = vmatprep.subr.bf16.mxu0 0
        %6025 = vmatpush1.bf16.msra.mxu0 0
        %6026 = vmatprep.subr.bf16.mxu0 0
        %6027 = vmatpush1.bf16.msra.mxu0 0
        %6028 = vmatprep.subr.bf16.mxu0 0
        %6029 = vmatpush1.bf16.msra.mxu0 0
        %6030 = vmatprep.mubr.bf16.mxu0 0
        %6031 = vmatmul.mubr.bf16.gmra.mrb[0].mxu0 %v5932
        %v6032 = vpop.f32.mrb[0].mxu0
        %v6033 = vadd.f32 0.0, %v6032
        %v6034 = vpop.f32.mrb[0].mxu0
        %v6035 = vpop.f32.mrb[0].mxu0
        %v6036 = vadd.f32 0.0, %v6035
        %v6037 = vpop.f32.mrb[0].mxu0
        %6038 = vdwg.mxu0
        %v6039 = vadd.f32 %v5928, %v6033
        %v6040 = vadd.f32 %v5929, %v6036
        %v6041 = vmax.f32 %v4151, %v4153
        %v6042 = vmax.f32 %v4152, %v4154
        %v6043 = vpack.c.bf16 %v6042, %v6041
        %s6044 = scalar_lea.vmem %s9, 1088
        %v6045 = vld [vmem:[%s6044] sm:$0xf]
        %v6046 = vld [vmem:[%s6044 + $0x4] sm:$0xf]
        %v6047 = vld [vmem:[%s6044 + $0x8] sm:$0xf]
        %v6048 = vld [vmem:[%s6044 + $0xc] sm:$0xf]
        %v6049 = vld [vmem:[%s6044 + $0x10] sm:$0xf]
        %v6050 = vld [vmem:[%s6044 + $0x14] sm:$0xf]
        %v6051 = vld [vmem:[%s6044 + $0x18] sm:$0xf]
        %v6052 = vld [vmem:[%s6044 + $0x1c] sm:$0xf]
        %v6053 = vld [vmem:[%s6044 + $0x20] sm:$0xf]
        %v6054 = vld [vmem:[%s6044 + $0x24] sm:$0xf]
        %v6055 = vld [vmem:[%s6044 + $0x28] sm:$0xf]
        %v6056 = vld [vmem:[%s6044 + $0x2c] sm:$0xf]
        %v6057 = vld [vmem:[%s6044 + $0x30] sm:$0xf]
        %v6058 = vld [vmem:[%s6044 + $0x34] sm:$0xf]
        %v6059 = vld [vmem:[%s6044 + $0x38] sm:$0xf]
        %v6060 = vld [vmem:[%s6044 + $0x3c] sm:$0xf]
        %v6077 = vunpack.c.l.b16 %v6045
        %v6078 = vunpack.c.l.b16 %v6046
        %v6079 = vunpack.c.l.b16 %v6047
        %v6080 = vunpack.c.l.b16 %v6048
        %v6081 = vunpack.c.l.b16 %v6049
        %v6082 = vunpack.c.l.b16 %v6050
        %v6083 = vunpack.c.l.b16 %v6051
        %v6084 = vunpack.c.l.b16 %v6052
        %v6085 = vunpack.c.l.b16 %v6053
        %v6086 = vunpack.c.l.b16 %v6054
        %v6087 = vunpack.c.l.b16 %v6055
        %v6088 = vunpack.c.l.b16 %v6056
        %v6089 = vunpack.c.l.b16 %v6057
        %v6090 = vunpack.c.l.b16 %v6058
        %v6091 = vunpack.c.l.b16 %v6059
        %v6092 = vunpack.c.l.b16 %v6060
        %v6093 = vpack.c.b16 %v6078, %v6077
        %v6094 = vpack.c.b16 %v6080, %v6079
        %v6095 = vpack.c.b16 %v6082, %v6081
        %v6096 = vpack.c.b16 %v6084, %v6083
        %v6097 = vpack.c.b16 %v6086, %v6085
        %v6098 = vpack.c.b16 %v6088, %v6087
        %v6099 = vpack.c.b16 %v6090, %v6089
        %v6100 = vpack.c.b16 %v6092, %v6091
        %6109 = vmatprep.subr.bf16.mxu0 0
        %6110 = vmatpush1.bf16.msra.mxu0 %v6093
        %6111 = vmatprep.subr.bf16.mxu0 0
        %6112 = vmatpush1.bf16.msra.mxu0 %v6094
        %6113 = vmatprep.subr.bf16.mxu0 0
        %6114 = vmatpush1.bf16.msra.mxu0 %v6095
        %6115 = vmatprep.subr.bf16.mxu0 0
        %6116 = vmatpush1.bf16.msra.mxu0 %v6096
        %6117 = vmatprep.subr.bf16.mxu0 0
        %6118 = vmatpush1.bf16.msra.mxu0 %v6097
        %6119 = vmatprep.subr.bf16.mxu0 0
        %6120 = vmatpush1.bf16.msra.mxu0 %v6098
        %6121 = vmatprep.subr.bf16.mxu0 0
        %6122 = vmatpush1.bf16.msra.mxu0 %v6099
        %6123 = vmatprep.subr.bf16.mxu0 0
        %6124 = vmatpush1.bf16.msra.mxu0 %v6100
        %6125 = vmatprep.subr.bf16.mxu0 0
        %6126 = vmatpush1.bf16.msra.mxu0 0
        %6127 = vmatprep.subr.bf16.mxu0 0
        %6128 = vmatpush1.bf16.msra.mxu0 0
        %6129 = vmatprep.subr.bf16.mxu0 0
        %6130 = vmatpush1.bf16.msra.mxu0 0
        %6131 = vmatprep.subr.bf16.mxu0 0
        %6132 = vmatpush1.bf16.msra.mxu0 0
        %6133 = vmatprep.subr.bf16.mxu0 0
        %6134 = vmatpush1.bf16.msra.mxu0 0
        %6135 = vmatprep.subr.bf16.mxu0 0
        %6136 = vmatpush1.bf16.msra.mxu0 0
        %6137 = vmatprep.subr.bf16.mxu0 0
        %6138 = vmatpush1.bf16.msra.mxu0 0
        %6139 = vmatprep.subr.bf16.mxu0 0
        %6140 = vmatpush1.bf16.msra.mxu0 0
        %6141 = vmatprep.mubr.bf16.mxu0 0
        %6142 = vmatmul.mubr.bf16.gmra.mrb[0].mxu0 %v6043
        %v6143 = vpop.f32.mrb[0].mxu0
        %v6144 = vadd.f32 0.0, %v6143
        %v6145 = vpop.f32.mrb[0].mxu0
        %v6146 = vpop.f32.mrb[0].mxu0
        %v6147 = vadd.f32 0.0, %v6146
        %v6148 = vpop.f32.mrb[0].mxu0
        %6149 = vdwg.mxu0
        %v6150 = vadd.f32 %v6039, %v6144
        %v6151 = vadd.f32 %v6040, %v6147
        %v6152 = vmax.f32 %v4155, %v4157
        %v6153 = vmax.f32 %v4156, %v4158
        %v6154 = vpack.c.bf16 %v6153, %v6152
        %s6155 = scalar_lea.vmem %s9, 1152
        %v6156 = vld [vmem:[%s6155] sm:$0xf]
        %v6157 = vld [vmem:[%s6155 + $0x4] sm:$0xf]
        %v6158 = vld [vmem:[%s6155 + $0x8] sm:$0xf]
        %v6159 = vld [vmem:[%s6155 + $0xc] sm:$0xf]
        %v6160 = vld [vmem:[%s6155 + $0x10] sm:$0xf]
        %v6161 = vld [vmem:[%s6155 + $0x14] sm:$0xf]
        %v6162 = vld [vmem:[%s6155 + $0x18] sm:$0xf]
        %v6163 = vld [vmem:[%s6155 + $0x1c] sm:$0xf]
        %v6164 = vld [vmem:[%s6155 + $0x20] sm:$0xf]
        %v6165 = vld [vmem:[%s6155 + $0x24] sm:$0xf]
        %v6166 = vld [vmem:[%s6155 + $0x28] sm:$0xf]
        %v6167 = vld [vmem:[%s6155 + $0x2c] sm:$0xf]
        %v6168 = vld [vmem:[%s6155 + $0x30] sm:$0xf]
        %v6169 = vld [vmem:[%s6155 + $0x34] sm:$0xf]
        %v6170 = vld [vmem:[%s6155 + $0x38] sm:$0xf]
        %v6171 = vld [vmem:[%s6155 + $0x3c] sm:$0xf]
        %v6188 = vunpack.c.l.b16 %v6156
        %v6189 = vunpack.c.l.b16 %v6157
        %v6190 = vunpack.c.l.b16 %v6158
        %v6191 = vunpack.c.l.b16 %v6159
        %v6192 = vunpack.c.l.b16 %v6160
        %v6193 = vunpack.c.l.b16 %v6161
        %v6194 = vunpack.c.l.b16 %v6162
        %v6195 = vunpack.c.l.b16 %v6163
        %v6196 = vunpack.c.l.b16 %v6164
        %v6197 = vunpack.c.l.b16 %v6165
        %v6198 = vunpack.c.l.b16 %v6166
        %v6199 = vunpack.c.l.b16 %v6167
        %v6200 = vunpack.c.l.b16 %v6168
        %v6201 = vunpack.c.l.b16 %v6169
        %v6202 = vunpack.c.l.b16 %v6170
        %v6203 = vunpack.c.l.b16 %v6171
        %v6204 = vpack.c.b16 %v6189, %v6188
        %v6205 = vpack.c.b16 %v6191, %v6190
        %v6206 = vpack.c.b16 %v6193, %v6192
        %v6207 = vpack.c.b16 %v6195, %v6194
        %v6208 = vpack.c.b16 %v6197, %v6196
        %v6209 = vpack.c.b16 %v6199, %v6198
        %v6210 = vpack.c.b16 %v6201, %v6200
        %v6211 = vpack.c.b16 %v6203, %v6202
        %6220 = vmatprep.subr.bf16.mxu0 0
        %6221 = vmatpush1.bf16.msra.mxu0 %v6204
        %6222 = vmatprep.subr.bf16.mxu0 0
        %6223 = vmatpush1.bf16.msra.mxu0 %v6205
        %6224 = vmatprep.subr.bf16.mxu0 0
        %6225 = vmatpush1.bf16.msra.mxu0 %v6206
        %6226 = vmatprep.subr.bf16.mxu0 0
        %6227 = vmatpush1.bf16.msra.mxu0 %v6207
        %6228 = vmatprep.subr.bf16.mxu0 0
        %6229 = vmatpush1.bf16.msra.mxu0 %v6208
        %6230 = vmatprep.subr.bf16.mxu0 0
        %6231 = vmatpush1.bf16.msra.mxu0 %v6209
        %6232 = vmatprep.subr.bf16.mxu0 0
        %6233 = vmatpush1.bf16.msra.mxu0 %v6210
        %6234 = vmatprep.subr.bf16.mxu0 0
        %6235 = vmatpush1.bf16.msra.mxu0 %v6211
        %6236 = vmatprep.subr.bf16.mxu0 0
        %6237 = vmatpush1.bf16.msra.mxu0 0
        %6238 = vmatprep.subr.bf16.mxu0 0
        %6239 = vmatpush1.bf16.msra.mxu0 0
        %6240 = vmatprep.subr.bf16.mxu0 0
        %6241 = vmatpush1.bf16.msra.mxu0 0
        %6242 = vmatprep.subr.bf16.mxu0 0
        %6243 = vmatpush1.bf16.msra.mxu0 0
        %6244 = vmatprep.subr.bf16.mxu0 0
        %6245 = vmatpush1.bf16.msra.mxu0 0
        %6246 = vmatprep.subr.bf16.mxu0 0
        %6247 = vmatpush1.bf16.msra.mxu0 0
        %6248 = vmatprep.subr.bf16.mxu0 0
        %6249 = vmatpush1.bf16.msra.mxu0 0
        %6250 = vmatprep.subr.bf16.mxu0 0
        %6251 = vmatpush1.bf16.msra.mxu0 0
        %6252 = vmatprep.mubr.bf16.mxu0 0
        %6253 = vmatmul.mubr.bf16.gmra.mrb[0].mxu0 %v6154
        %v6254 = vpop.f32.mrb[0].mxu0
        %v6255 = vadd.f32 0.0, %v6254
        %v6256 = vpop.f32.mrb[0].mxu0
        %v6257 = vpop.f32.mrb[0].mxu0
        %v6258 = vadd.f32 0.0, %v6257
        %v6259 = vpop.f32.mrb[0].mxu0
        %6260 = vdwg.mxu0
        %v6261 = vadd.f32 %v6150, %v6255
        %v6262 = vadd.f32 %v6151, %v6258
        %v6263 = vld [vmem:[%s10] sm:$0x1]
        %v6265 = vlaneseq
        %v6266 = vshrl.u32 %v6265, 7
        %v6267 = vsub.s32 0, %v6266
        %v6268 = vrot.slane %v6263, %v6267
        %v6270 = vadd.f32 %v6261, %v6268
        %v6271 = vadd.f32 %v6262, %v6268
        %v6272 = vmax.f32 %v6270, 0.0
        %v6273 = vmax.f32 %v6271, 0.0
        %v6274 = vpack.c.bf16 %v6273, %v6272
        %v6275 = vld [vmem:[%s11] sm:$0xf]
        %v6276 = vld [vmem:[%s11 + $0x4] sm:$0xf]
        %v6277 = vld [vmem:[%s11 + $0x8] sm:$0xf]
        %v6278 = vld [vmem:[%s11 + $0xc] sm:$0xf]
        %v6279 = vld [vmem:[%s11 + $0x10] sm:$0xf]
        %v6280 = vld [vmem:[%s11 + $0x14] sm:$0xf]
        %v6281 = vld [vmem:[%s11 + $0x18] sm:$0xf]
        %v6282 = vld [vmem:[%s11 + $0x1c] sm:$0xf]
        %v6283 = vld [vmem:[%s11 + $0x20] sm:$0xf]
        %v6284 = vld [vmem:[%s11 + $0x24] sm:$0xf]
        %v6285 = vld [vmem:[%s11 + $0x28] sm:$0xf]
        %v6286 = vld [vmem:[%s11 + $0x2c] sm:$0xf]
        %v6287 = vld [vmem:[%s11 + $0x30] sm:$0xf]
        %v6288 = vld [vmem:[%s11 + $0x34] sm:$0xf]
        %v6289 = vld [vmem:[%s11 + $0x38] sm:$0xf]
        %v6290 = vld [vmem:[%s11 + $0x3c] sm:$0xf]
        %v6291 = vld [vmem:[%s12] sm:$0x1]
        %v6293 = vlaneseq
        %v6294 = vshrl.u32 %v6293, 7
        %v6295 = vsub.s32 0, %v6294
        %v6296 = vrot.slane %v6291, %v6295
        %v6314 = vunpack.c.l.b16 %v6275
        %v6315 = vunpack.c.l.b16 %v6276
        %v6316 = vunpack.c.l.b16 %v6277
        %v6317 = vunpack.c.l.b16 %v6278
        %v6318 = vunpack.c.l.b16 %v6279
        %v6319 = vunpack.c.l.b16 %v6280
        %v6320 = vunpack.c.l.b16 %v6281
        %v6321 = vunpack.c.l.b16 %v6282
        %v6322 = vunpack.c.l.b16 %v6283
        %v6323 = vunpack.c.l.b16 %v6284
        %v6324 = vunpack.c.l.b16 %v6285
        %v6325 = vunpack.c.l.b16 %v6286
        %v6326 = vunpack.c.l.b16 %v6287
        %v6327 = vunpack.c.l.b16 %v6288
        %v6328 = vunpack.c.l.b16 %v6289
        %v6329 = vunpack.c.l.b16 %v6290
        %v6330 = vpack.c.b16 %v6315, %v6314
        %v6331 = vpack.c.b16 %v6317, %v6316
        %v6332 = vpack.c.b16 %v6319, %v6318
        %v6333 = vpack.c.b16 %v6321, %v6320
        %v6334 = vpack.c.b16 %v6323, %v6322
        %v6335 = vpack.c.b16 %v6325, %v6324
        %v6336 = vpack.c.b16 %v6327, %v6326
        %v6337 = vpack.c.b16 %v6329, %v6328
        %6346 = vmatprep.subr.bf16.mxu0 0
        %6347 = vmatpush1.bf16.msra.mxu0 %v6330
        %6348 = vmatprep.subr.bf16.mxu0 0
        %6349 = vmatpush1.bf16.msra.mxu0 %v6331
        %6350 = vmatprep.subr.bf16.mxu0 0
        %6351 = vmatpush1.bf16.msra.mxu0 %v6332
        %6352 = vmatprep.subr.bf16.mxu0 0
        %6353 = vmatpush1.bf16.msra.mxu0 %v6333
        %6354 = vmatprep.subr.bf16.mxu0 0
        %6355 = vmatpush1.bf16.msra.mxu0 %v6334
        %6356 = vmatprep.subr.bf16.mxu0 0
        %6357 = vmatpush1.bf16.msra.mxu0 %v6335
        %6358 = vmatprep.subr.bf16.mxu0 0
        %6359 = vmatpush1.bf16.msra.mxu0 %v6336
        %6360 = vmatprep.subr.bf16.mxu0 0
        %6361 = vmatpush1.bf16.msra.mxu0 %v6337
        %6362 = vmatprep.subr.bf16.mxu0 0
        %6363 = vmatpush1.bf16.msra.mxu0 0
        %6364 = vmatprep.subr.bf16.mxu0 0
        %6365 = vmatpush1.bf16.msra.mxu0 0
        %6366 = vmatprep.subr.bf16.mxu0 0
        %6367 = vmatpush1.bf16.msra.mxu0 0
        %6368 = vmatprep.subr.bf16.mxu0 0
        %6369 = vmatpush1.bf16.msra.mxu0 0
        %6370 = vmatprep.subr.bf16.mxu0 0
        %6371 = vmatpush1.bf16.msra.mxu0 0
        %6372 = vmatprep.subr.bf16.mxu0 0
        %6373 = vmatpush1.bf16.msra.mxu0 0
        %6374 = vmatprep.subr.bf16.mxu0 0
        %6375 = vmatpush1.bf16.msra.mxu0 0
        %6376 = vmatprep.subr.bf16.mxu0 0
        %6377 = vmatpush1.bf16.msra.mxu0 0
        %6378 = vmatprep.mubr.bf16.mxu0 0
        %6379 = vmatmul.mubr.bf16.gmra.mrb[0].mxu0 %v6274
        %v6380 = vpop.f32.mrb[0].mxu0
        %v6381 = vadd.f32 %v6296, %v6380
        %v6382 = vpop.f32.mrb[0].mxu0
        %v6383 = vpop.f32.mrb[0].mxu0
        %v6384 = vadd.f32 %v6296, %v6383
        %v6385 = vpop.f32.mrb[0].mxu0
        %6386 = vdwg.mxu0
        %v6387 = vxor.u32 %v6381, 2147483648
        %v6388 = vxor.u32 %v6384, 2147483648
        %v6389 = vmul.f32 %v6387, 1.442695
        %v6390 = vpow.pop %v6389
        %v6391 = vmul.f32 %v6388, 1.442695
        %v6392 = vpow.pop %v6391
        %v6393 = vadd.f32 %v6390, 1.0
        %v6394 = vadd.f32 %v6392, 1.0
        %v6395 = vrcp.pop %v6393
        %v6396 = vmul.f32 1.0, %v6395
        %v6397 = vrcp.pop %v6394
        %v6398 = vmul.f32 1.0, %v6397
        %6399 = vst [vmem:[%s799] sm:$0xff] %v6396
        %6400 = vst [vmem:[%s799 + $0x8] sm:$0xff] %v6398
        %s6401 = smul.u32 2, %s24
        %p6402 = scmp.lt.s32.totalorder %s6401, 3
        %s6403 = scalar_select %p6402, %s6401, 3
        %s6404 = smul.addr %s6403, 8
        %s6405 = scalar_lea.vmem %s13, %s6404
        // Predicated region
        $region114: #{cnn_timeseries_forward.1} parent=108 // pred_check
          %p6406 = pneg %p320
        $region115: #{cnn_timeseries_forward.1} parent=108 // pred_check_branch
          %6408 = sbr.rel (%p6406) target = $region117
        $region116: #{cnn_timeseries_forward.1} parent=108 // pred_region
          %s6409 = smul.u32 2, %s24
        $region117: #{cnn_timeseries_forward.1} parent=108 // pred_fallthru
          _
      $region109: #{cnn_timeseries_forward.1} parent=5 // pred_fallthru
        _
      %p6410 = scmp.le.s32.totalorder 2, %s19
      // Predicated region
      $region118: #{cnn_timeseries_forward.1} parent=5 // pred_check
        %p6411 = pneg %p6410
      $region119: #{cnn_timeseries_forward.1} parent=5 // pred_check_branch
        %6413 = sbr.rel (%p6411) target = $region121
      $region120: #{cnn_timeseries_forward.1} parent=5 // pred_region
        %s6414 = ssub.s32 %s19, 2
        // Predicated region
        $region122: #{cnn_timeseries_forward.1} parent=120 // pred_check
          %p6415 = pneg %p326
        $region123: #{cnn_timeseries_forward.1} parent=120 // pred_check_branch
          %6417 = sbr.rel (%p6415) target = $region125
        $region124: #{cnn_timeseries_forward.1} parent=120 // pred_region
          %s6418 = smul.u32 2, %s25
          %p6419 = scmp.lt.s32.totalorder %s6418, 3
          %s6420 = scalar_select %p6419, %s6418, 3
          %s6421 = smul.addr %s6420, 8
          %s6422 = scalar_lea.vmem %s13, %s6421
        $region125: #{cnn_timeseries_forward.1} parent=120 // pred_fallthru
          _
      $region121: #{cnn_timeseries_forward.1} parent=5 // pred_fallthru
        _
    $region6: #{cnn_timeseries_forward.1} parent=1 // loop_footer
      %s23 = sadd.s32 1, %s19
    $region7: #{cnn_timeseries_forward.1} parent=1 // loop_footer_branch
      %18 = sbr.rel target = $region3
    $region8: #{cnn_timeseries_forward.1} parent=1 // loop_exit
      _

</llo_original>
